<compile_context>
chip_gen: v7x
topology: tpu7x:2x2x1
jax: 0.10.0
libtpu: 0.0.40
codegen_flags: <defaults>
</compile_context>

<pallas_src>
from functools import partial

import jax
import jax.numpy as jnp
from jax import lax
from jax.experimental import pallas as pl
from jax.experimental.pallas import tpu as pltpu

# The PyTorch module references module-level IMG_HEIGHT / IMG_WIDTH globals.
IMG_HEIGHT = 16
IMG_WIDTH = 16
ENCODING_DIM = 32
BATCH = 2

C1, C2, C3 = 32, 64, 128
H, W = IMG_HEIGHT, IMG_WIDTH            # 16, 16
H2, W2 = H // 2, W // 2                 # 8, 8   (after pool1)
H3, W3 = H // 4, W // 4                 # 4, 4   (after pool2)
LIN = W * 3                             # 48  input lanes  (lane = w*3 + c)
LAN = W * C1                            # 512 activation lanes at every stage
EPAD = 128                              # fc output padded to one lane tile

# Per-batch row-block sizes.  Valid rows are placed so each stage's output
# lands exactly where the next stage's shifted-slab reads expect them:
#   s1 block (24): rows 6..23 = conv1 padded rows 0..17 (6,23 = zero H-halo)
#   conv1 valid output at block rows 6..21  ->  pool1 row q at block row q+3
#   s2 block (12): rows 3..10 = pooled rows 0..7, rows 2,11 = zero H-halo
#   conv2 valid output at block rows 2..9   ->  pool2 row q at block row q+1
#   s3 block (6):  rows 1..4  = pooled rows 0..3, rows 0,5  = zero H-halo
#   conv3 valid output at block rows 0..3   ->  fc reads rows 0..3 directly
B1R, B2R, B3R = 24, 12, 6


# ------------------------------ the kernel --------------------------------

def encoder_kernel(x_ref, t1_ref, b1_ref, t2_ref, b2_ref, t3_ref, b3_ref,
                   wf_ref, bf_ref, out_ref, s1, s2, s3):
    Bt = x_ref.shape[0]
    R1, R2, R3 = Bt * B1R, Bt * B2R, Bt * B3R
    f32, bf16 = jnp.float32, jnp.bfloat16

    # Stage the (wrapper-padded) input and zero the shift-overrun rows; done
    # every step so the "parallel" batch axis stays safe on multi-core parts.
    s1[0:R1, :] = x_ref[...].reshape(R1, LIN)
    s1[R1:R1 + 8, :] = jnp.zeros((8, LIN), bf16)
    s2[R2:R2 + 8, :] = jnp.zeros((8, LAN), bf16)
    s3[R3:R3 + 8, :] = jnp.zeros((8, LAN), bf16)

    # ---------------- conv1 (3 -> 32): 3 Toeplitz matmuls, K=48, N=512 ------
    acc = jnp.zeros((R1, LAN), f32)
    for kh in range(3):
        acc = acc + jnp.dot(s1[kh:kh + R1, :], t1_ref[kh],
                            preferred_element_type=f32)
    y = jnp.maximum(acc + b1_ref[...], 0.0)          # rows=(b,h), lane = w*32+c

    # ---------------- pool1 (2x2/2): paired-row max + lane-shift max --------
    v = y.reshape(R2, 2, LAN)
    hp = jnp.maximum(v[:, 0, :], v[:, 1, :])                      # H pairs
    hsh = jnp.concatenate([hp[:, C1:], hp[:, :C1]], axis=-1)      # lane w -> w+1
    hp = jnp.maximum(hp, hsh)                        # pooled value at even w blocks
    row = lax.broadcasted_iota(jnp.int32, (R2, 1), 0) % B2R
    keep = jnp.logical_and(row >= 3, row <= 10)      # data rows; halos -> 0
    s2[0:R2, :] = jnp.where(keep, hp, 0.0).astype(bf16)

    # ---------------- conv2 (32 -> 64): 3 Toeplitz matmuls, K=512, N=512 ----
    acc = jnp.zeros((R2, LAN), f32)
    for kh in range(3):
        acc = acc + jnp.dot(s2[kh:kh + R2, :], t2_ref[kh],
                            preferred_element_type=f32)
    y = jnp.maximum(acc + b2_ref[...], 0.0)          # lane = w2*64 + c

    # ---------------- pool2 ------------------------------------------------
    v = y.reshape(R3, 2, LAN)
    hp = jnp.maximum(v[:, 0, :], v[:, 1, :])
    hsh = jnp.concatenate([hp[:, C2:], hp[:, :C2]], axis=-1)
    hp = jnp.maximum(hp, hsh)
    row = lax.broadcasted_iota(jnp.int32, (R3, 1), 0) % B3R
    keep = jnp.logical_and(row >= 1, row <= 4)
    s3[0:R3, :] = jnp.where(keep, hp, 0.0).astype(bf16)

    # ---------------- conv3 (64 -> 128): 3 Toeplitz matmuls, K=512, N=512 ---
    acc = jnp.zeros((R3, LAN), f32)
    for kh in range(3):
        acc = acc + jnp.dot(s3[kh:kh + R3, :], t3_ref[kh],
                            preferred_element_type=f32)
    y3 = jnp.maximum(acc + b3_ref[...], 0.0)         # valid rows r%6 in 0..3

    # ---------------- fc: 4 dots over the valid rows only ------------------
    y3r = y3.reshape(Bt, B3R, LAN)
    accf = jnp.zeros((Bt, EPAD), f32)
    for h in range(H3):
        accf = accf + jnp.dot(y3r[:, h, :].astype(bf16), wf_ref[h],
                              preferred_element_type=f32)
    out_ref[...] = accf + bf_ref[...]


# ------------------------- one-time weight preparation ----------------------

def prepare_params(params):
    """Convert PyTorch-layout weights into the kernel's block-Toeplitz /
    lane-merged layouts.  Called once (hoisted out of the per-call path)."""
    w1, b1, w2, b2, w3, b3, wfc, bfc = params
    f32, bf16 = jnp.float32, jnp.bfloat16

    def toeplitz(w, win, wout, stride):
        # sel[kw, x, y] = 1  iff  input column x == stride*(y + kw - 1)
        kw = jnp.arange(3)[:, None, None]
        x = jnp.arange(win)[None, :, None]
        y = jnp.arange(wout)[None, None, :]
        sel = (x == stride * (y + kw - 1)).astype(f32)
        # t[kh, x, ci, y, co] = sum_kw sel[kw,x,y] * w[kh,kw,ci,co]
        t = jnp.einsum('kxy,hkio->hxiyo', sel, w)
        return t.reshape(3, win * w.shape[2], wout * w.shape[3]).astype(bf16)

    t1 = toeplitz(w1, W, W, 1)           # (3,  48, 512)
    t2 = toeplitz(w2, W, W2, 2)          # (3, 512, 512)  reads even-w lane blocks
    t3 = toeplitz(w3, W2, W3, 2)         # (3, 512, 512)

    b1b = jnp.tile(b1[None, :], (1, W)).astype(f32)      # (1, 512) lane = w*32+c
    b2b = jnp.tile(b2[None, :], (1, W2)).astype(f32)     # (1, 512)
    b3b = jnp.tile(b3[None, :], (1, W3)).astype(f32)     # (1, 512)

    # fc: PyTorch flattens (c, h, w); rearrange rows to (h, w*128 + c) and pad
    # the 32 outputs to a full 128-lane tile for a lane-dense store.
    wf = wfc.reshape(ENCODING_DIM, C3, H3, W3)
    wf = jnp.transpose(wf, (2, 3, 1, 0)).reshape(H3, W3 * C3, ENCODING_DIM)
    wf = jnp.pad(wf, ((0, 0), (0, 0), (0, EPAD - ENCODING_DIM))).astype(bf16)
    bfb = jnp.pad(bfc[None, :], ((0, 0), (0, EPAD - ENCODING_DIM))).astype(f32)
    return (t1, b1b, t2, b2b, t3, b3b, wf, bfb)


# ------------------------------ the wrapper --------------------------------

def _pick_batch_tile(n):
    if n <= 8:
        return n
    for bt in (32, 24, 16, 8):          # keep M sublane-aligned, >=2 grid steps
        if n % bt == 0:
            return bt
    return n


@partial(jax.jit, static_argnames=("batch_tile",))
def encoder_forward(x_nchw, kparams, batch_tile=None):
    t1, b1b, t2, b2b, t3, b3b, wf, bfb = kparams
    N = x_nchw.shape[0]
    Bt = _pick_batch_tile(N) if batch_tile is None else batch_tile
    assert N % Bt == 0

    # NCHW -> (N, H, W*3) with lane = w*3 + c, then pad rows so each batch
    # block is 24 rows: rows 7..22 = image rows 0..15, rows 6 / 23 = H-halos.
    x = jnp.transpose(x_nchw, (0, 2, 3, 1)).reshape(N, H, LIN)
    x = jnp.pad(x, ((0, 0), (7, 1), (0, 0))).astype(jnp.bfloat16)   # (N, 24, 48)

    def full(a):
        nd = a.ndim
        return pl.BlockSpec(a.shape, lambda n, _nd=nd: (0,) * _nd)

    out = pl.pallas_call(
        encoder_kernel,
        out_shape=jax.ShapeDtypeStruct((N, EPAD), jnp.float32),
        grid_spec=pltpu.PrefetchScalarGridSpec(
            num_scalar_prefetch=0,
            grid=(N // Bt,),
            in_specs=[
                pl.BlockSpec((Bt, B1R, LIN), lambda n: (n, 0, 0)),
                full(t1), full(b1b),
                full(t2), full(b2b),
                full(t3), full(b3b),
                full(wf), full(bfb),
            ],
            out_specs=pl.BlockSpec((Bt, EPAD), lambda n: (n, 0)),
            scratch_shapes=[
                pltpu.VMEM((Bt * B1R + 8, LIN), jnp.bfloat16),   # padded input
                pltpu.VMEM((Bt * B2R + 8, LAN), jnp.bfloat16),   # pooled1 + halo
                pltpu.VMEM((Bt * B3R + 8, LAN), jnp.bfloat16),   # pooled2 + halo
            ],
        ),
        compiler_params=pltpu.CompilerParams(
            dimension_semantics=("parallel",)),
    )(x, t1, b1b, t2, b2b, t3, b3b, wf, bfb)
    return out[:, :ENCODING_DIM]


# --------------------------- reference (pure JAX) ---------------------------

def reference_forward(x_nchw, params):
    w1, b1, w2, b2, w3, b3, wfc, bfc = params
    dn = ('NHWC', 'HWIO', 'NHWC')
    x = jnp.transpose(x_nchw, (0, 2, 3, 1)).astype(jnp.float32)

    def conv_relu(y, w, b):
        y = lax.conv_general_dilated(y, w, (1, 1), 'SAME',
                                     dimension_numbers=dn,
                                     precision=lax.Precision.HIGHEST)
        return jnp.maximum(y + b, 0.0)

    def pool(y):
        return lax.reduce_window(y, -jnp.inf, lax.max,
                                 (1, 2, 2, 1), (1, 2, 2, 1), 'VALID')

    y = pool(conv_relu(x, w1, b1))
    y = pool(conv_relu(y, w2, b2))
    y = conv_relu(y, w3, b3)
    # PyTorch flattens NCHW -> (N, C*H*W)
    y = jnp.transpose(y, (0, 3, 1, 2)).reshape(x.shape[0], -1)
    return jnp.dot(y, wfc.T, precision=lax.Precision.HIGHEST) + bfc


# --------------------------------- params ----------------------------------

def init_params(key):
    ks = jax.random.split(key, 8)
    s = 0.05
    w1 = jax.random.normal(ks[0], (3, 3, 3, C1), jnp.float32) * s
    b1 = jax.random.normal(ks[1], (C1,), jnp.float32) * s
    w2 = jax.random.normal(ks[2], (3, 3, C1, C2), jnp.float32) * s
    b2 = jax.random.normal(ks[3], (C2,), jnp.float32) * s
    w3 = jax.random.normal(ks[4], (3, 3, C2, C3), jnp.float32) * s
    b3 = jax.random.normal(ks[5], (C3,), jnp.float32) * s
    wfc = jax.random.normal(ks[6], (ENCODING_DIM, C3 * H3 * W3), jnp.float32) * s
    bfc = jax.random.normal(ks[7], (ENCODING_DIM,), jnp.float32) * s
    return (w1, b1, w2, b2, w3, b3, wfc, bfc)


if __name__ == "__main__":
    key = jax.random.PRNGKey(0)
    kx, kp = jax.random.split(key)
    # PyTorch-style NCHW input
    x = jax.random.normal(kx, (BATCH, 3, IMG_HEIGHT, IMG_WIDTH), jnp.float32)
    params = init_params(kp)
    kparams = prepare_params(params)        # one-time weight preparation

    out = encoder_forward(x, kparams)
    out = jax.block_until_ready(out)

    assert out.shape == (BATCH, ENCODING_DIM), out.shape
    assert bool(jnp.all(jnp.isfinite(out)))

    ref = reference_forward(x, params)
    if not jnp.allclose(out, ref, rtol=5e-2, atol=5e-2):
        raise AssertionError(
            f"mismatch vs reference, max abs diff="
            f"{float(jnp.max(jnp.abs(out - ref)))}")

    print("KERNEL_OK")
</pallas_src>

<mosaic_0001>
module attributes {stable_mosaic.version = 11 : i64} {
  func.func @encoder_kernel(%arg0: i32, %arg1: memref<2x24x48xbf16, #tpu.memory_space<vmem>>, %arg2: memref<3x48x512xbf16, #tpu.memory_space<vmem>>, %arg3: memref<1x512xf32, #tpu.memory_space<vmem>>, %arg4: memref<3x512x512xbf16, #tpu.memory_space<vmem>>, %arg5: memref<1x512xf32, #tpu.memory_space<vmem>>, %arg6: memref<3x512x512xbf16, #tpu.memory_space<vmem>>, %arg7: memref<1x512xf32, #tpu.memory_space<vmem>>, %arg8: memref<4x512x128xbf16, #tpu.memory_space<vmem>>, %arg9: memref<1x128xf32, #tpu.memory_space<vmem>>, %arg10: memref<2x128xf32, #tpu.memory_space<vmem>>, %arg11: memref<56x48xbf16, #tpu.memory_space<vmem>>, %arg12: memref<32x512xbf16, #tpu.memory_space<vmem>>, %arg13: memref<20x512xbf16, #tpu.memory_space<vmem>>) attributes {dimension_semantics = [#tpu.dimension_semantics<parallel>], iteration_bounds = array<i64: 1>, scalar_prefetch = 0 : i64, scratch_operands = 3 : i64, tpu.core_type = #tpu.core_type<tc>, window_params = [{transform_indices = @transform_0, window_bounds = array<i64: 2, 24, 48>}, {pipeline_mode = #tpu.pipeline_mode<synchronous>, transform_indices = @transform_1, window_bounds = array<i64: 3, 48, 512>}, {pipeline_mode = #tpu.pipeline_mode<synchronous>, transform_indices = @transform_2, window_bounds = array<i64: 1, 512>}, {pipeline_mode = #tpu.pipeline_mode<synchronous>, transform_indices = @transform_3, window_bounds = array<i64: 3, 512, 512>}, {pipeline_mode = #tpu.pipeline_mode<synchronous>, transform_indices = @transform_4, window_bounds = array<i64: 1, 512>}, {pipeline_mode = #tpu.pipeline_mode<synchronous>, transform_indices = @transform_5, window_bounds = array<i64: 3, 512, 512>}, {pipeline_mode = #tpu.pipeline_mode<synchronous>, transform_indices = @transform_6, window_bounds = array<i64: 1, 512>}, {pipeline_mode = #tpu.pipeline_mode<synchronous>, transform_indices = @transform_7, window_bounds = array<i64: 4, 512, 128>}, {pipeline_mode = #tpu.pipeline_mode<synchronous>, transform_indices = @transform_8, window_bounds = array<i64: 1, 128>}, {transform_indices = @transform_9, window_bounds = array<i64: 2, 128>}]} {
    %c0 = arith.constant 0 : index
    %c0_0 = arith.constant 0 : index
    %c0_1 = arith.constant 0 : index
    %0 = vector.load %arg1[%c0, %c0_0, %c0_1] : memref<2x24x48xbf16, #tpu.memory_space<vmem>>, vector<2x24x48xbf16>
    %1 = vector.shape_cast %0 : vector<2x24x48xbf16> to vector<48x48xbf16>
    %c0_2 = arith.constant 0 : index
    %c0_3 = arith.constant 0 : index
    %2 = vector.load %arg11[%c0_2, %c0_3] : memref<56x48xbf16, #tpu.memory_space<vmem>>, vector<48x48xbf16>
    tpu.vector_store %arg11[%c0_2, %c0_3], %1 {strides = array<i32>} : memref<56x48xbf16, #tpu.memory_space<vmem>>, vector<48x48xbf16>,
    %cst = arith.constant 0.000000e+00 : bf16
    %3 = vector.broadcast %cst : bf16 to vector<8x48xbf16>
    %c48 = arith.constant 48 : index
    %c0_4 = arith.constant 0 : index
    %4 = vector.load %arg11[%c48, %c0_4] : memref<56x48xbf16, #tpu.memory_space<vmem>>, vector<8x48xbf16>
    tpu.vector_store %arg11[%c48, %c0_4], %3 {strides = array<i32>} : memref<56x48xbf16, #tpu.memory_space<vmem>>, vector<8x48xbf16>,
    %cst_5 = arith.constant 0.000000e+00 : bf16
    %5 = vector.broadcast %cst_5 : bf16 to vector<8x512xbf16>
    %c24 = arith.constant 24 : index
    %c0_6 = arith.constant 0 : index
    %6 = vector.load %arg12[%c24, %c0_6] : memref<32x512xbf16, #tpu.memory_space<vmem>>, vector<8x512xbf16>
    tpu.vector_store %arg12[%c24, %c0_6], %5 {strides = array<i32>} : memref<32x512xbf16, #tpu.memory_space<vmem>>, vector<8x512xbf16>,
    %cst_7 = arith.constant 0.000000e+00 : bf16
    %7 = vector.broadcast %cst_7 : bf16 to vector<8x512xbf16>
    %c12 = arith.constant 12 : index
    %c0_8 = arith.constant 0 : index
    %8 = vector.load %arg13[%c12, %c0_8] : memref<20x512xbf16, #tpu.memory_space<vmem>>, vector<8x512xbf16>
    tpu.vector_store %arg13[%c12, %c0_8], %7 {strides = array<i32>} : memref<20x512xbf16, #tpu.memory_space<vmem>>, vector<8x512xbf16>,
    %cst_9 = arith.constant 0.000000e+00 : f32
    %9 = vector.broadcast %cst_9 : f32 to vector<48x512xf32>
    %c0_10 = arith.constant 0 : index
    %c0_11 = arith.constant 0 : index
    %10 = vector.load %arg11[%c0_10, %c0_11] : memref<56x48xbf16, #tpu.memory_space<vmem>>, vector<48x48xbf16>
    %c0_12 = arith.constant 0 : index
    %c0_13 = arith.constant 0 : index
    %c0_14 = arith.constant 0 : index
    %11 = vector.load %arg2[%c0_12, %c0_13, %c0_14] : memref<3x48x512xbf16, #tpu.memory_space<vmem>>, vector<1x48x512xbf16>
    %12 = vector.shape_cast %11 : vector<1x48x512xbf16> to vector<48x512xbf16>
    %cst_15 = arith.constant dense<0.000000e+00> : vector<48x512xf32>
    %13 = tpu.matmul %10, %12, %cst_15 {dimension_numbers = #tpu.dot_dimension_numbers<[1], [0], [0], [1], [0, 0, 1, 1], [], []>} : vector<48x48xbf16>, vector<48x512xbf16>, vector<48x512xf32> -> vector<48x512xf32>
    %14 = arith.addf %9, %13 : vector<48x512xf32>
    %c1 = arith.constant 1 : index
    %c0_16 = arith.constant 0 : index
    %15 = vector.load %arg11[%c1, %c0_16] : memref<56x48xbf16, #tpu.memory_space<vmem>>, vector<48x48xbf16>
    %c1_17 = arith.constant 1 : index
    %c0_18 = arith.constant 0 : index
    %c0_19 = arith.constant 0 : index
    %16 = vector.load %arg2[%c1_17, %c0_18, %c0_19] : memref<3x48x512xbf16, #tpu.memory_space<vmem>>, vector<1x48x512xbf16>
    %17 = vector.shape_cast %16 : vector<1x48x512xbf16> to vector<48x512xbf16>
    %cst_20 = arith.constant dense<0.000000e+00> : vector<48x512xf32>
    %18 = tpu.matmul %15, %17, %cst_20 {dimension_numbers = #tpu.dot_dimension_numbers<[1], [0], [0], [1], [0, 0, 1, 1], [], []>} : vector<48x48xbf16>, vector<48x512xbf16>, vector<48x512xf32> -> vector<48x512xf32>
    %19 = arith.addf %14, %18 : vector<48x512xf32>
    %c2 = arith.constant 2 : index
    %c0_21 = arith.constant 0 : index
    %20 = vector.load %arg11[%c2, %c0_21] : memref<56x48xbf16, #tpu.memory_space<vmem>>, vector<48x48xbf16>
    %c2_22 = arith.constant 2 : index
    %c0_23 = arith.constant 0 : index
    %c0_24 = arith.constant 0 : index
    %21 = vector.load %arg2[%c2_22, %c0_23, %c0_24] : memref<3x48x512xbf16, #tpu.memory_space<vmem>>, vector<1x48x512xbf16>
    %22 = vector.shape_cast %21 : vector<1x48x512xbf16> to vector<48x512xbf16>
    %cst_25 = arith.constant dense<0.000000e+00> : vector<48x512xf32>
    %23 = tpu.matmul %20, %22, %cst_25 {dimension_numbers = #tpu.dot_dimension_numbers<[1], [0], [0], [1], [0, 0, 1, 1], [], []>} : vector<48x48xbf16>, vector<48x512xbf16>, vector<48x512xf32> -> vector<48x512xf32>
    %24 = arith.addf %19, %23 : vector<48x512xf32>
    %c0_26 = arith.constant 0 : index
    %c0_27 = arith.constant 0 : index
    %25 = vector.load %arg3[%c0_26, %c0_27] : memref<1x512xf32, #tpu.memory_space<vmem>>, vector<1x512xf32>
    %26 = vector.broadcast %25 : vector<1x512xf32> to vector<48x512xf32>
    %27 = arith.addf %24, %26 : vector<48x512xf32>
    %cst_28 = arith.constant 0.000000e+00 : f32
    %28 = vector.broadcast %cst_28 : f32 to vector<48x512xf32>
    %29 = arith.maximumf %27, %28 : vector<48x512xf32>
    %30 = vector.shape_cast %29 : vector<48x512xf32> to vector<24x2x512xf32>
    %31 = vector.extract_strided_slice %30 {offsets = [0, 0, 0], sizes = [24, 1, 512], strides = [1, 1, 1]} : vector<24x2x512xf32> to vector<24x1x512xf32>
    %32 = vector.shape_cast %31 : vector<24x1x512xf32> to vector<24x512xf32>
    %33 = vector.extract_strided_slice %30 {offsets = [0, 1, 0], sizes = [24, 1, 512], strides = [1, 1, 1]} : vector<24x2x512xf32> to vector<24x1x512xf32>
    %34 = vector.shape_cast %33 : vector<24x1x512xf32> to vector<24x512xf32>
    %35 = arith.maximumf %32, %34 : vector<24x512xf32>
    %36 = vector.extract_strided_slice %35 {offsets = [0, 32], sizes = [24, 480], strides = [1, 1]} : vector<24x512xf32> to vector<24x480xf32>
    %37 = vector.extract_strided_slice %35 {offsets = [0, 0], sizes = [24, 32], strides = [1, 1]} : vector<24x512xf32> to vector<24x32xf32>
    %38 = tpu.concatenate %36, %37 in 1 : vector<24x480xf32>, vector<24x32xf32> -> vector<24x512xf32>
    %39 = arith.maximumf %35, %38 : vector<24x512xf32>
    %40 = tpu.iota {dimensions = array<i32: 0>} : vector<24x1xi32>
    %c12_i32 = arith.constant 12 : i32
    %c0_i32 = arith.constant 0 : i32
    %41 = arith.cmpi eq, %c12_i32, %c0_i32 : i32
    %c1_i32 = arith.constant 1 : i32
    %42 = arith.select %41, %c1_i32, %c12_i32 : i32
    %43 = vector.broadcast %42 : i32 to vector<24x1xi32>
    %44 = arith.remsi %40, %43 : vector<24x1xi32>
    %c0_i32_29 = arith.constant 0 : i32
    %45 = vector.broadcast %c0_i32_29 : i32 to vector<24x1xi32>
    %46 = arith.cmpi ne, %44, %45 : vector<24x1xi32>
    %c0_i32_30 = arith.constant 0 : i32
    %47 = vector.broadcast %c0_i32_30 : i32 to vector<24x1xi32>
    %48 = arith.cmpi slt, %44, %47 : vector<24x1xi32>
    %c0_i32_31 = arith.constant 0 : i32
    %49 = arith.cmpi slt, %42, %c0_i32_31 : i32
    %50 = vector.broadcast %49 : i1 to vector<24x1xi1>
    %51 = vector.broadcast %50 : vector<24x1xi1> to vector<24x1xi1>
    %52 = arith.xori %48, %51 : vector<24x1xi1>
    %53 = arith.andi %52, %46 : vector<24x1xi1>
    %54 = vector.broadcast %42 : i32 to vector<24x1xi32>
    %55 = arith.addi %44, %54 : vector<24x1xi32>
    %56 = arith.select %53, %55, %44 : vector<24x1xi1>, vector<24x1xi32>
    %c3_i32 = arith.constant 3 : i32
    %57 = vector.broadcast %c3_i32 : i32 to vector<24x1xi32>
    %58 = arith.cmpi sge, %56, %57 : vector<24x1xi32>
    %c10_i32 = arith.constant 10 : i32
    %59 = vector.broadcast %c10_i32 : i32 to vector<24x1xi32>
    %60 = arith.cmpi sle, %56, %59 : vector<24x1xi32>
    %61 = arith.andi %58, %60 : vector<24x1xi1>
    %cst_32 = arith.constant 0.000000e+00 : f32
    %62 = vector.shape_cast %61 : vector<24x1xi1> to vector<24x1xi1>
    %63 = vector.broadcast %62 : vector<24x1xi1> to vector<24x512xi1>
    %64 = vector.broadcast %cst_32 : f32 to vector<24x512xf32>
    %65 = arith.select %63, %39, %64 : vector<24x512xi1>, vector<24x512xf32>
    %66 = arith.truncf %65 : vector<24x512xf32> to vector<24x512xbf16>
    %c0_33 = arith.constant 0 : index
    %c0_34 = arith.constant 0 : index
    %67 = vector.load %arg12[%c0_33, %c0_34] : memref<32x512xbf16, #tpu.memory_space<vmem>>, vector<24x512xbf16>
    tpu.vector_store %arg12[%c0_33, %c0_34], %66 {strides = array<i32>} : memref<32x512xbf16, #tpu.memory_space<vmem>>, vector<24x512xbf16>,
    %cst_35 = arith.constant 0.000000e+00 : f32
    %68 = vector.broadcast %cst_35 : f32 to vector<24x512xf32>
    %c0_36 = arith.constant 0 : index
    %c0_37 = arith.constant 0 : index
    %69 = vector.load %arg12[%c0_36, %c0_37] : memref<32x512xbf16, #tpu.memory_space<vmem>>, vector<24x512xbf16>
    %c0_38 = arith.constant 0 : index
    %c0_39 = arith.constant 0 : index
    %c0_40 = arith.constant 0 : index
    %70 = vector.load %arg4[%c0_38, %c0_39, %c0_40] : memref<3x512x512xbf16, #tpu.memory_space<vmem>>, vector<1x512x512xbf16>
    %71 = vector.shape_cast %70 : vector<1x512x512xbf16> to vector<512x512xbf16>
    %cst_41 = arith.constant dense<0.000000e+00> : vector<24x512xf32>
    %72 = tpu.matmul %69, %71, %cst_41 {dimension_numbers = #tpu.dot_dimension_numbers<[1], [0], [0], [1], [0, 0, 1, 1], [], []>} : vector<24x512xbf16>, vector<512x512xbf16>, vector<24x512xf32> -> vector<24x512xf32>
    %73 = arith.addf %68, %72 : vector<24x512xf32>
    %c1_42 = arith.constant 1 : index
    %c0_43 = arith.constant 0 : index
    %74 = vector.load %arg12[%c1_42, %c0_43] : memref<32x512xbf16, #tpu.memory_space<vmem>>, vector<24x512xbf16>
    %c1_44 = arith.constant 1 : index
    %c0_45 = arith.constant 0 : index
    %c0_46 = arith.constant 0 : index
    %75 = vector.load %arg4[%c1_44, %c0_45, %c0_46] : memref<3x512x512xbf16, #tpu.memory_space<vmem>>, vector<1x512x512xbf16>
    %76 = vector.shape_cast %75 : vector<1x512x512xbf16> to vector<512x512xbf16>
    %cst_47 = arith.constant dense<0.000000e+00> : vector<24x512xf32>
    %77 = tpu.matmul %74, %76, %cst_47 {dimension_numbers = #tpu.dot_dimension_numbers<[1], [0], [0], [1], [0, 0, 1, 1], [], []>} : vector<24x512xbf16>, vector<512x512xbf16>, vector<24x512xf32> -> vector<24x512xf32>
    %78 = arith.addf %73, %77 : vector<24x512xf32>
    %c2_48 = arith.constant 2 : index
    %c0_49 = arith.constant 0 : index
    %79 = vector.load %arg12[%c2_48, %c0_49] : memref<32x512xbf16, #tpu.memory_space<vmem>>, vector<24x512xbf16>
    %c2_50 = arith.constant 2 : index
    %c0_51 = arith.constant 0 : index
    %c0_52 = arith.constant 0 : index
    %80 = vector.load %arg4[%c2_50, %c0_51, %c0_52] : memref<3x512x512xbf16, #tpu.memory_space<vmem>>, vector<1x512x512xbf16>
    %81 = vector.shape_cast %80 : vector<1x512x512xbf16> to vector<512x512xbf16>
    %cst_53 = arith.constant dense<0.000000e+00> : vector<24x512xf32>
    %82 = tpu.matmul %79, %81, %cst_53 {dimension_numbers = #tpu.dot_dimension_numbers<[1], [0], [0], [1], [0, 0, 1, 1], [], []>} : vector<24x512xbf16>, vector<512x512xbf16>, vector<24x512xf32> -> vector<24x512xf32>
    %83 = arith.addf %78, %82 : vector<24x512xf32>
    %c0_54 = arith.constant 0 : index
    %c0_55 = arith.constant 0 : index
    %84 = vector.load %arg5[%c0_54, %c0_55] : memref<1x512xf32, #tpu.memory_space<vmem>>, vector<1x512xf32>
    %85 = vector.broadcast %84 : vector<1x512xf32> to vector<24x512xf32>
    %86 = arith.addf %83, %85 : vector<24x512xf32>
    %cst_56 = arith.constant 0.000000e+00 : f32
    %87 = vector.broadcast %cst_56 : f32 to vector<24x512xf32>
    %88 = arith.maximumf %86, %87 : vector<24x512xf32>
    %89 = vector.shape_cast %88 : vector<24x512xf32> to vector<12x2x512xf32>
    %90 = vector.extract_strided_slice %89 {offsets = [0, 0, 0], sizes = [12, 1, 512], strides = [1, 1, 1]} : vector<12x2x512xf32> to vector<12x1x512xf32>
    %91 = vector.shape_cast %90 : vector<12x1x512xf32> to vector<12x512xf32>
    %92 = vector.extract_strided_slice %89 {offsets = [0, 1, 0], sizes = [12, 1, 512], strides = [1, 1, 1]} : vector<12x2x512xf32> to vector<12x1x512xf32>
    %93 = vector.shape_cast %92 : vector<12x1x512xf32> to vector<12x512xf32>
    %94 = arith.maximumf %91, %93 : vector<12x512xf32>
    %95 = vector.extract_strided_slice %94 {offsets = [0, 64], sizes = [12, 448], strides = [1, 1]} : vector<12x512xf32> to vector<12x448xf32>
    %96 = vector.extract_strided_slice %94 {offsets = [0, 0], sizes = [12, 64], strides = [1, 1]} : vector<12x512xf32> to vector<12x64xf32>
    %97 = tpu.concatenate %95, %96 in 1 : vector<12x448xf32>, vector<12x64xf32> -> vector<12x512xf32>
    %98 = arith.maximumf %94, %97 : vector<12x512xf32>
    %99 = tpu.iota {dimensions = array<i32: 0>} : vector<12x1xi32>
    %c6_i32 = arith.constant 6 : i32
    %c0_i32_57 = arith.constant 0 : i32
    %100 = arith.cmpi eq, %c6_i32, %c0_i32_57 : i32
    %c1_i32_58 = arith.constant 1 : i32
    %101 = arith.select %100, %c1_i32_58, %c6_i32 : i32
    %102 = vector.broadcast %101 : i32 to vector<12x1xi32>
    %103 = arith.remsi %99, %102 : vector<12x1xi32>
    %c0_i32_59 = arith.constant 0 : i32
    %104 = vector.broadcast %c0_i32_59 : i32 to vector<12x1xi32>
    %105 = arith.cmpi ne, %103, %104 : vector<12x1xi32>
    %c0_i32_60 = arith.constant 0 : i32
    %106 = vector.broadcast %c0_i32_60 : i32 to vector<12x1xi32>
    %107 = arith.cmpi slt, %103, %106 : vector<12x1xi32>
    %c0_i32_61 = arith.constant 0 : i32
    %108 = arith.cmpi slt, %101, %c0_i32_61 : i32
    %109 = vector.broadcast %108 : i1 to vector<12x1xi1>
    %110 = vector.broadcast %109 : vector<12x1xi1> to vector<12x1xi1>
    %111 = arith.xori %107, %110 : vector<12x1xi1>
    %112 = arith.andi %111, %105 : vector<12x1xi1>
    %113 = vector.broadcast %101 : i32 to vector<12x1xi32>
    %114 = arith.addi %103, %113 : vector<12x1xi32>
    %115 = arith.select %112, %114, %103 : vector<12x1xi1>, vector<12x1xi32>
    %c1_i32_62 = arith.constant 1 : i32
    %116 = vector.broadcast %c1_i32_62 : i32 to vector<12x1xi32>
    %117 = arith.cmpi sge, %115, %116 : vector<12x1xi32>
    %c4_i32 = arith.constant 4 : i32
    %118 = vector.broadcast %c4_i32 : i32 to vector<12x1xi32>
    %119 = arith.cmpi sle, %115, %118 : vector<12x1xi32>
    %120 = arith.andi %117, %119 : vector<12x1xi1>
    %cst_63 = arith.constant 0.000000e+00 : f32
    %121 = vector.shape_cast %120 : vector<12x1xi1> to vector<12x1xi1>
    %122 = vector.broadcast %121 : vector<12x1xi1> to vector<12x512xi1>
    %123 = vector.broadcast %cst_63 : f32 to vector<12x512xf32>
    %124 = arith.select %122, %98, %123 : vector<12x512xi1>, vector<12x512xf32>
    %125 = arith.truncf %124 : vector<12x512xf32> to vector<12x512xbf16>
    %c0_64 = arith.constant 0 : index
    %c0_65 = arith.constant 0 : index
    %126 = vector.load %arg13[%c0_64, %c0_65] : memref<20x512xbf16, #tpu.memory_space<vmem>>, vector<12x512xbf16>
    tpu.vector_store %arg13[%c0_64, %c0_65], %125 {strides = array<i32>} : memref<20x512xbf16, #tpu.memory_space<vmem>>, vector<12x512xbf16>,
    %cst_66 = arith.constant 0.000000e+00 : f32
    %127 = vector.broadcast %cst_66 : f32 to vector<12x512xf32>
    %c0_67 = arith.constant 0 : index
    %c0_68 = arith.constant 0 : index
    %128 = vector.load %arg13[%c0_67, %c0_68] : memref<20x512xbf16, #tpu.memory_space<vmem>>, vector<12x512xbf16>
    %c0_69 = arith.constant 0 : index
    %c0_70 = arith.constant 0 : index
    %c0_71 = arith.constant 0 : index
    %129 = vector.load %arg6[%c0_69, %c0_70, %c0_71] : memref<3x512x512xbf16, #tpu.memory_space<vmem>>, vector<1x512x512xbf16>
    %130 = vector.shape_cast %129 : vector<1x512x512xbf16> to vector<512x512xbf16>
    %cst_72 = arith.constant dense<0.000000e+00> : vector<12x512xf32>
    %131 = tpu.matmul %128, %130, %cst_72 {dimension_numbers = #tpu.dot_dimension_numbers<[1], [0], [0], [1], [0, 0, 1, 1], [], []>} : vector<12x512xbf16>, vector<512x512xbf16>, vector<12x512xf32> -> vector<12x512xf32>
    %132 = arith.addf %127, %131 : vector<12x512xf32>
    %c1_73 = arith.constant 1 : index
    %c0_74 = arith.constant 0 : index
    %133 = vector.load %arg13[%c1_73, %c0_74] : memref<20x512xbf16, #tpu.memory_space<vmem>>, vector<12x512xbf16>
    %c1_75 = arith.constant 1 : index
    %c0_76 = arith.constant 0 : index
    %c0_77 = arith.constant 0 : index
    %134 = vector.load %arg6[%c1_75, %c0_76, %c0_77] : memref<3x512x512xbf16, #tpu.memory_space<vmem>>, vector<1x512x512xbf16>
    %135 = vector.shape_cast %134 : vector<1x512x512xbf16> to vector<512x512xbf16>
    %cst_78 = arith.constant dense<0.000000e+00> : vector<12x512xf32>
    %136 = tpu.matmul %133, %135, %cst_78 {dimension_numbers = #tpu.dot_dimension_numbers<[1], [0], [0], [1], [0, 0, 1, 1], [], []>} : vector<12x512xbf16>, vector<512x512xbf16>, vector<12x512xf32> -> vector<12x512xf32>
    %137 = arith.addf %132, %136 : vector<12x512xf32>
    %c2_79 = arith.constant 2 : index
    %c0_80 = arith.constant 0 : index
    %138 = vector.load %arg13[%c2_79, %c0_80] : memref<20x512xbf16, #tpu.memory_space<vmem>>, vector<12x512xbf16>
    %c2_81 = arith.constant 2 : index
    %c0_82 = arith.constant 0 : index
    %c0_83 = arith.constant 0 : index
    %139 = vector.load %arg6[%c2_81, %c0_82, %c0_83] : memref<3x512x512xbf16, #tpu.memory_space<vmem>>, vector<1x512x512xbf16>
    %140 = vector.shape_cast %139 : vector<1x512x512xbf16> to vector<512x512xbf16>
    %cst_84 = arith.constant dense<0.000000e+00> : vector<12x512xf32>
    %141 = tpu.matmul %138, %140, %cst_84 {dimension_numbers = #tpu.dot_dimension_numbers<[1], [0], [0], [1], [0, 0, 1, 1], [], []>} : vector<12x512xbf16>, vector<512x512xbf16>, vector<12x512xf32> -> vector<12x512xf32>
    %142 = arith.addf %137, %141 : vector<12x512xf32>
    %c0_85 = arith.constant 0 : index
    %c0_86 = arith.constant 0 : index
    %143 = vector.load %arg7[%c0_85, %c0_86] : memref<1x512xf32, #tpu.memory_space<vmem>>, vector<1x512xf32>
    %144 = vector.broadcast %143 : vector<1x512xf32> to vector<12x512xf32>
    %145 = arith.addf %142, %144 : vector<12x512xf32>
    %cst_87 = arith.constant 0.000000e+00 : f32
    %146 = vector.broadcast %cst_87 : f32 to vector<12x512xf32>
    %147 = arith.maximumf %145, %146 : vector<12x512xf32>
    %148 = vector.shape_cast %147 : vector<12x512xf32> to vector<2x6x512xf32>
    %cst_88 = arith.constant 0.000000e+00 : f32
    %149 = vector.broadcast %cst_88 : f32 to vector<2x128xf32>
    %150 = vector.extract_strided_slice %148 {offsets = [0, 0, 0], sizes = [2, 1, 512], strides = [1, 1, 1]} : vector<2x6x512xf32> to vector<2x1x512xf32>
    %151 = vector.shape_cast %150 : vector<2x1x512xf32> to vector<2x512xf32>
    %152 = arith.truncf %151 : vector<2x512xf32> to vector<2x512xbf16>
    %c0_89 = arith.constant 0 : index
    %c0_90 = arith.constant 0 : index
    %c0_91 = arith.constant 0 : index
    %153 = vector.load %arg8[%c0_89, %c0_90, %c0_91] : memref<4x512x128xbf16, #tpu.memory_space<vmem>>, vector<1x512x128xbf16>
    %154 = vector.shape_cast %153 : vector<1x512x128xbf16> to vector<512x128xbf16>
    %cst_92 = arith.constant dense<0.000000e+00> : vector<2x128xf32>
    %155 = tpu.matmul %152, %154, %cst_92 {dimension_numbers = #tpu.dot_dimension_numbers<[1], [0], [0], [1], [0, 0, 1, 1], [], []>} : vector<2x512xbf16>, vector<512x128xbf16>, vector<2x128xf32> -> vector<2x128xf32>
    %156 = arith.addf %149, %155 : vector<2x128xf32>
    %157 = vector.extract_strided_slice %148 {offsets = [0, 1, 0], sizes = [2, 1, 512], strides = [1, 1, 1]} : vector<2x6x512xf32> to vector<2x1x512xf32>
    %158 = vector.shape_cast %157 : vector<2x1x512xf32> to vector<2x512xf32>
    %159 = arith.truncf %158 : vector<2x512xf32> to vector<2x512xbf16>
    %c1_93 = arith.constant 1 : index
    %c0_94 = arith.constant 0 : index
    %c0_95 = arith.constant 0 : index
    %160 = vector.load %arg8[%c1_93, %c0_94, %c0_95] : memref<4x512x128xbf16, #tpu.memory_space<vmem>>, vector<1x512x128xbf16>
    %161 = vector.shape_cast %160 : vector<1x512x128xbf16> to vector<512x128xbf16>
    %cst_96 = arith.constant dense<0.000000e+00> : vector<2x128xf32>
    %162 = tpu.matmul %159, %161, %cst_96 {dimension_numbers = #tpu.dot_dimension_numbers<[1], [0], [0], [1], [0, 0, 1, 1], [], []>} : vector<2x512xbf16>, vector<512x128xbf16>, vector<2x128xf32> -> vector<2x128xf32>
    %163 = arith.addf %156, %162 : vector<2x128xf32>
    %164 = vector.extract_strided_slice %148 {offsets = [0, 2, 0], sizes = [2, 1, 512], strides = [1, 1, 1]} : vector<2x6x512xf32> to vector<2x1x512xf32>
    %165 = vector.shape_cast %164 : vector<2x1x512xf32> to vector<2x512xf32>
    %166 = arith.truncf %165 : vector<2x512xf32> to vector<2x512xbf16>
    %c2_97 = arith.constant 2 : index
    %c0_98 = arith.constant 0 : index
    %c0_99 = arith.constant 0 : index
    %167 = vector.load %arg8[%c2_97, %c0_98, %c0_99] : memref<4x512x128xbf16, #tpu.memory_space<vmem>>, vector<1x512x128xbf16>
    %168 = vector.shape_cast %167 : vector<1x512x128xbf16> to vector<512x128xbf16>
    %cst_100 = arith.constant dense<0.000000e+00> : vector<2x128xf32>
    %169 = tpu.matmul %166, %168, %cst_100 {dimension_numbers = #tpu.dot_dimension_numbers<[1], [0], [0], [1], [0, 0, 1, 1], [], []>} : vector<2x512xbf16>, vector<512x128xbf16>, vector<2x128xf32> -> vector<2x128xf32>
    %170 = arith.addf %163, %169 : vector<2x128xf32>
    %171 = vector.extract_strided_slice %148 {offsets = [0, 3, 0], sizes = [2, 1, 512], strides = [1, 1, 1]} : vector<2x6x512xf32> to vector<2x1x512xf32>
    %172 = vector.shape_cast %171 : vector<2x1x512xf32> to vector<2x512xf32>
    %173 = arith.truncf %172 : vector<2x512xf32> to vector<2x512xbf16>
    %c3 = arith.constant 3 : index
    %c0_101 = arith.constant 0 : index
    %c0_102 = arith.constant 0 : index
    %174 = vector.load %arg8[%c3, %c0_101, %c0_102] : memref<4x512x128xbf16, #tpu.memory_space<vmem>>, vector<1x512x128xbf16>
    %175 = vector.shape_cast %174 : vector<1x512x128xbf16> to vector<512x128xbf16>
    %cst_103 = arith.constant dense<0.000000e+00> : vector<2x128xf32>
    %176 = tpu.matmul %173, %175, %cst_103 {dimension_numbers = #tpu.dot_dimension_numbers<[1], [0], [0], [1], [0, 0, 1, 1], [], []>} : vector<2x512xbf16>, vector<512x128xbf16>, vector<2x128xf32> -> vector<2x128xf32>
    %177 = arith.addf %170, %176 : vector<2x128xf32>
    %c0_104 = arith.constant 0 : index
    %c0_105 = arith.constant 0 : index
    %178 = vector.load %arg9[%c0_104, %c0_105] : memref<1x128xf32, #tpu.memory_space<vmem>>, vector<1x128xf32>
    %179 = vector.broadcast %178 : vector<1x128xf32> to vector<2x128xf32>
    %180 = arith.addf %177, %179 : vector<2x128xf32>
    %c0_106 = arith.constant 0 : index
    %c0_107 = arith.constant 0 : index
    %181 = vector.load %arg10[%c0_106, %c0_107] : memref<2x128xf32, #tpu.memory_space<vmem>>, vector<2x128xf32>
    tpu.vector_store %arg10[%c0_106, %c0_107], %180 {strides = array<i32>} : memref<2x128xf32, #tpu.memory_space<vmem>>, vector<2x128xf32>,
    return
  }
  func.func @transform_0(%arg0: i32) -> (i32, i32, i32) {
    %c0_i32 = arith.constant 0 : i32
    %c0_i32_0 = arith.constant 0 : i32
    %c0_i32_1 = arith.constant 0 : i32
    return %arg0, %c0_i32, %c0_i32_0 : i32, i32, i32
  }
  func.func @transform_1(%arg0: i32) -> (i32, i32, i32) {
    %c0_i32 = arith.constant 0 : i32
    %c0_i32_0 = arith.constant 0 : i32
    %c0_i32_1 = arith.constant 0 : i32
    %c0_i32_2 = arith.constant 0 : i32
    return %c0_i32, %c0_i32_0, %c0_i32_1 : i32, i32, i32
  }
  func.func @transform_2(%arg0: i32) -> (i32, i32) {
    %c0_i32 = arith.constant 0 : i32
    %c0_i32_0 = arith.constant 0 : i32
    %c0_i32_1 = arith.constant 0 : i32
    return %c0_i32, %c0_i32_0 : i32, i32
  }
  func.func @transform_3(%arg0: i32) -> (i32, i32, i32) {
    %c0_i32 = arith.constant 0 : i32
    %c0_i32_0 = arith.constant 0 : i32
    %c0_i32_1 = arith.constant 0 : i32
    %c0_i32_2 = arith.constant 0 : i32
    return %c0_i32, %c0_i32_0, %c0_i32_1 : i32, i32, i32
  }
  func.func @transform_4(%arg0: i32) -> (i32, i32) {
    %c0_i32 = arith.constant 0 : i32
    %c0_i32_0 = arith.constant 0 : i32
    %c0_i32_1 = arith.constant 0 : i32
    return %c0_i32, %c0_i32_0 : i32, i32
  }
  func.func @transform_5(%arg0: i32) -> (i32, i32, i32) {
    %c0_i32 = arith.constant 0 : i32
    %c0_i32_0 = arith.constant 0 : i32
    %c0_i32_1 = arith.constant 0 : i32
    %c0_i32_2 = arith.constant 0 : i32
    return %c0_i32, %c0_i32_0, %c0_i32_1 : i32, i32, i32
  }
  func.func @transform_6(%arg0: i32) -> (i32, i32) {
    %c0_i32 = arith.constant 0 : i32
    %c0_i32_0 = arith.constant 0 : i32
    %c0_i32_1 = arith.constant 0 : i32
    return %c0_i32, %c0_i32_0 : i32, i32
  }
  func.func @transform_7(%arg0: i32) -> (i32, i32, i32) {
    %c0_i32 = arith.constant 0 : i32
    %c0_i32_0 = arith.constant 0 : i32
    %c0_i32_1 = arith.constant 0 : i32
    %c0_i32_2 = arith.constant 0 : i32
    return %c0_i32, %c0_i32_0, %c0_i32_1 : i32, i32, i32
  }
  func.func @transform_8(%arg0: i32) -> (i32, i32) {
    %c0_i32 = arith.constant 0 : i32
    %c0_i32_0 = arith.constant 0 : i32
    %c0_i32_1 = arith.constant 0 : i32
    return %c0_i32, %c0_i32_0 : i32, i32
  }
  func.func @transform_9(%arg0: i32) -> (i32, i32) {
    %c0_i32 = arith.constant 0 : i32
    %c0_i32_0 = arith.constant 0 : i32
    return %arg0, %c0_i32 : i32, i32
  }
}

</mosaic_0001>

<llo_original>
// kernel: encoder_forward.1
$region0: #{encoder_forward.1}
  #allocation0 [shape = 'u32[]', space=smem, size = 0x4, offset = 0x4, fixed_abs, tag = 'smem constant byte address 0x4 - core index']
  #allocation1 [shape = 'u32[144,128]{1,0:T(1,128)}', space=vmem, size = 0x12000, scoped, tag = 'internal scratch']
  #allocation2 [shape = 'bf16[56,48]{1,0:T(8,128)(2,1)}', space=vmem, size = 0x3800, scoped, tag = 'scratch operand']
  #allocation3 [shape = 'bf16[32,512]{1,0:T(16,128)(2,1)}', space=vmem, size = 0x8000, scoped, tag = 'scratch operand']
  #allocation4 [shape = 'bf16[20,512]{1,0:T(8,128)(2,1)}', space=vmem, size = 0x6000, scoped, tag = 'scratch operand']
  %s0 = inlined_call_operand.vmem [shape: bf16[2,24,48], index: 0, kind: input, shape index: {}]
  %s1 = inlined_call_operand.hbm [shape: bf16[3,48,512], index: 1, kind: input, shape index: {}]
  %s2 = inlined_call_operand.hbm [shape: f32[1,512], index: 2, kind: input, shape index: {}]
  %s3 = inlined_call_operand.hbm [shape: bf16[3,512,512], index: 3, kind: input, shape index: {}]
  %s4 = inlined_call_operand.hbm [shape: f32[1,512], index: 4, kind: input, shape index: {}]
  %s5 = inlined_call_operand.hbm [shape: bf16[3,512,512], index: 5, kind: input, shape index: {}]
  %s6 = inlined_call_operand.hbm [shape: f32[1,512], index: 6, kind: input, shape index: {}]
  %s7 = inlined_call_operand.hbm [shape: bf16[4,512,128], index: 7, kind: input, shape index: {}]
  %s8 = inlined_call_operand.hbm [shape: f32[1,128], index: 8, kind: input, shape index: {}]
  %s9 = inlined_call_operand.hbm [shape: f32[2,128], index: 9, kind: output, shape index: {}]
  %s10 = sld [smem:[#allocation0]]
  $region78: #{encoder_forward.1} parent=0
    _
  %s12 = ssub.s32 1, %s10
  %s13 = scalar_select 0, %s12, %s10
  $region1: #{encoder_forward.1} parent=0
    #allocation5 [shape = 'u8[147456]{0}', space=vmem, size = 0x24000, scoped, tag = 'input window, operand 1, single buffered']
    #allocation6 [shape = 's32[1]{0}', space=sflag, size = 0x4, scoped, tag = 'scoped memory for encoder_forward.1']
    #allocation7 [shape = 's32[1]{0}', space=sflag, size = 0x4, scoped, tag = 'scoped memory for encoder_forward.1']
    #allocation8 [shape = 'u8[2048]{0}', space=vmem, size = 0x800, scoped, tag = 'input window, operand 2, single buffered']
    #allocation9 [shape = 's32[1]{0}', space=sflag, size = 0x4, scoped, tag = 'scoped memory for encoder_forward.1']
    #allocation10 [shape = 'u8[1572864]{0}', space=vmem, size = 0x180000, scoped, tag = 'input window, operand 3, single buffered']
    #allocation11 [shape = 'u8[2048]{0}', space=vmem, size = 0x800, scoped, tag = 'input window, operand 4, single buffered']
    #allocation12 [shape = 's32[1]{0}', space=sflag, size = 0x4, scoped, tag = 'scoped memory for encoder_forward.1']
    #allocation13 [shape = 'u8[1572864]{0}', space=vmem, size = 0x180000, scoped, tag = 'input window, operand 5, single buffered']
    #allocation14 [shape = 'u8[2048]{0}', space=vmem, size = 0x800, scoped, tag = 'input window, operand 6, single buffered']
    #allocation15 [shape = 's32[1]{0}', space=sflag, size = 0x4, scoped, tag = 'scoped memory for encoder_forward.1']
    #allocation16 [shape = 'u8[524288]{0}', space=vmem, size = 0x80000, scoped, tag = 'input window, operand 7, single buffered']
    #allocation17 [shape = 'u8[512]{0}', space=vmem, size = 0x400, scoped, tag = 'input window, operand 8, single buffered']
    #allocation18 [shape = 's32[1]{0}', space=sflag, size = 0x4, scoped, tag = 'scoped memory for encoder_forward.1']
    #allocation19 [shape = 'u8[1024]{0}', space=vmem, size = 0x400, scoped, tag = 'output window, operand 0, single buffered']
    %14 = vsyncpa [#allocation6], 0
    %15 = vsyncpa [#allocation9], 0
    %16 = vsyncpa [#allocation12], 0
    %17 = vsyncpa [#allocation15], 0
    %18 = vsyncpa [#allocation18], 0
    %19 = vsyncpa [#allocation7], 0
    // Predicated region
    $region2: #{encoder_forward.1} parent=1 // pred_check
      _
    $region3: #{encoder_forward.1} parent=1 // pred_check_branch
      %21 = sbr.rel (0) target = $region5
    $region4: #{encoder_forward.1} parent=1 // pred_region
      _
    $region5: #{encoder_forward.1} parent=1 // pred_fallthru
      _
    // Predicated region
    $region6: #{encoder_forward.1} parent=1 // pred_check
      _
    $region7: #{encoder_forward.1} parent=1 // pred_check_branch
      %23 = sbr.rel (0) target = $region9
    $region8: #{encoder_forward.1} parent=1 // pred_region
      %s25 = ssub.s32 4608, 4608
      %26 = vsyncadd [#allocation6], %s25
      %s27 = sshll.u32 [#allocation5], 4
      %s28 = int_to_ptr.vmem [resolvable:$true] %s27
      %33 = dma.hbm_to_vmem [thread:$0]  %s1, 4608, %s28, [#allocation6], 256, 256, 16
    $region9: #{encoder_forward.1} parent=1 // pred_fallthru
      _
    // Predicated region
    $region10: #{encoder_forward.1} parent=1 // pred_check
      _
    $region11: #{encoder_forward.1} parent=1 // pred_check_branch
      %35 = sbr.rel (0) target = $region13
    $region12: #{encoder_forward.1} parent=1 // pred_region
      %s37 = ssub.s32 64, 64
      %38 = vsyncadd [#allocation9], %s37
      %s40 = sshll.u32 [#allocation8], 4
      %s41 = int_to_ptr.vmem [resolvable:$true] %s40
      %43 = dma.hbm_to_vmem [thread:$0]  %s2, 64, %s41, [#allocation9]
    $region13: #{encoder_forward.1} parent=1 // pred_fallthru
      _
    // Predicated region
    $region14: #{encoder_forward.1} parent=1 // pred_check
      _
    $region15: #{encoder_forward.1} parent=1 // pred_check_branch
      %45 = sbr.rel (0) target = $region17
    $region16: #{encoder_forward.1} parent=1 // pred_region
      %s47 = ssub.s32 49152, 49152
      %48 = vsyncadd [#allocation9], %s47
      %s49 = sshll.u32 [#allocation10], 4
      %s50 = int_to_ptr.vmem [resolvable:$true] %s49
      %55 = dma.hbm_to_vmem [thread:$0]  %s3, 49152, %s50, [#allocation9], 256, 256, 16
    $region17: #{encoder_forward.1} parent=1 // pred_fallthru
      _
    // Predicated region
    $region18: #{encoder_forward.1} parent=1 // pred_check
      _
    $region19: #{encoder_forward.1} parent=1 // pred_check_branch
      %57 = sbr.rel (0) target = $region21
    $region20: #{encoder_forward.1} parent=1 // pred_region
      %s59 = ssub.s32 64, 64
      %60 = vsyncadd [#allocation12], %s59
      %s62 = sshll.u32 [#allocation11], 4
      %s63 = int_to_ptr.vmem [resolvable:$true] %s62
      %65 = dma.hbm_to_vmem [thread:$0]  %s4, 64, %s63, [#allocation12]
    $region21: #{encoder_forward.1} parent=1 // pred_fallthru
      _
    // Predicated region
    $region22: #{encoder_forward.1} parent=1 // pred_check
      _
    $region23: #{encoder_forward.1} parent=1 // pred_check_branch
      %67 = sbr.rel (0) target = $region25
    $region24: #{encoder_forward.1} parent=1 // pred_region
      %s69 = ssub.s32 49152, 49152
      %70 = vsyncadd [#allocation12], %s69
      %s71 = sshll.u32 [#allocation13], 4
      %s72 = int_to_ptr.vmem [resolvable:$true] %s71
      %77 = dma.hbm_to_vmem [thread:$0]  %s5, 49152, %s72, [#allocation12], 256, 256, 16
    $region25: #{encoder_forward.1} parent=1 // pred_fallthru
      _
    // Predicated region
    $region26: #{encoder_forward.1} parent=1 // pred_check
      _
    $region27: #{encoder_forward.1} parent=1 // pred_check_branch
      %79 = sbr.rel (0) target = $region29
    $region28: #{encoder_forward.1} parent=1 // pred_region
      %s81 = ssub.s32 64, 64
      %82 = vsyncadd [#allocation15], %s81
      %s84 = sshll.u32 [#allocation14], 4
      %s85 = int_to_ptr.vmem [resolvable:$true] %s84
      %87 = dma.hbm_to_vmem [thread:$0]  %s6, 64, %s85, [#allocation15]
    $region29: #{encoder_forward.1} parent=1 // pred_fallthru
      _
    // Predicated region
    $region30: #{encoder_forward.1} parent=1 // pred_check
      _
    $region31: #{encoder_forward.1} parent=1 // pred_check_branch
      %89 = sbr.rel (0) target = $region33
    $region32: #{encoder_forward.1} parent=1 // pred_region
      %s91 = ssub.s32 16384, 16384
      %92 = vsyncadd [#allocation15], %s91
      %s93 = sshll.u32 [#allocation16], 4
      %s94 = int_to_ptr.vmem [resolvable:$true] %s93
      %99 = dma.hbm_to_vmem [thread:$0]  %s7, 16384, %s94, [#allocation15], 64, 64, 4
    $region33: #{encoder_forward.1} parent=1 // pred_fallthru
      _
    // Predicated region
    $region34: #{encoder_forward.1} parent=1 // pred_check
      _
    $region35: #{encoder_forward.1} parent=1 // pred_check_branch
      %101 = sbr.rel (0) target = $region37
    $region36: #{encoder_forward.1} parent=1 // pred_region
      %s103 = ssub.s32 16, 16
      %104 = vsyncadd [#allocation18], %s103
      %s106 = sshll.u32 [#allocation17], 4
      %s107 = int_to_ptr.vmem [resolvable:$true] %s106
      %109 = dma.hbm_to_vmem [thread:$0]  %s8, 16, %s107, [#allocation18]
    $region37: #{encoder_forward.1} parent=1 // pred_fallthru
      _
    // Predicated region
    $region38: #{encoder_forward.1} parent=1 // pred_check
      _
    $region39: #{encoder_forward.1} parent=1 // pred_check_branch
      %111 = sbr.rel (0) target = $region41
    $region40: #{encoder_forward.1} parent=1 // pred_region
      %112 = dma.done [#allocation6], 4608
    $region41: #{encoder_forward.1} parent=1 // pred_fallthru
      _
    // Predicated region
    $region42: #{encoder_forward.1} parent=1 // pred_check
      _
    $region43: #{encoder_forward.1} parent=1 // pred_check_branch
      %114 = sbr.rel (0) target = $region45
    $region44: #{encoder_forward.1} parent=1 // pred_region
      %115 = dma.done [#allocation9], 64
    $region45: #{encoder_forward.1} parent=1 // pred_fallthru
      _
    // Predicated region
    $region46: #{encoder_forward.1} parent=1 // pred_check
      _
    $region47: #{encoder_forward.1} parent=1 // pred_check_branch
      %117 = sbr.rel (0) target = $region49
    $region48: #{encoder_forward.1} parent=1 // pred_region
      %118 = dma.done [#allocation9], 49152
    $region49: #{encoder_forward.1} parent=1 // pred_fallthru
      _
    // Predicated region
    $region50: #{encoder_forward.1} parent=1 // pred_check
      _
    $region51: #{encoder_forward.1} parent=1 // pred_check_branch
      %120 = sbr.rel (0) target = $region53
    $region52: #{encoder_forward.1} parent=1 // pred_region
      %121 = dma.done [#allocation12], 64
    $region53: #{encoder_forward.1} parent=1 // pred_fallthru
      _
    // Predicated region
    $region54: #{encoder_forward.1} parent=1 // pred_check
      _
    $region55: #{encoder_forward.1} parent=1 // pred_check_branch
      %123 = sbr.rel (0) target = $region57
    $region56: #{encoder_forward.1} parent=1 // pred_region
      %124 = dma.done [#allocation12], 49152
    $region57: #{encoder_forward.1} parent=1 // pred_fallthru
      _
    // Predicated region
    $region58: #{encoder_forward.1} parent=1 // pred_check
      _
    $region59: #{encoder_forward.1} parent=1 // pred_check_branch
      %126 = sbr.rel (0) target = $region61
    $region60: #{encoder_forward.1} parent=1 // pred_region
      %127 = dma.done [#allocation15], 64
    $region61: #{encoder_forward.1} parent=1 // pred_fallthru
      _
    // Predicated region
    $region62: #{encoder_forward.1} parent=1 // pred_check
      _
    $region63: #{encoder_forward.1} parent=1 // pred_check_branch
      %129 = sbr.rel (0) target = $region65
    $region64: #{encoder_forward.1} parent=1 // pred_region
      %130 = dma.done [#allocation15], 16384
    $region65: #{encoder_forward.1} parent=1 // pred_fallthru
      _
    // Predicated region
    $region66: #{encoder_forward.1} parent=1 // pred_check
      _
    $region67: #{encoder_forward.1} parent=1 // pred_check_branch
      %132 = sbr.rel (0) target = $region69
    $region68: #{encoder_forward.1} parent=1 // pred_region
      %133 = dma.done [#allocation18], 16
    $region69: #{encoder_forward.1} parent=1 // pred_fallthru
      _
    %v135 = vld [vmem:[%s0] sm:$0xf]
    %v136 = vld [vmem:[%s0 + $0x4] sm:$0xf]
    %v137 = vld [vmem:[%s0 + $0x8] sm:$0xf]
    %v138 = vld [vmem:[%s0 + $0xc] sm:$0xf]
    %v139 = vld [vmem:[%s0 + $0x10] sm:$0xf]
    %v140 = vld [vmem:[%s0 + $0x14] sm:$0xf]
    %vm141 = vcmask 388096
    %142 = vst.msk [vmem:[#allocation2] sm:$0xf] %vm141, %v135
    %143 = vst.msk [vmem:[#allocation2 + $0x4] sm:$0xf] %vm141, %v136
    %144 = vst.msk [vmem:[#allocation2 + $0x8] sm:$0xf] %vm141, %v137
    %145 = vst.msk [vmem:[#allocation2 + $0xc] sm:$0xf] %vm141, %v138
    %146 = vst.msk [vmem:[#allocation2 + $0x10] sm:$0xf] %vm141, %v139
    %147 = vst.msk [vmem:[#allocation2 + $0x14] sm:$0xf] %vm141, %v140
    %148 = vst.msk [vmem:[#allocation2 + $0x18] sm:$0xf] %vm141, 0
    %149 = vst [vmem:[#allocation3 + $0x20] sm:$0xf0] 0
    %150 = vst [vmem:[#allocation3 + $0x28] sm:$0xf0] 0
    %151 = vst [vmem:[#allocation3 + $0x30] sm:$0xf0] 0
    %152 = vst [vmem:[#allocation3 + $0x38] sm:$0xf0] 0
    %153 = vst [vmem:[#allocation4 + $0x10] sm:$0xcc] 0
    %154 = vst [vmem:[#allocation4 + $0x18] sm:$0xcc] 0
    %155 = vst [vmem:[#allocation4 + $0x20] sm:$0x33] 0
    %156 = vst [vmem:[#allocation4 + $0x28] sm:$0x33] 0
    %v157 = vld [vmem:[#allocation2] sm:$0xf]
    %v158 = vld [vmem:[#allocation2 + $0x4] sm:$0xf]
    %v159 = vld [vmem:[#allocation2 + $0x8] sm:$0xf]
    %v160 = vld [vmem:[#allocation2 + $0xc] sm:$0xf]
    %v161 = vld [vmem:[#allocation2 + $0x10] sm:$0xf]
    %v162 = vld [vmem:[#allocation2 + $0x14] sm:$0xf]
    %v163 = vld [vmem:[#allocation5] sm:$0xff]
    %v164 = vld [vmem:[#allocation5 + $0x8] sm:$0xff]
    %v165 = vld [vmem:[#allocation5 + $0x10] sm:$0xff]
    %v166 = vld [vmem:[#allocation5 + $0x18] sm:$0xff]
    %v167 = vld [vmem:[#allocation5 + $0x20] sm:$0xff]
    %v168 = vld [vmem:[#allocation5 + $0x28] sm:$0xff]
    %v169 = vld [vmem:[#allocation5 + $0x30] sm:$0xff]
    %v170 = vld [vmem:[#allocation5 + $0x38] sm:$0xff]
    %v171 = vld [vmem:[#allocation5 + $0x40] sm:$0xff]
    %v172 = vld [vmem:[#allocation5 + $0x48] sm:$0xff]
    %v173 = vld [vmem:[#allocation5 + $0x50] sm:$0xff]
    %v174 = vld [vmem:[#allocation5 + $0x58] sm:$0xff]
    %v175 = vld [vmem:[#allocation2 + $0x18] sm:$0x1]
    %s176 = scalar_lea.vmem [#allocation5], 96
    %v177 = vld [vmem:[%s176] sm:$0xff]
    %v178 = vld [vmem:[%s176 + $0x8] sm:$0xff]
    %v179 = vld [vmem:[%s176 + $0x10] sm:$0xff]
    %v180 = vld [vmem:[%s176 + $0x18] sm:$0xff]
    %v181 = vld [vmem:[%s176 + $0x20] sm:$0xff]
    %v182 = vld [vmem:[%s176 + $0x28] sm:$0xff]
    %v183 = vld [vmem:[%s176 + $0x30] sm:$0xff]
    %v184 = vld [vmem:[%s176 + $0x38] sm:$0xff]
    %v185 = vld [vmem:[%s176 + $0x40] sm:$0xff]
    %v186 = vld [vmem:[%s176 + $0x48] sm:$0xff]
    %v187 = vld [vmem:[%s176 + $0x50] sm:$0xff]
    %v188 = vld [vmem:[%s176 + $0x58] sm:$0xff]
    %v196 = vunpack.c.l.b16 %v157
    %v197 = vunpack.c.l.b16 %v158
    %v198 = vunpack.c.l.b16 %v159
    %v199 = vunpack.c.l.b16 %v160
    %v200 = vunpack.c.l.b16 %v161
    %v201 = vunpack.c.l.b16 %v162
    %v202 = vunpack.c.l.b16 %v175
    %v203 = vpack.c.b16 %v197, %v196
    %v204 = vpack.c.b16 %v199, %v198
    %v205 = vpack.c.b16 %v201, %v200
    %v206 = vpack.c.b16 %v202, %v202
    %vm207 = vsmask.f32 7424
    %v209 = vshrl.u32 %v203, 16
    %v211 = vshll.u32 %v203, 16
    %v213 = vrot.slane %v211, 1
    %v214 = vor.u32 %v209, %v213
    %v216 = vshll.u32 %v204, 16
    %v218 = vrot.slane %v216, 1
    %v219 = vsel %vm207, %v214, %v218
    %v220 = vshrl.u32 %v204, 16
    %v222 = vor.u32 %v220, %v218
    %v224 = vshll.u32 %v205, 16
    %v226 = vrot.slane %v224, 1
    %v227 = vsel %vm207, %v222, %v226
    %v228 = vshrl.u32 %v205, 16
    %v230 = vor.u32 %v228, %v226
    %v232 = vshll.u32 %v206, 16
    %v234 = vrot.slane %v232, 1
    %v235 = vsel %vm207, %v230, %v234
    %v248 = vunpack.c.l.b16 %v177
    %v249 = vunpack.c.h.b16 %v177
    %v250 = vunpack.c.l.b16 %v178
    %v251 = vunpack.c.h.b16 %v178
    %v252 = vunpack.c.l.b16 %v179
    %v253 = vunpack.c.h.b16 %v179
    %v254 = vunpack.c.l.b16 %v180
    %v255 = vunpack.c.h.b16 %v180
    %v256 = vunpack.c.l.b16 %v181
    %v257 = vunpack.c.h.b16 %v181
    %v258 = vunpack.c.l.b16 %v182
    %v259 = vunpack.c.h.b16 %v182
    %v260 = vunpack.c.l.b16 %v183
    %v261 = vunpack.c.h.b16 %v183
    %v262 = vunpack.c.l.b16 %v184
    %v263 = vunpack.c.h.b16 %v184
    %v264 = vunpack.c.l.b16 %v185
    %v265 = vunpack.c.h.b16 %v185
    %v266 = vunpack.c.l.b16 %v186
    %v267 = vunpack.c.h.b16 %v186
    %v268 = vunpack.c.l.b16 %v187
    %v269 = vunpack.c.h.b16 %v187
    %v270 = vunpack.c.l.b16 %v188
    %v271 = vunpack.c.h.b16 %v188
    %v272 = vpack.c.b16 %v252, %v248
    %v273 = vpack.c.b16 %v253, %v249
    %v274 = vpack.c.b16 %v254, %v250
    %v275 = vpack.c.b16 %v255, %v251
    %v276 = vpack.c.b16 %v260, %v256
    %v277 = vpack.c.b16 %v261, %v257
    %v278 = vpack.c.b16 %v262, %v258
    %v279 = vpack.c.b16 %v263, %v259
    %v280 = vpack.c.b16 %v268, %v264
    %v281 = vpack.c.b16 %v269, %v265
    %v282 = vpack.c.b16 %v270, %v266
    %v283 = vpack.c.b16 %v271, %v267
    %vm296 = vcmask 392192
    %v298 = vsel %vm296, %v219, 0
    %v301 = vsel %vm296, %v227, 0
    %v304 = vsel %vm296, %v235, 0
    %306 = vmatprep.subr.bf16.mxu0 %v273
    %307 = vmatpush1.bf16.msra.mxu0 %v272
    %308 = vmatprep.subr.bf16.mxu0 %v277
    %309 = vmatpush1.bf16.msra.mxu0 %v276
    %310 = vmatprep.subr.bf16.mxu0 %v281
    %311 = vmatpush1.bf16.msra.mxu0 %v280
    %312 = vmatprep.subr.bf16.mxu0 0
    %313 = vmatpush1.bf16.msra.mxu0 0
    %314 = vmatprep.subr.bf16.mxu0 0
    %315 = vmatpush1.bf16.msra.mxu0 0
    %316 = vmatprep.subr.bf16.mxu0 0
    %317 = vmatpush1.bf16.msra.mxu0 0
    %318 = vmatprep.subr.bf16.mxu0 0
    %319 = vmatpush1.bf16.msra.mxu0 0
    %320 = vmatprep.subr.bf16.mxu0 0
    %321 = vmatpush1.bf16.msra.mxu0 0
    %322 = vmatprep.subr.bf16.mxu0 0
    %323 = vmatpush1.bf16.msra.mxu0 0
    %324 = vmatprep.subr.bf16.mxu0 0
    %325 = vmatpush1.bf16.msra.mxu0 0
    %326 = vmatprep.subr.bf16.mxu0 0
    %327 = vmatpush1.bf16.msra.mxu0 0
    %328 = vmatprep.subr.bf16.mxu0 0
    %329 = vmatpush1.bf16.msra.mxu0 0
    %330 = vmatprep.subr.bf16.mxu0 0
    %331 = vmatpush1.bf16.msra.mxu0 0
    %332 = vmatprep.subr.bf16.mxu0 0
    %333 = vmatpush1.bf16.msra.mxu0 0
    %334 = vmatprep.subr.bf16.mxu0 0
    %335 = vmatpush1.bf16.msra.mxu0 0
    %336 = vmatprep.subr.bf16.mxu0 0
    %337 = vmatpush1.bf16.msra.mxu0 0
    %338 = vmatprep.mubr.bf16.mxu0 0
    %339 = vmatmul.mubr.bf16.gmra.mrb[0].mxu0 %v298
    %v340 = vpop.f32.mrb[0].mxu0
    %v341 = vadd.f32 0.0, %v340
    %v342 = vpop.f32.mrb[0].mxu0
    %v343 = vadd.f32 0.0, %v342
    %v344 = vpop.f32.mrb[0].mxu0
    %v345 = vadd.f32 0.0, %v344
    %v346 = vpop.f32.mrb[0].mxu0
    %v347 = vadd.f32 0.0, %v346
    %348 = vmatprep.mubr.bf16.mxu0 0
    %349 = vmatmul.mubr.bf16.gmra.mrb[0].mxu0 %v301
    %v350 = vpop.f32.mrb[0].mxu0
    %v351 = vadd.f32 0.0, %v350
    %v352 = vpop.f32.mrb[0].mxu0
    %v353 = vadd.f32 0.0, %v352
    %v354 = vpop.f32.mrb[0].mxu0
    %v355 = vadd.f32 0.0, %v354
    %v356 = vpop.f32.mrb[0].mxu0
    %v357 = vadd.f32 0.0, %v356
    %358 = vmatprep.mubr.bf16.mxu0 0
    %359 = vmatmul.mubr.bf16.gmra.mrb[0].mxu0 %v304
    %v360 = vpop.f32.mrb[0].mxu0
    %v361 = vadd.f32 0.0, %v360
    %v362 = vpop.f32.mrb[0].mxu0
    %v363 = vadd.f32 0.0, %v362
    %v364 = vpop.f32.mrb[0].mxu0
    %v365 = vadd.f32 0.0, %v364
    %v366 = vpop.f32.mrb[0].mxu0
    %v367 = vadd.f32 0.0, %v366
    %368 = vdwg.mxu0
    %369 = vmatprep.subr.bf16.mxu0 %v275
    %370 = vmatpush1.bf16.msra.mxu0 %v274
    %371 = vmatprep.subr.bf16.mxu0 %v279
    %372 = vmatpush1.bf16.msra.mxu0 %v278
    %373 = vmatprep.subr.bf16.mxu0 %v283
    %374 = vmatpush1.bf16.msra.mxu0 %v282
    %375 = vmatprep.subr.bf16.mxu0 0
    %376 = vmatpush1.bf16.msra.mxu0 0
    %377 = vmatprep.subr.bf16.mxu0 0
    %378 = vmatpush1.bf16.msra.mxu0 0
    %379 = vmatprep.subr.bf16.mxu0 0
    %380 = vmatpush1.bf16.msra.mxu0 0
    %381 = vmatprep.subr.bf16.mxu0 0
    %382 = vmatpush1.bf16.msra.mxu0 0
    %383 = vmatprep.subr.bf16.mxu0 0
    %384 = vmatpush1.bf16.msra.mxu0 0
    %385 = vmatprep.subr.bf16.mxu0 0
    %386 = vmatpush1.bf16.msra.mxu0 0
    %387 = vmatprep.subr.bf16.mxu0 0
    %388 = vmatpush1.bf16.msra.mxu0 0
    %389 = vmatprep.subr.bf16.mxu0 0
    %390 = vmatpush1.bf16.msra.mxu0 0
    %391 = vmatprep.subr.bf16.mxu0 0
    %392 = vmatpush1.bf16.msra.mxu0 0
    %393 = vmatprep.subr.bf16.mxu0 0
    %394 = vmatpush1.bf16.msra.mxu0 0
    %395 = vmatprep.subr.bf16.mxu0 0
    %396 = vmatpush1.bf16.msra.mxu0 0
    %397 = vmatprep.subr.bf16.mxu0 0
    %398 = vmatpush1.bf16.msra.mxu0 0
    %399 = vmatprep.subr.bf16.mxu0 0
    %400 = vmatpush1.bf16.msra.mxu0 0
    %401 = vmatprep.mubr.bf16.mxu0 0
    %402 = vmatmul.mubr.bf16.gmra.mrb[0].mxu0 %v298
    %v403 = vpop.f32.mrb[0].mxu0
    %v404 = vadd.f32 0.0, %v403
    %v405 = vpop.f32.mrb[0].mxu0
    %v406 = vadd.f32 0.0, %v405
    %v407 = vpop.f32.mrb[0].mxu0
    %v408 = vadd.f32 0.0, %v407
    %v409 = vpop.f32.mrb[0].mxu0
    %v410 = vadd.f32 0.0, %v409
    %411 = vmatprep.mubr.bf16.mxu0 0
    %412 = vmatmul.mubr.bf16.gmra.mrb[0].mxu0 %v301
    %v413 = vpop.f32.mrb[0].mxu0
    %v414 = vadd.f32 0.0, %v413
    %v415 = vpop.f32.mrb[0].mxu0
    %v416 = vadd.f32 0.0, %v415
    %v417 = vpop.f32.mrb[0].mxu0
    %v418 = vadd.f32 0.0, %v417
    %v419 = vpop.f32.mrb[0].mxu0
    %v420 = vadd.f32 0.0, %v419
    %421 = vmatprep.mubr.bf16.mxu0 0
    %422 = vmatmul.mubr.bf16.gmra.mrb[0].mxu0 %v304
    %v423 = vpop.f32.mrb[0].mxu0
    %v424 = vadd.f32 0.0, %v423
    %v425 = vpop.f32.mrb[0].mxu0
    %v426 = vadd.f32 0.0, %v425
    %v427 = vpop.f32.mrb[0].mxu0
    %v428 = vadd.f32 0.0, %v427
    %v429 = vpop.f32.mrb[0].mxu0
    %v430 = vadd.f32 0.0, %v429
    %431 = vdwg.mxu0
    %v444 = vunpack.c.l.b16 %v163
    %v445 = vunpack.c.h.b16 %v163
    %v446 = vunpack.c.l.b16 %v164
    %v447 = vunpack.c.h.b16 %v164
    %v448 = vunpack.c.l.b16 %v165
    %v449 = vunpack.c.h.b16 %v165
    %v450 = vunpack.c.l.b16 %v166
    %v451 = vunpack.c.h.b16 %v166
    %v452 = vunpack.c.l.b16 %v167
    %v453 = vunpack.c.h.b16 %v167
    %v454 = vunpack.c.l.b16 %v168
    %v455 = vunpack.c.h.b16 %v168
    %v456 = vunpack.c.l.b16 %v169
    %v457 = vunpack.c.h.b16 %v169
    %v458 = vunpack.c.l.b16 %v170
    %v459 = vunpack.c.h.b16 %v170
    %v460 = vunpack.c.l.b16 %v171
    %v461 = vunpack.c.h.b16 %v171
    %v462 = vunpack.c.l.b16 %v172
    %v463 = vunpack.c.h.b16 %v172
    %v464 = vunpack.c.l.b16 %v173
    %v465 = vunpack.c.h.b16 %v173
    %v466 = vunpack.c.l.b16 %v174
    %v467 = vunpack.c.h.b16 %v174
    %v468 = vpack.c.b16 %v448, %v444
    %v469 = vpack.c.b16 %v449, %v445
    %v470 = vpack.c.b16 %v450, %v446
    %v471 = vpack.c.b16 %v451, %v447
    %v472 = vpack.c.b16 %v456, %v452
    %v473 = vpack.c.b16 %v457, %v453
    %v474 = vpack.c.b16 %v458, %v454
    %v475 = vpack.c.b16 %v459, %v455
    %v476 = vpack.c.b16 %v464, %v460
    %v477 = vpack.c.b16 %v465, %v461
    %v478 = vpack.c.b16 %v466, %v462
    %v479 = vpack.c.b16 %v467, %v463
    %v492 = vsel %vm296, %v203, 0
    %v494 = vsel %vm296, %v204, 0
    %v496 = vsel %vm296, %v205, 0
    %498 = vmatprep.subr.bf16.mxu0 %v469
    %499 = vmatpush1.bf16.msra.mxu0 %v468
    %500 = vmatprep.subr.bf16.mxu0 %v473
    %501 = vmatpush1.bf16.msra.mxu0 %v472
    %502 = vmatprep.subr.bf16.mxu0 %v477
    %503 = vmatpush1.bf16.msra.mxu0 %v476
    %504 = vmatprep.subr.bf16.mxu0 0
    %505 = vmatpush1.bf16.msra.mxu0 0
    %506 = vmatprep.subr.bf16.mxu0 0
    %507 = vmatpush1.bf16.msra.mxu0 0
    %508 = vmatprep.subr.bf16.mxu0 0
    %509 = vmatpush1.bf16.msra.mxu0 0
    %510 = vmatprep.subr.bf16.mxu0 0
    %511 = vmatpush1.bf16.msra.mxu0 0
    %512 = vmatprep.subr.bf16.mxu0 0
    %513 = vmatpush1.bf16.msra.mxu0 0
    %514 = vmatprep.subr.bf16.mxu0 0
    %515 = vmatpush1.bf16.msra.mxu0 0
    %516 = vmatprep.subr.bf16.mxu0 0
    %517 = vmatpush1.bf16.msra.mxu0 0
    %518 = vmatprep.subr.bf16.mxu0 0
    %519 = vmatpush1.bf16.msra.mxu0 0
    %520 = vmatprep.subr.bf16.mxu0 0
    %521 = vmatpush1.bf16.msra.mxu0 0
    %522 = vmatprep.subr.bf16.mxu0 0
    %523 = vmatpush1.bf16.msra.mxu0 0
    %524 = vmatprep.subr.bf16.mxu0 0
    %525 = vmatpush1.bf16.msra.mxu0 0
    %526 = vmatprep.subr.bf16.mxu0 0
    %527 = vmatpush1.bf16.msra.mxu0 0
    %528 = vmatprep.subr.bf16.mxu0 0
    %529 = vmatpush1.bf16.msra.mxu0 0
    %530 = vmatprep.mubr.bf16.mxu0 0
    %531 = vmatmul.mubr.bf16.gmra.mrb[0].mxu0 %v492
    %v532 = vpop.f32.mrb[0].mxu0
    %v533 = vadd.f32 %v341, %v532
    %v534 = vpop.f32.mrb[0].mxu0
    %v535 = vadd.f32 %v343, %v534
    %v536 = vpop.f32.mrb[0].mxu0
    %v537 = vadd.f32 %v345, %v536
    %v538 = vpop.f32.mrb[0].mxu0
    %v539 = vadd.f32 %v347, %v538
    %540 = vmatprep.mubr.bf16.mxu0 0
    %541 = vmatmul.mubr.bf16.gmra.mrb[0].mxu0 %v494
    %v542 = vpop.f32.mrb[0].mxu0
    %v543 = vadd.f32 %v351, %v542
    %v544 = vpop.f32.mrb[0].mxu0
    %v545 = vadd.f32 %v353, %v544
    %v546 = vpop.f32.mrb[0].mxu0
    %v547 = vadd.f32 %v355, %v546
    %v548 = vpop.f32.mrb[0].mxu0
    %v549 = vadd.f32 %v357, %v548
    %550 = vmatprep.mubr.bf16.mxu0 0
    %551 = vmatmul.mubr.bf16.gmra.mrb[0].mxu0 %v496
    %v552 = vpop.f32.mrb[0].mxu0
    %v553 = vadd.f32 %v361, %v552
    %v554 = vpop.f32.mrb[0].mxu0
    %v555 = vadd.f32 %v363, %v554
    %v556 = vpop.f32.mrb[0].mxu0
    %v557 = vadd.f32 %v365, %v556
    %v558 = vpop.f32.mrb[0].mxu0
    %v559 = vadd.f32 %v367, %v558
    %560 = vdwg.mxu0
    %561 = vmatprep.subr.bf16.mxu0 %v471
    %562 = vmatpush1.bf16.msra.mxu0 %v470
    %563 = vmatprep.subr.bf16.mxu0 %v475
    %564 = vmatpush1.bf16.msra.mxu0 %v474
    %565 = vmatprep.subr.bf16.mxu0 %v479
    %566 = vmatpush1.bf16.msra.mxu0 %v478
    %567 = vmatprep.subr.bf16.mxu0 0
    %568 = vmatpush1.bf16.msra.mxu0 0
    %569 = vmatprep.subr.bf16.mxu0 0
    %570 = vmatpush1.bf16.msra.mxu0 0
    %571 = vmatprep.subr.bf16.mxu0 0
    %572 = vmatpush1.bf16.msra.mxu0 0
    %573 = vmatprep.subr.bf16.mxu0 0
    %574 = vmatpush1.bf16.msra.mxu0 0
    %575 = vmatprep.subr.bf16.mxu0 0
    %576 = vmatpush1.bf16.msra.mxu0 0
    %577 = vmatprep.subr.bf16.mxu0 0
    %578 = vmatpush1.bf16.msra.mxu0 0
    %579 = vmatprep.subr.bf16.mxu0 0
    %580 = vmatpush1.bf16.msra.mxu0 0
    %581 = vmatprep.subr.bf16.mxu0 0
    %582 = vmatpush1.bf16.msra.mxu0 0
    %583 = vmatprep.subr.bf16.mxu0 0
    %584 = vmatpush1.bf16.msra.mxu0 0
    %585 = vmatprep.subr.bf16.mxu0 0
    %586 = vmatpush1.bf16.msra.mxu0 0
    %587 = vmatprep.subr.bf16.mxu0 0
    %588 = vmatpush1.bf16.msra.mxu0 0
    %589 = vmatprep.subr.bf16.mxu0 0
    %590 = vmatpush1.bf16.msra.mxu0 0
    %591 = vmatprep.subr.bf16.mxu0 0
    %592 = vmatpush1.bf16.msra.mxu0 0
    %593 = vmatprep.mubr.bf16.mxu0 0
    %594 = vmatmul.mubr.bf16.gmra.mrb[0].mxu0 %v492
    %v595 = vpop.f32.mrb[0].mxu0
    %v596 = vadd.f32 %v404, %v595
    %v597 = vpop.f32.mrb[0].mxu0
    %v598 = vadd.f32 %v406, %v597
    %v599 = vpop.f32.mrb[0].mxu0
    %v600 = vadd.f32 %v408, %v599
    %v601 = vpop.f32.mrb[0].mxu0
    %v602 = vadd.f32 %v410, %v601
    %603 = vmatprep.mubr.bf16.mxu0 0
    %604 = vmatmul.mubr.bf16.gmra.mrb[0].mxu0 %v494
    %v605 = vpop.f32.mrb[0].mxu0
    %v606 = vadd.f32 %v414, %v605
    %v607 = vpop.f32.mrb[0].mxu0
    %v608 = vadd.f32 %v416, %v607
    %v609 = vpop.f32.mrb[0].mxu0
    %v610 = vadd.f32 %v418, %v609
    %v611 = vpop.f32.mrb[0].mxu0
    %v612 = vadd.f32 %v420, %v611
    %613 = vmatprep.mubr.bf16.mxu0 0
    %614 = vmatmul.mubr.bf16.gmra.mrb[0].mxu0 %v496
    %v615 = vpop.f32.mrb[0].mxu0
    %v616 = vadd.f32 %v424, %v615
    %v617 = vpop.f32.mrb[0].mxu0
    %v618 = vadd.f32 %v426, %v617
    %v619 = vpop.f32.mrb[0].mxu0
    %v620 = vadd.f32 %v428, %v619
    %v621 = vpop.f32.mrb[0].mxu0
    %v622 = vadd.f32 %v430, %v621
    %623 = vdwg.mxu0
    %v624 = vld [vmem:[#allocation2] sm:$0xe]
    %s625 = scalar_lea.vmem [#allocation5], 192
    %v626 = vld [vmem:[%s625] sm:$0xff]
    %v627 = vld [vmem:[%s625 + $0x8] sm:$0xff]
    %v628 = vld [vmem:[%s625 + $0x10] sm:$0xff]
    %v629 = vld [vmem:[%s625 + $0x18] sm:$0xff]
    %v630 = vld [vmem:[%s625 + $0x20] sm:$0xff]
    %v631 = vld [vmem:[%s625 + $0x28] sm:$0xff]
    %v632 = vld [vmem:[%s625 + $0x30] sm:$0xff]
    %v633 = vld [vmem:[%s625 + $0x38] sm:$0xff]
    %v634 = vld [vmem:[%s625 + $0x40] sm:$0xff]
    %v635 = vld [vmem:[%s625 + $0x48] sm:$0xff]
    %v636 = vld [vmem:[%s625 + $0x50] sm:$0xff]
    %v637 = vld [vmem:[%s625 + $0x58] sm:$0xff]
    %v639 = vunpack.c.l.b16 %v624
    %v640 = vpack.c.b16 %v197, %v639
    %vm641 = vcmask 1046528
    %v642 = vrot.slane %v640, 1
    %v643 = vrot.slane %v204, 1
    %v644 = vsel %vm641, %v642, %v643
    %v645 = vrot.slane %v205, 1
    %v646 = vsel %vm641, %v643, %v645
    %v647 = vrot.slane %v206, 1
    %v648 = vsel %vm641, %v645, %v647
    %v661 = vunpack.c.l.b16 %v626
    %v662 = vunpack.c.h.b16 %v626
    %v663 = vunpack.c.l.b16 %v627
    %v664 = vunpack.c.h.b16 %v627
    %v665 = vunpack.c.l.b16 %v628
    %v666 = vunpack.c.h.b16 %v628
    %v667 = vunpack.c.l.b16 %v629
    %v668 = vunpack.c.h.b16 %v629
    %v669 = vunpack.c.l.b16 %v630
    %v670 = vunpack.c.h.b16 %v630
    %v671 = vunpack.c.l.b16 %v631
    %v672 = vunpack.c.h.b16 %v631
    %v673 = vunpack.c.l.b16 %v632
    %v674 = vunpack.c.h.b16 %v632
    %v675 = vunpack.c.l.b16 %v633
    %v676 = vunpack.c.h.b16 %v633
    %v677 = vunpack.c.l.b16 %v634
    %v678 = vunpack.c.h.b16 %v634
    %v679 = vunpack.c.l.b16 %v635
    %v680 = vunpack.c.h.b16 %v635
    %v681 = vunpack.c.l.b16 %v636
    %v682 = vunpack.c.h.b16 %v636
    %v683 = vunpack.c.l.b16 %v637
    %v684 = vunpack.c.h.b16 %v637
    %v685 = vpack.c.b16 %v665, %v661
    %v686 = vpack.c.b16 %v666, %v662
    %v687 = vpack.c.b16 %v667, %v663
    %v688 = vpack.c.b16 %v668, %v664
    %v689 = vpack.c.b16 %v673, %v669
    %v690 = vpack.c.b16 %v674, %v670
    %v691 = vpack.c.b16 %v675, %v671
    %v692 = vpack.c.b16 %v676, %v672
    %v693 = vpack.c.b16 %v681, %v677
    %v694 = vpack.c.b16 %v682, %v678
    %v695 = vpack.c.b16 %v683, %v679
    %v696 = vpack.c.b16 %v684, %v680
    %v710 = vsel %vm296, %v644, 0
    %v713 = vsel %vm296, %v646, 0
    %v716 = vsel %vm296, %v648, 0
    %718 = vmatprep.subr.bf16.mxu0 %v686
    %719 = vmatpush1.bf16.msra.mxu0 %v685
    %720 = vmatprep.subr.bf16.mxu0 %v690
    %721 = vmatpush1.bf16.msra.mxu0 %v689
    %722 = vmatprep.subr.bf16.mxu0 %v694
    %723 = vmatpush1.bf16.msra.mxu0 %v693
    %724 = vmatprep.subr.bf16.mxu0 0
    %725 = vmatpush1.bf16.msra.mxu0 0
    %726 = vmatprep.subr.bf16.mxu0 0
    %727 = vmatpush1.bf16.msra.mxu0 0
    %728 = vmatprep.subr.bf16.mxu0 0
    %729 = vmatpush1.bf16.msra.mxu0 0
    %730 = vmatprep.subr.bf16.mxu0 0
    %731 = vmatpush1.bf16.msra.mxu0 0
    %732 = vmatprep.subr.bf16.mxu0 0
    %733 = vmatpush1.bf16.msra.mxu0 0
    %734 = vmatprep.subr.bf16.mxu0 0
    %735 = vmatpush1.bf16.msra.mxu0 0
    %736 = vmatprep.subr.bf16.mxu0 0
    %737 = vmatpush1.bf16.msra.mxu0 0
    %738 = vmatprep.subr.bf16.mxu0 0
    %739 = vmatpush1.bf16.msra.mxu0 0
    %740 = vmatprep.subr.bf16.mxu0 0
    %741 = vmatpush1.bf16.msra.mxu0 0
    %742 = vmatprep.subr.bf16.mxu0 0
    %743 = vmatpush1.bf16.msra.mxu0 0
    %744 = vmatprep.subr.bf16.mxu0 0
    %745 = vmatpush1.bf16.msra.mxu0 0
    %746 = vmatprep.subr.bf16.mxu0 0
    %747 = vmatpush1.bf16.msra.mxu0 0
    %748 = vmatprep.subr.bf16.mxu0 0
    %749 = vmatpush1.bf16.msra.mxu0 0
    %750 = vmatprep.mubr.bf16.mxu0 0
    %751 = vmatmul.mubr.bf16.gmra.mrb[0].mxu0 %v710
    %v752 = vpop.f32.mrb[0].mxu0
    %v753 = vadd.f32 0.0, %v752
    %v754 = vpop.f32.mrb[0].mxu0
    %v755 = vadd.f32 0.0, %v754
    %v756 = vpop.f32.mrb[0].mxu0
    %v757 = vadd.f32 0.0, %v756
    %v758 = vpop.f32.mrb[0].mxu0
    %v759 = vadd.f32 0.0, %v758
    %760 = vmatprep.mubr.bf16.mxu0 0
    %761 = vmatmul.mubr.bf16.gmra.mrb[0].mxu0 %v713
    %v762 = vpop.f32.mrb[0].mxu0
    %v763 = vadd.f32 0.0, %v762
    %v764 = vpop.f32.mrb[0].mxu0
    %v765 = vadd.f32 0.0, %v764
    %v766 = vpop.f32.mrb[0].mxu0
    %v767 = vadd.f32 0.0, %v766
    %v768 = vpop.f32.mrb[0].mxu0
    %v769 = vadd.f32 0.0, %v768
    %770 = vmatprep.mubr.bf16.mxu0 0
    %771 = vmatmul.mubr.bf16.gmra.mrb[0].mxu0 %v716
    %v772 = vpop.f32.mrb[0].mxu0
    %v773 = vadd.f32 0.0, %v772
    %v774 = vpop.f32.mrb[0].mxu0
    %v775 = vadd.f32 0.0, %v774
    %v776 = vpop.f32.mrb[0].mxu0
    %v777 = vadd.f32 0.0, %v776
    %v778 = vpop.f32.mrb[0].mxu0
    %v779 = vadd.f32 0.0, %v778
    %780 = vdwg.mxu0
    %781 = vmatprep.subr.bf16.mxu0 %v688
    %782 = vmatpush1.bf16.msra.mxu0 %v687
    %783 = vmatprep.subr.bf16.mxu0 %v692
    %784 = vmatpush1.bf16.msra.mxu0 %v691
    %785 = vmatprep.subr.bf16.mxu0 %v696
    %786 = vmatpush1.bf16.msra.mxu0 %v695
    %787 = vmatprep.subr.bf16.mxu0 0
    %788 = vmatpush1.bf16.msra.mxu0 0
    %789 = vmatprep.subr.bf16.mxu0 0
    %790 = vmatpush1.bf16.msra.mxu0 0
    %791 = vmatprep.subr.bf16.mxu0 0
    %792 = vmatpush1.bf16.msra.mxu0 0
    %793 = vmatprep.subr.bf16.mxu0 0
    %794 = vmatpush1.bf16.msra.mxu0 0
    %795 = vmatprep.subr.bf16.mxu0 0
    %796 = vmatpush1.bf16.msra.mxu0 0
    %797 = vmatprep.subr.bf16.mxu0 0
    %798 = vmatpush1.bf16.msra.mxu0 0
    %799 = vmatprep.subr.bf16.mxu0 0
    %800 = vmatpush1.bf16.msra.mxu0 0
    %801 = vmatprep.subr.bf16.mxu0 0
    %802 = vmatpush1.bf16.msra.mxu0 0
    %803 = vmatprep.subr.bf16.mxu0 0
    %804 = vmatpush1.bf16.msra.mxu0 0
    %805 = vmatprep.subr.bf16.mxu0 0
    %806 = vmatpush1.bf16.msra.mxu0 0
    %807 = vmatprep.subr.bf16.mxu0 0
    %808 = vmatpush1.bf16.msra.mxu0 0
    %809 = vmatprep.subr.bf16.mxu0 0
    %810 = vmatpush1.bf16.msra.mxu0 0
    %811 = vmatprep.subr.bf16.mxu0 0
    %812 = vmatpush1.bf16.msra.mxu0 0
    %813 = vmatprep.mubr.bf16.mxu0 0
    %814 = vmatmul.mubr.bf16.gmra.mrb[0].mxu0 %v710
    %v815 = vpop.f32.mrb[0].mxu0
    %v816 = vadd.f32 0.0, %v815
    %v817 = vpop.f32.mrb[0].mxu0
    %v818 = vadd.f32 0.0, %v817
    %v819 = vpop.f32.mrb[0].mxu0
    %v820 = vadd.f32 0.0, %v819
    %v821 = vpop.f32.mrb[0].mxu0
    %v822 = vadd.f32 0.0, %v821
    %823 = vmatprep.mubr.bf16.mxu0 0
    %824 = vmatmul.mubr.bf16.gmra.mrb[0].mxu0 %v713
    %v825 = vpop.f32.mrb[0].mxu0
    %v826 = vadd.f32 0.0, %v825
    %v827 = vpop.f32.mrb[0].mxu0
    %v828 = vadd.f32 0.0, %v827
    %v829 = vpop.f32.mrb[0].mxu0
    %v830 = vadd.f32 0.0, %v829
    %v831 = vpop.f32.mrb[0].mxu0
    %v832 = vadd.f32 0.0, %v831
    %833 = vmatprep.mubr.bf16.mxu0 0
    %834 = vmatmul.mubr.bf16.gmra.mrb[0].mxu0 %v716
    %v835 = vpop.f32.mrb[0].mxu0
    %v836 = vadd.f32 0.0, %v835
    %v837 = vpop.f32.mrb[0].mxu0
    %v838 = vadd.f32 0.0, %v837
    %v839 = vpop.f32.mrb[0].mxu0
    %v840 = vadd.f32 0.0, %v839
    %v841 = vpop.f32.mrb[0].mxu0
    %v842 = vadd.f32 0.0, %v841
    %843 = vdwg.mxu0
    %v844 = vadd.f32 %v533, %v753
    %v845 = vadd.f32 %v535, %v755
    %v846 = vadd.f32 %v596, %v816
    %v847 = vadd.f32 %v598, %v818
    %v848 = vadd.f32 %v537, %v757
    %v849 = vadd.f32 %v539, %v759
    %v850 = vadd.f32 %v600, %v820
    %v851 = vadd.f32 %v602, %v822
    %v852 = vadd.f32 %v543, %v763
    %v853 = vadd.f32 %v545, %v765
    %v854 = vadd.f32 %v606, %v826
    %v855 = vadd.f32 %v608, %v828
    %v856 = vadd.f32 %v547, %v767
    %v857 = vadd.f32 %v549, %v769
    %v858 = vadd.f32 %v610, %v830
    %v859 = vadd.f32 %v612, %v832
    %v860 = vadd.f32 %v553, %v773
    %v861 = vadd.f32 %v555, %v775
    %v862 = vadd.f32 %v616, %v836
    %v863 = vadd.f32 %v618, %v838
    %v864 = vadd.f32 %v557, %v777
    %v865 = vadd.f32 %v559, %v779
    %v866 = vadd.f32 %v620, %v840
    %v867 = vadd.f32 %v622, %v842
    %v868 = vld [vmem:[#allocation8] sm:$0xf]
    %v870 = vlaneseq
    %v871 = vshrl.u32 %v870, 7
    %v872 = vsub.s32 0, %v871
    %v873 = vrot.slane %v868, %v872
    %v874 = vlaneseq
    %v875 = vshrl.u32 %v874, 7
    %v876 = vsub.s32 1, %v875
    %v877 = vrot.slane %v868, %v876
    %v878 = vlaneseq
    %v879 = vshrl.u32 %v878, 7
    %v880 = vsub.s32 2, %v879
    %v881 = vrot.slane %v868, %v880
    %v882 = vlaneseq
    %v883 = vshrl.u32 %v882, 7
    %v884 = vsub.s32 3, %v883
    %v885 = vrot.slane %v868, %v884
    %v890 = vadd.f32 %v844, %v873
    %v891 = vadd.f32 %v845, %v877
    %v892 = vadd.f32 %v846, %v881
    %v893 = vadd.f32 %v847, %v885
    %v894 = vadd.f32 %v848, %v873
    %v895 = vadd.f32 %v849, %v877
    %v896 = vadd.f32 %v850, %v881
    %v897 = vadd.f32 %v851, %v885
    %v898 = vadd.f32 %v852, %v873
    %v899 = vadd.f32 %v853, %v877
    %v900 = vadd.f32 %v854, %v881
    %v901 = vadd.f32 %v855, %v885
    %v902 = vadd.f32 %v856, %v873
    %v903 = vadd.f32 %v857, %v877
    %v904 = vadd.f32 %v858, %v881
    %v905 = vadd.f32 %v859, %v885
    %v906 = vadd.f32 %v860, %v873
    %v907 = vadd.f32 %v861, %v877
    %v908 = vadd.f32 %v862, %v881
    %v909 = vadd.f32 %v863, %v885
    %v910 = vadd.f32 %v864, %v873
    %v911 = vadd.f32 %v865, %v877
    %v912 = vadd.f32 %v866, %v881
    %v913 = vadd.f32 %v867, %v885
    %v914 = vmax.f32 %v890, 0.0
    %v915 = vmax.f32 %v891, 0.0
    %v916 = vmax.f32 %v892, 0.0
    %v917 = vmax.f32 %v893, 0.0
    %v918 = vmax.f32 %v894, 0.0
    %v919 = vmax.f32 %v895, 0.0
    %v920 = vmax.f32 %v896, 0.0
    %v921 = vmax.f32 %v897, 0.0
    %v922 = vmax.f32 %v898, 0.0
    %v923 = vmax.f32 %v899, 0.0
    %v924 = vmax.f32 %v900, 0.0
    %v925 = vmax.f32 %v901, 0.0
    %v926 = vmax.f32 %v902, 0.0
    %v927 = vmax.f32 %v903, 0.0
    %v928 = vmax.f32 %v904, 0.0
    %v929 = vmax.f32 %v905, 0.0
    %v930 = vmax.f32 %v906, 0.0
    %v931 = vmax.f32 %v907, 0.0
    %v932 = vmax.f32 %v908, 0.0
    %v933 = vmax.f32 %v909, 0.0
    %v934 = vmax.f32 %v910, 0.0
    %v935 = vmax.f32 %v911, 0.0
    %v936 = vmax.f32 %v912, 0.0
    %v937 = vmax.f32 %v913, 0.0
    %v962 = vcombine.low %v914, %v915
    %v963 = vcombine.high %v914, %v915
    %v964 = vcombine.low %v916, %v917
    %v965 = vcombine.high %v916, %v917
    %v967 = vunpack.c.l.s4 1983009808
    %v968 = vunpack.c.0.s8 %v967
    %v969 = vlaneseq
    %v970 = vshrl.u32 %v969, 7
    %v971 = vsub.s32 %v968, %v970
    %v972 = vrot.slane %v962, %v971
    %v974 = vunpack.c.l.s4 1983009808
    %v975 = vunpack.c.0.s8 %v974
    %v976 = vlaneseq
    %v977 = vshrl.u32 %v976, 7
    %v978 = vsub.s32 %v975, %v977
    %v979 = vrot.slane %v963, %v978
    %v981 = vunpack.c.l.s4 1983009808
    %v982 = vunpack.c.0.s8 %v981
    %v983 = vlaneseq
    %v984 = vshrl.u32 %v983, 7
    %v985 = vsub.s32 %v982, %v984
    %v986 = vrot.slane %v964, %v985
    %v988 = vunpack.c.l.s4 1983009808
    %v989 = vunpack.c.0.s8 %v988
    %v990 = vlaneseq
    %v991 = vshrl.u32 %v990, 7
    %v992 = vsub.s32 %v989, %v991
    %v993 = vrot.slane %v965, %v992
    %v994 = vcombine.low %v972, %v986
    %v995 = vcombine.high %v972, %v986
    %v996 = vcombine.low %v979, %v993
    %v997 = vcombine.high %v979, %v993
    %v998 = vcombine.low %v918, %v919
    %v999 = vcombine.high %v918, %v919
    %v1000 = vcombine.low %v920, %v921
    %v1001 = vcombine.high %v920, %v921
    %v1003 = vunpack.c.l.s4 1983009808
    %v1004 = vunpack.c.0.s8 %v1003
    %v1005 = vlaneseq
    %v1006 = vshrl.u32 %v1005, 7
    %v1007 = vsub.s32 %v1004, %v1006
    %v1008 = vrot.slane %v998, %v1007
    %v1010 = vunpack.c.l.s4 1983009808
    %v1011 = vunpack.c.0.s8 %v1010
    %v1012 = vlaneseq
    %v1013 = vshrl.u32 %v1012, 7
    %v1014 = vsub.s32 %v1011, %v1013
    %v1015 = vrot.slane %v999, %v1014
    %v1017 = vunpack.c.l.s4 1983009808
    %v1018 = vunpack.c.0.s8 %v1017
    %v1019 = vlaneseq
    %v1020 = vshrl.u32 %v1019, 7
    %v1021 = vsub.s32 %v1018, %v1020
    %v1022 = vrot.slane %v1000, %v1021
    %v1024 = vunpack.c.l.s4 1983009808
    %v1025 = vunpack.c.0.s8 %v1024
    %v1026 = vlaneseq
    %v1027 = vshrl.u32 %v1026, 7
    %v1028 = vsub.s32 %v1025, %v1027
    %v1029 = vrot.slane %v1001, %v1028
    %v1030 = vcombine.low %v1008, %v1022
    %v1031 = vcombine.high %v1008, %v1022
    %v1032 = vcombine.low %v1015, %v1029
    %v1033 = vcombine.high %v1015, %v1029
    %v1034 = vcombine.low %v922, %v923
    %v1035 = vcombine.high %v922, %v923
    %v1036 = vcombine.low %v924, %v925
    %v1037 = vcombine.high %v924, %v925
    %v1039 = vunpack.c.l.s4 1983009808
    %v1040 = vunpack.c.0.s8 %v1039
    %v1041 = vlaneseq
    %v1042 = vshrl.u32 %v1041, 7
    %v1043 = vsub.s32 %v1040, %v1042
    %v1044 = vrot.slane %v1034, %v1043
    %v1046 = vunpack.c.l.s4 1983009808
    %v1047 = vunpack.c.0.s8 %v1046
    %v1048 = vlaneseq
    %v1049 = vshrl.u32 %v1048, 7
    %v1050 = vsub.s32 %v1047, %v1049
    %v1051 = vrot.slane %v1035, %v1050
    %v1053 = vunpack.c.l.s4 1983009808
    %v1054 = vunpack.c.0.s8 %v1053
    %v1055 = vlaneseq
    %v1056 = vshrl.u32 %v1055, 7
    %v1057 = vsub.s32 %v1054, %v1056
    %v1058 = vrot.slane %v1036, %v1057
    %v1060 = vunpack.c.l.s4 1983009808
    %v1061 = vunpack.c.0.s8 %v1060
    %v1062 = vlaneseq
    %v1063 = vshrl.u32 %v1062, 7
    %v1064 = vsub.s32 %v1061, %v1063
    %v1065 = vrot.slane %v1037, %v1064
    %v1066 = vcombine.low %v1044, %v1058
    %v1067 = vcombine.high %v1044, %v1058
    %v1068 = vcombine.low %v1051, %v1065
    %v1069 = vcombine.high %v1051, %v1065
    %v1070 = vcombine.low %v926, %v927
    %v1071 = vcombine.high %v926, %v927
    %v1072 = vcombine.low %v928, %v929
    %v1073 = vcombine.high %v928, %v929
    %v1075 = vunpack.c.l.s4 1983009808
    %v1076 = vunpack.c.0.s8 %v1075
    %v1077 = vlaneseq
    %v1078 = vshrl.u32 %v1077, 7
    %v1079 = vsub.s32 %v1076, %v1078
    %v1080 = vrot.slane %v1070, %v1079
    %v1082 = vunpack.c.l.s4 1983009808
    %v1083 = vunpack.c.0.s8 %v1082
    %v1084 = vlaneseq
    %v1085 = vshrl.u32 %v1084, 7
    %v1086 = vsub.s32 %v1083, %v1085
    %v1087 = vrot.slane %v1071, %v1086
    %v1089 = vunpack.c.l.s4 1983009808
    %v1090 = vunpack.c.0.s8 %v1089
    %v1091 = vlaneseq
    %v1092 = vshrl.u32 %v1091, 7
    %v1093 = vsub.s32 %v1090, %v1092
    %v1094 = vrot.slane %v1072, %v1093
    %v1096 = vunpack.c.l.s4 1983009808
    %v1097 = vunpack.c.0.s8 %v1096
    %v1098 = vlaneseq
    %v1099 = vshrl.u32 %v1098, 7
    %v1100 = vsub.s32 %v1097, %v1099
    %v1101 = vrot.slane %v1073, %v1100
    %v1102 = vcombine.low %v1080, %v1094
    %v1103 = vcombine.high %v1080, %v1094
    %v1104 = vcombine.low %v1087, %v1101
    %v1105 = vcombine.high %v1087, %v1101
    %v1106 = vcombine.low %v930, %v931
    %v1107 = vcombine.high %v930, %v931
    %v1108 = vcombine.low %v932, %v933
    %v1109 = vcombine.high %v932, %v933
    %v1111 = vunpack.c.l.s4 1983009808
    %v1112 = vunpack.c.0.s8 %v1111
    %v1113 = vlaneseq
    %v1114 = vshrl.u32 %v1113, 7
    %v1115 = vsub.s32 %v1112, %v1114
    %v1116 = vrot.slane %v1106, %v1115
    %v1118 = vunpack.c.l.s4 1983009808
    %v1119 = vunpack.c.0.s8 %v1118
    %v1120 = vlaneseq
    %v1121 = vshrl.u32 %v1120, 7
    %v1122 = vsub.s32 %v1119, %v1121
    %v1123 = vrot.slane %v1107, %v1122
    %v1125 = vunpack.c.l.s4 1983009808
    %v1126 = vunpack.c.0.s8 %v1125
    %v1127 = vlaneseq
    %v1128 = vshrl.u32 %v1127, 7
    %v1129 = vsub.s32 %v1126, %v1128
    %v1130 = vrot.slane %v1108, %v1129
    %v1132 = vunpack.c.l.s4 1983009808
    %v1133 = vunpack.c.0.s8 %v1132
    %v1134 = vlaneseq
    %v1135 = vshrl.u32 %v1134, 7
    %v1136 = vsub.s32 %v1133, %v1135
    %v1137 = vrot.slane %v1109, %v1136
    %v1138 = vcombine.low %v1116, %v1130
    %v1139 = vcombine.high %v1116, %v1130
    %v1140 = vcombine.low %v1123, %v1137
    %v1141 = vcombine.high %v1123, %v1137
    %v1142 = vcombine.low %v934, %v935
    %v1143 = vcombine.high %v934, %v935
    %v1144 = vcombine.low %v936, %v937
    %v1145 = vcombine.high %v936, %v937
    %v1147 = vunpack.c.l.s4 1983009808
    %v1148 = vunpack.c.0.s8 %v1147
    %v1149 = vlaneseq
    %v1150 = vshrl.u32 %v1149, 7
    %v1151 = vsub.s32 %v1148, %v1150
    %v1152 = vrot.slane %v1142, %v1151
    %v1154 = vunpack.c.l.s4 1983009808
    %v1155 = vunpack.c.0.s8 %v1154
    %v1156 = vlaneseq
    %v1157 = vshrl.u32 %v1156, 7
    %v1158 = vsub.s32 %v1155, %v1157
    %v1159 = vrot.slane %v1143, %v1158
    %v1161 = vunpack.c.l.s4 1983009808
    %v1162 = vunpack.c.0.s8 %v1161
    %v1163 = vlaneseq
    %v1164 = vshrl.u32 %v1163, 7
    %v1165 = vsub.s32 %v1162, %v1164
    %v1166 = vrot.slane %v1144, %v1165
    %v1168 = vunpack.c.l.s4 1983009808
    %v1169 = vunpack.c.0.s8 %v1168
    %v1170 = vlaneseq
    %v1171 = vshrl.u32 %v1170, 7
    %v1172 = vsub.s32 %v1169, %v1171
    %v1173 = vrot.slane %v1145, %v1172
    %v1174 = vcombine.low %v1152, %v1166
    %v1175 = vcombine.high %v1152, %v1166
    %v1176 = vcombine.low %v1159, %v1173
    %v1177 = vcombine.high %v1159, %v1173
    %v1202 = vrot.slane %v994, 7
    %v1203 = vrot.slane %v1202, 2
    %v1204 = vrot.slane %v995, 7
    %v1205 = vrot.slane %v1204, 2
    %v1206 = vrot.slane %v996, 7
    %v1207 = vrot.slane %v1206, 2
    %v1208 = vrot.slane %v997, 7
    %v1209 = vrot.slane %v1208, 2
    %v1210 = vrot.slane %v1030, 7
    %v1211 = vrot.slane %v1210, 2
    %v1212 = vrot.slane %v1031, 7
    %v1213 = vrot.slane %v1212, 2
    %v1214 = vrot.slane %v1032, 7
    %v1215 = vrot.slane %v1214, 2
    %v1216 = vrot.slane %v1033, 7
    %v1217 = vrot.slane %v1216, 2
    %v1218 = vrot.slane %v1066, 7
    %v1219 = vrot.slane %v1218, 2
    %v1220 = vrot.slane %v1067, 7
    %v1221 = vrot.slane %v1220, 2
    %v1222 = vrot.slane %v1068, 7
    %v1223 = vrot.slane %v1222, 2
    %v1224 = vrot.slane %v1069, 7
    %v1225 = vrot.slane %v1224, 2
    %v1226 = vrot.slane %v1102, 7
    %v1227 = vrot.slane %v1226, 2
    %v1228 = vrot.slane %v1103, 7
    %v1229 = vrot.slane %v1228, 2
    %v1230 = vrot.slane %v1104, 7
    %v1231 = vrot.slane %v1230, 2
    %v1232 = vrot.slane %v1105, 7
    %v1233 = vrot.slane %v1232, 2
    %v1234 = vrot.slane %v1138, 7
    %v1235 = vrot.slane %v1234, 2
    %v1236 = vrot.slane %v1139, 7
    %v1237 = vrot.slane %v1236, 2
    %v1238 = vrot.slane %v1140, 7
    %v1239 = vrot.slane %v1238, 2
    %v1240 = vrot.slane %v1141, 7
    %v1241 = vrot.slane %v1240, 2
    %v1242 = vrot.slane %v1174, 7
    %v1243 = vrot.slane %v1242, 2
    %v1244 = vrot.slane %v1175, 7
    %v1245 = vrot.slane %v1244, 2
    %v1246 = vrot.slane %v1176, 7
    %v1247 = vrot.slane %v1246, 2
    %v1248 = vrot.slane %v1177, 7
    %v1249 = vrot.slane %v1248, 2
    %v1274 = vmax.f32 %v994, %v1203
    %v1275 = vmax.f32 %v995, %v1205
    %v1276 = vmax.f32 %v996, %v1207
    %v1277 = vmax.f32 %v997, %v1209
    %v1278 = vmax.f32 %v1030, %v1211
    %v1279 = vmax.f32 %v1031, %v1213
    %v1280 = vmax.f32 %v1032, %v1215
    %v1281 = vmax.f32 %v1033, %v1217
    %v1282 = vmax.f32 %v1066, %v1219
    %v1283 = vmax.f32 %v1067, %v1221
    %v1284 = vmax.f32 %v1068, %v1223
    %v1285 = vmax.f32 %v1069, %v1225
    %v1286 = vmax.f32 %v1102, %v1227
    %v1287 = vmax.f32 %v1103, %v1229
    %v1288 = vmax.f32 %v1104, %v1231
    %v1289 = vmax.f32 %v1105, %v1233
    %v1290 = vmax.f32 %v1138, %v1235
    %v1291 = vmax.f32 %v1139, %v1237
    %v1292 = vmax.f32 %v1140, %v1239
    %v1293 = vmax.f32 %v1141, %v1241
    %v1294 = vmax.f32 %v1174, %v1243
    %v1295 = vmax.f32 %v1175, %v1245
    %v1296 = vmax.f32 %v1176, %v1247
    %v1297 = vmax.f32 %v1177, %v1249
    %v1322 = vlaneseq
    %v1323 = vshrl.u32 %v1322, 7
    %v1324 = vsub.s32 0, %v1323
    %v1325 = vrot.slane %v1274, %v1324
    %v1326 = vlaneseq
    %v1327 = vshrl.u32 %v1326, 7
    %v1328 = vsub.s32 2, %v1327
    %v1329 = vrot.slane %v1274, %v1328
    %v1330 = vlaneseq
    %v1331 = vshrl.u32 %v1330, 7
    %v1332 = vsub.s32 4, %v1331
    %v1333 = vrot.slane %v1274, %v1332
    %v1334 = vlaneseq
    %v1335 = vshrl.u32 %v1334, 7
    %v1336 = vsub.s32 6, %v1335
    %v1337 = vrot.slane %v1274, %v1336
    %v1338 = vlaneseq
    %v1339 = vshrl.u32 %v1338, 7
    %v1340 = vsub.s32 0, %v1339
    %v1341 = vrot.slane %v1275, %v1340
    %v1342 = vlaneseq
    %v1343 = vshrl.u32 %v1342, 7
    %v1344 = vsub.s32 2, %v1343
    %v1345 = vrot.slane %v1275, %v1344
    %v1346 = vlaneseq
    %v1347 = vshrl.u32 %v1346, 7
    %v1348 = vsub.s32 4, %v1347
    %v1349 = vrot.slane %v1275, %v1348
    %v1350 = vlaneseq
    %v1351 = vshrl.u32 %v1350, 7
    %v1352 = vsub.s32 6, %v1351
    %v1353 = vrot.slane %v1275, %v1352
    %v1354 = vlaneseq
    %v1355 = vshrl.u32 %v1354, 7
    %v1356 = vsub.s32 0, %v1355
    %v1357 = vrot.slane %v1276, %v1356
    %v1358 = vlaneseq
    %v1359 = vshrl.u32 %v1358, 7
    %v1360 = vsub.s32 2, %v1359
    %v1361 = vrot.slane %v1276, %v1360
    %v1362 = vlaneseq
    %v1363 = vshrl.u32 %v1362, 7
    %v1364 = vsub.s32 4, %v1363
    %v1365 = vrot.slane %v1276, %v1364
    %v1366 = vlaneseq
    %v1367 = vshrl.u32 %v1366, 7
    %v1368 = vsub.s32 6, %v1367
    %v1369 = vrot.slane %v1276, %v1368
    %v1370 = vlaneseq
    %v1371 = vshrl.u32 %v1370, 7
    %v1372 = vsub.s32 0, %v1371
    %v1373 = vrot.slane %v1277, %v1372
    %v1374 = vlaneseq
    %v1375 = vshrl.u32 %v1374, 7
    %v1376 = vsub.s32 2, %v1375
    %v1377 = vrot.slane %v1277, %v1376
    %v1378 = vlaneseq
    %v1379 = vshrl.u32 %v1378, 7
    %v1380 = vsub.s32 4, %v1379
    %v1381 = vrot.slane %v1277, %v1380
    %v1382 = vlaneseq
    %v1383 = vshrl.u32 %v1382, 7
    %v1384 = vsub.s32 6, %v1383
    %v1385 = vrot.slane %v1277, %v1384
    %v1386 = vlaneseq
    %v1387 = vshrl.u32 %v1386, 7
    %v1388 = vsub.s32 0, %v1387
    %v1389 = vrot.slane %v1278, %v1388
    %v1390 = vlaneseq
    %v1391 = vshrl.u32 %v1390, 7
    %v1392 = vsub.s32 2, %v1391
    %v1393 = vrot.slane %v1278, %v1392
    %v1394 = vlaneseq
    %v1395 = vshrl.u32 %v1394, 7
    %v1396 = vsub.s32 4, %v1395
    %v1397 = vrot.slane %v1278, %v1396
    %v1398 = vlaneseq
    %v1399 = vshrl.u32 %v1398, 7
    %v1400 = vsub.s32 6, %v1399
    %v1401 = vrot.slane %v1278, %v1400
    %v1402 = vlaneseq
    %v1403 = vshrl.u32 %v1402, 7
    %v1404 = vsub.s32 0, %v1403
    %v1405 = vrot.slane %v1279, %v1404
    %v1406 = vlaneseq
    %v1407 = vshrl.u32 %v1406, 7
    %v1408 = vsub.s32 2, %v1407
    %v1409 = vrot.slane %v1279, %v1408
    %v1410 = vlaneseq
    %v1411 = vshrl.u32 %v1410, 7
    %v1412 = vsub.s32 4, %v1411
    %v1413 = vrot.slane %v1279, %v1412
    %v1414 = vlaneseq
    %v1415 = vshrl.u32 %v1414, 7
    %v1416 = vsub.s32 6, %v1415
    %v1417 = vrot.slane %v1279, %v1416
    %v1418 = vlaneseq
    %v1419 = vshrl.u32 %v1418, 7
    %v1420 = vsub.s32 0, %v1419
    %v1421 = vrot.slane %v1280, %v1420
    %v1422 = vlaneseq
    %v1423 = vshrl.u32 %v1422, 7
    %v1424 = vsub.s32 2, %v1423
    %v1425 = vrot.slane %v1280, %v1424
    %v1426 = vlaneseq
    %v1427 = vshrl.u32 %v1426, 7
    %v1428 = vsub.s32 4, %v1427
    %v1429 = vrot.slane %v1280, %v1428
    %v1430 = vlaneseq
    %v1431 = vshrl.u32 %v1430, 7
    %v1432 = vsub.s32 6, %v1431
    %v1433 = vrot.slane %v1280, %v1432
    %v1434 = vlaneseq
    %v1435 = vshrl.u32 %v1434, 7
    %v1436 = vsub.s32 0, %v1435
    %v1437 = vrot.slane %v1281, %v1436
    %v1438 = vlaneseq
    %v1439 = vshrl.u32 %v1438, 7
    %v1440 = vsub.s32 2, %v1439
    %v1441 = vrot.slane %v1281, %v1440
    %v1442 = vlaneseq
    %v1443 = vshrl.u32 %v1442, 7
    %v1444 = vsub.s32 4, %v1443
    %v1445 = vrot.slane %v1281, %v1444
    %v1446 = vlaneseq
    %v1447 = vshrl.u32 %v1446, 7
    %v1448 = vsub.s32 6, %v1447
    %v1449 = vrot.slane %v1281, %v1448
    %v1450 = vlaneseq
    %v1451 = vshrl.u32 %v1450, 7
    %v1452 = vsub.s32 0, %v1451
    %v1453 = vrot.slane %v1282, %v1452
    %v1454 = vlaneseq
    %v1455 = vshrl.u32 %v1454, 7
    %v1456 = vsub.s32 2, %v1455
    %v1457 = vrot.slane %v1282, %v1456
    %v1458 = vlaneseq
    %v1459 = vshrl.u32 %v1458, 7
    %v1460 = vsub.s32 4, %v1459
    %v1461 = vrot.slane %v1282, %v1460
    %v1462 = vlaneseq
    %v1463 = vshrl.u32 %v1462, 7
    %v1464 = vsub.s32 6, %v1463
    %v1465 = vrot.slane %v1282, %v1464
    %v1466 = vlaneseq
    %v1467 = vshrl.u32 %v1466, 7
    %v1468 = vsub.s32 0, %v1467
    %v1469 = vrot.slane %v1283, %v1468
    %v1470 = vlaneseq
    %v1471 = vshrl.u32 %v1470, 7
    %v1472 = vsub.s32 2, %v1471
    %v1473 = vrot.slane %v1283, %v1472
    %v1474 = vlaneseq
    %v1475 = vshrl.u32 %v1474, 7
    %v1476 = vsub.s32 4, %v1475
    %v1477 = vrot.slane %v1283, %v1476
    %v1478 = vlaneseq
    %v1479 = vshrl.u32 %v1478, 7
    %v1480 = vsub.s32 6, %v1479
    %v1481 = vrot.slane %v1283, %v1480
    %v1482 = vlaneseq
    %v1483 = vshrl.u32 %v1482, 7
    %v1484 = vsub.s32 0, %v1483
    %v1485 = vrot.slane %v1284, %v1484
    %v1486 = vlaneseq
    %v1487 = vshrl.u32 %v1486, 7
    %v1488 = vsub.s32 2, %v1487
    %v1489 = vrot.slane %v1284, %v1488
    %v1490 = vlaneseq
    %v1491 = vshrl.u32 %v1490, 7
    %v1492 = vsub.s32 4, %v1491
    %v1493 = vrot.slane %v1284, %v1492
    %v1494 = vlaneseq
    %v1495 = vshrl.u32 %v1494, 7
    %v1496 = vsub.s32 6, %v1495
    %v1497 = vrot.slane %v1284, %v1496
    %v1498 = vlaneseq
    %v1499 = vshrl.u32 %v1498, 7
    %v1500 = vsub.s32 0, %v1499
    %v1501 = vrot.slane %v1285, %v1500
    %v1502 = vlaneseq
    %v1503 = vshrl.u32 %v1502, 7
    %v1504 = vsub.s32 2, %v1503
    %v1505 = vrot.slane %v1285, %v1504
    %v1506 = vlaneseq
    %v1507 = vshrl.u32 %v1506, 7
    %v1508 = vsub.s32 4, %v1507
    %v1509 = vrot.slane %v1285, %v1508
    %v1510 = vlaneseq
    %v1511 = vshrl.u32 %v1510, 7
    %v1512 = vsub.s32 6, %v1511
    %v1513 = vrot.slane %v1285, %v1512
    %v1514 = vlaneseq
    %v1515 = vshrl.u32 %v1514, 7
    %v1516 = vsub.s32 0, %v1515
    %v1517 = vrot.slane %v1286, %v1516
    %v1518 = vlaneseq
    %v1519 = vshrl.u32 %v1518, 7
    %v1520 = vsub.s32 2, %v1519
    %v1521 = vrot.slane %v1286, %v1520
    %v1522 = vlaneseq
    %v1523 = vshrl.u32 %v1522, 7
    %v1524 = vsub.s32 4, %v1523
    %v1525 = vrot.slane %v1286, %v1524
    %v1526 = vlaneseq
    %v1527 = vshrl.u32 %v1526, 7
    %v1528 = vsub.s32 6, %v1527
    %v1529 = vrot.slane %v1286, %v1528
    %v1530 = vlaneseq
    %v1531 = vshrl.u32 %v1530, 7
    %v1532 = vsub.s32 0, %v1531
    %v1533 = vrot.slane %v1287, %v1532
    %v1534 = vlaneseq
    %v1535 = vshrl.u32 %v1534, 7
    %v1536 = vsub.s32 2, %v1535
    %v1537 = vrot.slane %v1287, %v1536
    %v1538 = vlaneseq
    %v1539 = vshrl.u32 %v1538, 7
    %v1540 = vsub.s32 4, %v1539
    %v1541 = vrot.slane %v1287, %v1540
    %v1542 = vlaneseq
    %v1543 = vshrl.u32 %v1542, 7
    %v1544 = vsub.s32 6, %v1543
    %v1545 = vrot.slane %v1287, %v1544
    %v1546 = vlaneseq
    %v1547 = vshrl.u32 %v1546, 7
    %v1548 = vsub.s32 0, %v1547
    %v1549 = vrot.slane %v1288, %v1548
    %v1550 = vlaneseq
    %v1551 = vshrl.u32 %v1550, 7
    %v1552 = vsub.s32 2, %v1551
    %v1553 = vrot.slane %v1288, %v1552
    %v1554 = vlaneseq
    %v1555 = vshrl.u32 %v1554, 7
    %v1556 = vsub.s32 4, %v1555
    %v1557 = vrot.slane %v1288, %v1556
    %v1558 = vlaneseq
    %v1559 = vshrl.u32 %v1558, 7
    %v1560 = vsub.s32 6, %v1559
    %v1561 = vrot.slane %v1288, %v1560
    %v1562 = vlaneseq
    %v1563 = vshrl.u32 %v1562, 7
    %v1564 = vsub.s32 0, %v1563
    %v1565 = vrot.slane %v1289, %v1564
    %v1566 = vlaneseq
    %v1567 = vshrl.u32 %v1566, 7
    %v1568 = vsub.s32 2, %v1567
    %v1569 = vrot.slane %v1289, %v1568
    %v1570 = vlaneseq
    %v1571 = vshrl.u32 %v1570, 7
    %v1572 = vsub.s32 4, %v1571
    %v1573 = vrot.slane %v1289, %v1572
    %v1574 = vlaneseq
    %v1575 = vshrl.u32 %v1574, 7
    %v1576 = vsub.s32 6, %v1575
    %v1577 = vrot.slane %v1289, %v1576
    %v1578 = vlaneseq
    %v1579 = vshrl.u32 %v1578, 7
    %v1580 = vsub.s32 0, %v1579
    %v1581 = vrot.slane %v1290, %v1580
    %v1582 = vlaneseq
    %v1583 = vshrl.u32 %v1582, 7
    %v1584 = vsub.s32 2, %v1583
    %v1585 = vrot.slane %v1290, %v1584
    %v1586 = vlaneseq
    %v1587 = vshrl.u32 %v1586, 7
    %v1588 = vsub.s32 4, %v1587
    %v1589 = vrot.slane %v1290, %v1588
    %v1590 = vlaneseq
    %v1591 = vshrl.u32 %v1590, 7
    %v1592 = vsub.s32 6, %v1591
    %v1593 = vrot.slane %v1290, %v1592
    %v1594 = vlaneseq
    %v1595 = vshrl.u32 %v1594, 7
    %v1596 = vsub.s32 0, %v1595
    %v1597 = vrot.slane %v1291, %v1596
    %v1598 = vlaneseq
    %v1599 = vshrl.u32 %v1598, 7
    %v1600 = vsub.s32 2, %v1599
    %v1601 = vrot.slane %v1291, %v1600
    %v1602 = vlaneseq
    %v1603 = vshrl.u32 %v1602, 7
    %v1604 = vsub.s32 4, %v1603
    %v1605 = vrot.slane %v1291, %v1604
    %v1606 = vlaneseq
    %v1607 = vshrl.u32 %v1606, 7
    %v1608 = vsub.s32 6, %v1607
    %v1609 = vrot.slane %v1291, %v1608
    %v1610 = vlaneseq
    %v1611 = vshrl.u32 %v1610, 7
    %v1612 = vsub.s32 0, %v1611
    %v1613 = vrot.slane %v1292, %v1612
    %v1614 = vlaneseq
    %v1615 = vshrl.u32 %v1614, 7
    %v1616 = vsub.s32 2, %v1615
    %v1617 = vrot.slane %v1292, %v1616
    %v1618 = vlaneseq
    %v1619 = vshrl.u32 %v1618, 7
    %v1620 = vsub.s32 4, %v1619
    %v1621 = vrot.slane %v1292, %v1620
    %v1622 = vlaneseq
    %v1623 = vshrl.u32 %v1622, 7
    %v1624 = vsub.s32 6, %v1623
    %v1625 = vrot.slane %v1292, %v1624
    %v1626 = vlaneseq
    %v1627 = vshrl.u32 %v1626, 7
    %v1628 = vsub.s32 0, %v1627
    %v1629 = vrot.slane %v1293, %v1628
    %v1630 = vlaneseq
    %v1631 = vshrl.u32 %v1630, 7
    %v1632 = vsub.s32 2, %v1631
    %v1633 = vrot.slane %v1293, %v1632
    %v1634 = vlaneseq
    %v1635 = vshrl.u32 %v1634, 7
    %v1636 = vsub.s32 4, %v1635
    %v1637 = vrot.slane %v1293, %v1636
    %v1638 = vlaneseq
    %v1639 = vshrl.u32 %v1638, 7
    %v1640 = vsub.s32 6, %v1639
    %v1641 = vrot.slane %v1293, %v1640
    %v1642 = vlaneseq
    %v1643 = vshrl.u32 %v1642, 7
    %v1644 = vsub.s32 0, %v1643
    %v1645 = vrot.slane %v1294, %v1644
    %v1646 = vlaneseq
    %v1647 = vshrl.u32 %v1646, 7
    %v1648 = vsub.s32 2, %v1647
    %v1649 = vrot.slane %v1294, %v1648
    %v1650 = vlaneseq
    %v1651 = vshrl.u32 %v1650, 7
    %v1652 = vsub.s32 4, %v1651
    %v1653 = vrot.slane %v1294, %v1652
    %v1654 = vlaneseq
    %v1655 = vshrl.u32 %v1654, 7
    %v1656 = vsub.s32 6, %v1655
    %v1657 = vrot.slane %v1294, %v1656
    %v1658 = vlaneseq
    %v1659 = vshrl.u32 %v1658, 7
    %v1660 = vsub.s32 0, %v1659
    %v1661 = vrot.slane %v1295, %v1660
    %v1662 = vlaneseq
    %v1663 = vshrl.u32 %v1662, 7
    %v1664 = vsub.s32 2, %v1663
    %v1665 = vrot.slane %v1295, %v1664
    %v1666 = vlaneseq
    %v1667 = vshrl.u32 %v1666, 7
    %v1668 = vsub.s32 4, %v1667
    %v1669 = vrot.slane %v1295, %v1668
    %v1670 = vlaneseq
    %v1671 = vshrl.u32 %v1670, 7
    %v1672 = vsub.s32 6, %v1671
    %v1673 = vrot.slane %v1295, %v1672
    %v1674 = vlaneseq
    %v1675 = vshrl.u32 %v1674, 7
    %v1676 = vsub.s32 0, %v1675
    %v1677 = vrot.slane %v1296, %v1676
    %v1678 = vlaneseq
    %v1679 = vshrl.u32 %v1678, 7
    %v1680 = vsub.s32 2, %v1679
    %v1681 = vrot.slane %v1296, %v1680
    %v1682 = vlaneseq
    %v1683 = vshrl.u32 %v1682, 7
    %v1684 = vsub.s32 4, %v1683
    %v1685 = vrot.slane %v1296, %v1684
    %v1686 = vlaneseq
    %v1687 = vshrl.u32 %v1686, 7
    %v1688 = vsub.s32 6, %v1687
    %v1689 = vrot.slane %v1296, %v1688
    %v1690 = vlaneseq
    %v1691 = vshrl.u32 %v1690, 7
    %v1692 = vsub.s32 0, %v1691
    %v1693 = vrot.slane %v1297, %v1692
    %v1694 = vlaneseq
    %v1695 = vshrl.u32 %v1694, 7
    %v1696 = vsub.s32 2, %v1695
    %v1697 = vrot.slane %v1297, %v1696
    %v1698 = vlaneseq
    %v1699 = vshrl.u32 %v1698, 7
    %v1700 = vsub.s32 4, %v1699
    %v1701 = vrot.slane %v1297, %v1700
    %v1702 = vlaneseq
    %v1703 = vshrl.u32 %v1702, 7
    %v1704 = vsub.s32 6, %v1703
    %v1705 = vrot.slane %v1297, %v1704
    %vm1706 = vcmask 1041409
    %v1707 = vsel %vm1706, %v1341, %v1325
    %vm1708 = vcmask 1042434
    %v1709 = vsel %vm1708, %v1357, %v1707
    %vm1710 = vcmask 1043459
    %v1711 = vsel %vm1710, %v1373, %v1709
    %vm1712 = vcmask 1044484
    %v1713 = vsel %vm1712, %v1389, %v1711
    %vm1714 = vcmask 1045509
    %v1715 = vsel %vm1714, %v1405, %v1713
    %vm1716 = vcmask 1046534
    %v1717 = vsel %vm1716, %v1421, %v1715
    %vm1718 = vcmask 1047559
    %v1719 = vsel %vm1718, %v1437, %v1717
    %v1720 = vsel %vm1706, %v1345, %v1329
    %v1721 = vsel %vm1708, %v1361, %v1720
    %v1722 = vsel %vm1710, %v1377, %v1721
    %v1723 = vsel %vm1712, %v1393, %v1722
    %v1724 = vsel %vm1714, %v1409, %v1723
    %v1725 = vsel %vm1716, %v1425, %v1724
    %v1726 = vsel %vm1718, %v1441, %v1725
    %v1727 = vsel %vm1706, %v1349, %v1333
    %v1728 = vsel %vm1708, %v1365, %v1727
    %v1729 = vsel %vm1710, %v1381, %v1728
    %v1730 = vsel %vm1712, %v1397, %v1729
    %v1731 = vsel %vm1714, %v1413, %v1730
    %v1732 = vsel %vm1716, %v1429, %v1731
    %v1733 = vsel %vm1718, %v1445, %v1732
    %v1734 = vsel %vm1706, %v1353, %v1337
    %v1735 = vsel %vm1708, %v1369, %v1734
    %v1736 = vsel %vm1710, %v1385, %v1735
    %v1737 = vsel %vm1712, %v1401, %v1736
    %v1738 = vsel %vm1714, %v1417, %v1737
    %v1739 = vsel %vm1716, %v1433, %v1738
    %v1740 = vsel %vm1718, %v1449, %v1739
    %v1741 = vsel %vm1706, %v1469, %v1453
    %v1742 = vsel %vm1708, %v1485, %v1741
    %v1743 = vsel %vm1710, %v1501, %v1742
    %v1744 = vsel %vm1712, %v1517, %v1743
    %v1745 = vsel %vm1714, %v1533, %v1744
    %v1746 = vsel %vm1716, %v1549, %v1745
    %v1747 = vsel %vm1718, %v1565, %v1746
    %v1748 = vsel %vm1706, %v1473, %v1457
    %v1749 = vsel %vm1708, %v1489, %v1748
    %v1750 = vsel %vm1710, %v1505, %v1749
    %v1751 = vsel %vm1712, %v1521, %v1750
    %v1752 = vsel %vm1714, %v1537, %v1751
    %v1753 = vsel %vm1716, %v1553, %v1752
    %v1754 = vsel %vm1718, %v1569, %v1753
    %v1755 = vsel %vm1706, %v1477, %v1461
    %v1756 = vsel %vm1708, %v1493, %v1755
    %v1757 = vsel %vm1710, %v1509, %v1756
    %v1758 = vsel %vm1712, %v1525, %v1757
    %v1759 = vsel %vm1714, %v1541, %v1758
    %v1760 = vsel %vm1716, %v1557, %v1759
    %v1761 = vsel %vm1718, %v1573, %v1760
    %v1762 = vsel %vm1706, %v1481, %v1465
    %v1763 = vsel %vm1708, %v1497, %v1762
    %v1764 = vsel %vm1710, %v1513, %v1763
    %v1765 = vsel %vm1712, %v1529, %v1764
    %v1766 = vsel %vm1714, %v1545, %v1765
    %v1767 = vsel %vm1716, %v1561, %v1766
    %v1768 = vsel %vm1718, %v1577, %v1767
    %v1769 = vsel %vm1706, %v1597, %v1581
    %v1770 = vsel %vm1708, %v1613, %v1769
    %v1771 = vsel %vm1710, %v1629, %v1770
    %v1772 = vsel %vm1712, %v1645, %v1771
    %v1773 = vsel %vm1714, %v1661, %v1772
    %v1774 = vsel %vm1716, %v1677, %v1773
    %v1775 = vsel %vm1718, %v1693, %v1774
    %v1776 = vsel %vm1706, %v1601, %v1585
    %v1777 = vsel %vm1708, %v1617, %v1776
    %v1778 = vsel %vm1710, %v1633, %v1777
    %v1779 = vsel %vm1712, %v1649, %v1778
    %v1780 = vsel %vm1714, %v1665, %v1779
    %v1781 = vsel %vm1716, %v1681, %v1780
    %v1782 = vsel %vm1718, %v1697, %v1781
    %v1783 = vsel %vm1706, %v1605, %v1589
    %v1784 = vsel %vm1708, %v1621, %v1783
    %v1785 = vsel %vm1710, %v1637, %v1784
    %v1786 = vsel %vm1712, %v1653, %v1785
    %v1787 = vsel %vm1714, %v1669, %v1786
    %v1788 = vsel %vm1716, %v1685, %v1787
    %v1789 = vsel %vm1718, %v1701, %v1788
    %v1790 = vsel %vm1706, %v1609, %v1593
    %v1791 = vsel %vm1708, %v1625, %v1790
    %v1792 = vsel %vm1710, %v1641, %v1791
    %v1793 = vsel %vm1712, %v1657, %v1792
    %v1794 = vsel %vm1714, %v1673, %v1793
    %v1795 = vsel %vm1716, %v1689, %v1794
    %v1796 = vsel %vm1718, %v1705, %v1795
    %1797 = vrot.lane.b32.xlu0 %v1719, 96
    %v1798 = vpop.permute.xlu0 %1797
    %1799 = vrot.lane.b32.xlu0 %v1726, 96
    %v1800 = vpop.permute.xlu0 %1799
    %1801 = vrot.lane.b32.xlu0 %v1733, 96
    %v1802 = vpop.permute.xlu0 %1801
    %1803 = vrot.lane.b32.xlu0 %v1740, 96
    %v1804 = vpop.permute.xlu0 %1803
    %1805 = vrot.lane.b32.xlu0 %v1747, 96
    %v1806 = vpop.permute.xlu0 %1805
    %1807 = vrot.lane.b32.xlu0 %v1754, 96
    %v1808 = vpop.permute.xlu0 %1807
    %1809 = vrot.lane.b32.xlu0 %v1761, 96
    %v1810 = vpop.permute.xlu0 %1809
    %1811 = vrot.lane.b32.xlu0 %v1768, 96
    %v1812 = vpop.permute.xlu0 %1811
    %1813 = vrot.lane.b32.xlu0 %v1775, 96
    %v1814 = vpop.permute.xlu0 %1813
    %1815 = vrot.lane.b32.xlu0 %v1782, 96
    %v1816 = vpop.permute.xlu0 %1815
    %1817 = vrot.lane.b32.xlu0 %v1789, 96
    %v1818 = vpop.permute.xlu0 %1817
    %1819 = vrot.lane.b32.xlu0 %v1796, 96
    %v1820 = vpop.permute.xlu0 %1819
    %vm1821 = vcmask 785408
    %v1822 = vsel %vm1821, %v1798, %v1800
    %v1823 = vsel %vm1821, %v1800, %v1802
    %v1824 = vsel %vm1821, %v1802, %v1804
    %v1825 = vsel %vm1821, %v1806, %v1808
    %v1826 = vsel %vm1821, %v1808, %v1810
    %v1827 = vsel %vm1821, %v1810, %v1812
    %v1828 = vsel %vm1821, %v1814, %v1816
    %v1829 = vsel %vm1821, %v1816, %v1818
    %v1830 = vsel %vm1821, %v1818, %v1820
    %v1837 = vsel %vm1821, %v1804, %v1798
    %v1838 = vsel %vm1821, %v1812, %v1806
    %v1839 = vsel %vm1821, %v1820, %v1814
    %v1843 = vcombine.low %v1822, %v1823
    %v1844 = vcombine.high %v1822, %v1823
    %v1845 = vcombine.low %v1824, %v1837
    %v1846 = vcombine.high %v1824, %v1837
    %v1848 = vunpack.c.l.s4 1983009808
    %v1849 = vunpack.c.0.s8 %v1848
    %v1850 = vlaneseq
    %v1851 = vshrl.u32 %v1850, 7
    %v1852 = vsub.s32 %v1849, %v1851
    %v1853 = vrot.slane %v1843, %v1852
    %v1855 = vunpack.c.l.s4 1983009808
    %v1856 = vunpack.c.0.s8 %v1855
    %v1857 = vlaneseq
    %v1858 = vshrl.u32 %v1857, 7
    %v1859 = vsub.s32 %v1856, %v1858
    %v1860 = vrot.slane %v1844, %v1859
    %v1862 = vunpack.c.l.s4 1983009808
    %v1863 = vunpack.c.0.s8 %v1862
    %v1864 = vlaneseq
    %v1865 = vshrl.u32 %v1864, 7
    %v1866 = vsub.s32 %v1863, %v1865
    %v1867 = vrot.slane %v1845, %v1866
    %v1869 = vunpack.c.l.s4 1983009808
    %v1870 = vunpack.c.0.s8 %v1869
    %v1871 = vlaneseq
    %v1872 = vshrl.u32 %v1871, 7
    %v1873 = vsub.s32 %v1870, %v1872
    %v1874 = vrot.slane %v1846, %v1873
    %v1875 = vcombine.low %v1853, %v1867
    %v1876 = vcombine.high %v1853, %v1867
    %v1877 = vcombine.low %v1860, %v1874
    %v1878 = vcombine.high %v1860, %v1874
    %v1879 = vcombine.low %v1825, %v1826
    %v1880 = vcombine.high %v1825, %v1826
    %v1881 = vcombine.low %v1827, %v1838
    %v1882 = vcombine.high %v1827, %v1838
    %v1884 = vunpack.c.l.s4 1983009808
    %v1885 = vunpack.c.0.s8 %v1884
    %v1886 = vlaneseq
    %v1887 = vshrl.u32 %v1886, 7
    %v1888 = vsub.s32 %v1885, %v1887
    %v1889 = vrot.slane %v1879, %v1888
    %v1891 = vunpack.c.l.s4 1983009808
    %v1892 = vunpack.c.0.s8 %v1891
    %v1893 = vlaneseq
    %v1894 = vshrl.u32 %v1893, 7
    %v1895 = vsub.s32 %v1892, %v1894
    %v1896 = vrot.slane %v1880, %v1895
    %v1898 = vunpack.c.l.s4 1983009808
    %v1899 = vunpack.c.0.s8 %v1898
    %v1900 = vlaneseq
    %v1901 = vshrl.u32 %v1900, 7
    %v1902 = vsub.s32 %v1899, %v1901
    %v1903 = vrot.slane %v1881, %v1902
    %v1905 = vunpack.c.l.s4 1983009808
    %v1906 = vunpack.c.0.s8 %v1905
    %v1907 = vlaneseq
    %v1908 = vshrl.u32 %v1907, 7
    %v1909 = vsub.s32 %v1906, %v1908
    %v1910 = vrot.slane %v1882, %v1909
    %v1911 = vcombine.low %v1889, %v1903
    %v1912 = vcombine.high %v1889, %v1903
    %v1913 = vcombine.low %v1896, %v1910
    %v1914 = vcombine.high %v1896, %v1910
    %v1915 = vcombine.low %v1828, %v1829
    %v1916 = vcombine.high %v1828, %v1829
    %v1917 = vcombine.low %v1830, %v1839
    %v1918 = vcombine.high %v1830, %v1839
    %v1920 = vunpack.c.l.s4 1983009808
    %v1921 = vunpack.c.0.s8 %v1920
    %v1922 = vlaneseq
    %v1923 = vshrl.u32 %v1922, 7
    %v1924 = vsub.s32 %v1921, %v1923
    %v1925 = vrot.slane %v1915, %v1924
    %v1927 = vunpack.c.l.s4 1983009808
    %v1928 = vunpack.c.0.s8 %v1927
    %v1929 = vlaneseq
    %v1930 = vshrl.u32 %v1929, 7
    %v1931 = vsub.s32 %v1928, %v1930
    %v1932 = vrot.slane %v1916, %v1931
    %v1934 = vunpack.c.l.s4 1983009808
    %v1935 = vunpack.c.0.s8 %v1934
    %v1936 = vlaneseq
    %v1937 = vshrl.u32 %v1936, 7
    %v1938 = vsub.s32 %v1935, %v1937
    %v1939 = vrot.slane %v1917, %v1938
    %v1941 = vunpack.c.l.s4 1983009808
    %v1942 = vunpack.c.0.s8 %v1941
    %v1943 = vlaneseq
    %v1944 = vshrl.u32 %v1943, 7
    %v1945 = vsub.s32 %v1942, %v1944
    %v1946 = vrot.slane %v1918, %v1945
    %v1947 = vcombine.low %v1925, %v1939
    %v1948 = vcombine.high %v1925, %v1939
    %v1949 = vcombine.low %v1932, %v1946
    %v1950 = vcombine.high %v1932, %v1946
    %v1951 = vrot.slane %v1875, 1
    %v1952 = vrot.slane %v1876, 1
    %v1953 = vrot.slane %v1877, 1
    %v1954 = vrot.slane %v1878, 1
    %v1955 = vrot.slane %v1911, 1
    %v1956 = vrot.slane %v1912, 1
    %v1957 = vrot.slane %v1913, 1
    %v1958 = vrot.slane %v1914, 1
    %v1959 = vrot.slane %v1947, 1
    %v1960 = vrot.slane %v1948, 1
    %v1961 = vrot.slane %v1949, 1
    %v1962 = vrot.slane %v1950, 1
    %v1987 = vmax.f32 %v1274, %v1875
    %v1988 = vmax.f32 %v1275, %v1951
    %v1989 = vmax.f32 %v1276, %v1876
    %v1990 = vmax.f32 %v1277, %v1952
    %v1991 = vmax.f32 %v1278, %v1877
    %v1992 = vmax.f32 %v1279, %v1953
    %v1993 = vmax.f32 %v1280, %v1878
    %v1994 = vmax.f32 %v1281, %v1954
    %v1995 = vmax.f32 %v1282, %v1911
    %v1996 = vmax.f32 %v1283, %v1955
    %v1997 = vmax.f32 %v1284, %v1912
    %v1998 = vmax.f32 %v1285, %v1956
    %v1999 = vmax.f32 %v1286, %v1913
    %v2000 = vmax.f32 %v1287, %v1957
    %v2001 = vmax.f32 %v1288, %v1914
    %v2002 = vmax.f32 %v1289, %v1958
    %v2003 = vmax.f32 %v1290, %v1947
    %v2004 = vmax.f32 %v1291, %v1959
    %v2005 = vmax.f32 %v1292, %v1948
    %v2006 = vmax.f32 %v1293, %v1960
    %v2007 = vmax.f32 %v1294, %v1949
    %v2008 = vmax.f32 %v1295, %v1961
    %v2009 = vmax.f32 %v1296, %v1950
    %v2010 = vmax.f32 %v1297, %v1962
    %v2011 = vlaneseq
    %v2012 = vshrl.u32 %v2011, 7
    %v2013 = vadd.s32 %v2012, 8
    %v2014 = vadd.s32 %v2012, 16
    %vm2015 = vcmp.lt.s32.totalorder %v2012, 0
    %v2016 = vsub.s32 0, %v2012
    %v2017 = vsel %vm2015, %v2016, %v2012
    %v2018 = vmul.u32.u64.compose %v2017, 2863311531
    %v2019 = vextract.low.u32 %v2018
    %v2020 = vextract.high.u32 %v2018
    %v2021 = vshrl.u32 %v2020, 3
    %v2022 = vmul.u32 %v2021, 12
    %v2023 = vsub.s32 %v2017, %v2022
    %v2024 = vsub.s32 0, %v2023
    %v2025 = vsel %vm2015, %v2024, %v2023
    %vm2026 = vcmp.lt.s32.totalorder %v2013, 0
    %v2027 = vsub.s32 0, %v2013
    %v2028 = vsel %vm2026, %v2027, %v2013
    %v2029 = vmul.u32.u64.compose %v2028, 2863311531
    %v2030 = vextract.low.u32 %v2029
    %v2031 = vextract.high.u32 %v2029
    %v2032 = vshrl.u32 %v2031, 3
    %v2033 = vmul.u32 %v2032, 12
    %v2034 = vsub.s32 %v2028, %v2033
    %v2035 = vsub.s32 0, %v2034
    %v2036 = vsel %vm2026, %v2035, %v2034
    %vm2037 = vcmp.lt.s32.totalorder %v2014, 0
    %v2038 = vsub.s32 0, %v2014
    %v2039 = vsel %vm2037, %v2038, %v2014
    %v2040 = vmul.u32.u64.compose %v2039, 2863311531
    %v2041 = vextract.low.u32 %v2040
    %v2042 = vextract.high.u32 %v2040
    %v2043 = vshrl.u32 %v2042, 3
    %v2044 = vmul.u32 %v2043, 12
    %v2045 = vsub.s32 %v2039, %v2044
    %v2046 = vsub.s32 0, %v2045
    %v2047 = vsel %vm2037, %v2046, %v2045
    %vm2048 = vcmp.ne.s32.totalorder %v2025, 0
    %vm2049 = vcmp.ne.s32.totalorder %v2036, 0
    %vm2050 = vcmp.ne.s32.totalorder %v2047, 0
    %vm2051 = vcmp.lt.s32.totalorder %v2025, 0
    %vm2052 = vcmp.lt.s32.totalorder %v2036, 0
    %vm2053 = vcmp.lt.s32.totalorder %v2047, 0
    %vm2054 = vmand %vm2051, %vm2048
    %vm2055 = vmand %vm2052, %vm2049
    %vm2056 = vmand %vm2053, %vm2050
    %v2057 = vadd.s32 %v2025, 12
    %v2058 = vadd.s32 %v2036, 12
    %v2059 = vadd.s32 %v2047, 12
    %v2060 = vsel %vm2054, %v2057, %v2025
    %v2061 = vsel %vm2055, %v2058, %v2036
    %v2062 = vsel %vm2056, %v2059, %v2047
    %vm2063 = vcmp.ge.s32.totalorder %v2060, 3
    %vm2064 = vcmp.ge.s32.totalorder %v2061, 3
    %vm2065 = vcmp.ge.s32.totalorder %v2062, 3
    %vm2066 = vcmp.le.s32.totalorder %v2060, 10
    %vm2067 = vcmp.le.s32.totalorder %v2061, 10
    %vm2068 = vcmp.le.s32.totalorder %v2062, 10
    %vm2069 = vmand %vm2063, %vm2066
    %vm2070 = vmand %vm2064, %vm2067
    %vm2071 = vmand %vm2065, %vm2068
    %v2072 = vsel %vm2069, 1, 0
    %v2073 = vsel %vm2070, 1, 0
    %v2074 = vsel %vm2071, 1, 0
    %vm2075 = vcmp.eq.s32.totalorder %v2072, 1
    %vm2076 = vcmp.eq.s32.totalorder %v2073, 1
    %vm2077 = vcmp.eq.s32.totalorder %v2074, 1
    %v2102 = vlaneseq
    %v2103 = vshrl.u32 %v2102, 7
    %v2104 = vsub.s32 0, %v2103
    %v2105 = vrot.slane %v1987, %v2104
    %v2106 = vlaneseq
    %v2107 = vshrl.u32 %v2106, 7
    %v2108 = vsub.s32 2, %v2107
    %v2109 = vrot.slane %v1987, %v2108
    %v2110 = vlaneseq
    %v2111 = vshrl.u32 %v2110, 7
    %v2112 = vsub.s32 4, %v2111
    %v2113 = vrot.slane %v1987, %v2112
    %v2114 = vlaneseq
    %v2115 = vshrl.u32 %v2114, 7
    %v2116 = vsub.s32 6, %v2115
    %v2117 = vrot.slane %v1987, %v2116
    %v2118 = vlaneseq
    %v2119 = vshrl.u32 %v2118, 7
    %v2120 = vsub.s32 0, %v2119
    %v2121 = vrot.slane %v1988, %v2120
    %v2122 = vlaneseq
    %v2123 = vshrl.u32 %v2122, 7
    %v2124 = vsub.s32 2, %v2123
    %v2125 = vrot.slane %v1988, %v2124
    %v2126 = vlaneseq
    %v2127 = vshrl.u32 %v2126, 7
    %v2128 = vsub.s32 4, %v2127
    %v2129 = vrot.slane %v1988, %v2128
    %v2130 = vlaneseq
    %v2131 = vshrl.u32 %v2130, 7
    %v2132 = vsub.s32 6, %v2131
    %v2133 = vrot.slane %v1988, %v2132
    %v2134 = vlaneseq
    %v2135 = vshrl.u32 %v2134, 7
    %v2136 = vsub.s32 0, %v2135
    %v2137 = vrot.slane %v1989, %v2136
    %v2138 = vlaneseq
    %v2139 = vshrl.u32 %v2138, 7
    %v2140 = vsub.s32 2, %v2139
    %v2141 = vrot.slane %v1989, %v2140
    %v2142 = vlaneseq
    %v2143 = vshrl.u32 %v2142, 7
    %v2144 = vsub.s32 4, %v2143
    %v2145 = vrot.slane %v1989, %v2144
    %v2146 = vlaneseq
    %v2147 = vshrl.u32 %v2146, 7
    %v2148 = vsub.s32 6, %v2147
    %v2149 = vrot.slane %v1989, %v2148
    %v2150 = vlaneseq
    %v2151 = vshrl.u32 %v2150, 7
    %v2152 = vsub.s32 0, %v2151
    %v2153 = vrot.slane %v1990, %v2152
    %v2154 = vlaneseq
    %v2155 = vshrl.u32 %v2154, 7
    %v2156 = vsub.s32 2, %v2155
    %v2157 = vrot.slane %v1990, %v2156
    %v2158 = vlaneseq
    %v2159 = vshrl.u32 %v2158, 7
    %v2160 = vsub.s32 4, %v2159
    %v2161 = vrot.slane %v1990, %v2160
    %v2162 = vlaneseq
    %v2163 = vshrl.u32 %v2162, 7
    %v2164 = vsub.s32 6, %v2163
    %v2165 = vrot.slane %v1990, %v2164
    %v2166 = vlaneseq
    %v2167 = vshrl.u32 %v2166, 7
    %v2168 = vsub.s32 0, %v2167
    %v2169 = vrot.slane %v1991, %v2168
    %v2170 = vlaneseq
    %v2171 = vshrl.u32 %v2170, 7
    %v2172 = vsub.s32 2, %v2171
    %v2173 = vrot.slane %v1991, %v2172
    %v2174 = vlaneseq
    %v2175 = vshrl.u32 %v2174, 7
    %v2176 = vsub.s32 4, %v2175
    %v2177 = vrot.slane %v1991, %v2176
    %v2178 = vlaneseq
    %v2179 = vshrl.u32 %v2178, 7
    %v2180 = vsub.s32 6, %v2179
    %v2181 = vrot.slane %v1991, %v2180
    %v2182 = vlaneseq
    %v2183 = vshrl.u32 %v2182, 7
    %v2184 = vsub.s32 0, %v2183
    %v2185 = vrot.slane %v1992, %v2184
    %v2186 = vlaneseq
    %v2187 = vshrl.u32 %v2186, 7
    %v2188 = vsub.s32 2, %v2187
    %v2189 = vrot.slane %v1992, %v2188
    %v2190 = vlaneseq
    %v2191 = vshrl.u32 %v2190, 7
    %v2192 = vsub.s32 4, %v2191
    %v2193 = vrot.slane %v1992, %v2192
    %v2194 = vlaneseq
    %v2195 = vshrl.u32 %v2194, 7
    %v2196 = vsub.s32 6, %v2195
    %v2197 = vrot.slane %v1992, %v2196
    %v2198 = vlaneseq
    %v2199 = vshrl.u32 %v2198, 7
    %v2200 = vsub.s32 0, %v2199
    %v2201 = vrot.slane %v1993, %v2200
    %v2202 = vlaneseq
    %v2203 = vshrl.u32 %v2202, 7
    %v2204 = vsub.s32 2, %v2203
    %v2205 = vrot.slane %v1993, %v2204
    %v2206 = vlaneseq
    %v2207 = vshrl.u32 %v2206, 7
    %v2208 = vsub.s32 4, %v2207
    %v2209 = vrot.slane %v1993, %v2208
    %v2210 = vlaneseq
    %v2211 = vshrl.u32 %v2210, 7
    %v2212 = vsub.s32 6, %v2211
    %v2213 = vrot.slane %v1993, %v2212
    %v2214 = vlaneseq
    %v2215 = vshrl.u32 %v2214, 7
    %v2216 = vsub.s32 0, %v2215
    %v2217 = vrot.slane %v1994, %v2216
    %v2218 = vlaneseq
    %v2219 = vshrl.u32 %v2218, 7
    %v2220 = vsub.s32 2, %v2219
    %v2221 = vrot.slane %v1994, %v2220
    %v2222 = vlaneseq
    %v2223 = vshrl.u32 %v2222, 7
    %v2224 = vsub.s32 4, %v2223
    %v2225 = vrot.slane %v1994, %v2224
    %v2226 = vlaneseq
    %v2227 = vshrl.u32 %v2226, 7
    %v2228 = vsub.s32 6, %v2227
    %v2229 = vrot.slane %v1994, %v2228
    %v2230 = vlaneseq
    %v2231 = vshrl.u32 %v2230, 7
    %v2232 = vsub.s32 0, %v2231
    %v2233 = vrot.slane %v1995, %v2232
    %v2234 = vlaneseq
    %v2235 = vshrl.u32 %v2234, 7
    %v2236 = vsub.s32 2, %v2235
    %v2237 = vrot.slane %v1995, %v2236
    %v2238 = vlaneseq
    %v2239 = vshrl.u32 %v2238, 7
    %v2240 = vsub.s32 4, %v2239
    %v2241 = vrot.slane %v1995, %v2240
    %v2242 = vlaneseq
    %v2243 = vshrl.u32 %v2242, 7
    %v2244 = vsub.s32 6, %v2243
    %v2245 = vrot.slane %v1995, %v2244
    %v2246 = vlaneseq
    %v2247 = vshrl.u32 %v2246, 7
    %v2248 = vsub.s32 0, %v2247
    %v2249 = vrot.slane %v1996, %v2248
    %v2250 = vlaneseq
    %v2251 = vshrl.u32 %v2250, 7
    %v2252 = vsub.s32 2, %v2251
    %v2253 = vrot.slane %v1996, %v2252
    %v2254 = vlaneseq
    %v2255 = vshrl.u32 %v2254, 7
    %v2256 = vsub.s32 4, %v2255
    %v2257 = vrot.slane %v1996, %v2256
    %v2258 = vlaneseq
    %v2259 = vshrl.u32 %v2258, 7
    %v2260 = vsub.s32 6, %v2259
    %v2261 = vrot.slane %v1996, %v2260
    %v2262 = vlaneseq
    %v2263 = vshrl.u32 %v2262, 7
    %v2264 = vsub.s32 0, %v2263
    %v2265 = vrot.slane %v1997, %v2264
    %v2266 = vlaneseq
    %v2267 = vshrl.u32 %v2266, 7
    %v2268 = vsub.s32 2, %v2267
    %v2269 = vrot.slane %v1997, %v2268
    %v2270 = vlaneseq
    %v2271 = vshrl.u32 %v2270, 7
    %v2272 = vsub.s32 4, %v2271
    %v2273 = vrot.slane %v1997, %v2272
    %v2274 = vlaneseq
    %v2275 = vshrl.u32 %v2274, 7
    %v2276 = vsub.s32 6, %v2275
    %v2277 = vrot.slane %v1997, %v2276
    %v2278 = vlaneseq
    %v2279 = vshrl.u32 %v2278, 7
    %v2280 = vsub.s32 0, %v2279
    %v2281 = vrot.slane %v1998, %v2280
    %v2282 = vlaneseq
    %v2283 = vshrl.u32 %v2282, 7
    %v2284 = vsub.s32 2, %v2283
    %v2285 = vrot.slane %v1998, %v2284
    %v2286 = vlaneseq
    %v2287 = vshrl.u32 %v2286, 7
    %v2288 = vsub.s32 4, %v2287
    %v2289 = vrot.slane %v1998, %v2288
    %v2290 = vlaneseq
    %v2291 = vshrl.u32 %v2290, 7
    %v2292 = vsub.s32 6, %v2291
    %v2293 = vrot.slane %v1998, %v2292
    %v2294 = vlaneseq
    %v2295 = vshrl.u32 %v2294, 7
    %v2296 = vsub.s32 0, %v2295
    %v2297 = vrot.slane %v1999, %v2296
    %v2298 = vlaneseq
    %v2299 = vshrl.u32 %v2298, 7
    %v2300 = vsub.s32 2, %v2299
    %v2301 = vrot.slane %v1999, %v2300
    %v2302 = vlaneseq
    %v2303 = vshrl.u32 %v2302, 7
    %v2304 = vsub.s32 4, %v2303
    %v2305 = vrot.slane %v1999, %v2304
    %v2306 = vlaneseq
    %v2307 = vshrl.u32 %v2306, 7
    %v2308 = vsub.s32 6, %v2307
    %v2309 = vrot.slane %v1999, %v2308
    %v2310 = vlaneseq
    %v2311 = vshrl.u32 %v2310, 7
    %v2312 = vsub.s32 0, %v2311
    %v2313 = vrot.slane %v2000, %v2312
    %v2314 = vlaneseq
    %v2315 = vshrl.u32 %v2314, 7
    %v2316 = vsub.s32 2, %v2315
    %v2317 = vrot.slane %v2000, %v2316
    %v2318 = vlaneseq
    %v2319 = vshrl.u32 %v2318, 7
    %v2320 = vsub.s32 4, %v2319
    %v2321 = vrot.slane %v2000, %v2320
    %v2322 = vlaneseq
    %v2323 = vshrl.u32 %v2322, 7
    %v2324 = vsub.s32 6, %v2323
    %v2325 = vrot.slane %v2000, %v2324
    %v2326 = vlaneseq
    %v2327 = vshrl.u32 %v2326, 7
    %v2328 = vsub.s32 0, %v2327
    %v2329 = vrot.slane %v2001, %v2328
    %v2330 = vlaneseq
    %v2331 = vshrl.u32 %v2330, 7
    %v2332 = vsub.s32 2, %v2331
    %v2333 = vrot.slane %v2001, %v2332
    %v2334 = vlaneseq
    %v2335 = vshrl.u32 %v2334, 7
    %v2336 = vsub.s32 4, %v2335
    %v2337 = vrot.slane %v2001, %v2336
    %v2338 = vlaneseq
    %v2339 = vshrl.u32 %v2338, 7
    %v2340 = vsub.s32 6, %v2339
    %v2341 = vrot.slane %v2001, %v2340
    %v2342 = vlaneseq
    %v2343 = vshrl.u32 %v2342, 7
    %v2344 = vsub.s32 0, %v2343
    %v2345 = vrot.slane %v2002, %v2344
    %v2346 = vlaneseq
    %v2347 = vshrl.u32 %v2346, 7
    %v2348 = vsub.s32 2, %v2347
    %v2349 = vrot.slane %v2002, %v2348
    %v2350 = vlaneseq
    %v2351 = vshrl.u32 %v2350, 7
    %v2352 = vsub.s32 4, %v2351
    %v2353 = vrot.slane %v2002, %v2352
    %v2354 = vlaneseq
    %v2355 = vshrl.u32 %v2354, 7
    %v2356 = vsub.s32 6, %v2355
    %v2357 = vrot.slane %v2002, %v2356
    %v2358 = vlaneseq
    %v2359 = vshrl.u32 %v2358, 7
    %v2360 = vsub.s32 0, %v2359
    %v2361 = vrot.slane %v2003, %v2360
    %v2362 = vlaneseq
    %v2363 = vshrl.u32 %v2362, 7
    %v2364 = vsub.s32 2, %v2363
    %v2365 = vrot.slane %v2003, %v2364
    %v2366 = vlaneseq
    %v2367 = vshrl.u32 %v2366, 7
    %v2368 = vsub.s32 4, %v2367
    %v2369 = vrot.slane %v2003, %v2368
    %v2370 = vlaneseq
    %v2371 = vshrl.u32 %v2370, 7
    %v2372 = vsub.s32 6, %v2371
    %v2373 = vrot.slane %v2003, %v2372
    %v2374 = vlaneseq
    %v2375 = vshrl.u32 %v2374, 7
    %v2376 = vsub.s32 0, %v2375
    %v2377 = vrot.slane %v2004, %v2376
    %v2378 = vlaneseq
    %v2379 = vshrl.u32 %v2378, 7
    %v2380 = vsub.s32 2, %v2379
    %v2381 = vrot.slane %v2004, %v2380
    %v2382 = vlaneseq
    %v2383 = vshrl.u32 %v2382, 7
    %v2384 = vsub.s32 4, %v2383
    %v2385 = vrot.slane %v2004, %v2384
    %v2386 = vlaneseq
    %v2387 = vshrl.u32 %v2386, 7
    %v2388 = vsub.s32 6, %v2387
    %v2389 = vrot.slane %v2004, %v2388
    %v2390 = vlaneseq
    %v2391 = vshrl.u32 %v2390, 7
    %v2392 = vsub.s32 0, %v2391
    %v2393 = vrot.slane %v2005, %v2392
    %v2394 = vlaneseq
    %v2395 = vshrl.u32 %v2394, 7
    %v2396 = vsub.s32 2, %v2395
    %v2397 = vrot.slane %v2005, %v2396
    %v2398 = vlaneseq
    %v2399 = vshrl.u32 %v2398, 7
    %v2400 = vsub.s32 4, %v2399
    %v2401 = vrot.slane %v2005, %v2400
    %v2402 = vlaneseq
    %v2403 = vshrl.u32 %v2402, 7
    %v2404 = vsub.s32 6, %v2403
    %v2405 = vrot.slane %v2005, %v2404
    %v2406 = vlaneseq
    %v2407 = vshrl.u32 %v2406, 7
    %v2408 = vsub.s32 0, %v2407
    %v2409 = vrot.slane %v2006, %v2408
    %v2410 = vlaneseq
    %v2411 = vshrl.u32 %v2410, 7
    %v2412 = vsub.s32 2, %v2411
    %v2413 = vrot.slane %v2006, %v2412
    %v2414 = vlaneseq
    %v2415 = vshrl.u32 %v2414, 7
    %v2416 = vsub.s32 4, %v2415
    %v2417 = vrot.slane %v2006, %v2416
    %v2418 = vlaneseq
    %v2419 = vshrl.u32 %v2418, 7
    %v2420 = vsub.s32 6, %v2419
    %v2421 = vrot.slane %v2006, %v2420
    %v2422 = vlaneseq
    %v2423 = vshrl.u32 %v2422, 7
    %v2424 = vsub.s32 0, %v2423
    %v2425 = vrot.slane %v2007, %v2424
    %v2426 = vlaneseq
    %v2427 = vshrl.u32 %v2426, 7
    %v2428 = vsub.s32 2, %v2427
    %v2429 = vrot.slane %v2007, %v2428
    %v2430 = vlaneseq
    %v2431 = vshrl.u32 %v2430, 7
    %v2432 = vsub.s32 4, %v2431
    %v2433 = vrot.slane %v2007, %v2432
    %v2434 = vlaneseq
    %v2435 = vshrl.u32 %v2434, 7
    %v2436 = vsub.s32 6, %v2435
    %v2437 = vrot.slane %v2007, %v2436
    %v2438 = vlaneseq
    %v2439 = vshrl.u32 %v2438, 7
    %v2440 = vsub.s32 0, %v2439
    %v2441 = vrot.slane %v2008, %v2440
    %v2442 = vlaneseq
    %v2443 = vshrl.u32 %v2442, 7
    %v2444 = vsub.s32 2, %v2443
    %v2445 = vrot.slane %v2008, %v2444
    %v2446 = vlaneseq
    %v2447 = vshrl.u32 %v2446, 7
    %v2448 = vsub.s32 4, %v2447
    %v2449 = vrot.slane %v2008, %v2448
    %v2450 = vlaneseq
    %v2451 = vshrl.u32 %v2450, 7
    %v2452 = vsub.s32 6, %v2451
    %v2453 = vrot.slane %v2008, %v2452
    %v2454 = vlaneseq
    %v2455 = vshrl.u32 %v2454, 7
    %v2456 = vsub.s32 0, %v2455
    %v2457 = vrot.slane %v2009, %v2456
    %v2458 = vlaneseq
    %v2459 = vshrl.u32 %v2458, 7
    %v2460 = vsub.s32 2, %v2459
    %v2461 = vrot.slane %v2009, %v2460
    %v2462 = vlaneseq
    %v2463 = vshrl.u32 %v2462, 7
    %v2464 = vsub.s32 4, %v2463
    %v2465 = vrot.slane %v2009, %v2464
    %v2466 = vlaneseq
    %v2467 = vshrl.u32 %v2466, 7
    %v2468 = vsub.s32 6, %v2467
    %v2469 = vrot.slane %v2009, %v2468
    %v2470 = vlaneseq
    %v2471 = vshrl.u32 %v2470, 7
    %v2472 = vsub.s32 0, %v2471
    %v2473 = vrot.slane %v2010, %v2472
    %v2474 = vlaneseq
    %v2475 = vshrl.u32 %v2474, 7
    %v2476 = vsub.s32 2, %v2475
    %v2477 = vrot.slane %v2010, %v2476
    %v2478 = vlaneseq
    %v2479 = vshrl.u32 %v2478, 7
    %v2480 = vsub.s32 4, %v2479
    %v2481 = vrot.slane %v2010, %v2480
    %v2482 = vlaneseq
    %v2483 = vshrl.u32 %v2482, 7
    %v2484 = vsub.s32 6, %v2483
    %v2485 = vrot.slane %v2010, %v2484
    %v2486 = vsel %vm1706, %v2121, %v2105
    %v2487 = vsel %vm1708, %v2137, %v2486
    %v2488 = vsel %vm1710, %v2153, %v2487
    %v2489 = vsel %vm1712, %v2169, %v2488
    %v2490 = vsel %vm1714, %v2185, %v2489
    %v2491 = vsel %vm1716, %v2201, %v2490
    %v2492 = vsel %vm1718, %v2217, %v2491
    %v2493 = vsel %vm1706, %v2125, %v2109
    %v2494 = vsel %vm1708, %v2141, %v2493
    %v2495 = vsel %vm1710, %v2157, %v2494
    %v2496 = vsel %vm1712, %v2173, %v2495
    %v2497 = vsel %vm1714, %v2189, %v2496
    %v2498 = vsel %vm1716, %v2205, %v2497
    %v2499 = vsel %vm1718, %v2221, %v2498
    %v2500 = vsel %vm1706, %v2129, %v2113
    %v2501 = vsel %vm1708, %v2145, %v2500
    %v2502 = vsel %vm1710, %v2161, %v2501
    %v2503 = vsel %vm1712, %v2177, %v2502
    %v2504 = vsel %vm1714, %v2193, %v2503
    %v2505 = vsel %vm1716, %v2209, %v2504
    %v2506 = vsel %vm1718, %v2225, %v2505
    %v2507 = vsel %vm1706, %v2133, %v2117
    %v2508 = vsel %vm1708, %v2149, %v2507
    %v2509 = vsel %vm1710, %v2165, %v2508
    %v2510 = vsel %vm1712, %v2181, %v2509
    %v2511 = vsel %vm1714, %v2197, %v2510
    %v2512 = vsel %vm1716, %v2213, %v2511
    %v2513 = vsel %vm1718, %v2229, %v2512
    %v2514 = vsel %vm1706, %v2249, %v2233
    %v2515 = vsel %vm1708, %v2265, %v2514
    %v2516 = vsel %vm1710, %v2281, %v2515
    %v2517 = vsel %vm1712, %v2297, %v2516
    %v2518 = vsel %vm1714, %v2313, %v2517
    %v2519 = vsel %vm1716, %v2329, %v2518
    %v2520 = vsel %vm1718, %v2345, %v2519
    %v2521 = vsel %vm1706, %v2253, %v2237
    %v2522 = vsel %vm1708, %v2269, %v2521
    %v2523 = vsel %vm1710, %v2285, %v2522
    %v2524 = vsel %vm1712, %v2301, %v2523
    %v2525 = vsel %vm1714, %v2317, %v2524
    %v2526 = vsel %vm1716, %v2333, %v2525
    %v2527 = vsel %vm1718, %v2349, %v2526
    %v2528 = vsel %vm1706, %v2257, %v2241
    %v2529 = vsel %vm1708, %v2273, %v2528
    %v2530 = vsel %vm1710, %v2289, %v2529
    %v2531 = vsel %vm1712, %v2305, %v2530
    %v2532 = vsel %vm1714, %v2321, %v2531
    %v2533 = vsel %vm1716, %v2337, %v2532
    %v2534 = vsel %vm1718, %v2353, %v2533
    %v2535 = vsel %vm1706, %v2261, %v2245
    %v2536 = vsel %vm1708, %v2277, %v2535
    %v2537 = vsel %vm1710, %v2293, %v2536
    %v2538 = vsel %vm1712, %v2309, %v2537
    %v2539 = vsel %vm1714, %v2325, %v2538
    %v2540 = vsel %vm1716, %v2341, %v2539
    %v2541 = vsel %vm1718, %v2357, %v2540
    %v2542 = vsel %vm1706, %v2377, %v2361
    %v2543 = vsel %vm1708, %v2393, %v2542
    %v2544 = vsel %vm1710, %v2409, %v2543
    %v2545 = vsel %vm1712, %v2425, %v2544
    %v2546 = vsel %vm1714, %v2441, %v2545
    %v2547 = vsel %vm1716, %v2457, %v2546
    %v2548 = vsel %vm1718, %v2473, %v2547
    %v2549 = vsel %vm1706, %v2381, %v2365
    %v2550 = vsel %vm1708, %v2397, %v2549
    %v2551 = vsel %vm1710, %v2413, %v2550
    %v2552 = vsel %vm1712, %v2429, %v2551
    %v2553 = vsel %vm1714, %v2445, %v2552
    %v2554 = vsel %vm1716, %v2461, %v2553
    %v2555 = vsel %vm1718, %v2477, %v2554
    %v2556 = vsel %vm1706, %v2385, %v2369
    %v2557 = vsel %vm1708, %v2401, %v2556
    %v2558 = vsel %vm1710, %v2417, %v2557
    %v2559 = vsel %vm1712, %v2433, %v2558
    %v2560 = vsel %vm1714, %v2449, %v2559
    %v2561 = vsel %vm1716, %v2465, %v2560
    %v2562 = vsel %vm1718, %v2481, %v2561
    %v2563 = vsel %vm1706, %v2389, %v2373
    %v2564 = vsel %vm1708, %v2405, %v2563
    %v2565 = vsel %vm1710, %v2421, %v2564
    %v2566 = vsel %vm1712, %v2437, %v2565
    %v2567 = vsel %vm1714, %v2453, %v2566
    %v2568 = vsel %vm1716, %v2469, %v2567
    %v2569 = vsel %vm1718, %v2485, %v2568
    %v2582 = vsel %vm2075, %v2492, 0.0
    %v2583 = vsel %vm2075, %v2499, 0.0
    %v2584 = vsel %vm2075, %v2506, 0.0
    %v2585 = vsel %vm2075, %v2513, 0.0
    %v2586 = vsel %vm2076, %v2520, 0.0
    %v2587 = vsel %vm2076, %v2527, 0.0
    %v2588 = vsel %vm2076, %v2534, 0.0
    %v2589 = vsel %vm2076, %v2541, 0.0
    %v2590 = vsel %vm2077, %v2548, 0.0
    %v2591 = vsel %vm2077, %v2555, 0.0
    %v2592 = vsel %vm2077, %v2562, 0.0
    %v2593 = vsel %vm2077, %v2569, 0.0
    %v2594 = vpack.c.bf16 %v2586, %v2582
    %v2595 = vpack.c.bf16 %v2587, %v2583
    %v2596 = vpack.c.bf16 %v2588, %v2584
    %v2597 = vpack.c.bf16 %v2589, %v2585
    %v2598 = vpack.c.bf16 %v2590, %v2590
    %v2599 = vpack.c.bf16 %v2591, %v2591
    %v2600 = vpack.c.bf16 %v2592, %v2592
    %v2601 = vpack.c.bf16 %v2593, %v2593
    %2602 = vst [vmem:[#allocation3] sm:$0xff] %v2594
    %2603 = vst [vmem:[#allocation3 + $0x8] sm:$0xff] %v2595
    %2604 = vst [vmem:[#allocation3 + $0x10] sm:$0xff] %v2596
    %2605 = vst [vmem:[#allocation3 + $0x18] sm:$0xff] %v2597
    %2606 = vst [vmem:[#allocation3 + $0x20] sm:$0xf] %v2598
    %2607 = vst [vmem:[#allocation3 + $0x28] sm:$0xf] %v2599
    %2608 = vst [vmem:[#allocation3 + $0x30] sm:$0xf] %v2600
    %2609 = vst [vmem:[#allocation3 + $0x38] sm:$0xf] %v2601
    %v2610 = vld [vmem:[#allocation3] sm:$0xff]
    %v2611 = vld [vmem:[#allocation3 + $0x8] sm:$0xff]
    %v2612 = vld [vmem:[#allocation3 + $0x10] sm:$0xff]
    %v2613 = vld [vmem:[#allocation3 + $0x18] sm:$0xff]
    %v2614 = vld [vmem:[#allocation3 + $0x20] sm:$0xf]
    %v2615 = vld [vmem:[#allocation3 + $0x28] sm:$0xf]
    %v2616 = vld [vmem:[#allocation3 + $0x30] sm:$0xf]
    %v2617 = vld [vmem:[#allocation3 + $0x38] sm:$0xf]
    %v2618 = vld [vmem:[#allocation10] sm:$0xff]
    %v2619 = vld [vmem:[#allocation10 + $0x8] sm:$0xff]
    %v2620 = vld [vmem:[#allocation10 + $0x10] sm:$0xff]
    %v2621 = vld [vmem:[#allocation10 + $0x18] sm:$0xff]
    %v2622 = vld [vmem:[#allocation10 + $0x20] sm:$0xff]
    %v2623 = vld [vmem:[#allocation10 + $0x28] sm:$0xff]
    %v2624 = vld [vmem:[#allocation10 + $0x30] sm:$0xff]
    %v2625 = vld [vmem:[#allocation10 + $0x38] sm:$0xff]
    %v2626 = vld [vmem:[#allocation10 + $0x40] sm:$0xff]
    %v2627 = vld [vmem:[#allocation10 + $0x48] sm:$0xff]
    %v2628 = vld [vmem:[#allocation10 + $0x50] sm:$0xff]
    %v2629 = vld [vmem:[#allocation10 + $0x58] sm:$0xff]
    %v2630 = vld [vmem:[#allocation10 + $0x60] sm:$0xff]
    %v2631 = vld [vmem:[#allocation10 + $0x68] sm:$0xff]
    %v2632 = vld [vmem:[#allocation10 + $0x70] sm:$0xff]
    %v2633 = vld [vmem:[#allocation10 + $0x78] sm:$0xff]
    %v2634 = vld [vmem:[#allocation10 + $0x80] sm:$0xff]
    %v2635 = vld [vmem:[#allocation10 + $0x88] sm:$0xff]
    %v2636 = vld [vmem:[#allocation10 + $0x90] sm:$0xff]
    %v2637 = vld [vmem:[#allocation10 + $0x98] sm:$0xff]
    %v2638 = vld [vmem:[#allocation10 + $0xa0] sm:$0xff]
    %v2639 = vld [vmem:[#allocation10 + $0xa8] sm:$0xff]
    %v2640 = vld [vmem:[#allocation10 + $0xb0] sm:$0xff]
    %v2641 = vld [vmem:[#allocation10 + $0xb8] sm:$0xff]
    %v2642 = vld [vmem:[#allocation10 + $0xc0] sm:$0xff]
    %v2643 = vld [vmem:[#allocation10 + $0xc8] sm:$0xff]
    %v2644 = vld [vmem:[#allocation10 + $0xd0] sm:$0xff]
    %v2645 = vld [vmem:[#allocation10 + $0xd8] sm:$0xff]
    %v2646 = vld [vmem:[#allocation10 + $0xe0] sm:$0xff]
    %v2647 = vld [vmem:[#allocation10 + $0xe8] sm:$0xff]
    %v2648 = vld [vmem:[#allocation10 + $0xf0] sm:$0xff]
    %v2649 = vld [vmem:[#allocation10 + $0xf8] sm:$0xff]
    %v2650 = vld [vmem:[#allocation10 + $0x100] sm:$0xff]
    %v2651 = vld [vmem:[#allocation10 + $0x108] sm:$0xff]
    %v2652 = vld [vmem:[#allocation10 + $0x110] sm:$0xff]
    %v2653 = vld [vmem:[#allocation10 + $0x118] sm:$0xff]
    %v2654 = vld [vmem:[#allocation10 + $0x120] sm:$0xff]
    %v2655 = vld [vmem:[#allocation10 + $0x128] sm:$0xff]
    %v2656 = vld [vmem:[#allocation10 + $0x130] sm:$0xff]
    %v2657 = vld [vmem:[#allocation10 + $0x138] sm:$0xff]
    %v2658 = vld [vmem:[#allocation10 + $0x140] sm:$0xff]
    %v2659 = vld [vmem:[#allocation10 + $0x148] sm:$0xff]
    %v2660 = vld [vmem:[#allocation10 + $0x150] sm:$0xff]
    %v2661 = vld [vmem:[#allocation10 + $0x158] sm:$0xff]
    %v2662 = vld [vmem:[#allocation10 + $0x160] sm:$0xff]
    %v2663 = vld [vmem:[#allocation10 + $0x168] sm:$0xff]
    %v2664 = vld [vmem:[#allocation10 + $0x170] sm:$0xff]
    %v2665 = vld [vmem:[#allocation10 + $0x178] sm:$0xff]
    %v2666 = vld [vmem:[#allocation10 + $0x180] sm:$0xff]
    %v2667 = vld [vmem:[#allocation10 + $0x188] sm:$0xff]
    %v2668 = vld [vmem:[#allocation10 + $0x190] sm:$0xff]
    %v2669 = vld [vmem:[#allocation10 + $0x198] sm:$0xff]
    %v2670 = vld [vmem:[#allocation10 + $0x1a0] sm:$0xff]
    %v2671 = vld [vmem:[#allocation10 + $0x1a8] sm:$0xff]
    %v2672 = vld [vmem:[#allocation10 + $0x1b0] sm:$0xff]
    %v2673 = vld [vmem:[#allocation10 + $0x1b8] sm:$0xff]
    %v2674 = vld [vmem:[#allocation10 + $0x1c0] sm:$0xff]
    %v2675 = vld [vmem:[#allocation10 + $0x1c8] sm:$0xff]
    %v2676 = vld [vmem:[#allocation10 + $0x1d0] sm:$0xff]
    %v2677 = vld [vmem:[#allocation10 + $0x1d8] sm:$0xff]
    %v2678 = vld [vmem:[#allocation10 + $0x1e0] sm:$0xff]
    %v2679 = vld [vmem:[#allocation10 + $0x1e8] sm:$0xff]
    %v2680 = vld [vmem:[#allocation10 + $0x1f0] sm:$0xff]
    %v2681 = vld [vmem:[#allocation10 + $0x1f8] sm:$0xff]
    %v2682 = vld [vmem:[#allocation10 + $0x200] sm:$0xff]
    %v2683 = vld [vmem:[#allocation10 + $0x208] sm:$0xff]
    %v2684 = vld [vmem:[#allocation10 + $0x210] sm:$0xff]
    %v2685 = vld [vmem:[#allocation10 + $0x218] sm:$0xff]
    %v2686 = vld [vmem:[#allocation10 + $0x220] sm:$0xff]
    %v2687 = vld [vmem:[#allocation10 + $0x228] sm:$0xff]
    %v2688 = vld [vmem:[#allocation10 + $0x230] sm:$0xff]
    %v2689 = vld [vmem:[#allocation10 + $0x238] sm:$0xff]
    %v2690 = vld [vmem:[#allocation10 + $0x240] sm:$0xff]
    %v2691 = vld [vmem:[#allocation10 + $0x248] sm:$0xff]
    %v2692 = vld [vmem:[#allocation10 + $0x250] sm:$0xff]
    %v2693 = vld [vmem:[#allocation10 + $0x258] sm:$0xff]
    %v2694 = vld [vmem:[#allocation10 + $0x260] sm:$0xff]
    %v2695 = vld [vmem:[#allocation10 + $0x268] sm:$0xff]
    %v2696 = vld [vmem:[#allocation10 + $0x270] sm:$0xff]
    %v2697 = vld [vmem:[#allocation10 + $0x278] sm:$0xff]
    %v2698 = vld [vmem:[#allocation10 + $0x280] sm:$0xff]
    %v2699 = vld [vmem:[#allocation10 + $0x288] sm:$0xff]
    %v2700 = vld [vmem:[#allocation10 + $0x290] sm:$0xff]
    %v2701 = vld [vmem:[#allocation10 + $0x298] sm:$0xff]
    %v2702 = vld [vmem:[#allocation10 + $0x2a0] sm:$0xff]
    %v2703 = vld [vmem:[#allocation10 + $0x2a8] sm:$0xff]
    %v2704 = vld [vmem:[#allocation10 + $0x2b0] sm:$0xff]
    %v2705 = vld [vmem:[#allocation10 + $0x2b8] sm:$0xff]
    %v2706 = vld [vmem:[#allocation10 + $0x2c0] sm:$0xff]
    %v2707 = vld [vmem:[#allocation10 + $0x2c8] sm:$0xff]
    %v2708 = vld [vmem:[#allocation10 + $0x2d0] sm:$0xff]
    %v2709 = vld [vmem:[#allocation10 + $0x2d8] sm:$0xff]
    %v2710 = vld [vmem:[#allocation10 + $0x2e0] sm:$0xff]
    %v2711 = vld [vmem:[#allocation10 + $0x2e8] sm:$0xff]
    %v2712 = vld [vmem:[#allocation10 + $0x2f0] sm:$0xff]
    %v2713 = vld [vmem:[#allocation10 + $0x2f8] sm:$0xff]
    %v2714 = vld [vmem:[#allocation10 + $0x300] sm:$0xff]
    %v2715 = vld [vmem:[#allocation10 + $0x308] sm:$0xff]
    %v2716 = vld [vmem:[#allocation10 + $0x310] sm:$0xff]
    %v2717 = vld [vmem:[#allocation10 + $0x318] sm:$0xff]
    %v2718 = vld [vmem:[#allocation10 + $0x320] sm:$0xff]
    %v2719 = vld [vmem:[#allocation10 + $0x328] sm:$0xff]
    %v2720 = vld [vmem:[#allocation10 + $0x330] sm:$0xff]
    %v2721 = vld [vmem:[#allocation10 + $0x338] sm:$0xff]
    %v2722 = vld [vmem:[#allocation10 + $0x340] sm:$0xff]
    %v2723 = vld [vmem:[#allocation10 + $0x348] sm:$0xff]
    %v2724 = vld [vmem:[#allocation10 + $0x350] sm:$0xff]
    %v2725 = vld [vmem:[#allocation10 + $0x358] sm:$0xff]
    %v2726 = vld [vmem:[#allocation10 + $0x360] sm:$0xff]
    %v2727 = vld [vmem:[#allocation10 + $0x368] sm:$0xff]
    %v2728 = vld [vmem:[#allocation10 + $0x370] sm:$0xff]
    %v2729 = vld [vmem:[#allocation10 + $0x378] sm:$0xff]
    %v2730 = vld [vmem:[#allocation10 + $0x380] sm:$0xff]
    %v2731 = vld [vmem:[#allocation10 + $0x388] sm:$0xff]
    %v2732 = vld [vmem:[#allocation10 + $0x390] sm:$0xff]
    %v2733 = vld [vmem:[#allocation10 + $0x398] sm:$0xff]
    %v2734 = vld [vmem:[#allocation10 + $0x3a0] sm:$0xff]
    %v2735 = vld [vmem:[#allocation10 + $0x3a8] sm:$0xff]
    %v2736 = vld [vmem:[#allocation10 + $0x3b0] sm:$0xff]
    %v2737 = vld [vmem:[#allocation10 + $0x3b8] sm:$0xff]
    %v2738 = vld [vmem:[#allocation10 + $0x3c0] sm:$0xff]
    %v2739 = vld [vmem:[#allocation10 + $0x3c8] sm:$0xff]
    %v2740 = vld [vmem:[#allocation10 + $0x3d0] sm:$0xff]
    %v2741 = vld [vmem:[#allocation10 + $0x3d8] sm:$0xff]
    %v2742 = vld [vmem:[#allocation10 + $0x3e0] sm:$0xff]
    %v2743 = vld [vmem:[#allocation10 + $0x3e8] sm:$0xff]
    %v2744 = vld [vmem:[#allocation10 + $0x3f0] sm:$0xff]
    %v2745 = vld [vmem:[#allocation10 + $0x3f8] sm:$0xff]
    %v2746 = vld [vmem:[#allocation3 + $0x20] sm:$0x1f]
    %v2747 = vld [vmem:[#allocation3 + $0x28] sm:$0x1f]
    %v2748 = vld [vmem:[#allocation3 + $0x30] sm:$0x1f]
    %v2749 = vld [vmem:[#allocation3 + $0x38] sm:$0x1f]
    %s2750 = scalar_lea.vmem [#allocation10], 1024
    %v2751 = vld [vmem:[%s2750] sm:$0xff]
    %v2752 = vld [vmem:[%s2750 + $0x8] sm:$0xff]
    %v2753 = vld [vmem:[%s2750 + $0x10] sm:$0xff]
    %v2754 = vld [vmem:[%s2750 + $0x18] sm:$0xff]
    %v2755 = vld [vmem:[%s2750 + $0x20] sm:$0xff]
    %v2756 = vld [vmem:[%s2750 + $0x28] sm:$0xff]
    %v2757 = vld [vmem:[%s2750 + $0x30] sm:$0xff]
    %v2758 = vld [vmem:[%s2750 + $0x38] sm:$0xff]
    %v2759 = vld [vmem:[%s2750 + $0x40] sm:$0xff]
    %v2760 = vld [vmem:[%s2750 + $0x48] sm:$0xff]
    %v2761 = vld [vmem:[%s2750 + $0x50] sm:$0xff]
    %v2762 = vld [vmem:[%s2750 + $0x58] sm:$0xff]
    %v2763 = vld [vmem:[%s2750 + $0x60] sm:$0xff]
    %v2764 = vld [vmem:[%s2750 + $0x68] sm:$0xff]
    %v2765 = vld [vmem:[%s2750 + $0x70] sm:$0xff]
    %v2766 = vld [vmem:[%s2750 + $0x78] sm:$0xff]
    %v2767 = vld [vmem:[%s2750 + $0x80] sm:$0xff]
    %v2768 = vld [vmem:[%s2750 + $0x88] sm:$0xff]
    %v2769 = vld [vmem:[%s2750 + $0x90] sm:$0xff]
    %v2770 = vld [vmem:[%s2750 + $0x98] sm:$0xff]
    %v2771 = vld [vmem:[%s2750 + $0xa0] sm:$0xff]
    %v2772 = vld [vmem:[%s2750 + $0xa8] sm:$0xff]
    %v2773 = vld [vmem:[%s2750 + $0xb0] sm:$0xff]
    %v2774 = vld [vmem:[%s2750 + $0xb8] sm:$0xff]
    %v2775 = vld [vmem:[%s2750 + $0xc0] sm:$0xff]
    %v2776 = vld [vmem:[%s2750 + $0xc8] sm:$0xff]
    %v2777 = vld [vmem:[%s2750 + $0xd0] sm:$0xff]
    %v2778 = vld [vmem:[%s2750 + $0xd8] sm:$0xff]
    %v2779 = vld [vmem:[%s2750 + $0xe0] sm:$0xff]
    %v2780 = vld [vmem:[%s2750 + $0xe8] sm:$0xff]
    %v2781 = vld [vmem:[%s2750 + $0xf0] sm:$0xff]
    %v2782 = vld [vmem:[%s2750 + $0xf8] sm:$0xff]
    %v2783 = vld [vmem:[%s2750 + $0x100] sm:$0xff]
    %v2784 = vld [vmem:[%s2750 + $0x108] sm:$0xff]
    %v2785 = vld [vmem:[%s2750 + $0x110] sm:$0xff]
    %v2786 = vld [vmem:[%s2750 + $0x118] sm:$0xff]
    %v2787 = vld [vmem:[%s2750 + $0x120] sm:$0xff]
    %v2788 = vld [vmem:[%s2750 + $0x128] sm:$0xff]
    %v2789 = vld [vmem:[%s2750 + $0x130] sm:$0xff]
    %v2790 = vld [vmem:[%s2750 + $0x138] sm:$0xff]
    %v2791 = vld [vmem:[%s2750 + $0x140] sm:$0xff]
    %v2792 = vld [vmem:[%s2750 + $0x148] sm:$0xff]
    %v2793 = vld [vmem:[%s2750 + $0x150] sm:$0xff]
    %v2794 = vld [vmem:[%s2750 + $0x158] sm:$0xff]
    %v2795 = vld [vmem:[%s2750 + $0x160] sm:$0xff]
    %v2796 = vld [vmem:[%s2750 + $0x168] sm:$0xff]
    %v2797 = vld [vmem:[%s2750 + $0x170] sm:$0xff]
    %v2798 = vld [vmem:[%s2750 + $0x178] sm:$0xff]
    %v2799 = vld [vmem:[%s2750 + $0x180] sm:$0xff]
    %v2800 = vld [vmem:[%s2750 + $0x188] sm:$0xff]
    %v2801 = vld [vmem:[%s2750 + $0x190] sm:$0xff]
    %v2802 = vld [vmem:[%s2750 + $0x198] sm:$0xff]
    %v2803 = vld [vmem:[%s2750 + $0x1a0] sm:$0xff]
    %v2804 = vld [vmem:[%s2750 + $0x1a8] sm:$0xff]
    %v2805 = vld [vmem:[%s2750 + $0x1b0] sm:$0xff]
    %v2806 = vld [vmem:[%s2750 + $0x1b8] sm:$0xff]
    %v2807 = vld [vmem:[%s2750 + $0x1c0] sm:$0xff]
    %v2808 = vld [vmem:[%s2750 + $0x1c8] sm:$0xff]
    %v2809 = vld [vmem:[%s2750 + $0x1d0] sm:$0xff]
    %v2810 = vld [vmem:[%s2750 + $0x1d8] sm:$0xff]
    %v2811 = vld [vmem:[%s2750 + $0x1e0] sm:$0xff]
    %v2812 = vld [vmem:[%s2750 + $0x1e8] sm:$0xff]
    %v2813 = vld [vmem:[%s2750 + $0x1f0] sm:$0xff]
    %v2814 = vld [vmem:[%s2750 + $0x1f8] sm:$0xff]
    %v2815 = vld [vmem:[%s2750 + $0x200] sm:$0xff]
    %v2816 = vld [vmem:[%s2750 + $0x208] sm:$0xff]
    %v2817 = vld [vmem:[%s2750 + $0x210] sm:$0xff]
    %v2818 = vld [vmem:[%s2750 + $0x218] sm:$0xff]
    %v2819 = vld [vmem:[%s2750 + $0x220] sm:$0xff]
    %v2820 = vld [vmem:[%s2750 + $0x228] sm:$0xff]
    %v2821 = vld [vmem:[%s2750 + $0x230] sm:$0xff]
    %v2822 = vld [vmem:[%s2750 + $0x238] sm:$0xff]
    %v2823 = vld [vmem:[%s2750 + $0x240] sm:$0xff]
    %v2824 = vld [vmem:[%s2750 + $0x248] sm:$0xff]
    %v2825 = vld [vmem:[%s2750 + $0x250] sm:$0xff]
    %v2826 = vld [vmem:[%s2750 + $0x258] sm:$0xff]
    %v2827 = vld [vmem:[%s2750 + $0x260] sm:$0xff]
    %v2828 = vld [vmem:[%s2750 + $0x268] sm:$0xff]
    %v2829 = vld [vmem:[%s2750 + $0x270] sm:$0xff]
    %v2830 = vld [vmem:[%s2750 + $0x278] sm:$0xff]
    %v2831 = vld [vmem:[%s2750 + $0x280] sm:$0xff]
    %v2832 = vld [vmem:[%s2750 + $0x288] sm:$0xff]
    %v2833 = vld [vmem:[%s2750 + $0x290] sm:$0xff]
    %v2834 = vld [vmem:[%s2750 + $0x298] sm:$0xff]
    %v2835 = vld [vmem:[%s2750 + $0x2a0] sm:$0xff]
    %v2836 = vld [vmem:[%s2750 + $0x2a8] sm:$0xff]
    %v2837 = vld [vmem:[%s2750 + $0x2b0] sm:$0xff]
    %v2838 = vld [vmem:[%s2750 + $0x2b8] sm:$0xff]
    %v2839 = vld [vmem:[%s2750 + $0x2c0] sm:$0xff]
    %v2840 = vld [vmem:[%s2750 + $0x2c8] sm:$0xff]
    %v2841 = vld [vmem:[%s2750 + $0x2d0] sm:$0xff]
    %v2842 = vld [vmem:[%s2750 + $0x2d8] sm:$0xff]
    %v2843 = vld [vmem:[%s2750 + $0x2e0] sm:$0xff]
    %v2844 = vld [vmem:[%s2750 + $0x2e8] sm:$0xff]
    %v2845 = vld [vmem:[%s2750 + $0x2f0] sm:$0xff]
    %v2846 = vld [vmem:[%s2750 + $0x2f8] sm:$0xff]
    %v2847 = vld [vmem:[%s2750 + $0x300] sm:$0xff]
    %v2848 = vld [vmem:[%s2750 + $0x308] sm:$0xff]
    %v2849 = vld [vmem:[%s2750 + $0x310] sm:$0xff]
    %v2850 = vld [vmem:[%s2750 + $0x318] sm:$0xff]
    %v2851 = vld [vmem:[%s2750 + $0x320] sm:$0xff]
    %v2852 = vld [vmem:[%s2750 + $0x328] sm:$0xff]
    %v2853 = vld [vmem:[%s2750 + $0x330] sm:$0xff]
    %v2854 = vld [vmem:[%s2750 + $0x338] sm:$0xff]
    %v2855 = vld [vmem:[%s2750 + $0x340] sm:$0xff]
    %v2856 = vld [vmem:[%s2750 + $0x348] sm:$0xff]
    %v2857 = vld [vmem:[%s2750 + $0x350] sm:$0xff]
    %v2858 = vld [vmem:[%s2750 + $0x358] sm:$0xff]
    %v2859 = vld [vmem:[%s2750 + $0x360] sm:$0xff]
    %v2860 = vld [vmem:[%s2750 + $0x368] sm:$0xff]
    %v2861 = vld [vmem:[%s2750 + $0x370] sm:$0xff]
    %v2862 = vld [vmem:[%s2750 + $0x378] sm:$0xff]
    %v2863 = vld [vmem:[%s2750 + $0x380] sm:$0xff]
    %v2864 = vld [vmem:[%s2750 + $0x388] sm:$0xff]
    %v2865 = vld [vmem:[%s2750 + $0x390] sm:$0xff]
    %v2866 = vld [vmem:[%s2750 + $0x398] sm:$0xff]
    %v2867 = vld [vmem:[%s2750 + $0x3a0] sm:$0xff]
    %v2868 = vld [vmem:[%s2750 + $0x3a8] sm:$0xff]
    %v2869 = vld [vmem:[%s2750 + $0x3b0] sm:$0xff]
    %v2870 = vld [vmem:[%s2750 + $0x3b8] sm:$0xff]
    %v2871 = vld [vmem:[%s2750 + $0x3c0] sm:$0xff]
    %v2872 = vld [vmem:[%s2750 + $0x3c8] sm:$0xff]
    %v2873 = vld [vmem:[%s2750 + $0x3d0] sm:$0xff]
    %v2874 = vld [vmem:[%s2750 + $0x3d8] sm:$0xff]
    %v2875 = vld [vmem:[%s2750 + $0x3e0] sm:$0xff]
    %v2876 = vld [vmem:[%s2750 + $0x3e8] sm:$0xff]
    %v2877 = vld [vmem:[%s2750 + $0x3f0] sm:$0xff]
    %v2878 = vld [vmem:[%s2750 + $0x3f8] sm:$0xff]
    %v2880 = vshrl.u32 %v2610, 16
    %v2882 = vshll.u32 %v2610, 16
    %v2884 = vrot.slane %v2882, 1
    %v2885 = vor.u32 %v2880, %v2884
    %v2887 = vshll.u32 %v2746, 16
    %v2889 = vrot.slane %v2887, 1
    %v2890 = vsel %vm207, %v2885, %v2889
    %v2892 = vshrl.u32 %v2611, 16
    %v2894 = vshll.u32 %v2611, 16
    %v2896 = vrot.slane %v2894, 1
    %v2897 = vor.u32 %v2892, %v2896
    %v2899 = vshll.u32 %v2747, 16
    %v2901 = vrot.slane %v2899, 1
    %v2902 = vsel %vm207, %v2897, %v2901
    %v2904 = vshrl.u32 %v2612, 16
    %v2906 = vshll.u32 %v2612, 16
    %v2908 = vrot.slane %v2906, 1
    %v2909 = vor.u32 %v2904, %v2908
    %v2911 = vshll.u32 %v2748, 16
    %v2913 = vrot.slane %v2911, 1
    %v2914 = vsel %vm207, %v2909, %v2913
    %v2916 = vshrl.u32 %v2613, 16
    %v2918 = vshll.u32 %v2613, 16
    %v2920 = vrot.slane %v2918, 1
    %v2921 = vor.u32 %v2916, %v2920
    %v2923 = vshll.u32 %v2749, 16
    %v2925 = vrot.slane %v2923, 1
    %v2926 = vsel %vm207, %v2921, %v2925
    %v2927 = vshrl.u32 %v2746, 16
    %v2929 = vor.u32 %v2927, %v2889
    %v2930 = vshrl.u32 %v2747, 16
    %v2932 = vor.u32 %v2930, %v2901
    %v2933 = vshrl.u32 %v2748, 16
    %v2935 = vor.u32 %v2933, %v2913
    %v2936 = vshrl.u32 %v2749, 16
    %v2938 = vor.u32 %v2936, %v2925
    %v3075 = vunpack.c.l.b16 %v2751
    %v3076 = vunpack.c.h.b16 %v2751
    %v3077 = vunpack.c.l.b16 %v2752
    %v3078 = vunpack.c.h.b16 %v2752
    %v3079 = vunpack.c.l.b16 %v2753
    %v3080 = vunpack.c.h.b16 %v2753
    %v3081 = vunpack.c.l.b16 %v2754
    %v3082 = vunpack.c.h.b16 %v2754
    %v3083 = vunpack.c.l.b16 %v2755
    %v3084 = vunpack.c.h.b16 %v2755
    %v3085 = vunpack.c.l.b16 %v2756
    %v3086 = vunpack.c.h.b16 %v2756
    %v3087 = vunpack.c.l.b16 %v2757
    %v3088 = vunpack.c.h.b16 %v2757
    %v3089 = vunpack.c.l.b16 %v2758
    %v3090 = vunpack.c.h.b16 %v2758
    %v3091 = vunpack.c.l.b16 %v2759
    %v3092 = vunpack.c.h.b16 %v2759
    %v3093 = vunpack.c.l.b16 %v2760
    %v3094 = vunpack.c.h.b16 %v2760
    %v3095 = vunpack.c.l.b16 %v2761
    %v3096 = vunpack.c.h.b16 %v2761
    %v3097 = vunpack.c.l.b16 %v2762
    %v3098 = vunpack.c.h.b16 %v2762
    %v3099 = vunpack.c.l.b16 %v2763
    %v3100 = vunpack.c.h.b16 %v2763
    %v3101 = vunpack.c.l.b16 %v2764
    %v3102 = vunpack.c.h.b16 %v2764
    %v3103 = vunpack.c.l.b16 %v2765
    %v3104 = vunpack.c.h.b16 %v2765
    %v3105 = vunpack.c.l.b16 %v2766
    %v3106 = vunpack.c.h.b16 %v2766
    %v3107 = vunpack.c.l.b16 %v2767
    %v3108 = vunpack.c.h.b16 %v2767
    %v3109 = vunpack.c.l.b16 %v2768
    %v3110 = vunpack.c.h.b16 %v2768
    %v3111 = vunpack.c.l.b16 %v2769
    %v3112 = vunpack.c.h.b16 %v2769
    %v3113 = vunpack.c.l.b16 %v2770
    %v3114 = vunpack.c.h.b16 %v2770
    %v3115 = vunpack.c.l.b16 %v2771
    %v3116 = vunpack.c.h.b16 %v2771
    %v3117 = vunpack.c.l.b16 %v2772
    %v3118 = vunpack.c.h.b16 %v2772
    %v3119 = vunpack.c.l.b16 %v2773
    %v3120 = vunpack.c.h.b16 %v2773
    %v3121 = vunpack.c.l.b16 %v2774
    %v3122 = vunpack.c.h.b16 %v2774
    %v3123 = vunpack.c.l.b16 %v2775
    %v3124 = vunpack.c.h.b16 %v2775
    %v3125 = vunpack.c.l.b16 %v2776
    %v3126 = vunpack.c.h.b16 %v2776
    %v3127 = vunpack.c.l.b16 %v2777
    %v3128 = vunpack.c.h.b16 %v2777
    %v3129 = vunpack.c.l.b16 %v2778
    %v3130 = vunpack.c.h.b16 %v2778
    %v3131 = vunpack.c.l.b16 %v2779
    %v3132 = vunpack.c.h.b16 %v2779
    %v3133 = vunpack.c.l.b16 %v2780
    %v3134 = vunpack.c.h.b16 %v2780
    %v3135 = vunpack.c.l.b16 %v2781
    %v3136 = vunpack.c.h.b16 %v2781
    %v3137 = vunpack.c.l.b16 %v2782
    %v3138 = vunpack.c.h.b16 %v2782
    %v3139 = vunpack.c.l.b16 %v2783
    %v3140 = vunpack.c.h.b16 %v2783
    %v3141 = vunpack.c.l.b16 %v2784
    %v3142 = vunpack.c.h.b16 %v2784
    %v3143 = vunpack.c.l.b16 %v2785
    %v3144 = vunpack.c.h.b16 %v2785
    %v3145 = vunpack.c.l.b16 %v2786
    %v3146 = vunpack.c.h.b16 %v2786
    %v3147 = vunpack.c.l.b16 %v2787
    %v3148 = vunpack.c.h.b16 %v2787
    %v3149 = vunpack.c.l.b16 %v2788
    %v3150 = vunpack.c.h.b16 %v2788
    %v3151 = vunpack.c.l.b16 %v2789
    %v3152 = vunpack.c.h.b16 %v2789
    %v3153 = vunpack.c.l.b16 %v2790
    %v3154 = vunpack.c.h.b16 %v2790
    %v3155 = vunpack.c.l.b16 %v2791
    %v3156 = vunpack.c.h.b16 %v2791
    %v3157 = vunpack.c.l.b16 %v2792
    %v3158 = vunpack.c.h.b16 %v2792
    %v3159 = vunpack.c.l.b16 %v2793
    %v3160 = vunpack.c.h.b16 %v2793
    %v3161 = vunpack.c.l.b16 %v2794
    %v3162 = vunpack.c.h.b16 %v2794
    %v3163 = vunpack.c.l.b16 %v2795
    %v3164 = vunpack.c.h.b16 %v2795
    %v3165 = vunpack.c.l.b16 %v2796
    %v3166 = vunpack.c.h.b16 %v2796
    %v3167 = vunpack.c.l.b16 %v2797
    %v3168 = vunpack.c.h.b16 %v2797
    %v3169 = vunpack.c.l.b16 %v2798
    %v3170 = vunpack.c.h.b16 %v2798
    %v3171 = vunpack.c.l.b16 %v2799
    %v3172 = vunpack.c.h.b16 %v2799
    %v3173 = vunpack.c.l.b16 %v2800
    %v3174 = vunpack.c.h.b16 %v2800
    %v3175 = vunpack.c.l.b16 %v2801
    %v3176 = vunpack.c.h.b16 %v2801
    %v3177 = vunpack.c.l.b16 %v2802
    %v3178 = vunpack.c.h.b16 %v2802
    %v3179 = vunpack.c.l.b16 %v2803
    %v3180 = vunpack.c.h.b16 %v2803
    %v3181 = vunpack.c.l.b16 %v2804
    %v3182 = vunpack.c.h.b16 %v2804
    %v3183 = vunpack.c.l.b16 %v2805
    %v3184 = vunpack.c.h.b16 %v2805
    %v3185 = vunpack.c.l.b16 %v2806
    %v3186 = vunpack.c.h.b16 %v2806
    %v3187 = vunpack.c.l.b16 %v2807
    %v3188 = vunpack.c.h.b16 %v2807
    %v3189 = vunpack.c.l.b16 %v2808
    %v3190 = vunpack.c.h.b16 %v2808
    %v3191 = vunpack.c.l.b16 %v2809
    %v3192 = vunpack.c.h.b16 %v2809
    %v3193 = vunpack.c.l.b16 %v2810
    %v3194 = vunpack.c.h.b16 %v2810
    %v3195 = vunpack.c.l.b16 %v2811
    %v3196 = vunpack.c.h.b16 %v2811
    %v3197 = vunpack.c.l.b16 %v2812
    %v3198 = vunpack.c.h.b16 %v2812
    %v3199 = vunpack.c.l.b16 %v2813
    %v3200 = vunpack.c.h.b16 %v2813
    %v3201 = vunpack.c.l.b16 %v2814
    %v3202 = vunpack.c.h.b16 %v2814
    %v3203 = vunpack.c.l.b16 %v2815
    %v3204 = vunpack.c.h.b16 %v2815
    %v3205 = vunpack.c.l.b16 %v2816
    %v3206 = vunpack.c.h.b16 %v2816
    %v3207 = vunpack.c.l.b16 %v2817
    %v3208 = vunpack.c.h.b16 %v2817
    %v3209 = vunpack.c.l.b16 %v2818
    %v3210 = vunpack.c.h.b16 %v2818
    %v3211 = vunpack.c.l.b16 %v2819
    %v3212 = vunpack.c.h.b16 %v2819
    %v3213 = vunpack.c.l.b16 %v2820
    %v3214 = vunpack.c.h.b16 %v2820
    %v3215 = vunpack.c.l.b16 %v2821
    %v3216 = vunpack.c.h.b16 %v2821
    %v3217 = vunpack.c.l.b16 %v2822
    %v3218 = vunpack.c.h.b16 %v2822
    %v3219 = vunpack.c.l.b16 %v2823
    %v3220 = vunpack.c.h.b16 %v2823
    %v3221 = vunpack.c.l.b16 %v2824
    %v3222 = vunpack.c.h.b16 %v2824
    %v3223 = vunpack.c.l.b16 %v2825
    %v3224 = vunpack.c.h.b16 %v2825
    %v3225 = vunpack.c.l.b16 %v2826
    %v3226 = vunpack.c.h.b16 %v2826
    %v3227 = vunpack.c.l.b16 %v2827
    %v3228 = vunpack.c.h.b16 %v2827
    %v3229 = vunpack.c.l.b16 %v2828
    %v3230 = vunpack.c.h.b16 %v2828
    %v3231 = vunpack.c.l.b16 %v2829
    %v3232 = vunpack.c.h.b16 %v2829
    %v3233 = vunpack.c.l.b16 %v2830
    %v3234 = vunpack.c.h.b16 %v2830
    %v3235 = vunpack.c.l.b16 %v2831
    %v3236 = vunpack.c.h.b16 %v2831
    %v3237 = vunpack.c.l.b16 %v2832
    %v3238 = vunpack.c.h.b16 %v2832
    %v3239 = vunpack.c.l.b16 %v2833
    %v3240 = vunpack.c.h.b16 %v2833
    %v3241 = vunpack.c.l.b16 %v2834
    %v3242 = vunpack.c.h.b16 %v2834
    %v3243 = vunpack.c.l.b16 %v2835
    %v3244 = vunpack.c.h.b16 %v2835
    %v3245 = vunpack.c.l.b16 %v2836
    %v3246 = vunpack.c.h.b16 %v2836
    %v3247 = vunpack.c.l.b16 %v2837
    %v3248 = vunpack.c.h.b16 %v2837
    %v3249 = vunpack.c.l.b16 %v2838
    %v3250 = vunpack.c.h.b16 %v2838
    %v3251 = vunpack.c.l.b16 %v2839
    %v3252 = vunpack.c.h.b16 %v2839
    %v3253 = vunpack.c.l.b16 %v2840
    %v3254 = vunpack.c.h.b16 %v2840
    %v3255 = vunpack.c.l.b16 %v2841
    %v3256 = vunpack.c.h.b16 %v2841
    %v3257 = vunpack.c.l.b16 %v2842
    %v3258 = vunpack.c.h.b16 %v2842
    %v3259 = vunpack.c.l.b16 %v2843
    %v3260 = vunpack.c.h.b16 %v2843
    %v3261 = vunpack.c.l.b16 %v2844
    %v3262 = vunpack.c.h.b16 %v2844
    %v3263 = vunpack.c.l.b16 %v2845
    %v3264 = vunpack.c.h.b16 %v2845
    %v3265 = vunpack.c.l.b16 %v2846
    %v3266 = vunpack.c.h.b16 %v2846
    %v3267 = vunpack.c.l.b16 %v2847
    %v3268 = vunpack.c.h.b16 %v2847
    %v3269 = vunpack.c.l.b16 %v2848
    %v3270 = vunpack.c.h.b16 %v2848
    %v3271 = vunpack.c.l.b16 %v2849
    %v3272 = vunpack.c.h.b16 %v2849
    %v3273 = vunpack.c.l.b16 %v2850
    %v3274 = vunpack.c.h.b16 %v2850
    %v3275 = vunpack.c.l.b16 %v2851
    %v3276 = vunpack.c.h.b16 %v2851
    %v3277 = vunpack.c.l.b16 %v2852
    %v3278 = vunpack.c.h.b16 %v2852
    %v3279 = vunpack.c.l.b16 %v2853
    %v3280 = vunpack.c.h.b16 %v2853
    %v3281 = vunpack.c.l.b16 %v2854
    %v3282 = vunpack.c.h.b16 %v2854
    %v3283 = vunpack.c.l.b16 %v2855
    %v3284 = vunpack.c.h.b16 %v2855
    %v3285 = vunpack.c.l.b16 %v2856
    %v3286 = vunpack.c.h.b16 %v2856
    %v3287 = vunpack.c.l.b16 %v2857
    %v3288 = vunpack.c.h.b16 %v2857
    %v3289 = vunpack.c.l.b16 %v2858
    %v3290 = vunpack.c.h.b16 %v2858
    %v3291 = vunpack.c.l.b16 %v2859
    %v3292 = vunpack.c.h.b16 %v2859
    %v3293 = vunpack.c.l.b16 %v2860
    %v3294 = vunpack.c.h.b16 %v2860
    %v3295 = vunpack.c.l.b16 %v2861
    %v3296 = vunpack.c.h.b16 %v2861
    %v3297 = vunpack.c.l.b16 %v2862
    %v3298 = vunpack.c.h.b16 %v2862
    %v3299 = vunpack.c.l.b16 %v2863
    %v3300 = vunpack.c.h.b16 %v2863
    %v3301 = vunpack.c.l.b16 %v2864
    %v3302 = vunpack.c.h.b16 %v2864
    %v3303 = vunpack.c.l.b16 %v2865
    %v3304 = vunpack.c.h.b16 %v2865
    %v3305 = vunpack.c.l.b16 %v2866
    %v3306 = vunpack.c.h.b16 %v2866
    %v3307 = vunpack.c.l.b16 %v2867
    %v3308 = vunpack.c.h.b16 %v2867
    %v3309 = vunpack.c.l.b16 %v2868
    %v3310 = vunpack.c.h.b16 %v2868
    %v3311 = vunpack.c.l.b16 %v2869
    %v3312 = vunpack.c.h.b16 %v2869
    %v3313 = vunpack.c.l.b16 %v2870
    %v3314 = vunpack.c.h.b16 %v2870
    %v3315 = vunpack.c.l.b16 %v2871
    %v3316 = vunpack.c.h.b16 %v2871
    %v3317 = vunpack.c.l.b16 %v2872
    %v3318 = vunpack.c.h.b16 %v2872
    %v3319 = vunpack.c.l.b16 %v2873
    %v3320 = vunpack.c.h.b16 %v2873
    %v3321 = vunpack.c.l.b16 %v2874
    %v3322 = vunpack.c.h.b16 %v2874
    %v3323 = vunpack.c.l.b16 %v2875
    %v3324 = vunpack.c.h.b16 %v2875
    %v3325 = vunpack.c.l.b16 %v2876
    %v3326 = vunpack.c.h.b16 %v2876
    %v3327 = vunpack.c.l.b16 %v2877
    %v3328 = vunpack.c.h.b16 %v2877
    %v3329 = vunpack.c.l.b16 %v2878
    %v3330 = vunpack.c.h.b16 %v2878
    %v3331 = vpack.c.b16 %v3079, %v3075
    %v3332 = vpack.c.b16 %v3080, %v3076
    %v3333 = vpack.c.b16 %v3081, %v3077
    %v3334 = vpack.c.b16 %v3082, %v3078
    %v3335 = vpack.c.b16 %v3087, %v3083
    %v3336 = vpack.c.b16 %v3088, %v3084
    %v3337 = vpack.c.b16 %v3089, %v3085
    %v3338 = vpack.c.b16 %v3090, %v3086
    %v3339 = vpack.c.b16 %v3095, %v3091
    %v3340 = vpack.c.b16 %v3096, %v3092
    %v3341 = vpack.c.b16 %v3097, %v3093
    %v3342 = vpack.c.b16 %v3098, %v3094
    %v3343 = vpack.c.b16 %v3103, %v3099
    %v3344 = vpack.c.b16 %v3104, %v3100
    %v3345 = vpack.c.b16 %v3105, %v3101
    %v3346 = vpack.c.b16 %v3106, %v3102
    %v3347 = vpack.c.b16 %v3111, %v3107
    %v3348 = vpack.c.b16 %v3112, %v3108
    %v3349 = vpack.c.b16 %v3113, %v3109
    %v3350 = vpack.c.b16 %v3114, %v3110
    %v3351 = vpack.c.b16 %v3119, %v3115
    %v3352 = vpack.c.b16 %v3120, %v3116
    %v3353 = vpack.c.b16 %v3121, %v3117
    %v3354 = vpack.c.b16 %v3122, %v3118
    %v3355 = vpack.c.b16 %v3127, %v3123
    %v3356 = vpack.c.b16 %v3128, %v3124
    %v3357 = vpack.c.b16 %v3129, %v3125
    %v3358 = vpack.c.b16 %v3130, %v3126
    %v3359 = vpack.c.b16 %v3135, %v3131
    %v3360 = vpack.c.b16 %v3136, %v3132
    %v3361 = vpack.c.b16 %v3137, %v3133
    %v3362 = vpack.c.b16 %v3138, %v3134
    %v3363 = vpack.c.b16 %v3143, %v3139
    %v3364 = vpack.c.b16 %v3144, %v3140
    %v3365 = vpack.c.b16 %v3145, %v3141
    %v3366 = vpack.c.b16 %v3146, %v3142
    %v3367 = vpack.c.b16 %v3151, %v3147
    %v3368 = vpack.c.b16 %v3152, %v3148
    %v3369 = vpack.c.b16 %v3153, %v3149
    %v3370 = vpack.c.b16 %v3154, %v3150
    %v3371 = vpack.c.b16 %v3159, %v3155
    %v3372 = vpack.c.b16 %v3160, %v3156
    %v3373 = vpack.c.b16 %v3161, %v3157
    %v3374 = vpack.c.b16 %v3162, %v3158
    %v3375 = vpack.c.b16 %v3167, %v3163
    %v3376 = vpack.c.b16 %v3168, %v3164
    %v3377 = vpack.c.b16 %v3169, %v3165
    %v3378 = vpack.c.b16 %v3170, %v3166
    %v3379 = vpack.c.b16 %v3175, %v3171
    %v3380 = vpack.c.b16 %v3176, %v3172
    %v3381 = vpack.c.b16 %v3177, %v3173
    %v3382 = vpack.c.b16 %v3178, %v3174
    %v3383 = vpack.c.b16 %v3183, %v3179
    %v3384 = vpack.c.b16 %v3184, %v3180
    %v3385 = vpack.c.b16 %v3185, %v3181
    %v3386 = vpack.c.b16 %v3186, %v3182
    %v3387 = vpack.c.b16 %v3191, %v3187
    %v3388 = vpack.c.b16 %v3192, %v3188
    %v3389 = vpack.c.b16 %v3193, %v3189
    %v3390 = vpack.c.b16 %v3194, %v3190
    %v3391 = vpack.c.b16 %v3199, %v3195
    %v3392 = vpack.c.b16 %v3200, %v3196
    %v3393 = vpack.c.b16 %v3201, %v3197
    %v3394 = vpack.c.b16 %v3202, %v3198
    %v3395 = vpack.c.b16 %v3207, %v3203
    %v3396 = vpack.c.b16 %v3208, %v3204
    %v3397 = vpack.c.b16 %v3209, %v3205
    %v3398 = vpack.c.b16 %v3210, %v3206
    %v3399 = vpack.c.b16 %v3215, %v3211
    %v3400 = vpack.c.b16 %v3216, %v3212
    %v3401 = vpack.c.b16 %v3217, %v3213
    %v3402 = vpack.c.b16 %v3218, %v3214
    %v3403 = vpack.c.b16 %v3223, %v3219
    %v3404 = vpack.c.b16 %v3224, %v3220
    %v3405 = vpack.c.b16 %v3225, %v3221
    %v3406 = vpack.c.b16 %v3226, %v3222
    %v3407 = vpack.c.b16 %v3231, %v3227
    %v3408 = vpack.c.b16 %v3232, %v3228
    %v3409 = vpack.c.b16 %v3233, %v3229
    %v3410 = vpack.c.b16 %v3234, %v3230
    %v3411 = vpack.c.b16 %v3239, %v3235
    %v3412 = vpack.c.b16 %v3240, %v3236
    %v3413 = vpack.c.b16 %v3241, %v3237
    %v3414 = vpack.c.b16 %v3242, %v3238
    %v3415 = vpack.c.b16 %v3247, %v3243
    %v3416 = vpack.c.b16 %v3248, %v3244
    %v3417 = vpack.c.b16 %v3249, %v3245
    %v3418 = vpack.c.b16 %v3250, %v3246
    %v3419 = vpack.c.b16 %v3255, %v3251
    %v3420 = vpack.c.b16 %v3256, %v3252
    %v3421 = vpack.c.b16 %v3257, %v3253
    %v3422 = vpack.c.b16 %v3258, %v3254
    %v3423 = vpack.c.b16 %v3263, %v3259
    %v3424 = vpack.c.b16 %v3264, %v3260
    %v3425 = vpack.c.b16 %v3265, %v3261
    %v3426 = vpack.c.b16 %v3266, %v3262
    %v3427 = vpack.c.b16 %v3271, %v3267
    %v3428 = vpack.c.b16 %v3272, %v3268
    %v3429 = vpack.c.b16 %v3273, %v3269
    %v3430 = vpack.c.b16 %v3274, %v3270
    %v3431 = vpack.c.b16 %v3279, %v3275
    %v3432 = vpack.c.b16 %v3280, %v3276
    %v3433 = vpack.c.b16 %v3281, %v3277
    %v3434 = vpack.c.b16 %v3282, %v3278
    %v3435 = vpack.c.b16 %v3287, %v3283
    %v3436 = vpack.c.b16 %v3288, %v3284
    %v3437 = vpack.c.b16 %v3289, %v3285
    %v3438 = vpack.c.b16 %v3290, %v3286
    %v3439 = vpack.c.b16 %v3295, %v3291
    %v3440 = vpack.c.b16 %v3296, %v3292
    %v3441 = vpack.c.b16 %v3297, %v3293
    %v3442 = vpack.c.b16 %v3298, %v3294
    %v3443 = vpack.c.b16 %v3303, %v3299
    %v3444 = vpack.c.b16 %v3304, %v3300
    %v3445 = vpack.c.b16 %v3305, %v3301
    %v3446 = vpack.c.b16 %v3306, %v3302
    %v3447 = vpack.c.b16 %v3311, %v3307
    %v3448 = vpack.c.b16 %v3312, %v3308
    %v3449 = vpack.c.b16 %v3313, %v3309
    %v3450 = vpack.c.b16 %v3314, %v3310
    %v3451 = vpack.c.b16 %v3319, %v3315
    %v3452 = vpack.c.b16 %v3320, %v3316
    %v3453 = vpack.c.b16 %v3321, %v3317
    %v3454 = vpack.c.b16 %v3322, %v3318
    %v3455 = vpack.c.b16 %v3327, %v3323
    %v3456 = vpack.c.b16 %v3328, %v3324
    %v3457 = vpack.c.b16 %v3329, %v3325
    %v3458 = vpack.c.b16 %v3330, %v3326
    %3587 = vmatprep.subr.bf16.mxu0 %v3332
    %3588 = vmatpush1.bf16.msra.mxu0 %v3331
    %3589 = vmatprep.subr.bf16.mxu0 %v3336
    %3590 = vmatpush1.bf16.msra.mxu0 %v3335
    %3591 = vmatprep.subr.bf16.mxu0 %v3340
    %3592 = vmatpush1.bf16.msra.mxu0 %v3339
    %3593 = vmatprep.subr.bf16.mxu0 %v3344
    %3594 = vmatpush1.bf16.msra.mxu0 %v3343
    %3595 = vmatprep.subr.bf16.mxu0 %v3348
    %3596 = vmatpush1.bf16.msra.mxu0 %v3347
    %3597 = vmatprep.subr.bf16.mxu0 %v3352
    %3598 = vmatpush1.bf16.msra.mxu0 %v3351
    %3599 = vmatprep.subr.bf16.mxu0 %v3356
    %3600 = vmatpush1.bf16.msra.mxu0 %v3355
    %3601 = vmatprep.subr.bf16.mxu0 %v3360
    %3602 = vmatpush1.bf16.msra.mxu0 %v3359
    %3603 = vmatprep.subr.bf16.mxu0 %v3364
    %3604 = vmatpush1.bf16.msra.mxu0 %v3363
    %3605 = vmatprep.subr.bf16.mxu0 %v3368
    %3606 = vmatpush1.bf16.msra.mxu0 %v3367
    %3607 = vmatprep.subr.bf16.mxu0 %v3372
    %3608 = vmatpush1.bf16.msra.mxu0 %v3371
    %3609 = vmatprep.subr.bf16.mxu0 %v3376
    %3610 = vmatpush1.bf16.msra.mxu0 %v3375
    %3611 = vmatprep.subr.bf16.mxu0 %v3380
    %3612 = vmatpush1.bf16.msra.mxu0 %v3379
    %3613 = vmatprep.subr.bf16.mxu0 %v3384
    %3614 = vmatpush1.bf16.msra.mxu0 %v3383
    %3615 = vmatprep.subr.bf16.mxu0 %v3388
    %3616 = vmatpush1.bf16.msra.mxu0 %v3387
    %3617 = vmatprep.subr.bf16.mxu0 %v3392
    %3618 = vmatpush1.bf16.msra.mxu0 %v3391
    %3619 = vmatprep.mubr.bf16.mxu0 %v2902
    %3620 = vmatmul.mubr.bf16.gmra.mrb[0].mxu0 %v2890
    %v3621 = vpop.f32.mrb[0].mxu0
    %v3622 = vadd.f32 0.0, %v3621
    %v3623 = vpop.f32.mrb[0].mxu0
    %v3624 = vadd.f32 0.0, %v3623
    %v3625 = vpop.f32.mrb[0].mxu0
    %v3626 = vadd.f32 0.0, %v3625
    %v3627 = vpop.f32.mrb[0].mxu0
    %v3628 = vadd.f32 0.0, %v3627
    %3629 = vmatprep.mubr.bf16.mxu0 %v2932
    %3630 = vmatmul.mubr.bf16.gmra.mrb[0].mxu0 %v2929
    %v3631 = vpop.f32.mrb[0].mxu0
    %v3632 = vadd.f32 0.0, %v3631
    %v3633 = vpop.f32.mrb[0].mxu0
    %v3634 = vadd.f32 0.0, %v3633
    %v3635 = vpop.f32.mrb[0].mxu0
    %v3636 = vpop.f32.mrb[0].mxu0
    %3637 = vdwg.mxu0
    %3638 = vmatprep.subr.bf16.mxu0 %v3396
    %3639 = vmatpush1.bf16.msra.mxu0 %v3395
    %3640 = vmatprep.subr.bf16.mxu0 %v3400
    %3641 = vmatpush1.bf16.msra.mxu0 %v3399
    %3642 = vmatprep.subr.bf16.mxu0 %v3404
    %3643 = vmatpush1.bf16.msra.mxu0 %v3403
    %3644 = vmatprep.subr.bf16.mxu0 %v3408
    %3645 = vmatpush1.bf16.msra.mxu0 %v3407
    %3646 = vmatprep.subr.bf16.mxu0 %v3412
    %3647 = vmatpush1.bf16.msra.mxu0 %v3411
    %3648 = vmatprep.subr.bf16.mxu0 %v3416
    %3649 = vmatpush1.bf16.msra.mxu0 %v3415
    %3650 = vmatprep.subr.bf16.mxu0 %v3420
    %3651 = vmatpush1.bf16.msra.mxu0 %v3419
    %3652 = vmatprep.subr.bf16.mxu0 %v3424
    %3653 = vmatpush1.bf16.msra.mxu0 %v3423
    %3654 = vmatprep.subr.bf16.mxu0 %v3428
    %3655 = vmatpush1.bf16.msra.mxu0 %v3427
    %3656 = vmatprep.subr.bf16.mxu0 %v3432
    %3657 = vmatpush1.bf16.msra.mxu0 %v3431
    %3658 = vmatprep.subr.bf16.mxu0 %v3436
    %3659 = vmatpush1.bf16.msra.mxu0 %v3435
    %3660 = vmatprep.subr.bf16.mxu0 %v3440
    %3661 = vmatpush1.bf16.msra.mxu0 %v3439
    %3662 = vmatprep.subr.bf16.mxu0 %v3444
    %3663 = vmatpush1.bf16.msra.mxu0 %v3443
    %3664 = vmatprep.subr.bf16.mxu0 %v3448
    %3665 = vmatpush1.bf16.msra.mxu0 %v3447
    %3666 = vmatprep.subr.bf16.mxu0 %v3452
    %3667 = vmatpush1.bf16.msra.mxu0 %v3451
    %3668 = vmatprep.subr.bf16.mxu0 %v3456
    %3669 = vmatpush1.bf16.msra.mxu0 %v3455
    %3670 = vmatprep.mubr.bf16.mxu0 %v2926
    %3671 = vmatmul.mubr.bf16.gmra.mrb[0].mxu0 %v2914
    %v3672 = vpop.f32.mrb[0].mxu0
    %v3673 = vadd.f32 %v3622, %v3672
    %v3674 = vpop.f32.mrb[0].mxu0
    %v3675 = vadd.f32 %v3624, %v3674
    %v3676 = vpop.f32.mrb[0].mxu0
    %v3677 = vadd.f32 %v3626, %v3676
    %v3678 = vpop.f32.mrb[0].mxu0
    %v3679 = vadd.f32 %v3628, %v3678
    %3680 = vmatprep.mubr.bf16.mxu0 %v2938
    %3681 = vmatmul.mubr.bf16.gmra.mrb[0].mxu0 %v2935
    %v3682 = vpop.f32.mrb[0].mxu0
    %v3683 = vadd.f32 %v3632, %v3682
    %v3684 = vpop.f32.mrb[0].mxu0
    %v3685 = vadd.f32 %v3634, %v3684
    %v3686 = vpop.f32.mrb[0].mxu0
    %v3687 = vpop.f32.mrb[0].mxu0
    %3688 = vdwg.mxu0
    %3689 = vmatprep.subr.bf16.mxu0 %v3334
    %3690 = vmatpush1.bf16.msra.mxu0 %v3333
    %3691 = vmatprep.subr.bf16.mxu0 %v3338
    %3692 = vmatpush1.bf16.msra.mxu0 %v3337
    %3693 = vmatprep.subr.bf16.mxu0 %v3342
    %3694 = vmatpush1.bf16.msra.mxu0 %v3341
    %3695 = vmatprep.subr.bf16.mxu0 %v3346
    %3696 = vmatpush1.bf16.msra.mxu0 %v3345
    %3697 = vmatprep.subr.bf16.mxu0 %v3350
    %3698 = vmatpush1.bf16.msra.mxu0 %v3349
    %3699 = vmatprep.subr.bf16.mxu0 %v3354
    %3700 = vmatpush1.bf16.msra.mxu0 %v3353
    %3701 = vmatprep.subr.bf16.mxu0 %v3358
    %3702 = vmatpush1.bf16.msra.mxu0 %v3357
    %3703 = vmatprep.subr.bf16.mxu0 %v3362
    %3704 = vmatpush1.bf16.msra.mxu0 %v3361
    %3705 = vmatprep.subr.bf16.mxu0 %v3366
    %3706 = vmatpush1.bf16.msra.mxu0 %v3365
    %3707 = vmatprep.subr.bf16.mxu0 %v3370
    %3708 = vmatpush1.bf16.msra.mxu0 %v3369
    %3709 = vmatprep.subr.bf16.mxu0 %v3374
    %3710 = vmatpush1.bf16.msra.mxu0 %v3373
    %3711 = vmatprep.subr.bf16.mxu0 %v3378
    %3712 = vmatpush1.bf16.msra.mxu0 %v3377
    %3713 = vmatprep.subr.bf16.mxu0 %v3382
    %3714 = vmatpush1.bf16.msra.mxu0 %v3381
    %3715 = vmatprep.subr.bf16.mxu0 %v3386
    %3716 = vmatpush1.bf16.msra.mxu0 %v3385
    %3717 = vmatprep.subr.bf16.mxu0 %v3390
    %3718 = vmatpush1.bf16.msra.mxu0 %v3389
    %3719 = vmatprep.subr.bf16.mxu0 %v3394
    %3720 = vmatpush1.bf16.msra.mxu0 %v3393
    %3721 = vmatprep.mubr.bf16.mxu0 %v2902
    %3722 = vmatmul.mubr.bf16.gmra.mrb[0].mxu0 %v2890
    %v3723 = vpop.f32.mrb[0].mxu0
    %v3724 = vadd.f32 0.0, %v3723
    %v3725 = vpop.f32.mrb[0].mxu0
    %v3726 = vadd.f32 0.0, %v3725
    %v3727 = vpop.f32.mrb[0].mxu0
    %v3728 = vadd.f32 0.0, %v3727
    %v3729 = vpop.f32.mrb[0].mxu0
    %v3730 = vadd.f32 0.0, %v3729
    %3731 = vmatprep.mubr.bf16.mxu0 %v2932
    %3732 = vmatmul.mubr.bf16.gmra.mrb[0].mxu0 %v2929
    %v3733 = vpop.f32.mrb[0].mxu0
    %v3734 = vadd.f32 0.0, %v3733
    %v3735 = vpop.f32.mrb[0].mxu0
    %v3736 = vadd.f32 0.0, %v3735
    %v3737 = vpop.f32.mrb[0].mxu0
    %v3738 = vpop.f32.mrb[0].mxu0
    %3739 = vdwg.mxu0
    %3740 = vmatprep.subr.bf16.mxu0 %v3398
    %3741 = vmatpush1.bf16.msra.mxu0 %v3397
    %3742 = vmatprep.subr.bf16.mxu0 %v3402
    %3743 = vmatpush1.bf16.msra.mxu0 %v3401
    %3744 = vmatprep.subr.bf16.mxu0 %v3406
    %3745 = vmatpush1.bf16.msra.mxu0 %v3405
    %3746 = vmatprep.subr.bf16.mxu0 %v3410
    %3747 = vmatpush1.bf16.msra.mxu0 %v3409
    %3748 = vmatprep.subr.bf16.mxu0 %v3414
    %3749 = vmatpush1.bf16.msra.mxu0 %v3413
    %3750 = vmatprep.subr.bf16.mxu0 %v3418
    %3751 = vmatpush1.bf16.msra.mxu0 %v3417
    %3752 = vmatprep.subr.bf16.mxu0 %v3422
    %3753 = vmatpush1.bf16.msra.mxu0 %v3421
    %3754 = vmatprep.subr.bf16.mxu0 %v3426
    %3755 = vmatpush1.bf16.msra.mxu0 %v3425
    %3756 = vmatprep.subr.bf16.mxu0 %v3430
    %3757 = vmatpush1.bf16.msra.mxu0 %v3429
    %3758 = vmatprep.subr.bf16.mxu0 %v3434
    %3759 = vmatpush1.bf16.msra.mxu0 %v3433
    %3760 = vmatprep.subr.bf16.mxu0 %v3438
    %3761 = vmatpush1.bf16.msra.mxu0 %v3437
    %3762 = vmatprep.subr.bf16.mxu0 %v3442
    %3763 = vmatpush1.bf16.msra.mxu0 %v3441
    %3764 = vmatprep.subr.bf16.mxu0 %v3446
    %3765 = vmatpush1.bf16.msra.mxu0 %v3445
    %3766 = vmatprep.subr.bf16.mxu0 %v3450
    %3767 = vmatpush1.bf16.msra.mxu0 %v3449
    %3768 = vmatprep.subr.bf16.mxu0 %v3454
    %3769 = vmatpush1.bf16.msra.mxu0 %v3453
    %3770 = vmatprep.subr.bf16.mxu0 %v3458
    %3771 = vmatpush1.bf16.msra.mxu0 %v3457
    %3772 = vmatprep.mubr.bf16.mxu0 %v2926
    %3773 = vmatmul.mubr.bf16.gmra.mrb[0].mxu0 %v2914
    %v3774 = vpop.f32.mrb[0].mxu0
    %v3775 = vadd.f32 %v3724, %v3774
    %v3776 = vpop.f32.mrb[0].mxu0
    %v3777 = vadd.f32 %v3726, %v3776
    %v3778 = vpop.f32.mrb[0].mxu0
    %v3779 = vadd.f32 %v3728, %v3778
    %v3780 = vpop.f32.mrb[0].mxu0
    %v3781 = vadd.f32 %v3730, %v3780
    %3782 = vmatprep.mubr.bf16.mxu0 %v2938
    %3783 = vmatmul.mubr.bf16.gmra.mrb[0].mxu0 %v2935
    %v3784 = vpop.f32.mrb[0].mxu0
    %v3785 = vadd.f32 %v3734, %v3784
    %v3786 = vpop.f32.mrb[0].mxu0
    %v3787 = vadd.f32 %v3736, %v3786
    %v3788 = vpop.f32.mrb[0].mxu0
    %v3789 = vpop.f32.mrb[0].mxu0
    %3790 = vdwg.mxu0
    %v3919 = vunpack.c.l.b16 %v2618
    %v3920 = vunpack.c.h.b16 %v2618
    %v3921 = vunpack.c.l.b16 %v2619
    %v3922 = vunpack.c.h.b16 %v2619
    %v3923 = vunpack.c.l.b16 %v2620
    %v3924 = vunpack.c.h.b16 %v2620
    %v3925 = vunpack.c.l.b16 %v2621
    %v3926 = vunpack.c.h.b16 %v2621
    %v3927 = vunpack.c.l.b16 %v2622
    %v3928 = vunpack.c.h.b16 %v2622
    %v3929 = vunpack.c.l.b16 %v2623
    %v3930 = vunpack.c.h.b16 %v2623
    %v3931 = vunpack.c.l.b16 %v2624
    %v3932 = vunpack.c.h.b16 %v2624
    %v3933 = vunpack.c.l.b16 %v2625
    %v3934 = vunpack.c.h.b16 %v2625
    %v3935 = vunpack.c.l.b16 %v2626
    %v3936 = vunpack.c.h.b16 %v2626
    %v3937 = vunpack.c.l.b16 %v2627
    %v3938 = vunpack.c.h.b16 %v2627
    %v3939 = vunpack.c.l.b16 %v2628
    %v3940 = vunpack.c.h.b16 %v2628
    %v3941 = vunpack.c.l.b16 %v2629
    %v3942 = vunpack.c.h.b16 %v2629
    %v3943 = vunpack.c.l.b16 %v2630
    %v3944 = vunpack.c.h.b16 %v2630
    %v3945 = vunpack.c.l.b16 %v2631
    %v3946 = vunpack.c.h.b16 %v2631
    %v3947 = vunpack.c.l.b16 %v2632
    %v3948 = vunpack.c.h.b16 %v2632
    %v3949 = vunpack.c.l.b16 %v2633
    %v3950 = vunpack.c.h.b16 %v2633
    %v3951 = vunpack.c.l.b16 %v2634
    %v3952 = vunpack.c.h.b16 %v2634
    %v3953 = vunpack.c.l.b16 %v2635
    %v3954 = vunpack.c.h.b16 %v2635
    %v3955 = vunpack.c.l.b16 %v2636
    %v3956 = vunpack.c.h.b16 %v2636
    %v3957 = vunpack.c.l.b16 %v2637
    %v3958 = vunpack.c.h.b16 %v2637
    %v3959 = vunpack.c.l.b16 %v2638
    %v3960 = vunpack.c.h.b16 %v2638
    %v3961 = vunpack.c.l.b16 %v2639
    %v3962 = vunpack.c.h.b16 %v2639
    %v3963 = vunpack.c.l.b16 %v2640
    %v3964 = vunpack.c.h.b16 %v2640
    %v3965 = vunpack.c.l.b16 %v2641
    %v3966 = vunpack.c.h.b16 %v2641
    %v3967 = vunpack.c.l.b16 %v2642
    %v3968 = vunpack.c.h.b16 %v2642
    %v3969 = vunpack.c.l.b16 %v2643
    %v3970 = vunpack.c.h.b16 %v2643
    %v3971 = vunpack.c.l.b16 %v2644
    %v3972 = vunpack.c.h.b16 %v2644
    %v3973 = vunpack.c.l.b16 %v2645
    %v3974 = vunpack.c.h.b16 %v2645
    %v3975 = vunpack.c.l.b16 %v2646
    %v3976 = vunpack.c.h.b16 %v2646
    %v3977 = vunpack.c.l.b16 %v2647
    %v3978 = vunpack.c.h.b16 %v2647
    %v3979 = vunpack.c.l.b16 %v2648
    %v3980 = vunpack.c.h.b16 %v2648
    %v3981 = vunpack.c.l.b16 %v2649
    %v3982 = vunpack.c.h.b16 %v2649
    %v3983 = vunpack.c.l.b16 %v2650
    %v3984 = vunpack.c.h.b16 %v2650
    %v3985 = vunpack.c.l.b16 %v2651
    %v3986 = vunpack.c.h.b16 %v2651
    %v3987 = vunpack.c.l.b16 %v2652
    %v3988 = vunpack.c.h.b16 %v2652
    %v3989 = vunpack.c.l.b16 %v2653
    %v3990 = vunpack.c.h.b16 %v2653
    %v3991 = vunpack.c.l.b16 %v2654
    %v3992 = vunpack.c.h.b16 %v2654
    %v3993 = vunpack.c.l.b16 %v2655
    %v3994 = vunpack.c.h.b16 %v2655
    %v3995 = vunpack.c.l.b16 %v2656
    %v3996 = vunpack.c.h.b16 %v2656
    %v3997 = vunpack.c.l.b16 %v2657
    %v3998 = vunpack.c.h.b16 %v2657
    %v3999 = vunpack.c.l.b16 %v2658
    %v4000 = vunpack.c.h.b16 %v2658
    %v4001 = vunpack.c.l.b16 %v2659
    %v4002 = vunpack.c.h.b16 %v2659
    %v4003 = vunpack.c.l.b16 %v2660
    %v4004 = vunpack.c.h.b16 %v2660
    %v4005 = vunpack.c.l.b16 %v2661
    %v4006 = vunpack.c.h.b16 %v2661
    %v4007 = vunpack.c.l.b16 %v2662
    %v4008 = vunpack.c.h.b16 %v2662
    %v4009 = vunpack.c.l.b16 %v2663
    %v4010 = vunpack.c.h.b16 %v2663
    %v4011 = vunpack.c.l.b16 %v2664
    %v4012 = vunpack.c.h.b16 %v2664
    %v4013 = vunpack.c.l.b16 %v2665
    %v4014 = vunpack.c.h.b16 %v2665
    %v4015 = vunpack.c.l.b16 %v2666
    %v4016 = vunpack.c.h.b16 %v2666
    %v4017 = vunpack.c.l.b16 %v2667
    %v4018 = vunpack.c.h.b16 %v2667
    %v4019 = vunpack.c.l.b16 %v2668
    %v4020 = vunpack.c.h.b16 %v2668
    %v4021 = vunpack.c.l.b16 %v2669
    %v4022 = vunpack.c.h.b16 %v2669
    %v4023 = vunpack.c.l.b16 %v2670
    %v4024 = vunpack.c.h.b16 %v2670
    %v4025 = vunpack.c.l.b16 %v2671
    %v4026 = vunpack.c.h.b16 %v2671
    %v4027 = vunpack.c.l.b16 %v2672
    %v4028 = vunpack.c.h.b16 %v2672
    %v4029 = vunpack.c.l.b16 %v2673
    %v4030 = vunpack.c.h.b16 %v2673
    %v4031 = vunpack.c.l.b16 %v2674
    %v4032 = vunpack.c.h.b16 %v2674
    %v4033 = vunpack.c.l.b16 %v2675
    %v4034 = vunpack.c.h.b16 %v2675
    %v4035 = vunpack.c.l.b16 %v2676
    %v4036 = vunpack.c.h.b16 %v2676
    %v4037 = vunpack.c.l.b16 %v2677
    %v4038 = vunpack.c.h.b16 %v2677
    %v4039 = vunpack.c.l.b16 %v2678
    %v4040 = vunpack.c.h.b16 %v2678
    %v4041 = vunpack.c.l.b16 %v2679
    %v4042 = vunpack.c.h.b16 %v2679
    %v4043 = vunpack.c.l.b16 %v2680
    %v4044 = vunpack.c.h.b16 %v2680
    %v4045 = vunpack.c.l.b16 %v2681
    %v4046 = vunpack.c.h.b16 %v2681
    %v4047 = vunpack.c.l.b16 %v2682
    %v4048 = vunpack.c.h.b16 %v2682
    %v4049 = vunpack.c.l.b16 %v2683
    %v4050 = vunpack.c.h.b16 %v2683
    %v4051 = vunpack.c.l.b16 %v2684
    %v4052 = vunpack.c.h.b16 %v2684
    %v4053 = vunpack.c.l.b16 %v2685
    %v4054 = vunpack.c.h.b16 %v2685
    %v4055 = vunpack.c.l.b16 %v2686
    %v4056 = vunpack.c.h.b16 %v2686
    %v4057 = vunpack.c.l.b16 %v2687
    %v4058 = vunpack.c.h.b16 %v2687
    %v4059 = vunpack.c.l.b16 %v2688
    %v4060 = vunpack.c.h.b16 %v2688
    %v4061 = vunpack.c.l.b16 %v2689
    %v4062 = vunpack.c.h.b16 %v2689
    %v4063 = vunpack.c.l.b16 %v2690
    %v4064 = vunpack.c.h.b16 %v2690
    %v4065 = vunpack.c.l.b16 %v2691
    %v4066 = vunpack.c.h.b16 %v2691
    %v4067 = vunpack.c.l.b16 %v2692
    %v4068 = vunpack.c.h.b16 %v2692
    %v4069 = vunpack.c.l.b16 %v2693
    %v4070 = vunpack.c.h.b16 %v2693
    %v4071 = vunpack.c.l.b16 %v2694
    %v4072 = vunpack.c.h.b16 %v2694
    %v4073 = vunpack.c.l.b16 %v2695
    %v4074 = vunpack.c.h.b16 %v2695
    %v4075 = vunpack.c.l.b16 %v2696
    %v4076 = vunpack.c.h.b16 %v2696
    %v4077 = vunpack.c.l.b16 %v2697
    %v4078 = vunpack.c.h.b16 %v2697
    %v4079 = vunpack.c.l.b16 %v2698
    %v4080 = vunpack.c.h.b16 %v2698
    %v4081 = vunpack.c.l.b16 %v2699
    %v4082 = vunpack.c.h.b16 %v2699
    %v4083 = vunpack.c.l.b16 %v2700
    %v4084 = vunpack.c.h.b16 %v2700
    %v4085 = vunpack.c.l.b16 %v2701
    %v4086 = vunpack.c.h.b16 %v2701
    %v4087 = vunpack.c.l.b16 %v2702
    %v4088 = vunpack.c.h.b16 %v2702
    %v4089 = vunpack.c.l.b16 %v2703
    %v4090 = vunpack.c.h.b16 %v2703
    %v4091 = vunpack.c.l.b16 %v2704
    %v4092 = vunpack.c.h.b16 %v2704
    %v4093 = vunpack.c.l.b16 %v2705
    %v4094 = vunpack.c.h.b16 %v2705
    %v4095 = vunpack.c.l.b16 %v2706
    %v4096 = vunpack.c.h.b16 %v2706
    %v4097 = vunpack.c.l.b16 %v2707
    %v4098 = vunpack.c.h.b16 %v2707
    %v4099 = vunpack.c.l.b16 %v2708
    %v4100 = vunpack.c.h.b16 %v2708
    %v4101 = vunpack.c.l.b16 %v2709
    %v4102 = vunpack.c.h.b16 %v2709
    %v4103 = vunpack.c.l.b16 %v2710
    %v4104 = vunpack.c.h.b16 %v2710
    %v4105 = vunpack.c.l.b16 %v2711
    %v4106 = vunpack.c.h.b16 %v2711
    %v4107 = vunpack.c.l.b16 %v2712
    %v4108 = vunpack.c.h.b16 %v2712
    %v4109 = vunpack.c.l.b16 %v2713
    %v4110 = vunpack.c.h.b16 %v2713
    %v4111 = vunpack.c.l.b16 %v2714
    %v4112 = vunpack.c.h.b16 %v2714
    %v4113 = vunpack.c.l.b16 %v2715
    %v4114 = vunpack.c.h.b16 %v2715
    %v4115 = vunpack.c.l.b16 %v2716
    %v4116 = vunpack.c.h.b16 %v2716
    %v4117 = vunpack.c.l.b16 %v2717
    %v4118 = vunpack.c.h.b16 %v2717
    %v4119 = vunpack.c.l.b16 %v2718
    %v4120 = vunpack.c.h.b16 %v2718
    %v4121 = vunpack.c.l.b16 %v2719
    %v4122 = vunpack.c.h.b16 %v2719
    %v4123 = vunpack.c.l.b16 %v2720
    %v4124 = vunpack.c.h.b16 %v2720
    %v4125 = vunpack.c.l.b16 %v2721
    %v4126 = vunpack.c.h.b16 %v2721
    %v4127 = vunpack.c.l.b16 %v2722
    %v4128 = vunpack.c.h.b16 %v2722
    %v4129 = vunpack.c.l.b16 %v2723
    %v4130 = vunpack.c.h.b16 %v2723
    %v4131 = vunpack.c.l.b16 %v2724
    %v4132 = vunpack.c.h.b16 %v2724
    %v4133 = vunpack.c.l.b16 %v2725
    %v4134 = vunpack.c.h.b16 %v2725
    %v4135 = vunpack.c.l.b16 %v2726
    %v4136 = vunpack.c.h.b16 %v2726
    %v4137 = vunpack.c.l.b16 %v2727
    %v4138 = vunpack.c.h.b16 %v2727
    %v4139 = vunpack.c.l.b16 %v2728
    %v4140 = vunpack.c.h.b16 %v2728
    %v4141 = vunpack.c.l.b16 %v2729
    %v4142 = vunpack.c.h.b16 %v2729
    %v4143 = vunpack.c.l.b16 %v2730
    %v4144 = vunpack.c.h.b16 %v2730
    %v4145 = vunpack.c.l.b16 %v2731
    %v4146 = vunpack.c.h.b16 %v2731
    %v4147 = vunpack.c.l.b16 %v2732
    %v4148 = vunpack.c.h.b16 %v2732
    %v4149 = vunpack.c.l.b16 %v2733
    %v4150 = vunpack.c.h.b16 %v2733
    %v4151 = vunpack.c.l.b16 %v2734
    %v4152 = vunpack.c.h.b16 %v2734
    %v4153 = vunpack.c.l.b16 %v2735
    %v4154 = vunpack.c.h.b16 %v2735
    %v4155 = vunpack.c.l.b16 %v2736
    %v4156 = vunpack.c.h.b16 %v2736
    %v4157 = vunpack.c.l.b16 %v2737
    %v4158 = vunpack.c.h.b16 %v2737
    %v4159 = vunpack.c.l.b16 %v2738
    %v4160 = vunpack.c.h.b16 %v2738
    %v4161 = vunpack.c.l.b16 %v2739
    %v4162 = vunpack.c.h.b16 %v2739
    %v4163 = vunpack.c.l.b16 %v2740
    %v4164 = vunpack.c.h.b16 %v2740
    %v4165 = vunpack.c.l.b16 %v2741
    %v4166 = vunpack.c.h.b16 %v2741
    %v4167 = vunpack.c.l.b16 %v2742
    %v4168 = vunpack.c.h.b16 %v2742
    %v4169 = vunpack.c.l.b16 %v2743
    %v4170 = vunpack.c.h.b16 %v2743
    %v4171 = vunpack.c.l.b16 %v2744
    %v4172 = vunpack.c.h.b16 %v2744
    %v4173 = vunpack.c.l.b16 %v2745
    %v4174 = vunpack.c.h.b16 %v2745
    %v4175 = vpack.c.b16 %v3923, %v3919
    %v4176 = vpack.c.b16 %v3924, %v3920
    %v4177 = vpack.c.b16 %v3925, %v3921
    %v4178 = vpack.c.b16 %v3926, %v3922
    %v4179 = vpack.c.b16 %v3931, %v3927
    %v4180 = vpack.c.b16 %v3932, %v3928
    %v4181 = vpack.c.b16 %v3933, %v3929
    %v4182 = vpack.c.b16 %v3934, %v3930
    %v4183 = vpack.c.b16 %v3939, %v3935
    %v4184 = vpack.c.b16 %v3940, %v3936
    %v4185 = vpack.c.b16 %v3941, %v3937
    %v4186 = vpack.c.b16 %v3942, %v3938
    %v4187 = vpack.c.b16 %v3947, %v3943
    %v4188 = vpack.c.b16 %v3948, %v3944
    %v4189 = vpack.c.b16 %v3949, %v3945
    %v4190 = vpack.c.b16 %v3950, %v3946
    %v4191 = vpack.c.b16 %v3955, %v3951
    %v4192 = vpack.c.b16 %v3956, %v3952
    %v4193 = vpack.c.b16 %v3957, %v3953
    %v4194 = vpack.c.b16 %v3958, %v3954
    %v4195 = vpack.c.b16 %v3963, %v3959
    %v4196 = vpack.c.b16 %v3964, %v3960
    %v4197 = vpack.c.b16 %v3965, %v3961
    %v4198 = vpack.c.b16 %v3966, %v3962
    %v4199 = vpack.c.b16 %v3971, %v3967
    %v4200 = vpack.c.b16 %v3972, %v3968
    %v4201 = vpack.c.b16 %v3973, %v3969
    %v4202 = vpack.c.b16 %v3974, %v3970
    %v4203 = vpack.c.b16 %v3979, %v3975
    %v4204 = vpack.c.b16 %v3980, %v3976
    %v4205 = vpack.c.b16 %v3981, %v3977
    %v4206 = vpack.c.b16 %v3982, %v3978
    %v4207 = vpack.c.b16 %v3987, %v3983
    %v4208 = vpack.c.b16 %v3988, %v3984
    %v4209 = vpack.c.b16 %v3989, %v3985
    %v4210 = vpack.c.b16 %v3990, %v3986
    %v4211 = vpack.c.b16 %v3995, %v3991
    %v4212 = vpack.c.b16 %v3996, %v3992
    %v4213 = vpack.c.b16 %v3997, %v3993
    %v4214 = vpack.c.b16 %v3998, %v3994
    %v4215 = vpack.c.b16 %v4003, %v3999
    %v4216 = vpack.c.b16 %v4004, %v4000
    %v4217 = vpack.c.b16 %v4005, %v4001
    %v4218 = vpack.c.b16 %v4006, %v4002
    %v4219 = vpack.c.b16 %v4011, %v4007
    %v4220 = vpack.c.b16 %v4012, %v4008
    %v4221 = vpack.c.b16 %v4013, %v4009
    %v4222 = vpack.c.b16 %v4014, %v4010
    %v4223 = vpack.c.b16 %v4019, %v4015
    %v4224 = vpack.c.b16 %v4020, %v4016
    %v4225 = vpack.c.b16 %v4021, %v4017
    %v4226 = vpack.c.b16 %v4022, %v4018
    %v4227 = vpack.c.b16 %v4027, %v4023
    %v4228 = vpack.c.b16 %v4028, %v4024
    %v4229 = vpack.c.b16 %v4029, %v4025
    %v4230 = vpack.c.b16 %v4030, %v4026
    %v4231 = vpack.c.b16 %v4035, %v4031
    %v4232 = vpack.c.b16 %v4036, %v4032
    %v4233 = vpack.c.b16 %v4037, %v4033
    %v4234 = vpack.c.b16 %v4038, %v4034
    %v4235 = vpack.c.b16 %v4043, %v4039
    %v4236 = vpack.c.b16 %v4044, %v4040
    %v4237 = vpack.c.b16 %v4045, %v4041
    %v4238 = vpack.c.b16 %v4046, %v4042
    %v4239 = vpack.c.b16 %v4051, %v4047
    %v4240 = vpack.c.b16 %v4052, %v4048
    %v4241 = vpack.c.b16 %v4053, %v4049
    %v4242 = vpack.c.b16 %v4054, %v4050
    %v4243 = vpack.c.b16 %v4059, %v4055
    %v4244 = vpack.c.b16 %v4060, %v4056
    %v4245 = vpack.c.b16 %v4061, %v4057
    %v4246 = vpack.c.b16 %v4062, %v4058
    %v4247 = vpack.c.b16 %v4067, %v4063
    %v4248 = vpack.c.b16 %v4068, %v4064
    %v4249 = vpack.c.b16 %v4069, %v4065
    %v4250 = vpack.c.b16 %v4070, %v4066
    %v4251 = vpack.c.b16 %v4075, %v4071
    %v4252 = vpack.c.b16 %v4076, %v4072
    %v4253 = vpack.c.b16 %v4077, %v4073
    %v4254 = vpack.c.b16 %v4078, %v4074
    %v4255 = vpack.c.b16 %v4083, %v4079
    %v4256 = vpack.c.b16 %v4084, %v4080
    %v4257 = vpack.c.b16 %v4085, %v4081
    %v4258 = vpack.c.b16 %v4086, %v4082
    %v4259 = vpack.c.b16 %v4091, %v4087
    %v4260 = vpack.c.b16 %v4092, %v4088
    %v4261 = vpack.c.b16 %v4093, %v4089
    %v4262 = vpack.c.b16 %v4094, %v4090
    %v4263 = vpack.c.b16 %v4099, %v4095
    %v4264 = vpack.c.b16 %v4100, %v4096
    %v4265 = vpack.c.b16 %v4101, %v4097
    %v4266 = vpack.c.b16 %v4102, %v4098
    %v4267 = vpack.c.b16 %v4107, %v4103
    %v4268 = vpack.c.b16 %v4108, %v4104
    %v4269 = vpack.c.b16 %v4109, %v4105
    %v4270 = vpack.c.b16 %v4110, %v4106
    %v4271 = vpack.c.b16 %v4115, %v4111
    %v4272 = vpack.c.b16 %v4116, %v4112
    %v4273 = vpack.c.b16 %v4117, %v4113
    %v4274 = vpack.c.b16 %v4118, %v4114
    %v4275 = vpack.c.b16 %v4123, %v4119
    %v4276 = vpack.c.b16 %v4124, %v4120
    %v4277 = vpack.c.b16 %v4125, %v4121
    %v4278 = vpack.c.b16 %v4126, %v4122
    %v4279 = vpack.c.b16 %v4131, %v4127
    %v4280 = vpack.c.b16 %v4132, %v4128
    %v4281 = vpack.c.b16 %v4133, %v4129
    %v4282 = vpack.c.b16 %v4134, %v4130
    %v4283 = vpack.c.b16 %v4139, %v4135
    %v4284 = vpack.c.b16 %v4140, %v4136
    %v4285 = vpack.c.b16 %v4141, %v4137
    %v4286 = vpack.c.b16 %v4142, %v4138
    %v4287 = vpack.c.b16 %v4147, %v4143
    %v4288 = vpack.c.b16 %v4148, %v4144
    %v4289 = vpack.c.b16 %v4149, %v4145
    %v4290 = vpack.c.b16 %v4150, %v4146
    %v4291 = vpack.c.b16 %v4155, %v4151
    %v4292 = vpack.c.b16 %v4156, %v4152
    %v4293 = vpack.c.b16 %v4157, %v4153
    %v4294 = vpack.c.b16 %v4158, %v4154
    %v4295 = vpack.c.b16 %v4163, %v4159
    %v4296 = vpack.c.b16 %v4164, %v4160
    %v4297 = vpack.c.b16 %v4165, %v4161
    %v4298 = vpack.c.b16 %v4166, %v4162
    %v4299 = vpack.c.b16 %v4171, %v4167
    %v4300 = vpack.c.b16 %v4172, %v4168
    %v4301 = vpack.c.b16 %v4173, %v4169
    %v4302 = vpack.c.b16 %v4174, %v4170
    %4431 = vmatprep.subr.bf16.mxu0 %v4176
    %4432 = vmatpush1.bf16.msra.mxu0 %v4175
    %4433 = vmatprep.subr.bf16.mxu0 %v4180
    %4434 = vmatpush1.bf16.msra.mxu0 %v4179
    %4435 = vmatprep.subr.bf16.mxu0 %v4184
    %4436 = vmatpush1.bf16.msra.mxu0 %v4183
    %4437 = vmatprep.subr.bf16.mxu0 %v4188
    %4438 = vmatpush1.bf16.msra.mxu0 %v4187
    %4439 = vmatprep.subr.bf16.mxu0 %v4192
    %4440 = vmatpush1.bf16.msra.mxu0 %v4191
    %4441 = vmatprep.subr.bf16.mxu0 %v4196
    %4442 = vmatpush1.bf16.msra.mxu0 %v4195
    %4443 = vmatprep.subr.bf16.mxu0 %v4200
    %4444 = vmatpush1.bf16.msra.mxu0 %v4199
    %4445 = vmatprep.subr.bf16.mxu0 %v4204
    %4446 = vmatpush1.bf16.msra.mxu0 %v4203
    %4447 = vmatprep.subr.bf16.mxu0 %v4208
    %4448 = vmatpush1.bf16.msra.mxu0 %v4207
    %4449 = vmatprep.subr.bf16.mxu0 %v4212
    %4450 = vmatpush1.bf16.msra.mxu0 %v4211
    %4451 = vmatprep.subr.bf16.mxu0 %v4216
    %4452 = vmatpush1.bf16.msra.mxu0 %v4215
    %4453 = vmatprep.subr.bf16.mxu0 %v4220
    %4454 = vmatpush1.bf16.msra.mxu0 %v4219
    %4455 = vmatprep.subr.bf16.mxu0 %v4224
    %4456 = vmatpush1.bf16.msra.mxu0 %v4223
    %4457 = vmatprep.subr.bf16.mxu0 %v4228
    %4458 = vmatpush1.bf16.msra.mxu0 %v4227
    %4459 = vmatprep.subr.bf16.mxu0 %v4232
    %4460 = vmatpush1.bf16.msra.mxu0 %v4231
    %4461 = vmatprep.subr.bf16.mxu0 %v4236
    %4462 = vmatpush1.bf16.msra.mxu0 %v4235
    %4463 = vmatprep.mubr.bf16.mxu0 %v2611
    %4464 = vmatmul.mubr.bf16.gmra.mrb[0].mxu0 %v2610
    %v4465 = vpop.f32.mrb[0].mxu0
    %v4466 = vadd.f32 %v3673, %v4465
    %v4467 = vpop.f32.mrb[0].mxu0
    %v4468 = vadd.f32 %v3675, %v4467
    %v4469 = vpop.f32.mrb[0].mxu0
    %v4470 = vadd.f32 %v3677, %v4469
    %v4471 = vpop.f32.mrb[0].mxu0
    %v4472 = vadd.f32 %v3679, %v4471
    %4473 = vmatprep.mubr.bf16.mxu0 %v2615
    %4474 = vmatmul.mubr.bf16.gmra.mrb[0].mxu0 %v2614
    %v4475 = vpop.f32.mrb[0].mxu0
    %v4476 = vadd.f32 %v3683, %v4475
    %v4477 = vpop.f32.mrb[0].mxu0
    %v4478 = vadd.f32 %v3685, %v4477
    %v4479 = vpop.f32.mrb[0].mxu0
    %v4480 = vpop.f32.mrb[0].mxu0
    %4481 = vdwg.mxu0
    %4482 = vmatprep.subr.bf16.mxu0 %v4240
    %4483 = vmatpush1.bf16.msra.mxu0 %v4239
    %4484 = vmatprep.subr.bf16.mxu0 %v4244
    %4485 = vmatpush1.bf16.msra.mxu0 %v4243
    %4486 = vmatprep.subr.bf16.mxu0 %v4248
    %4487 = vmatpush1.bf16.msra.mxu0 %v4247
    %4488 = vmatprep.subr.bf16.mxu0 %v4252
    %4489 = vmatpush1.bf16.msra.mxu0 %v4251
    %4490 = vmatprep.subr.bf16.mxu0 %v4256
    %4491 = vmatpush1.bf16.msra.mxu0 %v4255
    %4492 = vmatprep.subr.bf16.mxu0 %v4260
    %4493 = vmatpush1.bf16.msra.mxu0 %v4259
    %4494 = vmatprep.subr.bf16.mxu0 %v4264
    %4495 = vmatpush1.bf16.msra.mxu0 %v4263
    %4496 = vmatprep.subr.bf16.mxu0 %v4268
    %4497 = vmatpush1.bf16.msra.mxu0 %v4267
    %4498 = vmatprep.subr.bf16.mxu0 %v4272
    %4499 = vmatpush1.bf16.msra.mxu0 %v4271
    %4500 = vmatprep.subr.bf16.mxu0 %v4276
    %4501 = vmatpush1.bf16.msra.mxu0 %v4275
    %4502 = vmatprep.subr.bf16.mxu0 %v4280
    %4503 = vmatpush1.bf16.msra.mxu0 %v4279
    %4504 = vmatprep.subr.bf16.mxu0 %v4284
    %4505 = vmatpush1.bf16.msra.mxu0 %v4283
    %4506 = vmatprep.subr.bf16.mxu0 %v4288
    %4507 = vmatpush1.bf16.msra.mxu0 %v4287
    %4508 = vmatprep.subr.bf16.mxu0 %v4292
    %4509 = vmatpush1.bf16.msra.mxu0 %v4291
    %4510 = vmatprep.subr.bf16.mxu0 %v4296
    %4511 = vmatpush1.bf16.msra.mxu0 %v4295
    %4512 = vmatprep.subr.bf16.mxu0 %v4300
    %4513 = vmatpush1.bf16.msra.mxu0 %v4299
    %4514 = vmatprep.mubr.bf16.mxu0 %v2613
    %4515 = vmatmul.mubr.bf16.gmra.mrb[0].mxu0 %v2612
    %v4516 = vpop.f32.mrb[0].mxu0
    %v4517 = vadd.f32 %v4466, %v4516
    %v4518 = vpop.f32.mrb[0].mxu0
    %v4519 = vadd.f32 %v4468, %v4518
    %v4520 = vpop.f32.mrb[0].mxu0
    %v4521 = vadd.f32 %v4470, %v4520
    %v4522 = vpop.f32.mrb[0].mxu0
    %v4523 = vadd.f32 %v4472, %v4522
    %4524 = vmatprep.mubr.bf16.mxu0 %v2617
    %4525 = vmatmul.mubr.bf16.gmra.mrb[0].mxu0 %v2616
    %v4526 = vpop.f32.mrb[0].mxu0
    %v4527 = vadd.f32 %v4476, %v4526
    %v4528 = vpop.f32.mrb[0].mxu0
    %v4529 = vadd.f32 %v4478, %v4528
    %v4530 = vpop.f32.mrb[0].mxu0
    %v4531 = vpop.f32.mrb[0].mxu0
    %4532 = vdwg.mxu0
    %4533 = vmatprep.subr.bf16.mxu0 %v4178
    %4534 = vmatpush1.bf16.msra.mxu0 %v4177
    %4535 = vmatprep.subr.bf16.mxu0 %v4182
    %4536 = vmatpush1.bf16.msra.mxu0 %v4181
    %4537 = vmatprep.subr.bf16.mxu0 %v4186
    %4538 = vmatpush1.bf16.msra.mxu0 %v4185
    %4539 = vmatprep.subr.bf16.mxu0 %v4190
    %4540 = vmatpush1.bf16.msra.mxu0 %v4189
    %4541 = vmatprep.subr.bf16.mxu0 %v4194
    %4542 = vmatpush1.bf16.msra.mxu0 %v4193
    %4543 = vmatprep.subr.bf16.mxu0 %v4198
    %4544 = vmatpush1.bf16.msra.mxu0 %v4197
    %4545 = vmatprep.subr.bf16.mxu0 %v4202
    %4546 = vmatpush1.bf16.msra.mxu0 %v4201
    %4547 = vmatprep.subr.bf16.mxu0 %v4206
    %4548 = vmatpush1.bf16.msra.mxu0 %v4205
    %4549 = vmatprep.subr.bf16.mxu0 %v4210
    %4550 = vmatpush1.bf16.msra.mxu0 %v4209
    %4551 = vmatprep.subr.bf16.mxu0 %v4214
    %4552 = vmatpush1.bf16.msra.mxu0 %v4213
    %4553 = vmatprep.subr.bf16.mxu0 %v4218
    %4554 = vmatpush1.bf16.msra.mxu0 %v4217
    %4555 = vmatprep.subr.bf16.mxu0 %v4222
    %4556 = vmatpush1.bf16.msra.mxu0 %v4221
    %4557 = vmatprep.subr.bf16.mxu0 %v4226
    %4558 = vmatpush1.bf16.msra.mxu0 %v4225
    %4559 = vmatprep.subr.bf16.mxu0 %v4230
    %4560 = vmatpush1.bf16.msra.mxu0 %v4229
    %4561 = vmatprep.subr.bf16.mxu0 %v4234
    %4562 = vmatpush1.bf16.msra.mxu0 %v4233
    %4563 = vmatprep.subr.bf16.mxu0 %v4238
    %4564 = vmatpush1.bf16.msra.mxu0 %v4237
    %4565 = vmatprep.mubr.bf16.mxu0 %v2611
    %4566 = vmatmul.mubr.bf16.gmra.mrb[0].mxu0 %v2610
    %v4567 = vpop.f32.mrb[0].mxu0
    %v4568 = vadd.f32 %v3775, %v4567
    %v4569 = vpop.f32.mrb[0].mxu0
    %v4570 = vadd.f32 %v3777, %v4569
    %v4571 = vpop.f32.mrb[0].mxu0
    %v4572 = vadd.f32 %v3779, %v4571
    %v4573 = vpop.f32.mrb[0].mxu0
    %v4574 = vadd.f32 %v3781, %v4573
    %4575 = vmatprep.mubr.bf16.mxu0 %v2615
    %4576 = vmatmul.mubr.bf16.gmra.mrb[0].mxu0 %v2614
    %v4577 = vpop.f32.mrb[0].mxu0
    %v4578 = vadd.f32 %v3785, %v4577
    %v4579 = vpop.f32.mrb[0].mxu0
    %v4580 = vadd.f32 %v3787, %v4579
    %v4581 = vpop.f32.mrb[0].mxu0
    %v4582 = vpop.f32.mrb[0].mxu0
    %4583 = vdwg.mxu0
    %4584 = vmatprep.subr.bf16.mxu0 %v4242
    %4585 = vmatpush1.bf16.msra.mxu0 %v4241
    %4586 = vmatprep.subr.bf16.mxu0 %v4246
    %4587 = vmatpush1.bf16.msra.mxu0 %v4245
    %4588 = vmatprep.subr.bf16.mxu0 %v4250
    %4589 = vmatpush1.bf16.msra.mxu0 %v4249
    %4590 = vmatprep.subr.bf16.mxu0 %v4254
    %4591 = vmatpush1.bf16.msra.mxu0 %v4253
    %4592 = vmatprep.subr.bf16.mxu0 %v4258
    %4593 = vmatpush1.bf16.msra.mxu0 %v4257
    %4594 = vmatprep.subr.bf16.mxu0 %v4262
    %4595 = vmatpush1.bf16.msra.mxu0 %v4261
    %4596 = vmatprep.subr.bf16.mxu0 %v4266
    %4597 = vmatpush1.bf16.msra.mxu0 %v4265
    %4598 = vmatprep.subr.bf16.mxu0 %v4270
    %4599 = vmatpush1.bf16.msra.mxu0 %v4269
    %4600 = vmatprep.subr.bf16.mxu0 %v4274
    %4601 = vmatpush1.bf16.msra.mxu0 %v4273
    %4602 = vmatprep.subr.bf16.mxu0 %v4278
    %4603 = vmatpush1.bf16.msra.mxu0 %v4277
    %4604 = vmatprep.subr.bf16.mxu0 %v4282
    %4605 = vmatpush1.bf16.msra.mxu0 %v4281
    %4606 = vmatprep.subr.bf16.mxu0 %v4286
    %4607 = vmatpush1.bf16.msra.mxu0 %v4285
    %4608 = vmatprep.subr.bf16.mxu0 %v4290
    %4609 = vmatpush1.bf16.msra.mxu0 %v4289
    %4610 = vmatprep.subr.bf16.mxu0 %v4294
    %4611 = vmatpush1.bf16.msra.mxu0 %v4293
    %4612 = vmatprep.subr.bf16.mxu0 %v4298
    %4613 = vmatpush1.bf16.msra.mxu0 %v4297
    %4614 = vmatprep.subr.bf16.mxu0 %v4302
    %4615 = vmatpush1.bf16.msra.mxu0 %v4301
    %4616 = vmatprep.mubr.bf16.mxu0 %v2613
    %4617 = vmatmul.mubr.bf16.gmra.mrb[0].mxu0 %v2612
    %v4618 = vpop.f32.mrb[0].mxu0
    %v4619 = vadd.f32 %v4568, %v4618
    %v4620 = vpop.f32.mrb[0].mxu0
    %v4621 = vadd.f32 %v4570, %v4620
    %v4622 = vpop.f32.mrb[0].mxu0
    %v4623 = vadd.f32 %v4572, %v4622
    %v4624 = vpop.f32.mrb[0].mxu0
    %v4625 = vadd.f32 %v4574, %v4624
    %4626 = vmatprep.mubr.bf16.mxu0 %v2617
    %4627 = vmatmul.mubr.bf16.gmra.mrb[0].mxu0 %v2616
    %v4628 = vpop.f32.mrb[0].mxu0
    %v4629 = vadd.f32 %v4578, %v4628
    %v4630 = vpop.f32.mrb[0].mxu0
    %v4631 = vadd.f32 %v4580, %v4630
    %v4632 = vpop.f32.mrb[0].mxu0
    %v4633 = vpop.f32.mrb[0].mxu0
    %4634 = vdwg.mxu0
    %v4635 = vld [vmem:[#allocation3] sm:$0xfe]
    %v4636 = vld [vmem:[#allocation3 + $0x8] sm:$0xfe]
    %v4637 = vld [vmem:[#allocation3 + $0x10] sm:$0xfe]
    %v4638 = vld [vmem:[#allocation3 + $0x18] sm:$0xfe]
    %s4639 = scalar_lea.vmem [#allocation10], 2048
    %v4640 = vld [vmem:[%s4639] sm:$0xff]
    %v4641 = vld [vmem:[%s4639 + $0x8] sm:$0xff]
    %v4642 = vld [vmem:[%s4639 + $0x10] sm:$0xff]
    %v4643 = vld [vmem:[%s4639 + $0x18] sm:$0xff]
    %v4644 = vld [vmem:[%s4639 + $0x20] sm:$0xff]
    %v4645 = vld [vmem:[%s4639 + $0x28] sm:$0xff]
    %v4646 = vld [vmem:[%s4639 + $0x30] sm:$0xff]
    %v4647 = vld [vmem:[%s4639 + $0x38] sm:$0xff]
    %v4648 = vld [vmem:[%s4639 + $0x40] sm:$0xff]
    %v4649 = vld [vmem:[%s4639 + $0x48] sm:$0xff]
    %v4650 = vld [vmem:[%s4639 + $0x50] sm:$0xff]
    %v4651 = vld [vmem:[%s4639 + $0x58] sm:$0xff]
    %v4652 = vld [vmem:[%s4639 + $0x60] sm:$0xff]
    %v4653 = vld [vmem:[%s4639 + $0x68] sm:$0xff]
    %v4654 = vld [vmem:[%s4639 + $0x70] sm:$0xff]
    %v4655 = vld [vmem:[%s4639 + $0x78] sm:$0xff]
    %v4656 = vld [vmem:[%s4639 + $0x80] sm:$0xff]
    %v4657 = vld [vmem:[%s4639 + $0x88] sm:$0xff]
    %v4658 = vld [vmem:[%s4639 + $0x90] sm:$0xff]
    %v4659 = vld [vmem:[%s4639 + $0x98] sm:$0xff]
    %v4660 = vld [vmem:[%s4639 + $0xa0] sm:$0xff]
    %v4661 = vld [vmem:[%s4639 + $0xa8] sm:$0xff]
    %v4662 = vld [vmem:[%s4639 + $0xb0] sm:$0xff]
    %v4663 = vld [vmem:[%s4639 + $0xb8] sm:$0xff]
    %v4664 = vld [vmem:[%s4639 + $0xc0] sm:$0xff]
    %v4665 = vld [vmem:[%s4639 + $0xc8] sm:$0xff]
    %v4666 = vld [vmem:[%s4639 + $0xd0] sm:$0xff]
    %v4667 = vld [vmem:[%s4639 + $0xd8] sm:$0xff]
    %v4668 = vld [vmem:[%s4639 + $0xe0] sm:$0xff]
    %v4669 = vld [vmem:[%s4639 + $0xe8] sm:$0xff]
    %v4670 = vld [vmem:[%s4639 + $0xf0] sm:$0xff]
    %v4671 = vld [vmem:[%s4639 + $0xf8] sm:$0xff]
    %v4672 = vld [vmem:[%s4639 + $0x100] sm:$0xff]
    %v4673 = vld [vmem:[%s4639 + $0x108] sm:$0xff]
    %v4674 = vld [vmem:[%s4639 + $0x110] sm:$0xff]
    %v4675 = vld [vmem:[%s4639 + $0x118] sm:$0xff]
    %v4676 = vld [vmem:[%s4639 + $0x120] sm:$0xff]
    %v4677 = vld [vmem:[%s4639 + $0x128] sm:$0xff]
    %v4678 = vld [vmem:[%s4639 + $0x130] sm:$0xff]
    %v4679 = vld [vmem:[%s4639 + $0x138] sm:$0xff]
    %v4680 = vld [vmem:[%s4639 + $0x140] sm:$0xff]
    %v4681 = vld [vmem:[%s4639 + $0x148] sm:$0xff]
    %v4682 = vld [vmem:[%s4639 + $0x150] sm:$0xff]
    %v4683 = vld [vmem:[%s4639 + $0x158] sm:$0xff]
    %v4684 = vld [vmem:[%s4639 + $0x160] sm:$0xff]
    %v4685 = vld [vmem:[%s4639 + $0x168] sm:$0xff]
    %v4686 = vld [vmem:[%s4639 + $0x170] sm:$0xff]
    %v4687 = vld [vmem:[%s4639 + $0x178] sm:$0xff]
    %v4688 = vld [vmem:[%s4639 + $0x180] sm:$0xff]
    %v4689 = vld [vmem:[%s4639 + $0x188] sm:$0xff]
    %v4690 = vld [vmem:[%s4639 + $0x190] sm:$0xff]
    %v4691 = vld [vmem:[%s4639 + $0x198] sm:$0xff]
    %v4692 = vld [vmem:[%s4639 + $0x1a0] sm:$0xff]
    %v4693 = vld [vmem:[%s4639 + $0x1a8] sm:$0xff]
    %v4694 = vld [vmem:[%s4639 + $0x1b0] sm:$0xff]
    %v4695 = vld [vmem:[%s4639 + $0x1b8] sm:$0xff]
    %v4696 = vld [vmem:[%s4639 + $0x1c0] sm:$0xff]
    %v4697 = vld [vmem:[%s4639 + $0x1c8] sm:$0xff]
    %v4698 = vld [vmem:[%s4639 + $0x1d0] sm:$0xff]
    %v4699 = vld [vmem:[%s4639 + $0x1d8] sm:$0xff]
    %v4700 = vld [vmem:[%s4639 + $0x1e0] sm:$0xff]
    %v4701 = vld [vmem:[%s4639 + $0x1e8] sm:$0xff]
    %v4702 = vld [vmem:[%s4639 + $0x1f0] sm:$0xff]
    %v4703 = vld [vmem:[%s4639 + $0x1f8] sm:$0xff]
    %v4704 = vld [vmem:[%s4639 + $0x200] sm:$0xff]
    %v4705 = vld [vmem:[%s4639 + $0x208] sm:$0xff]
    %v4706 = vld [vmem:[%s4639 + $0x210] sm:$0xff]
    %v4707 = vld [vmem:[%s4639 + $0x218] sm:$0xff]
    %v4708 = vld [vmem:[%s4639 + $0x220] sm:$0xff]
    %v4709 = vld [vmem:[%s4639 + $0x228] sm:$0xff]
    %v4710 = vld [vmem:[%s4639 + $0x230] sm:$0xff]
    %v4711 = vld [vmem:[%s4639 + $0x238] sm:$0xff]
    %v4712 = vld [vmem:[%s4639 + $0x240] sm:$0xff]
    %v4713 = vld [vmem:[%s4639 + $0x248] sm:$0xff]
    %v4714 = vld [vmem:[%s4639 + $0x250] sm:$0xff]
    %v4715 = vld [vmem:[%s4639 + $0x258] sm:$0xff]
    %v4716 = vld [vmem:[%s4639 + $0x260] sm:$0xff]
    %v4717 = vld [vmem:[%s4639 + $0x268] sm:$0xff]
    %v4718 = vld [vmem:[%s4639 + $0x270] sm:$0xff]
    %v4719 = vld [vmem:[%s4639 + $0x278] sm:$0xff]
    %v4720 = vld [vmem:[%s4639 + $0x280] sm:$0xff]
    %v4721 = vld [vmem:[%s4639 + $0x288] sm:$0xff]
    %v4722 = vld [vmem:[%s4639 + $0x290] sm:$0xff]
    %v4723 = vld [vmem:[%s4639 + $0x298] sm:$0xff]
    %v4724 = vld [vmem:[%s4639 + $0x2a0] sm:$0xff]
    %v4725 = vld [vmem:[%s4639 + $0x2a8] sm:$0xff]
    %v4726 = vld [vmem:[%s4639 + $0x2b0] sm:$0xff]
    %v4727 = vld [vmem:[%s4639 + $0x2b8] sm:$0xff]
    %v4728 = vld [vmem:[%s4639 + $0x2c0] sm:$0xff]
    %v4729 = vld [vmem:[%s4639 + $0x2c8] sm:$0xff]
    %v4730 = vld [vmem:[%s4639 + $0x2d0] sm:$0xff]
    %v4731 = vld [vmem:[%s4639 + $0x2d8] sm:$0xff]
    %v4732 = vld [vmem:[%s4639 + $0x2e0] sm:$0xff]
    %v4733 = vld [vmem:[%s4639 + $0x2e8] sm:$0xff]
    %v4734 = vld [vmem:[%s4639 + $0x2f0] sm:$0xff]
    %v4735 = vld [vmem:[%s4639 + $0x2f8] sm:$0xff]
    %v4736 = vld [vmem:[%s4639 + $0x300] sm:$0xff]
    %v4737 = vld [vmem:[%s4639 + $0x308] sm:$0xff]
    %v4738 = vld [vmem:[%s4639 + $0x310] sm:$0xff]
    %v4739 = vld [vmem:[%s4639 + $0x318] sm:$0xff]
    %v4740 = vld [vmem:[%s4639 + $0x320] sm:$0xff]
    %v4741 = vld [vmem:[%s4639 + $0x328] sm:$0xff]
    %v4742 = vld [vmem:[%s4639 + $0x330] sm:$0xff]
    %v4743 = vld [vmem:[%s4639 + $0x338] sm:$0xff]
    %v4744 = vld [vmem:[%s4639 + $0x340] sm:$0xff]
    %v4745 = vld [vmem:[%s4639 + $0x348] sm:$0xff]
    %v4746 = vld [vmem:[%s4639 + $0x350] sm:$0xff]
    %v4747 = vld [vmem:[%s4639 + $0x358] sm:$0xff]
    %v4748 = vld [vmem:[%s4639 + $0x360] sm:$0xff]
    %v4749 = vld [vmem:[%s4639 + $0x368] sm:$0xff]
    %v4750 = vld [vmem:[%s4639 + $0x370] sm:$0xff]
    %v4751 = vld [vmem:[%s4639 + $0x378] sm:$0xff]
    %v4752 = vld [vmem:[%s4639 + $0x380] sm:$0xff]
    %v4753 = vld [vmem:[%s4639 + $0x388] sm:$0xff]
    %v4754 = vld [vmem:[%s4639 + $0x390] sm:$0xff]
    %v4755 = vld [vmem:[%s4639 + $0x398] sm:$0xff]
    %v4756 = vld [vmem:[%s4639 + $0x3a0] sm:$0xff]
    %v4757 = vld [vmem:[%s4639 + $0x3a8] sm:$0xff]
    %v4758 = vld [vmem:[%s4639 + $0x3b0] sm:$0xff]
    %v4759 = vld [vmem:[%s4639 + $0x3b8] sm:$0xff]
    %v4760 = vld [vmem:[%s4639 + $0x3c0] sm:$0xff]
    %v4761 = vld [vmem:[%s4639 + $0x3c8] sm:$0xff]
    %v4762 = vld [vmem:[%s4639 + $0x3d0] sm:$0xff]
    %v4763 = vld [vmem:[%s4639 + $0x3d8] sm:$0xff]
    %v4764 = vld [vmem:[%s4639 + $0x3e0] sm:$0xff]
    %v4765 = vld [vmem:[%s4639 + $0x3e8] sm:$0xff]
    %v4766 = vld [vmem:[%s4639 + $0x3f0] sm:$0xff]
    %v4767 = vld [vmem:[%s4639 + $0x3f8] sm:$0xff]
    %v4776 = vrot.slane %v4635, 1
    %v4777 = vrot.slane %v2746, 1
    %v4778 = vsel %vm641, %v4776, %v4777
    %v4779 = vrot.slane %v4636, 1
    %v4780 = vrot.slane %v2747, 1
    %v4781 = vsel %vm641, %v4779, %v4780
    %v4782 = vrot.slane %v4637, 1
    %v4783 = vrot.slane %v2748, 1
    %v4784 = vsel %vm641, %v4782, %v4783
    %v4785 = vrot.slane %v4638, 1
    %v4786 = vrot.slane %v2749, 1
    %v4787 = vsel %vm641, %v4785, %v4786
    %v4924 = vunpack.c.l.b16 %v4640
    %v4925 = vunpack.c.h.b16 %v4640
    %v4926 = vunpack.c.l.b16 %v4641
    %v4927 = vunpack.c.h.b16 %v4641
    %v4928 = vunpack.c.l.b16 %v4642
    %v4929 = vunpack.c.h.b16 %v4642
    %v4930 = vunpack.c.l.b16 %v4643
    %v4931 = vunpack.c.h.b16 %v4643
    %v4932 = vunpack.c.l.b16 %v4644
    %v4933 = vunpack.c.h.b16 %v4644
    %v4934 = vunpack.c.l.b16 %v4645
    %v4935 = vunpack.c.h.b16 %v4645
    %v4936 = vunpack.c.l.b16 %v4646
    %v4937 = vunpack.c.h.b16 %v4646
    %v4938 = vunpack.c.l.b16 %v4647
    %v4939 = vunpack.c.h.b16 %v4647
    %v4940 = vunpack.c.l.b16 %v4648
    %v4941 = vunpack.c.h.b16 %v4648
    %v4942 = vunpack.c.l.b16 %v4649
    %v4943 = vunpack.c.h.b16 %v4649
    %v4944 = vunpack.c.l.b16 %v4650
    %v4945 = vunpack.c.h.b16 %v4650
    %v4946 = vunpack.c.l.b16 %v4651
    %v4947 = vunpack.c.h.b16 %v4651
    %v4948 = vunpack.c.l.b16 %v4652
    %v4949 = vunpack.c.h.b16 %v4652
    %v4950 = vunpack.c.l.b16 %v4653
    %v4951 = vunpack.c.h.b16 %v4653
    %v4952 = vunpack.c.l.b16 %v4654
    %v4953 = vunpack.c.h.b16 %v4654
    %v4954 = vunpack.c.l.b16 %v4655
    %v4955 = vunpack.c.h.b16 %v4655
    %v4956 = vunpack.c.l.b16 %v4656
    %v4957 = vunpack.c.h.b16 %v4656
    %v4958 = vunpack.c.l.b16 %v4657
    %v4959 = vunpack.c.h.b16 %v4657
    %v4960 = vunpack.c.l.b16 %v4658
    %v4961 = vunpack.c.h.b16 %v4658
    %v4962 = vunpack.c.l.b16 %v4659
    %v4963 = vunpack.c.h.b16 %v4659
    %v4964 = vunpack.c.l.b16 %v4660
    %v4965 = vunpack.c.h.b16 %v4660
    %v4966 = vunpack.c.l.b16 %v4661
    %v4967 = vunpack.c.h.b16 %v4661
    %v4968 = vunpack.c.l.b16 %v4662
    %v4969 = vunpack.c.h.b16 %v4662
    %v4970 = vunpack.c.l.b16 %v4663
    %v4971 = vunpack.c.h.b16 %v4663
    %v4972 = vunpack.c.l.b16 %v4664
    %v4973 = vunpack.c.h.b16 %v4664
    %v4974 = vunpack.c.l.b16 %v4665
    %v4975 = vunpack.c.h.b16 %v4665
    %v4976 = vunpack.c.l.b16 %v4666
    %v4977 = vunpack.c.h.b16 %v4666
    %v4978 = vunpack.c.l.b16 %v4667
    %v4979 = vunpack.c.h.b16 %v4667
    %v4980 = vunpack.c.l.b16 %v4668
    %v4981 = vunpack.c.h.b16 %v4668
    %v4982 = vunpack.c.l.b16 %v4669
    %v4983 = vunpack.c.h.b16 %v4669
    %v4984 = vunpack.c.l.b16 %v4670
    %v4985 = vunpack.c.h.b16 %v4670
    %v4986 = vunpack.c.l.b16 %v4671
    %v4987 = vunpack.c.h.b16 %v4671
    %v4988 = vunpack.c.l.b16 %v4672
    %v4989 = vunpack.c.h.b16 %v4672
    %v4990 = vunpack.c.l.b16 %v4673
    %v4991 = vunpack.c.h.b16 %v4673
    %v4992 = vunpack.c.l.b16 %v4674
    %v4993 = vunpack.c.h.b16 %v4674
    %v4994 = vunpack.c.l.b16 %v4675
    %v4995 = vunpack.c.h.b16 %v4675
    %v4996 = vunpack.c.l.b16 %v4676
    %v4997 = vunpack.c.h.b16 %v4676
    %v4998 = vunpack.c.l.b16 %v4677
    %v4999 = vunpack.c.h.b16 %v4677
    %v5000 = vunpack.c.l.b16 %v4678
    %v5001 = vunpack.c.h.b16 %v4678
    %v5002 = vunpack.c.l.b16 %v4679
    %v5003 = vunpack.c.h.b16 %v4679
    %v5004 = vunpack.c.l.b16 %v4680
    %v5005 = vunpack.c.h.b16 %v4680
    %v5006 = vunpack.c.l.b16 %v4681
    %v5007 = vunpack.c.h.b16 %v4681
    %v5008 = vunpack.c.l.b16 %v4682
    %v5009 = vunpack.c.h.b16 %v4682
    %v5010 = vunpack.c.l.b16 %v4683
    %v5011 = vunpack.c.h.b16 %v4683
    %v5012 = vunpack.c.l.b16 %v4684
    %v5013 = vunpack.c.h.b16 %v4684
    %v5014 = vunpack.c.l.b16 %v4685
    %v5015 = vunpack.c.h.b16 %v4685
    %v5016 = vunpack.c.l.b16 %v4686
    %v5017 = vunpack.c.h.b16 %v4686
    %v5018 = vunpack.c.l.b16 %v4687
    %v5019 = vunpack.c.h.b16 %v4687
    %v5020 = vunpack.c.l.b16 %v4688
    %v5021 = vunpack.c.h.b16 %v4688
    %v5022 = vunpack.c.l.b16 %v4689
    %v5023 = vunpack.c.h.b16 %v4689
    %v5024 = vunpack.c.l.b16 %v4690
    %v5025 = vunpack.c.h.b16 %v4690
    %v5026 = vunpack.c.l.b16 %v4691
    %v5027 = vunpack.c.h.b16 %v4691
    %v5028 = vunpack.c.l.b16 %v4692
    %v5029 = vunpack.c.h.b16 %v4692
    %v5030 = vunpack.c.l.b16 %v4693
    %v5031 = vunpack.c.h.b16 %v4693
    %v5032 = vunpack.c.l.b16 %v4694
    %v5033 = vunpack.c.h.b16 %v4694
    %v5034 = vunpack.c.l.b16 %v4695
    %v5035 = vunpack.c.h.b16 %v4695
    %v5036 = vunpack.c.l.b16 %v4696
    %v5037 = vunpack.c.h.b16 %v4696
    %v5038 = vunpack.c.l.b16 %v4697
    %v5039 = vunpack.c.h.b16 %v4697
    %v5040 = vunpack.c.l.b16 %v4698
    %v5041 = vunpack.c.h.b16 %v4698
    %v5042 = vunpack.c.l.b16 %v4699
    %v5043 = vunpack.c.h.b16 %v4699
    %v5044 = vunpack.c.l.b16 %v4700
    %v5045 = vunpack.c.h.b16 %v4700
    %v5046 = vunpack.c.l.b16 %v4701
    %v5047 = vunpack.c.h.b16 %v4701
    %v5048 = vunpack.c.l.b16 %v4702
    %v5049 = vunpack.c.h.b16 %v4702
    %v5050 = vunpack.c.l.b16 %v4703
    %v5051 = vunpack.c.h.b16 %v4703
    %v5052 = vunpack.c.l.b16 %v4704
    %v5053 = vunpack.c.h.b16 %v4704
    %v5054 = vunpack.c.l.b16 %v4705
    %v5055 = vunpack.c.h.b16 %v4705
    %v5056 = vunpack.c.l.b16 %v4706
    %v5057 = vunpack.c.h.b16 %v4706
    %v5058 = vunpack.c.l.b16 %v4707
    %v5059 = vunpack.c.h.b16 %v4707
    %v5060 = vunpack.c.l.b16 %v4708
    %v5061 = vunpack.c.h.b16 %v4708
    %v5062 = vunpack.c.l.b16 %v4709
    %v5063 = vunpack.c.h.b16 %v4709
    %v5064 = vunpack.c.l.b16 %v4710
    %v5065 = vunpack.c.h.b16 %v4710
    %v5066 = vunpack.c.l.b16 %v4711
    %v5067 = vunpack.c.h.b16 %v4711
    %v5068 = vunpack.c.l.b16 %v4712
    %v5069 = vunpack.c.h.b16 %v4712
    %v5070 = vunpack.c.l.b16 %v4713
    %v5071 = vunpack.c.h.b16 %v4713
    %v5072 = vunpack.c.l.b16 %v4714
    %v5073 = vunpack.c.h.b16 %v4714
    %v5074 = vunpack.c.l.b16 %v4715
    %v5075 = vunpack.c.h.b16 %v4715
    %v5076 = vunpack.c.l.b16 %v4716
    %v5077 = vunpack.c.h.b16 %v4716
    %v5078 = vunpack.c.l.b16 %v4717
    %v5079 = vunpack.c.h.b16 %v4717
    %v5080 = vunpack.c.l.b16 %v4718
    %v5081 = vunpack.c.h.b16 %v4718
    %v5082 = vunpack.c.l.b16 %v4719
    %v5083 = vunpack.c.h.b16 %v4719
    %v5084 = vunpack.c.l.b16 %v4720
    %v5085 = vunpack.c.h.b16 %v4720
    %v5086 = vunpack.c.l.b16 %v4721
    %v5087 = vunpack.c.h.b16 %v4721
    %v5088 = vunpack.c.l.b16 %v4722
    %v5089 = vunpack.c.h.b16 %v4722
    %v5090 = vunpack.c.l.b16 %v4723
    %v5091 = vunpack.c.h.b16 %v4723
    %v5092 = vunpack.c.l.b16 %v4724
    %v5093 = vunpack.c.h.b16 %v4724
    %v5094 = vunpack.c.l.b16 %v4725
    %v5095 = vunpack.c.h.b16 %v4725
    %v5096 = vunpack.c.l.b16 %v4726
    %v5097 = vunpack.c.h.b16 %v4726
    %v5098 = vunpack.c.l.b16 %v4727
    %v5099 = vunpack.c.h.b16 %v4727
    %v5100 = vunpack.c.l.b16 %v4728
    %v5101 = vunpack.c.h.b16 %v4728
    %v5102 = vunpack.c.l.b16 %v4729
    %v5103 = vunpack.c.h.b16 %v4729
    %v5104 = vunpack.c.l.b16 %v4730
    %v5105 = vunpack.c.h.b16 %v4730
    %v5106 = vunpack.c.l.b16 %v4731
    %v5107 = vunpack.c.h.b16 %v4731
    %v5108 = vunpack.c.l.b16 %v4732
    %v5109 = vunpack.c.h.b16 %v4732
    %v5110 = vunpack.c.l.b16 %v4733
    %v5111 = vunpack.c.h.b16 %v4733
    %v5112 = vunpack.c.l.b16 %v4734
    %v5113 = vunpack.c.h.b16 %v4734
    %v5114 = vunpack.c.l.b16 %v4735
    %v5115 = vunpack.c.h.b16 %v4735
    %v5116 = vunpack.c.l.b16 %v4736
    %v5117 = vunpack.c.h.b16 %v4736
    %v5118 = vunpack.c.l.b16 %v4737
    %v5119 = vunpack.c.h.b16 %v4737
    %v5120 = vunpack.c.l.b16 %v4738
    %v5121 = vunpack.c.h.b16 %v4738
    %v5122 = vunpack.c.l.b16 %v4739
    %v5123 = vunpack.c.h.b16 %v4739
    %v5124 = vunpack.c.l.b16 %v4740
    %v5125 = vunpack.c.h.b16 %v4740
    %v5126 = vunpack.c.l.b16 %v4741
    %v5127 = vunpack.c.h.b16 %v4741
    %v5128 = vunpack.c.l.b16 %v4742
    %v5129 = vunpack.c.h.b16 %v4742
    %v5130 = vunpack.c.l.b16 %v4743
    %v5131 = vunpack.c.h.b16 %v4743
    %v5132 = vunpack.c.l.b16 %v4744
    %v5133 = vunpack.c.h.b16 %v4744
    %v5134 = vunpack.c.l.b16 %v4745
    %v5135 = vunpack.c.h.b16 %v4745
    %v5136 = vunpack.c.l.b16 %v4746
    %v5137 = vunpack.c.h.b16 %v4746
    %v5138 = vunpack.c.l.b16 %v4747
    %v5139 = vunpack.c.h.b16 %v4747
    %v5140 = vunpack.c.l.b16 %v4748
    %v5141 = vunpack.c.h.b16 %v4748
    %v5142 = vunpack.c.l.b16 %v4749
    %v5143 = vunpack.c.h.b16 %v4749
    %v5144 = vunpack.c.l.b16 %v4750
    %v5145 = vunpack.c.h.b16 %v4750
    %v5146 = vunpack.c.l.b16 %v4751
    %v5147 = vunpack.c.h.b16 %v4751
    %v5148 = vunpack.c.l.b16 %v4752
    %v5149 = vunpack.c.h.b16 %v4752
    %v5150 = vunpack.c.l.b16 %v4753
    %v5151 = vunpack.c.h.b16 %v4753
    %v5152 = vunpack.c.l.b16 %v4754
    %v5153 = vunpack.c.h.b16 %v4754
    %v5154 = vunpack.c.l.b16 %v4755
    %v5155 = vunpack.c.h.b16 %v4755
    %v5156 = vunpack.c.l.b16 %v4756
    %v5157 = vunpack.c.h.b16 %v4756
    %v5158 = vunpack.c.l.b16 %v4757
    %v5159 = vunpack.c.h.b16 %v4757
    %v5160 = vunpack.c.l.b16 %v4758
    %v5161 = vunpack.c.h.b16 %v4758
    %v5162 = vunpack.c.l.b16 %v4759
    %v5163 = vunpack.c.h.b16 %v4759
    %v5164 = vunpack.c.l.b16 %v4760
    %v5165 = vunpack.c.h.b16 %v4760
    %v5166 = vunpack.c.l.b16 %v4761
    %v5167 = vunpack.c.h.b16 %v4761
    %v5168 = vunpack.c.l.b16 %v4762
    %v5169 = vunpack.c.h.b16 %v4762
    %v5170 = vunpack.c.l.b16 %v4763
    %v5171 = vunpack.c.h.b16 %v4763
    %v5172 = vunpack.c.l.b16 %v4764
    %v5173 = vunpack.c.h.b16 %v4764
    %v5174 = vunpack.c.l.b16 %v4765
    %v5175 = vunpack.c.h.b16 %v4765
    %v5176 = vunpack.c.l.b16 %v4766
    %v5177 = vunpack.c.h.b16 %v4766
    %v5178 = vunpack.c.l.b16 %v4767
    %v5179 = vunpack.c.h.b16 %v4767
    %v5180 = vpack.c.b16 %v4928, %v4924
    %v5181 = vpack.c.b16 %v4929, %v4925
    %v5182 = vpack.c.b16 %v4930, %v4926
    %v5183 = vpack.c.b16 %v4931, %v4927
    %v5184 = vpack.c.b16 %v4936, %v4932
    %v5185 = vpack.c.b16 %v4937, %v4933
    %v5186 = vpack.c.b16 %v4938, %v4934
    %v5187 = vpack.c.b16 %v4939, %v4935
    %v5188 = vpack.c.b16 %v4944, %v4940
    %v5189 = vpack.c.b16 %v4945, %v4941
    %v5190 = vpack.c.b16 %v4946, %v4942
    %v5191 = vpack.c.b16 %v4947, %v4943
    %v5192 = vpack.c.b16 %v4952, %v4948
    %v5193 = vpack.c.b16 %v4953, %v4949
    %v5194 = vpack.c.b16 %v4954, %v4950
    %v5195 = vpack.c.b16 %v4955, %v4951
    %v5196 = vpack.c.b16 %v4960, %v4956
    %v5197 = vpack.c.b16 %v4961, %v4957
    %v5198 = vpack.c.b16 %v4962, %v4958
    %v5199 = vpack.c.b16 %v4963, %v4959
    %v5200 = vpack.c.b16 %v4968, %v4964
    %v5201 = vpack.c.b16 %v4969, %v4965
    %v5202 = vpack.c.b16 %v4970, %v4966
    %v5203 = vpack.c.b16 %v4971, %v4967
    %v5204 = vpack.c.b16 %v4976, %v4972
    %v5205 = vpack.c.b16 %v4977, %v4973
    %v5206 = vpack.c.b16 %v4978, %v4974
    %v5207 = vpack.c.b16 %v4979, %v4975
    %v5208 = vpack.c.b16 %v4984, %v4980
    %v5209 = vpack.c.b16 %v4985, %v4981
    %v5210 = vpack.c.b16 %v4986, %v4982
    %v5211 = vpack.c.b16 %v4987, %v4983
    %v5212 = vpack.c.b16 %v4992, %v4988
    %v5213 = vpack.c.b16 %v4993, %v4989
    %v5214 = vpack.c.b16 %v4994, %v4990
    %v5215 = vpack.c.b16 %v4995, %v4991
    %v5216 = vpack.c.b16 %v5000, %v4996
    %v5217 = vpack.c.b16 %v5001, %v4997
    %v5218 = vpack.c.b16 %v5002, %v4998
    %v5219 = vpack.c.b16 %v5003, %v4999
    %v5220 = vpack.c.b16 %v5008, %v5004
    %v5221 = vpack.c.b16 %v5009, %v5005
    %v5222 = vpack.c.b16 %v5010, %v5006
    %v5223 = vpack.c.b16 %v5011, %v5007
    %v5224 = vpack.c.b16 %v5016, %v5012
    %v5225 = vpack.c.b16 %v5017, %v5013
    %v5226 = vpack.c.b16 %v5018, %v5014
    %v5227 = vpack.c.b16 %v5019, %v5015
    %v5228 = vpack.c.b16 %v5024, %v5020
    %v5229 = vpack.c.b16 %v5025, %v5021
    %v5230 = vpack.c.b16 %v5026, %v5022
    %v5231 = vpack.c.b16 %v5027, %v5023
    %v5232 = vpack.c.b16 %v5032, %v5028
    %v5233 = vpack.c.b16 %v5033, %v5029
    %v5234 = vpack.c.b16 %v5034, %v5030
    %v5235 = vpack.c.b16 %v5035, %v5031
    %v5236 = vpack.c.b16 %v5040, %v5036
    %v5237 = vpack.c.b16 %v5041, %v5037
    %v5238 = vpack.c.b16 %v5042, %v5038
    %v5239 = vpack.c.b16 %v5043, %v5039
    %v5240 = vpack.c.b16 %v5048, %v5044
    %v5241 = vpack.c.b16 %v5049, %v5045
    %v5242 = vpack.c.b16 %v5050, %v5046
    %v5243 = vpack.c.b16 %v5051, %v5047
    %v5244 = vpack.c.b16 %v5056, %v5052
    %v5245 = vpack.c.b16 %v5057, %v5053
    %v5246 = vpack.c.b16 %v5058, %v5054
    %v5247 = vpack.c.b16 %v5059, %v5055
    %v5248 = vpack.c.b16 %v5064, %v5060
    %v5249 = vpack.c.b16 %v5065, %v5061
    %v5250 = vpack.c.b16 %v5066, %v5062
    %v5251 = vpack.c.b16 %v5067, %v5063
    %v5252 = vpack.c.b16 %v5072, %v5068
    %v5253 = vpack.c.b16 %v5073, %v5069
    %v5254 = vpack.c.b16 %v5074, %v5070
    %v5255 = vpack.c.b16 %v5075, %v5071
    %v5256 = vpack.c.b16 %v5080, %v5076
    %v5257 = vpack.c.b16 %v5081, %v5077
    %v5258 = vpack.c.b16 %v5082, %v5078
    %v5259 = vpack.c.b16 %v5083, %v5079
    %v5260 = vpack.c.b16 %v5088, %v5084
    %v5261 = vpack.c.b16 %v5089, %v5085
    %v5262 = vpack.c.b16 %v5090, %v5086
    %v5263 = vpack.c.b16 %v5091, %v5087
    %v5264 = vpack.c.b16 %v5096, %v5092
    %v5265 = vpack.c.b16 %v5097, %v5093
    %v5266 = vpack.c.b16 %v5098, %v5094
    %v5267 = vpack.c.b16 %v5099, %v5095
    %v5268 = vpack.c.b16 %v5104, %v5100
    %v5269 = vpack.c.b16 %v5105, %v5101
    %v5270 = vpack.c.b16 %v5106, %v5102
    %v5271 = vpack.c.b16 %v5107, %v5103
    %v5272 = vpack.c.b16 %v5112, %v5108
    %v5273 = vpack.c.b16 %v5113, %v5109
    %v5274 = vpack.c.b16 %v5114, %v5110
    %v5275 = vpack.c.b16 %v5115, %v5111
    %v5276 = vpack.c.b16 %v5120, %v5116
    %v5277 = vpack.c.b16 %v5121, %v5117
    %v5278 = vpack.c.b16 %v5122, %v5118
    %v5279 = vpack.c.b16 %v5123, %v5119
    %v5280 = vpack.c.b16 %v5128, %v5124
    %v5281 = vpack.c.b16 %v5129, %v5125
    %v5282 = vpack.c.b16 %v5130, %v5126
    %v5283 = vpack.c.b16 %v5131, %v5127
    %v5284 = vpack.c.b16 %v5136, %v5132
    %v5285 = vpack.c.b16 %v5137, %v5133
    %v5286 = vpack.c.b16 %v5138, %v5134
    %v5287 = vpack.c.b16 %v5139, %v5135
    %v5288 = vpack.c.b16 %v5144, %v5140
    %v5289 = vpack.c.b16 %v5145, %v5141
    %v5290 = vpack.c.b16 %v5146, %v5142
    %v5291 = vpack.c.b16 %v5147, %v5143
    %v5292 = vpack.c.b16 %v5152, %v5148
    %v5293 = vpack.c.b16 %v5153, %v5149
    %v5294 = vpack.c.b16 %v5154, %v5150
    %v5295 = vpack.c.b16 %v5155, %v5151
    %v5296 = vpack.c.b16 %v5160, %v5156
    %v5297 = vpack.c.b16 %v5161, %v5157
    %v5298 = vpack.c.b16 %v5162, %v5158
    %v5299 = vpack.c.b16 %v5163, %v5159
    %v5300 = vpack.c.b16 %v5168, %v5164
    %v5301 = vpack.c.b16 %v5169, %v5165
    %v5302 = vpack.c.b16 %v5170, %v5166
    %v5303 = vpack.c.b16 %v5171, %v5167
    %v5304 = vpack.c.b16 %v5176, %v5172
    %v5305 = vpack.c.b16 %v5177, %v5173
    %v5306 = vpack.c.b16 %v5178, %v5174
    %v5307 = vpack.c.b16 %v5179, %v5175
    %5436 = vmatprep.subr.bf16.mxu0 %v5181
    %5437 = vmatpush1.bf16.msra.mxu0 %v5180
    %5438 = vmatprep.subr.bf16.mxu0 %v5185
    %5439 = vmatpush1.bf16.msra.mxu0 %v5184
    %5440 = vmatprep.subr.bf16.mxu0 %v5189
    %5441 = vmatpush1.bf16.msra.mxu0 %v5188
    %5442 = vmatprep.subr.bf16.mxu0 %v5193
    %5443 = vmatpush1.bf16.msra.mxu0 %v5192
    %5444 = vmatprep.subr.bf16.mxu0 %v5197
    %5445 = vmatpush1.bf16.msra.mxu0 %v5196
    %5446 = vmatprep.subr.bf16.mxu0 %v5201
    %5447 = vmatpush1.bf16.msra.mxu0 %v5200
    %5448 = vmatprep.subr.bf16.mxu0 %v5205
    %5449 = vmatpush1.bf16.msra.mxu0 %v5204
    %5450 = vmatprep.subr.bf16.mxu0 %v5209
    %5451 = vmatpush1.bf16.msra.mxu0 %v5208
    %5452 = vmatprep.subr.bf16.mxu0 %v5213
    %5453 = vmatpush1.bf16.msra.mxu0 %v5212
    %5454 = vmatprep.subr.bf16.mxu0 %v5217
    %5455 = vmatpush1.bf16.msra.mxu0 %v5216
    %5456 = vmatprep.subr.bf16.mxu0 %v5221
    %5457 = vmatpush1.bf16.msra.mxu0 %v5220
    %5458 = vmatprep.subr.bf16.mxu0 %v5225
    %5459 = vmatpush1.bf16.msra.mxu0 %v5224
    %5460 = vmatprep.subr.bf16.mxu0 %v5229
    %5461 = vmatpush1.bf16.msra.mxu0 %v5228
    %5462 = vmatprep.subr.bf16.mxu0 %v5233
    %5463 = vmatpush1.bf16.msra.mxu0 %v5232
    %5464 = vmatprep.subr.bf16.mxu0 %v5237
    %5465 = vmatpush1.bf16.msra.mxu0 %v5236
    %5466 = vmatprep.subr.bf16.mxu0 %v5241
    %5467 = vmatpush1.bf16.msra.mxu0 %v5240
    %5468 = vmatprep.mubr.bf16.mxu0 %v4781
    %5469 = vmatmul.mubr.bf16.gmra.mrb[0].mxu0 %v4778
    %v5470 = vpop.f32.mrb[0].mxu0
    %v5471 = vadd.f32 0.0, %v5470
    %v5472 = vpop.f32.mrb[0].mxu0
    %v5473 = vadd.f32 0.0, %v5472
    %v5474 = vpop.f32.mrb[0].mxu0
    %v5475 = vadd.f32 0.0, %v5474
    %v5476 = vpop.f32.mrb[0].mxu0
    %v5477 = vadd.f32 0.0, %v5476
    %5478 = vmatprep.mubr.bf16.mxu0 %v4780
    %5479 = vmatmul.mubr.bf16.gmra.mrb[0].mxu0 %v4777
    %v5480 = vpop.f32.mrb[0].mxu0
    %v5481 = vadd.f32 0.0, %v5480
    %v5482 = vpop.f32.mrb[0].mxu0
    %v5483 = vadd.f32 0.0, %v5482
    %v5484 = vpop.f32.mrb[0].mxu0
    %v5485 = vpop.f32.mrb[0].mxu0
    %5486 = vdwg.mxu0
    %5487 = vmatprep.subr.bf16.mxu0 %v5245
    %5488 = vmatpush1.bf16.msra.mxu0 %v5244
    %5489 = vmatprep.subr.bf16.mxu0 %v5249
    %5490 = vmatpush1.bf16.msra.mxu0 %v5248
    %5491 = vmatprep.subr.bf16.mxu0 %v5253
    %5492 = vmatpush1.bf16.msra.mxu0 %v5252
    %5493 = vmatprep.subr.bf16.mxu0 %v5257
    %5494 = vmatpush1.bf16.msra.mxu0 %v5256
    %5495 = vmatprep.subr.bf16.mxu0 %v5261
    %5496 = vmatpush1.bf16.msra.mxu0 %v5260
    %5497 = vmatprep.subr.bf16.mxu0 %v5265
    %5498 = vmatpush1.bf16.msra.mxu0 %v5264
    %5499 = vmatprep.subr.bf16.mxu0 %v5269
    %5500 = vmatpush1.bf16.msra.mxu0 %v5268
    %5501 = vmatprep.subr.bf16.mxu0 %v5273
    %5502 = vmatpush1.bf16.msra.mxu0 %v5272
    %5503 = vmatprep.subr.bf16.mxu0 %v5277
    %5504 = vmatpush1.bf16.msra.mxu0 %v5276
    %5505 = vmatprep.subr.bf16.mxu0 %v5281
    %5506 = vmatpush1.bf16.msra.mxu0 %v5280
    %5507 = vmatprep.subr.bf16.mxu0 %v5285
    %5508 = vmatpush1.bf16.msra.mxu0 %v5284
    %5509 = vmatprep.subr.bf16.mxu0 %v5289
    %5510 = vmatpush1.bf16.msra.mxu0 %v5288
    %5511 = vmatprep.subr.bf16.mxu0 %v5293
    %5512 = vmatpush1.bf16.msra.mxu0 %v5292
    %5513 = vmatprep.subr.bf16.mxu0 %v5297
    %5514 = vmatpush1.bf16.msra.mxu0 %v5296
    %5515 = vmatprep.subr.bf16.mxu0 %v5301
    %5516 = vmatpush1.bf16.msra.mxu0 %v5300
    %5517 = vmatprep.subr.bf16.mxu0 %v5305
    %5518 = vmatpush1.bf16.msra.mxu0 %v5304
    %5519 = vmatprep.mubr.bf16.mxu0 %v4787
    %5520 = vmatmul.mubr.bf16.gmra.mrb[0].mxu0 %v4784
    %v5521 = vpop.f32.mrb[0].mxu0
    %v5522 = vadd.f32 %v5471, %v5521
    %v5523 = vpop.f32.mrb[0].mxu0
    %v5524 = vadd.f32 %v5473, %v5523
    %v5525 = vpop.f32.mrb[0].mxu0
    %v5526 = vadd.f32 %v5475, %v5525
    %v5527 = vpop.f32.mrb[0].mxu0
    %v5528 = vadd.f32 %v5477, %v5527
    %5529 = vmatprep.mubr.bf16.mxu0 %v4786
    %5530 = vmatmul.mubr.bf16.gmra.mrb[0].mxu0 %v4783
    %v5531 = vpop.f32.mrb[0].mxu0
    %v5532 = vadd.f32 %v5481, %v5531
    %v5533 = vpop.f32.mrb[0].mxu0
    %v5534 = vadd.f32 %v5483, %v5533
    %v5535 = vpop.f32.mrb[0].mxu0
    %v5536 = vpop.f32.mrb[0].mxu0
    %5537 = vdwg.mxu0
    %5538 = vmatprep.subr.bf16.mxu0 %v5183
    %5539 = vmatpush1.bf16.msra.mxu0 %v5182
    %5540 = vmatprep.subr.bf16.mxu0 %v5187
    %5541 = vmatpush1.bf16.msra.mxu0 %v5186
    %5542 = vmatprep.subr.bf16.mxu0 %v5191
    %5543 = vmatpush1.bf16.msra.mxu0 %v5190
    %5544 = vmatprep.subr.bf16.mxu0 %v5195
    %5545 = vmatpush1.bf16.msra.mxu0 %v5194
    %5546 = vmatprep.subr.bf16.mxu0 %v5199
    %5547 = vmatpush1.bf16.msra.mxu0 %v5198
    %5548 = vmatprep.subr.bf16.mxu0 %v5203
    %5549 = vmatpush1.bf16.msra.mxu0 %v5202
    %5550 = vmatprep.subr.bf16.mxu0 %v5207
    %5551 = vmatpush1.bf16.msra.mxu0 %v5206
    %5552 = vmatprep.subr.bf16.mxu0 %v5211
    %5553 = vmatpush1.bf16.msra.mxu0 %v5210
    %5554 = vmatprep.subr.bf16.mxu0 %v5215
    %5555 = vmatpush1.bf16.msra.mxu0 %v5214
    %5556 = vmatprep.subr.bf16.mxu0 %v5219
    %5557 = vmatpush1.bf16.msra.mxu0 %v5218
    %5558 = vmatprep.subr.bf16.mxu0 %v5223
    %5559 = vmatpush1.bf16.msra.mxu0 %v5222
    %5560 = vmatprep.subr.bf16.mxu0 %v5227
    %5561 = vmatpush1.bf16.msra.mxu0 %v5226
    %5562 = vmatprep.subr.bf16.mxu0 %v5231
    %5563 = vmatpush1.bf16.msra.mxu0 %v5230
    %5564 = vmatprep.subr.bf16.mxu0 %v5235
    %5565 = vmatpush1.bf16.msra.mxu0 %v5234
    %5566 = vmatprep.subr.bf16.mxu0 %v5239
    %5567 = vmatpush1.bf16.msra.mxu0 %v5238
    %5568 = vmatprep.subr.bf16.mxu0 %v5243
    %5569 = vmatpush1.bf16.msra.mxu0 %v5242
    %5570 = vmatprep.mubr.bf16.mxu0 %v4781
    %5571 = vmatmul.mubr.bf16.gmra.mrb[0].mxu0 %v4778
    %v5572 = vpop.f32.mrb[0].mxu0
    %v5573 = vadd.f32 0.0, %v5572
    %v5574 = vpop.f32.mrb[0].mxu0
    %v5575 = vadd.f32 0.0, %v5574
    %v5576 = vpop.f32.mrb[0].mxu0
    %v5577 = vadd.f32 0.0, %v5576
    %v5578 = vpop.f32.mrb[0].mxu0
    %v5579 = vadd.f32 0.0, %v5578
    %5580 = vmatprep.mubr.bf16.mxu0 %v4780
    %5581 = vmatmul.mubr.bf16.gmra.mrb[0].mxu0 %v4777
    %v5582 = vpop.f32.mrb[0].mxu0
    %v5583 = vadd.f32 0.0, %v5582
    %v5584 = vpop.f32.mrb[0].mxu0
    %v5585 = vadd.f32 0.0, %v5584
    %v5586 = vpop.f32.mrb[0].mxu0
    %v5587 = vpop.f32.mrb[0].mxu0
    %5588 = vdwg.mxu0
    %5589 = vmatprep.subr.bf16.mxu0 %v5247
    %5590 = vmatpush1.bf16.msra.mxu0 %v5246
    %5591 = vmatprep.subr.bf16.mxu0 %v5251
    %5592 = vmatpush1.bf16.msra.mxu0 %v5250
    %5593 = vmatprep.subr.bf16.mxu0 %v5255
    %5594 = vmatpush1.bf16.msra.mxu0 %v5254
    %5595 = vmatprep.subr.bf16.mxu0 %v5259
    %5596 = vmatpush1.bf16.msra.mxu0 %v5258
    %5597 = vmatprep.subr.bf16.mxu0 %v5263
    %5598 = vmatpush1.bf16.msra.mxu0 %v5262
    %5599 = vmatprep.subr.bf16.mxu0 %v5267
    %5600 = vmatpush1.bf16.msra.mxu0 %v5266
    %5601 = vmatprep.subr.bf16.mxu0 %v5271
    %5602 = vmatpush1.bf16.msra.mxu0 %v5270
    %5603 = vmatprep.subr.bf16.mxu0 %v5275
    %5604 = vmatpush1.bf16.msra.mxu0 %v5274
    %5605 = vmatprep.subr.bf16.mxu0 %v5279
    %5606 = vmatpush1.bf16.msra.mxu0 %v5278
    %5607 = vmatprep.subr.bf16.mxu0 %v5283
    %5608 = vmatpush1.bf16.msra.mxu0 %v5282
    %5609 = vmatprep.subr.bf16.mxu0 %v5287
    %5610 = vmatpush1.bf16.msra.mxu0 %v5286
    %5611 = vmatprep.subr.bf16.mxu0 %v5291
    %5612 = vmatpush1.bf16.msra.mxu0 %v5290
    %5613 = vmatprep.subr.bf16.mxu0 %v5295
    %5614 = vmatpush1.bf16.msra.mxu0 %v5294
    %5615 = vmatprep.subr.bf16.mxu0 %v5299
    %5616 = vmatpush1.bf16.msra.mxu0 %v5298
    %5617 = vmatprep.subr.bf16.mxu0 %v5303
    %5618 = vmatpush1.bf16.msra.mxu0 %v5302
    %5619 = vmatprep.subr.bf16.mxu0 %v5307
    %5620 = vmatpush1.bf16.msra.mxu0 %v5306
    %5621 = vmatprep.mubr.bf16.mxu0 %v4787
    %5622 = vmatmul.mubr.bf16.gmra.mrb[0].mxu0 %v4784
    %v5623 = vpop.f32.mrb[0].mxu0
    %v5624 = vadd.f32 %v5573, %v5623
    %v5625 = vpop.f32.mrb[0].mxu0
    %v5626 = vadd.f32 %v5575, %v5625
    %v5627 = vpop.f32.mrb[0].mxu0
    %v5628 = vadd.f32 %v5577, %v5627
    %v5629 = vpop.f32.mrb[0].mxu0
    %v5630 = vadd.f32 %v5579, %v5629
    %5631 = vmatprep.mubr.bf16.mxu0 %v4786
    %5632 = vmatmul.mubr.bf16.gmra.mrb[0].mxu0 %v4783
    %v5633 = vpop.f32.mrb[0].mxu0
    %v5634 = vadd.f32 %v5583, %v5633
    %v5635 = vpop.f32.mrb[0].mxu0
    %v5636 = vadd.f32 %v5585, %v5635
    %v5637 = vpop.f32.mrb[0].mxu0
    %v5638 = vpop.f32.mrb[0].mxu0
    %5639 = vdwg.mxu0
    %v5640 = vadd.f32 %v4517, %v5522
    %v5641 = vadd.f32 %v4519, %v5524
    %v5642 = vadd.f32 %v4619, %v5624
    %v5643 = vadd.f32 %v4621, %v5626
    %v5644 = vadd.f32 %v4521, %v5526
    %v5645 = vadd.f32 %v4523, %v5528
    %v5646 = vadd.f32 %v4623, %v5628
    %v5647 = vadd.f32 %v4625, %v5630
    %v5648 = vadd.f32 %v4527, %v5532
    %v5649 = vadd.f32 %v4529, %v5534
    %v5650 = vadd.f32 %v4629, %v5634
    %v5651 = vadd.f32 %v4631, %v5636
    %v5652 = vld [vmem:[#allocation11] sm:$0xf]
    %v5654 = vlaneseq
    %v5655 = vshrl.u32 %v5654, 7
    %v5656 = vsub.s32 0, %v5655
    %v5657 = vrot.slane %v5652, %v5656
    %v5658 = vlaneseq
    %v5659 = vshrl.u32 %v5658, 7
    %v5660 = vsub.s32 1, %v5659
    %v5661 = vrot.slane %v5652, %v5660
    %v5662 = vlaneseq
    %v5663 = vshrl.u32 %v5662, 7
    %v5664 = vsub.s32 2, %v5663
    %v5665 = vrot.slane %v5652, %v5664
    %v5666 = vlaneseq
    %v5667 = vshrl.u32 %v5666, 7
    %v5668 = vsub.s32 3, %v5667
    %v5669 = vrot.slane %v5652, %v5668
    %v5674 = vadd.f32 %v5640, %v5657
    %v5675 = vadd.f32 %v5641, %v5661
    %v5676 = vadd.f32 %v5642, %v5665
    %v5677 = vadd.f32 %v5643, %v5669
    %v5678 = vadd.f32 %v5644, %v5657
    %v5679 = vadd.f32 %v5645, %v5661
    %v5680 = vadd.f32 %v5646, %v5665
    %v5681 = vadd.f32 %v5647, %v5669
    %v5682 = vadd.f32 %v5648, %v5657
    %v5683 = vadd.f32 %v5649, %v5661
    %v5684 = vadd.f32 %v5650, %v5665
    %v5685 = vadd.f32 %v5651, %v5669
    %v5686 = vmax.f32 %v5674, 0.0
    %v5687 = vmax.f32 %v5675, 0.0
    %v5688 = vmax.f32 %v5676, 0.0
    %v5689 = vmax.f32 %v5677, 0.0
    %v5690 = vmax.f32 %v5678, 0.0
    %v5691 = vmax.f32 %v5679, 0.0
    %v5692 = vmax.f32 %v5680, 0.0
    %v5693 = vmax.f32 %v5681, 0.0
    %v5694 = vmax.f32 %v5682, 0.0
    %v5695 = vmax.f32 %v5683, 0.0
    %v5696 = vmax.f32 %v5684, 0.0
    %v5697 = vmax.f32 %v5685, 0.0
    %v5710 = vcombine.low %v5686, %v5687
    %v5711 = vcombine.high %v5686, %v5687
    %v5712 = vcombine.low %v5688, %v5689
    %v5713 = vcombine.high %v5688, %v5689
    %v5715 = vunpack.c.l.s4 1983009808
    %v5716 = vunpack.c.0.s8 %v5715
    %v5717 = vlaneseq
    %v5718 = vshrl.u32 %v5717, 7
    %v5719 = vsub.s32 %v5716, %v5718
    %v5720 = vrot.slane %v5710, %v5719
    %v5722 = vunpack.c.l.s4 1983009808
    %v5723 = vunpack.c.0.s8 %v5722
    %v5724 = vlaneseq
    %v5725 = vshrl.u32 %v5724, 7
    %v5726 = vsub.s32 %v5723, %v5725
    %v5727 = vrot.slane %v5711, %v5726
    %v5729 = vunpack.c.l.s4 1983009808
    %v5730 = vunpack.c.0.s8 %v5729
    %v5731 = vlaneseq
    %v5732 = vshrl.u32 %v5731, 7
    %v5733 = vsub.s32 %v5730, %v5732
    %v5734 = vrot.slane %v5712, %v5733
    %v5736 = vunpack.c.l.s4 1983009808
    %v5737 = vunpack.c.0.s8 %v5736
    %v5738 = vlaneseq
    %v5739 = vshrl.u32 %v5738, 7
    %v5740 = vsub.s32 %v5737, %v5739
    %v5741 = vrot.slane %v5713, %v5740
    %v5742 = vcombine.low %v5720, %v5734
    %v5743 = vcombine.high %v5720, %v5734
    %v5744 = vcombine.low %v5727, %v5741
    %v5745 = vcombine.high %v5727, %v5741
    %v5746 = vcombine.low %v5690, %v5691
    %v5747 = vcombine.high %v5690, %v5691
    %v5748 = vcombine.low %v5692, %v5693
    %v5749 = vcombine.high %v5692, %v5693
    %v5751 = vunpack.c.l.s4 1983009808
    %v5752 = vunpack.c.0.s8 %v5751
    %v5753 = vlaneseq
    %v5754 = vshrl.u32 %v5753, 7
    %v5755 = vsub.s32 %v5752, %v5754
    %v5756 = vrot.slane %v5746, %v5755
    %v5758 = vunpack.c.l.s4 1983009808
    %v5759 = vunpack.c.0.s8 %v5758
    %v5760 = vlaneseq
    %v5761 = vshrl.u32 %v5760, 7
    %v5762 = vsub.s32 %v5759, %v5761
    %v5763 = vrot.slane %v5747, %v5762
    %v5765 = vunpack.c.l.s4 1983009808
    %v5766 = vunpack.c.0.s8 %v5765
    %v5767 = vlaneseq
    %v5768 = vshrl.u32 %v5767, 7
    %v5769 = vsub.s32 %v5766, %v5768
    %v5770 = vrot.slane %v5748, %v5769
    %v5772 = vunpack.c.l.s4 1983009808
    %v5773 = vunpack.c.0.s8 %v5772
    %v5774 = vlaneseq
    %v5775 = vshrl.u32 %v5774, 7
    %v5776 = vsub.s32 %v5773, %v5775
    %v5777 = vrot.slane %v5749, %v5776
    %v5778 = vcombine.low %v5756, %v5770
    %v5779 = vcombine.high %v5756, %v5770
    %v5780 = vcombine.low %v5763, %v5777
    %v5781 = vcombine.high %v5763, %v5777
    %v5782 = vcombine.low %v5694, %v5695
    %v5783 = vcombine.high %v5694, %v5695
    %v5784 = vcombine.low %v5696, %v5697
    %v5785 = vcombine.high %v5696, %v5697
    %v5787 = vunpack.c.l.s4 1983009808
    %v5788 = vunpack.c.0.s8 %v5787
    %v5789 = vlaneseq
    %v5790 = vshrl.u32 %v5789, 7
    %v5791 = vsub.s32 %v5788, %v5790
    %v5792 = vrot.slane %v5782, %v5791
    %v5794 = vunpack.c.l.s4 1983009808
    %v5795 = vunpack.c.0.s8 %v5794
    %v5796 = vlaneseq
    %v5797 = vshrl.u32 %v5796, 7
    %v5798 = vsub.s32 %v5795, %v5797
    %v5799 = vrot.slane %v5783, %v5798
    %v5801 = vunpack.c.l.s4 1983009808
    %v5802 = vunpack.c.0.s8 %v5801
    %v5803 = vlaneseq
    %v5804 = vshrl.u32 %v5803, 7
    %v5805 = vsub.s32 %v5802, %v5804
    %v5806 = vrot.slane %v5784, %v5805
    %v5808 = vunpack.c.l.s4 1983009808
    %v5809 = vunpack.c.0.s8 %v5808
    %v5810 = vlaneseq
    %v5811 = vshrl.u32 %v5810, 7
    %v5812 = vsub.s32 %v5809, %v5811
    %v5813 = vrot.slane %v5785, %v5812
    %v5814 = vcombine.low %v5792, %v5806
    %v5815 = vcombine.high %v5792, %v5806
    %v5816 = vcombine.low %v5799, %v5813
    %v5817 = vcombine.high %v5799, %v5813
    %v5830 = vrot.slane %v5742, 7
    %v5831 = vrot.slane %v5830, 2
    %v5832 = vrot.slane %v5743, 7
    %v5833 = vrot.slane %v5832, 2
    %v5834 = vrot.slane %v5744, 7
    %v5835 = vrot.slane %v5834, 2
    %v5836 = vrot.slane %v5745, 7
    %v5837 = vrot.slane %v5836, 2
    %v5838 = vrot.slane %v5778, 7
    %v5839 = vrot.slane %v5838, 2
    %v5840 = vrot.slane %v5779, 7
    %v5841 = vrot.slane %v5840, 2
    %v5842 = vrot.slane %v5780, 7
    %v5843 = vrot.slane %v5842, 2
    %v5844 = vrot.slane %v5781, 7
    %v5845 = vrot.slane %v5844, 2
    %v5846 = vrot.slane %v5814, 7
    %v5847 = vrot.slane %v5846, 2
    %v5848 = vrot.slane %v5815, 7
    %v5849 = vrot.slane %v5848, 2
    %v5850 = vrot.slane %v5816, 7
    %v5851 = vrot.slane %v5850, 2
    %v5852 = vrot.slane %v5817, 7
    %v5853 = vrot.slane %v5852, 2
    %v5866 = vmax.f32 %v5742, %v5831
    %v5867 = vmax.f32 %v5743, %v5833
    %v5868 = vmax.f32 %v5744, %v5835
    %v5869 = vmax.f32 %v5745, %v5837
    %v5870 = vmax.f32 %v5778, %v5839
    %v5871 = vmax.f32 %v5779, %v5841
    %v5872 = vmax.f32 %v5780, %v5843
    %v5873 = vmax.f32 %v5781, %v5845
    %v5874 = vmax.f32 %v5814, %v5847
    %v5875 = vmax.f32 %v5815, %v5849
    %v5876 = vmax.f32 %v5816, %v5851
    %v5877 = vmax.f32 %v5817, %v5853
    %v5890 = vlaneseq
    %v5891 = vshrl.u32 %v5890, 7
    %v5892 = vsub.s32 0, %v5891
    %v5893 = vrot.slane %v5866, %v5892
    %v5894 = vlaneseq
    %v5895 = vshrl.u32 %v5894, 7
    %v5896 = vsub.s32 2, %v5895
    %v5897 = vrot.slane %v5866, %v5896
    %v5898 = vlaneseq
    %v5899 = vshrl.u32 %v5898, 7
    %v5900 = vsub.s32 4, %v5899
    %v5901 = vrot.slane %v5866, %v5900
    %v5902 = vlaneseq
    %v5903 = vshrl.u32 %v5902, 7
    %v5904 = vsub.s32 6, %v5903
    %v5905 = vrot.slane %v5866, %v5904
    %v5906 = vlaneseq
    %v5907 = vshrl.u32 %v5906, 7
    %v5908 = vsub.s32 0, %v5907
    %v5909 = vrot.slane %v5867, %v5908
    %v5910 = vlaneseq
    %v5911 = vshrl.u32 %v5910, 7
    %v5912 = vsub.s32 2, %v5911
    %v5913 = vrot.slane %v5867, %v5912
    %v5914 = vlaneseq
    %v5915 = vshrl.u32 %v5914, 7
    %v5916 = vsub.s32 4, %v5915
    %v5917 = vrot.slane %v5867, %v5916
    %v5918 = vlaneseq
    %v5919 = vshrl.u32 %v5918, 7
    %v5920 = vsub.s32 6, %v5919
    %v5921 = vrot.slane %v5867, %v5920
    %v5922 = vlaneseq
    %v5923 = vshrl.u32 %v5922, 7
    %v5924 = vsub.s32 0, %v5923
    %v5925 = vrot.slane %v5868, %v5924
    %v5926 = vlaneseq
    %v5927 = vshrl.u32 %v5926, 7
    %v5928 = vsub.s32 2, %v5927
    %v5929 = vrot.slane %v5868, %v5928
    %v5930 = vlaneseq
    %v5931 = vshrl.u32 %v5930, 7
    %v5932 = vsub.s32 4, %v5931
    %v5933 = vrot.slane %v5868, %v5932
    %v5934 = vlaneseq
    %v5935 = vshrl.u32 %v5934, 7
    %v5936 = vsub.s32 6, %v5935
    %v5937 = vrot.slane %v5868, %v5936
    %v5938 = vlaneseq
    %v5939 = vshrl.u32 %v5938, 7
    %v5940 = vsub.s32 0, %v5939
    %v5941 = vrot.slane %v5869, %v5940
    %v5942 = vlaneseq
    %v5943 = vshrl.u32 %v5942, 7
    %v5944 = vsub.s32 2, %v5943
    %v5945 = vrot.slane %v5869, %v5944
    %v5946 = vlaneseq
    %v5947 = vshrl.u32 %v5946, 7
    %v5948 = vsub.s32 4, %v5947
    %v5949 = vrot.slane %v5869, %v5948
    %v5950 = vlaneseq
    %v5951 = vshrl.u32 %v5950, 7
    %v5952 = vsub.s32 6, %v5951
    %v5953 = vrot.slane %v5869, %v5952
    %v5954 = vlaneseq
    %v5955 = vshrl.u32 %v5954, 7
    %v5956 = vsub.s32 0, %v5955
    %v5957 = vrot.slane %v5870, %v5956
    %v5958 = vlaneseq
    %v5959 = vshrl.u32 %v5958, 7
    %v5960 = vsub.s32 2, %v5959
    %v5961 = vrot.slane %v5870, %v5960
    %v5962 = vlaneseq
    %v5963 = vshrl.u32 %v5962, 7
    %v5964 = vsub.s32 4, %v5963
    %v5965 = vrot.slane %v5870, %v5964
    %v5966 = vlaneseq
    %v5967 = vshrl.u32 %v5966, 7
    %v5968 = vsub.s32 6, %v5967
    %v5969 = vrot.slane %v5870, %v5968
    %v5970 = vlaneseq
    %v5971 = vshrl.u32 %v5970, 7
    %v5972 = vsub.s32 0, %v5971
    %v5973 = vrot.slane %v5871, %v5972
    %v5974 = vlaneseq
    %v5975 = vshrl.u32 %v5974, 7
    %v5976 = vsub.s32 2, %v5975
    %v5977 = vrot.slane %v5871, %v5976
    %v5978 = vlaneseq
    %v5979 = vshrl.u32 %v5978, 7
    %v5980 = vsub.s32 4, %v5979
    %v5981 = vrot.slane %v5871, %v5980
    %v5982 = vlaneseq
    %v5983 = vshrl.u32 %v5982, 7
    %v5984 = vsub.s32 6, %v5983
    %v5985 = vrot.slane %v5871, %v5984
    %v5986 = vlaneseq
    %v5987 = vshrl.u32 %v5986, 7
    %v5988 = vsub.s32 0, %v5987
    %v5989 = vrot.slane %v5872, %v5988
    %v5990 = vlaneseq
    %v5991 = vshrl.u32 %v5990, 7
    %v5992 = vsub.s32 2, %v5991
    %v5993 = vrot.slane %v5872, %v5992
    %v5994 = vlaneseq
    %v5995 = vshrl.u32 %v5994, 7
    %v5996 = vsub.s32 4, %v5995
    %v5997 = vrot.slane %v5872, %v5996
    %v5998 = vlaneseq
    %v5999 = vshrl.u32 %v5998, 7
    %v6000 = vsub.s32 6, %v5999
    %v6001 = vrot.slane %v5872, %v6000
    %v6002 = vlaneseq
    %v6003 = vshrl.u32 %v6002, 7
    %v6004 = vsub.s32 0, %v6003
    %v6005 = vrot.slane %v5873, %v6004
    %v6006 = vlaneseq
    %v6007 = vshrl.u32 %v6006, 7
    %v6008 = vsub.s32 2, %v6007
    %v6009 = vrot.slane %v5873, %v6008
    %v6010 = vlaneseq
    %v6011 = vshrl.u32 %v6010, 7
    %v6012 = vsub.s32 4, %v6011
    %v6013 = vrot.slane %v5873, %v6012
    %v6014 = vlaneseq
    %v6015 = vshrl.u32 %v6014, 7
    %v6016 = vsub.s32 6, %v6015
    %v6017 = vrot.slane %v5873, %v6016
    %v6018 = vlaneseq
    %v6019 = vshrl.u32 %v6018, 7
    %v6020 = vsub.s32 0, %v6019
    %v6021 = vrot.slane %v5874, %v6020
    %v6022 = vlaneseq
    %v6023 = vshrl.u32 %v6022, 7
    %v6024 = vsub.s32 2, %v6023
    %v6025 = vrot.slane %v5874, %v6024
    %v6026 = vlaneseq
    %v6027 = vshrl.u32 %v6026, 7
    %v6028 = vsub.s32 4, %v6027
    %v6029 = vrot.slane %v5874, %v6028
    %v6030 = vlaneseq
    %v6031 = vshrl.u32 %v6030, 7
    %v6032 = vsub.s32 6, %v6031
    %v6033 = vrot.slane %v5874, %v6032
    %v6034 = vlaneseq
    %v6035 = vshrl.u32 %v6034, 7
    %v6036 = vsub.s32 0, %v6035
    %v6037 = vrot.slane %v5875, %v6036
    %v6038 = vlaneseq
    %v6039 = vshrl.u32 %v6038, 7
    %v6040 = vsub.s32 2, %v6039
    %v6041 = vrot.slane %v5875, %v6040
    %v6042 = vlaneseq
    %v6043 = vshrl.u32 %v6042, 7
    %v6044 = vsub.s32 4, %v6043
    %v6045 = vrot.slane %v5875, %v6044
    %v6046 = vlaneseq
    %v6047 = vshrl.u32 %v6046, 7
    %v6048 = vsub.s32 6, %v6047
    %v6049 = vrot.slane %v5875, %v6048
    %v6050 = vlaneseq
    %v6051 = vshrl.u32 %v6050, 7
    %v6052 = vsub.s32 0, %v6051
    %v6053 = vrot.slane %v5876, %v6052
    %v6054 = vlaneseq
    %v6055 = vshrl.u32 %v6054, 7
    %v6056 = vsub.s32 2, %v6055
    %v6057 = vrot.slane %v5876, %v6056
    %v6058 = vlaneseq
    %v6059 = vshrl.u32 %v6058, 7
    %v6060 = vsub.s32 4, %v6059
    %v6061 = vrot.slane %v5876, %v6060
    %v6062 = vlaneseq
    %v6063 = vshrl.u32 %v6062, 7
    %v6064 = vsub.s32 6, %v6063
    %v6065 = vrot.slane %v5876, %v6064
    %v6066 = vlaneseq
    %v6067 = vshrl.u32 %v6066, 7
    %v6068 = vsub.s32 0, %v6067
    %v6069 = vrot.slane %v5877, %v6068
    %v6070 = vlaneseq
    %v6071 = vshrl.u32 %v6070, 7
    %v6072 = vsub.s32 2, %v6071
    %v6073 = vrot.slane %v5877, %v6072
    %v6074 = vlaneseq
    %v6075 = vshrl.u32 %v6074, 7
    %v6076 = vsub.s32 4, %v6075
    %v6077 = vrot.slane %v5877, %v6076
    %v6078 = vlaneseq
    %v6079 = vshrl.u32 %v6078, 7
    %v6080 = vsub.s32 6, %v6079
    %v6081 = vrot.slane %v5877, %v6080
    %v6082 = vsel %vm1706, %v5909, %v5893
    %v6083 = vsel %vm1708, %v5925, %v6082
    %v6084 = vsel %vm1710, %v5941, %v6083
    %v6085 = vsel %vm1712, %v5957, %v6084
    %v6086 = vsel %vm1714, %v5973, %v6085
    %v6087 = vsel %vm1716, %v5989, %v6086
    %v6088 = vsel %vm1718, %v6005, %v6087
    %v6089 = vsel %vm1706, %v5913, %v5897
    %v6090 = vsel %vm1708, %v5929, %v6089
    %v6091 = vsel %vm1710, %v5945, %v6090
    %v6092 = vsel %vm1712, %v5961, %v6091
    %v6093 = vsel %vm1714, %v5977, %v6092
    %v6094 = vsel %vm1716, %v5993, %v6093
    %v6095 = vsel %vm1718, %v6009, %v6094
    %v6096 = vsel %vm1706, %v5917, %v5901
    %v6097 = vsel %vm1708, %v5933, %v6096
    %v6098 = vsel %vm1710, %v5949, %v6097
    %v6099 = vsel %vm1712, %v5965, %v6098
    %v6100 = vsel %vm1714, %v5981, %v6099
    %v6101 = vsel %vm1716, %v5997, %v6100
    %v6102 = vsel %vm1718, %v6013, %v6101
    %v6103 = vsel %vm1706, %v5921, %v5905
    %v6104 = vsel %vm1708, %v5937, %v6103
    %v6105 = vsel %vm1710, %v5953, %v6104
    %v6106 = vsel %vm1712, %v5969, %v6105
    %v6107 = vsel %vm1714, %v5985, %v6106
    %v6108 = vsel %vm1716, %v6001, %v6107
    %v6109 = vsel %vm1718, %v6017, %v6108
    %v6110 = vsel %vm1706, %v6037, %v6021
    %v6111 = vsel %vm1708, %v6053, %v6110
    %v6112 = vsel %vm1710, %v6069, %v6111
    %v6113 = vsel %vm1706, %v6041, %v6025
    %v6114 = vsel %vm1708, %v6057, %v6113
    %v6115 = vsel %vm1710, %v6073, %v6114
    %v6116 = vsel %vm1706, %v6045, %v6029
    %v6117 = vsel %vm1708, %v6061, %v6116
    %v6118 = vsel %vm1710, %v6077, %v6117
    %v6119 = vsel %vm1706, %v6049, %v6033
    %v6120 = vsel %vm1708, %v6065, %v6119
    %v6121 = vsel %vm1710, %v6081, %v6120
    %6122 = vrot.lane.b32.xlu0 %v6088, 64
    %v6123 = vpop.permute.xlu0 %6122
    %6124 = vrot.lane.b32.xlu0 %v6095, 64
    %v6125 = vpop.permute.xlu0 %6124
    %6126 = vrot.lane.b32.xlu0 %v6102, 64
    %v6127 = vpop.permute.xlu0 %6126
    %6128 = vrot.lane.b32.xlu0 %v6109, 64
    %v6129 = vpop.permute.xlu0 %6128
    %6130 = vrot.lane.b32.xlu0 %v6112, 64
    %v6131 = vpop.permute.xlu0 %6130
    %6132 = vrot.lane.b32.xlu0 %v6115, 64
    %v6133 = vpop.permute.xlu0 %6132
    %6134 = vrot.lane.b32.xlu0 %v6118, 64
    %v6135 = vpop.permute.xlu0 %6134
    %6136 = vrot.lane.b32.xlu0 %v6121, 64
    %v6137 = vpop.permute.xlu0 %6136
    %vm6138 = vcmask 523264
    %v6139 = vsel %vm6138, %v6123, %v6125
    %v6140 = vsel %vm6138, %v6125, %v6127
    %v6141 = vsel %vm6138, %v6127, %v6129
    %v6142 = vsel %vm6138, %v6131, %v6133
    %v6143 = vsel %vm6138, %v6133, %v6135
    %v6144 = vsel %vm6138, %v6135, %v6137
    %v6149 = vsel %vm6138, %v6129, %v6123
    %v6150 = vsel %vm6138, %v6137, %v6131
    %v6153 = vcombine.low %v6139, %v6140
    %v6154 = vcombine.high %v6139, %v6140
    %v6155 = vcombine.low %v6141, %v6149
    %v6156 = vcombine.high %v6141, %v6149
    %v6158 = vunpack.c.l.s4 1983009808
    %v6159 = vunpack.c.0.s8 %v6158
    %v6160 = vlaneseq
    %v6161 = vshrl.u32 %v6160, 7
    %v6162 = vsub.s32 %v6159, %v6161
    %v6163 = vrot.slane %v6153, %v6162
    %v6165 = vunpack.c.l.s4 1983009808
    %v6166 = vunpack.c.0.s8 %v6165
    %v6167 = vlaneseq
    %v6168 = vshrl.u32 %v6167, 7
    %v6169 = vsub.s32 %v6166, %v6168
    %v6170 = vrot.slane %v6154, %v6169
    %v6172 = vunpack.c.l.s4 1983009808
    %v6173 = vunpack.c.0.s8 %v6172
    %v6174 = vlaneseq
    %v6175 = vshrl.u32 %v6174, 7
    %v6176 = vsub.s32 %v6173, %v6175
    %v6177 = vrot.slane %v6155, %v6176
    %v6179 = vunpack.c.l.s4 1983009808
    %v6180 = vunpack.c.0.s8 %v6179
    %v6181 = vlaneseq
    %v6182 = vshrl.u32 %v6181, 7
    %v6183 = vsub.s32 %v6180, %v6182
    %v6184 = vrot.slane %v6156, %v6183
    %v6185 = vcombine.low %v6163, %v6177
    %v6186 = vcombine.high %v6163, %v6177
    %v6187 = vcombine.low %v6170, %v6184
    %v6188 = vcombine.high %v6170, %v6184
    %v6189 = vcombine.low %v6142, %v6143
    %v6190 = vcombine.low %v6144, %v6150
    %v6192 = vunpack.c.l.s4 1983009808
    %v6193 = vunpack.c.0.s8 %v6192
    %v6194 = vlaneseq
    %v6195 = vshrl.u32 %v6194, 7
    %v6196 = vsub.s32 %v6193, %v6195
    %v6197 = vrot.slane %v6189, %v6196
    %v6199 = vunpack.c.l.s4 1983009808
    %v6200 = vunpack.c.0.s8 %v6199
    %v6201 = vlaneseq
    %v6202 = vshrl.u32 %v6201, 7
    %v6203 = vsub.s32 %v6200, %v6202
    %v6204 = vrot.slane %v6190, %v6203
    %v6205 = vcombine.low %v6197, %v6204
    %v6206 = vcombine.high %v6197, %v6204
    %v6207 = vrot.slane %v6185, 1
    %v6208 = vrot.slane %v6186, 1
    %v6209 = vrot.slane %v6187, 1
    %v6210 = vrot.slane %v6188, 1
    %v6211 = vrot.slane %v6205, 1
    %v6212 = vrot.slane %v6206, 1
    %v6225 = vmax.f32 %v5866, %v6185
    %v6226 = vmax.f32 %v5867, %v6207
    %v6227 = vmax.f32 %v5868, %v6186
    %v6228 = vmax.f32 %v5869, %v6208
    %v6229 = vmax.f32 %v5870, %v6187
    %v6230 = vmax.f32 %v5871, %v6209
    %v6231 = vmax.f32 %v5872, %v6188
    %v6232 = vmax.f32 %v5873, %v6210
    %v6233 = vmax.f32 %v5874, %v6205
    %v6234 = vmax.f32 %v5875, %v6211
    %v6235 = vmax.f32 %v5876, %v6206
    %v6236 = vmax.f32 %v5877, %v6212
    %vm6237 = vcmp.lt.s32.totalorder %v2012, 0
    %v6238 = vsub.s32 0, %v2012
    %v6239 = vsel %vm6237, %v6238, %v2012
    %v6240 = vmul.u32.u64.compose %v6239, 2863311531
    %v6241 = vextract.low.u32 %v6240
    %v6242 = vextract.high.u32 %v6240
    %v6243 = vshrl.u32 %v6242, 2
    %v6244 = vmul.u32 %v6243, 6
    %v6245 = vsub.s32 %v6239, %v6244
    %v6246 = vsub.s32 0, %v6245
    %v6247 = vsel %vm6237, %v6246, %v6245
    %vm6248 = vcmp.lt.s32.totalorder %v2013, 0
    %v6249 = vsub.s32 0, %v2013
    %v6250 = vsel %vm6248, %v6249, %v2013
    %v6251 = vmul.u32.u64.compose %v6250, 2863311531
    %v6252 = vextract.low.u32 %v6251
    %v6253 = vextract.high.u32 %v6251
    %v6254 = vshrl.u32 %v6253, 2
    %v6255 = vmul.u32 %v6254, 6
    %v6256 = vsub.s32 %v6250, %v6255
    %v6257 = vsub.s32 0, %v6256
    %v6258 = vsel %vm6248, %v6257, %v6256
    %vm6259 = vcmp.ne.s32.totalorder %v6247, 0
    %vm6260 = vcmp.ne.s32.totalorder %v6258, 0
    %vm6261 = vcmp.lt.s32.totalorder %v6247, 0
    %vm6262 = vcmp.lt.s32.totalorder %v6258, 0
    %vm6263 = vmand %vm6261, %vm6259
    %vm6264 = vmand %vm6262, %vm6260
    %v6265 = vadd.s32 %v6247, 6
    %v6266 = vadd.s32 %v6258, 6
    %v6267 = vsel %vm6263, %v6265, %v6247
    %v6268 = vsel %vm6264, %v6266, %v6258
    %vm6269 = vcmp.ge.s32.totalorder %v6267, 1
    %vm6270 = vcmp.ge.s32.totalorder %v6268, 1
    %vm6271 = vcmp.le.s32.totalorder %v6267, 4
    %vm6272 = vcmp.le.s32.totalorder %v6268, 4
    %vm6273 = vmand %vm6269, %vm6271
    %vm6274 = vmand %vm6270, %vm6272
    %v6275 = vsel %vm6273, 1, 0
    %v6276 = vsel %vm6274, 1, 0
    %vm6277 = vcmp.eq.s32.totalorder %v6275, 1
    %vm6278 = vcmp.eq.s32.totalorder %v6276, 1
    %v6291 = vlaneseq
    %v6292 = vshrl.u32 %v6291, 7
    %v6293 = vsub.s32 0, %v6292
    %v6294 = vrot.slane %v6225, %v6293
    %v6295 = vlaneseq
    %v6296 = vshrl.u32 %v6295, 7
    %v6297 = vsub.s32 2, %v6296
    %v6298 = vrot.slane %v6225, %v6297
    %v6299 = vlaneseq
    %v6300 = vshrl.u32 %v6299, 7
    %v6301 = vsub.s32 4, %v6300
    %v6302 = vrot.slane %v6225, %v6301
    %v6303 = vlaneseq
    %v6304 = vshrl.u32 %v6303, 7
    %v6305 = vsub.s32 6, %v6304
    %v6306 = vrot.slane %v6225, %v6305
    %v6307 = vlaneseq
    %v6308 = vshrl.u32 %v6307, 7
    %v6309 = vsub.s32 0, %v6308
    %v6310 = vrot.slane %v6226, %v6309
    %v6311 = vlaneseq
    %v6312 = vshrl.u32 %v6311, 7
    %v6313 = vsub.s32 2, %v6312
    %v6314 = vrot.slane %v6226, %v6313
    %v6315 = vlaneseq
    %v6316 = vshrl.u32 %v6315, 7
    %v6317 = vsub.s32 4, %v6316
    %v6318 = vrot.slane %v6226, %v6317
    %v6319 = vlaneseq
    %v6320 = vshrl.u32 %v6319, 7
    %v6321 = vsub.s32 6, %v6320
    %v6322 = vrot.slane %v6226, %v6321
    %v6323 = vlaneseq
    %v6324 = vshrl.u32 %v6323, 7
    %v6325 = vsub.s32 0, %v6324
    %v6326 = vrot.slane %v6227, %v6325
    %v6327 = vlaneseq
    %v6328 = vshrl.u32 %v6327, 7
    %v6329 = vsub.s32 2, %v6328
    %v6330 = vrot.slane %v6227, %v6329
    %v6331 = vlaneseq
    %v6332 = vshrl.u32 %v6331, 7
    %v6333 = vsub.s32 4, %v6332
    %v6334 = vrot.slane %v6227, %v6333
    %v6335 = vlaneseq
    %v6336 = vshrl.u32 %v6335, 7
    %v6337 = vsub.s32 6, %v6336
    %v6338 = vrot.slane %v6227, %v6337
    %v6339 = vlaneseq
    %v6340 = vshrl.u32 %v6339, 7
    %v6341 = vsub.s32 0, %v6340
    %v6342 = vrot.slane %v6228, %v6341
    %v6343 = vlaneseq
    %v6344 = vshrl.u32 %v6343, 7
    %v6345 = vsub.s32 2, %v6344
    %v6346 = vrot.slane %v6228, %v6345
    %v6347 = vlaneseq
    %v6348 = vshrl.u32 %v6347, 7
    %v6349 = vsub.s32 4, %v6348
    %v6350 = vrot.slane %v6228, %v6349
    %v6351 = vlaneseq
    %v6352 = vshrl.u32 %v6351, 7
    %v6353 = vsub.s32 6, %v6352
    %v6354 = vrot.slane %v6228, %v6353
    %v6355 = vlaneseq
    %v6356 = vshrl.u32 %v6355, 7
    %v6357 = vsub.s32 0, %v6356
    %v6358 = vrot.slane %v6229, %v6357
    %v6359 = vlaneseq
    %v6360 = vshrl.u32 %v6359, 7
    %v6361 = vsub.s32 2, %v6360
    %v6362 = vrot.slane %v6229, %v6361
    %v6363 = vlaneseq
    %v6364 = vshrl.u32 %v6363, 7
    %v6365 = vsub.s32 4, %v6364
    %v6366 = vrot.slane %v6229, %v6365
    %v6367 = vlaneseq
    %v6368 = vshrl.u32 %v6367, 7
    %v6369 = vsub.s32 6, %v6368
    %v6370 = vrot.slane %v6229, %v6369
    %v6371 = vlaneseq
    %v6372 = vshrl.u32 %v6371, 7
    %v6373 = vsub.s32 0, %v6372
    %v6374 = vrot.slane %v6230, %v6373
    %v6375 = vlaneseq
    %v6376 = vshrl.u32 %v6375, 7
    %v6377 = vsub.s32 2, %v6376
    %v6378 = vrot.slane %v6230, %v6377
    %v6379 = vlaneseq
    %v6380 = vshrl.u32 %v6379, 7
    %v6381 = vsub.s32 4, %v6380
    %v6382 = vrot.slane %v6230, %v6381
    %v6383 = vlaneseq
    %v6384 = vshrl.u32 %v6383, 7
    %v6385 = vsub.s32 6, %v6384
    %v6386 = vrot.slane %v6230, %v6385
    %v6387 = vlaneseq
    %v6388 = vshrl.u32 %v6387, 7
    %v6389 = vsub.s32 0, %v6388
    %v6390 = vrot.slane %v6231, %v6389
    %v6391 = vlaneseq
    %v6392 = vshrl.u32 %v6391, 7
    %v6393 = vsub.s32 2, %v6392
    %v6394 = vrot.slane %v6231, %v6393
    %v6395 = vlaneseq
    %v6396 = vshrl.u32 %v6395, 7
    %v6397 = vsub.s32 4, %v6396
    %v6398 = vrot.slane %v6231, %v6397
    %v6399 = vlaneseq
    %v6400 = vshrl.u32 %v6399, 7
    %v6401 = vsub.s32 6, %v6400
    %v6402 = vrot.slane %v6231, %v6401
    %v6403 = vlaneseq
    %v6404 = vshrl.u32 %v6403, 7
    %v6405 = vsub.s32 0, %v6404
    %v6406 = vrot.slane %v6232, %v6405
    %v6407 = vlaneseq
    %v6408 = vshrl.u32 %v6407, 7
    %v6409 = vsub.s32 2, %v6408
    %v6410 = vrot.slane %v6232, %v6409
    %v6411 = vlaneseq
    %v6412 = vshrl.u32 %v6411, 7
    %v6413 = vsub.s32 4, %v6412
    %v6414 = vrot.slane %v6232, %v6413
    %v6415 = vlaneseq
    %v6416 = vshrl.u32 %v6415, 7
    %v6417 = vsub.s32 6, %v6416
    %v6418 = vrot.slane %v6232, %v6417
    %v6419 = vlaneseq
    %v6420 = vshrl.u32 %v6419, 7
    %v6421 = vsub.s32 0, %v6420
    %v6422 = vrot.slane %v6233, %v6421
    %v6423 = vlaneseq
    %v6424 = vshrl.u32 %v6423, 7
    %v6425 = vsub.s32 2, %v6424
    %v6426 = vrot.slane %v6233, %v6425
    %v6427 = vlaneseq
    %v6428 = vshrl.u32 %v6427, 7
    %v6429 = vsub.s32 4, %v6428
    %v6430 = vrot.slane %v6233, %v6429
    %v6431 = vlaneseq
    %v6432 = vshrl.u32 %v6431, 7
    %v6433 = vsub.s32 6, %v6432
    %v6434 = vrot.slane %v6233, %v6433
    %v6435 = vlaneseq
    %v6436 = vshrl.u32 %v6435, 7
    %v6437 = vsub.s32 0, %v6436
    %v6438 = vrot.slane %v6234, %v6437
    %v6439 = vlaneseq
    %v6440 = vshrl.u32 %v6439, 7
    %v6441 = vsub.s32 2, %v6440
    %v6442 = vrot.slane %v6234, %v6441
    %v6443 = vlaneseq
    %v6444 = vshrl.u32 %v6443, 7
    %v6445 = vsub.s32 4, %v6444
    %v6446 = vrot.slane %v6234, %v6445
    %v6447 = vlaneseq
    %v6448 = vshrl.u32 %v6447, 7
    %v6449 = vsub.s32 6, %v6448
    %v6450 = vrot.slane %v6234, %v6449
    %v6451 = vlaneseq
    %v6452 = vshrl.u32 %v6451, 7
    %v6453 = vsub.s32 0, %v6452
    %v6454 = vrot.slane %v6235, %v6453
    %v6455 = vlaneseq
    %v6456 = vshrl.u32 %v6455, 7
    %v6457 = vsub.s32 2, %v6456
    %v6458 = vrot.slane %v6235, %v6457
    %v6459 = vlaneseq
    %v6460 = vshrl.u32 %v6459, 7
    %v6461 = vsub.s32 4, %v6460
    %v6462 = vrot.slane %v6235, %v6461
    %v6463 = vlaneseq
    %v6464 = vshrl.u32 %v6463, 7
    %v6465 = vsub.s32 6, %v6464
    %v6466 = vrot.slane %v6235, %v6465
    %v6467 = vlaneseq
    %v6468 = vshrl.u32 %v6467, 7
    %v6469 = vsub.s32 0, %v6468
    %v6470 = vrot.slane %v6236, %v6469
    %v6471 = vlaneseq
    %v6472 = vshrl.u32 %v6471, 7
    %v6473 = vsub.s32 2, %v6472
    %v6474 = vrot.slane %v6236, %v6473
    %v6475 = vlaneseq
    %v6476 = vshrl.u32 %v6475, 7
    %v6477 = vsub.s32 4, %v6476
    %v6478 = vrot.slane %v6236, %v6477
    %v6479 = vlaneseq
    %v6480 = vshrl.u32 %v6479, 7
    %v6481 = vsub.s32 6, %v6480
    %v6482 = vrot.slane %v6236, %v6481
    %v6483 = vsel %vm1706, %v6310, %v6294
    %v6484 = vsel %vm1708, %v6326, %v6483
    %v6485 = vsel %vm1710, %v6342, %v6484
    %v6486 = vsel %vm1712, %v6358, %v6485
    %v6487 = vsel %vm1714, %v6374, %v6486
    %v6488 = vsel %vm1716, %v6390, %v6487
    %v6489 = vsel %vm1718, %v6406, %v6488
    %v6490 = vsel %vm1706, %v6314, %v6298
    %v6491 = vsel %vm1708, %v6330, %v6490
    %v6492 = vsel %vm1710, %v6346, %v6491
    %v6493 = vsel %vm1712, %v6362, %v6492
    %v6494 = vsel %vm1714, %v6378, %v6493
    %v6495 = vsel %vm1716, %v6394, %v6494
    %v6496 = vsel %vm1718, %v6410, %v6495
    %v6497 = vsel %vm1706, %v6318, %v6302
    %v6498 = vsel %vm1708, %v6334, %v6497
    %v6499 = vsel %vm1710, %v6350, %v6498
    %v6500 = vsel %vm1712, %v6366, %v6499
    %v6501 = vsel %vm1714, %v6382, %v6500
    %v6502 = vsel %vm1716, %v6398, %v6501
    %v6503 = vsel %vm1718, %v6414, %v6502
    %v6504 = vsel %vm1706, %v6322, %v6306
    %v6505 = vsel %vm1708, %v6338, %v6504
    %v6506 = vsel %vm1710, %v6354, %v6505
    %v6507 = vsel %vm1712, %v6370, %v6506
    %v6508 = vsel %vm1714, %v6386, %v6507
    %v6509 = vsel %vm1716, %v6402, %v6508
    %v6510 = vsel %vm1718, %v6418, %v6509
    %v6511 = vsel %vm1706, %v6438, %v6422
    %v6512 = vsel %vm1708, %v6454, %v6511
    %v6513 = vsel %vm1710, %v6470, %v6512
    %v6514 = vsel %vm1706, %v6442, %v6426
    %v6515 = vsel %vm1708, %v6458, %v6514
    %v6516 = vsel %vm1710, %v6474, %v6515
    %v6517 = vsel %vm1706, %v6446, %v6430
    %v6518 = vsel %vm1708, %v6462, %v6517
    %v6519 = vsel %vm1710, %v6478, %v6518
    %v6520 = vsel %vm1706, %v6450, %v6434
    %v6521 = vsel %vm1708, %v6466, %v6520
    %v6522 = vsel %vm1710, %v6482, %v6521
    %v6531 = vsel %vm6277, %v6489, 0.0
    %v6532 = vsel %vm6277, %v6496, 0.0
    %v6533 = vsel %vm6277, %v6503, 0.0
    %v6534 = vsel %vm6277, %v6510, 0.0
    %v6535 = vsel %vm6278, %v6513, 0.0
    %v6536 = vsel %vm6278, %v6516, 0.0
    %v6537 = vsel %vm6278, %v6519, 0.0
    %v6538 = vsel %vm6278, %v6522, 0.0
    %v6539 = vpack.c.bf16 %v6535, %v6531
    %v6540 = vpack.c.bf16 %v6536, %v6532
    %v6541 = vpack.c.bf16 %v6537, %v6533
    %v6542 = vpack.c.bf16 %v6538, %v6534
    %v6547 = vunpack.c.l.b16 %v6539
    %v6548 = vunpack.c.l.b16 %v6540
    %v6549 = vunpack.c.l.b16 %v6541
    %v6550 = vunpack.c.l.b16 %v6542
    %v6551 = vunpack.c.h.b16 %v6539
    %v6552 = vunpack.c.h.b16 %v6540
    %v6553 = vunpack.c.h.b16 %v6541
    %v6554 = vunpack.c.h.b16 %v6542
    %v6555 = vpack.c.b16 %v6548, %v6547
    %v6556 = vpack.c.b16 %v6550, %v6549
    %v6557 = vpack.c.b16 %v6552, %v6551
    %v6558 = vpack.c.b16 %v6554, %v6553
    %6563 = vst [vmem:[#allocation4] sm:$0xff] %v6555
    %6564 = vst [vmem:[#allocation4 + $0x8] sm:$0xff] %v6556
    %6565 = vst [vmem:[#allocation4 + $0x10] sm:$0x33] %v6557
    %6566 = vst [vmem:[#allocation4 + $0x18] sm:$0x33] %v6558
    %v6567 = vld [vmem:[#allocation4] sm:$0xff]
    %v6568 = vld [vmem:[#allocation4 + $0x8] sm:$0xff]
    %v6569 = vld [vmem:[#allocation4 + $0x10] sm:$0x33]
    %v6570 = vld [vmem:[#allocation4 + $0x18] sm:$0x33]
    %v6571 = vld [vmem:[#allocation13] sm:$0xff]
    %v6572 = vld [vmem:[#allocation13 + $0x8] sm:$0xff]
    %v6573 = vld [vmem:[#allocation13 + $0x10] sm:$0xff]
    %v6574 = vld [vmem:[#allocation13 + $0x18] sm:$0xff]
    %v6575 = vld [vmem:[#allocation13 + $0x20] sm:$0xff]
    %v6576 = vld [vmem:[#allocation13 + $0x28] sm:$0xff]
    %v6577 = vld [vmem:[#allocation13 + $0x30] sm:$0xff]
    %v6578 = vld [vmem:[#allocation13 + $0x38] sm:$0xff]
    %v6579 = vld [vmem:[#allocation13 + $0x40] sm:$0xff]
    %v6580 = vld [vmem:[#allocation13 + $0x48] sm:$0xff]
    %v6581 = vld [vmem:[#allocation13 + $0x50] sm:$0xff]
    %v6582 = vld [vmem:[#allocation13 + $0x58] sm:$0xff]
    %v6583 = vld [vmem:[#allocation13 + $0x60] sm:$0xff]
    %v6584 = vld [vmem:[#allocation13 + $0x68] sm:$0xff]
    %v6585 = vld [vmem:[#allocation13 + $0x70] sm:$0xff]
    %v6586 = vld [vmem:[#allocation13 + $0x78] sm:$0xff]
    %v6587 = vld [vmem:[#allocation13 + $0x80] sm:$0xff]
    %v6588 = vld [vmem:[#allocation13 + $0x88] sm:$0xff]
    %v6589 = vld [vmem:[#allocation13 + $0x90] sm:$0xff]
    %v6590 = vld [vmem:[#allocation13 + $0x98] sm:$0xff]
    %v6591 = vld [vmem:[#allocation13 + $0xa0] sm:$0xff]
    %v6592 = vld [vmem:[#allocation13 + $0xa8] sm:$0xff]
    %v6593 = vld [vmem:[#allocation13 + $0xb0] sm:$0xff]
    %v6594 = vld [vmem:[#allocation13 + $0xb8] sm:$0xff]
    %v6595 = vld [vmem:[#allocation13 + $0xc0] sm:$0xff]
    %v6596 = vld [vmem:[#allocation13 + $0xc8] sm:$0xff]
    %v6597 = vld [vmem:[#allocation13 + $0xd0] sm:$0xff]
    %v6598 = vld [vmem:[#allocation13 + $0xd8] sm:$0xff]
    %v6599 = vld [vmem:[#allocation13 + $0xe0] sm:$0xff]
    %v6600 = vld [vmem:[#allocation13 + $0xe8] sm:$0xff]
    %v6601 = vld [vmem:[#allocation13 + $0xf0] sm:$0xff]
    %v6602 = vld [vmem:[#allocation13 + $0xf8] sm:$0xff]
    %v6603 = vld [vmem:[#allocation13 + $0x100] sm:$0xff]
    %v6604 = vld [vmem:[#allocation13 + $0x108] sm:$0xff]
    %v6605 = vld [vmem:[#allocation13 + $0x110] sm:$0xff]
    %v6606 = vld [vmem:[#allocation13 + $0x118] sm:$0xff]
    %v6607 = vld [vmem:[#allocation13 + $0x120] sm:$0xff]
    %v6608 = vld [vmem:[#allocation13 + $0x128] sm:$0xff]
    %v6609 = vld [vmem:[#allocation13 + $0x130] sm:$0xff]
    %v6610 = vld [vmem:[#allocation13 + $0x138] sm:$0xff]
    %v6611 = vld [vmem:[#allocation13 + $0x140] sm:$0xff]
    %v6612 = vld [vmem:[#allocation13 + $0x148] sm:$0xff]
    %v6613 = vld [vmem:[#allocation13 + $0x150] sm:$0xff]
    %v6614 = vld [vmem:[#allocation13 + $0x158] sm:$0xff]
    %v6615 = vld [vmem:[#allocation13 + $0x160] sm:$0xff]
    %v6616 = vld [vmem:[#allocation13 + $0x168] sm:$0xff]
    %v6617 = vld [vmem:[#allocation13 + $0x170] sm:$0xff]
    %v6618 = vld [vmem:[#allocation13 + $0x178] sm:$0xff]
    %v6619 = vld [vmem:[#allocation13 + $0x180] sm:$0xff]
    %v6620 = vld [vmem:[#allocation13 + $0x188] sm:$0xff]
    %v6621 = vld [vmem:[#allocation13 + $0x190] sm:$0xff]
    %v6622 = vld [vmem:[#allocation13 + $0x198] sm:$0xff]
    %v6623 = vld [vmem:[#allocation13 + $0x1a0] sm:$0xff]
    %v6624 = vld [vmem:[#allocation13 + $0x1a8] sm:$0xff]
    %v6625 = vld [vmem:[#allocation13 + $0x1b0] sm:$0xff]
    %v6626 = vld [vmem:[#allocation13 + $0x1b8] sm:$0xff]
    %v6627 = vld [vmem:[#allocation13 + $0x1c0] sm:$0xff]
    %v6628 = vld [vmem:[#allocation13 + $0x1c8] sm:$0xff]
    %v6629 = vld [vmem:[#allocation13 + $0x1d0] sm:$0xff]
    %v6630 = vld [vmem:[#allocation13 + $0x1d8] sm:$0xff]
    %v6631 = vld [vmem:[#allocation13 + $0x1e0] sm:$0xff]
    %v6632 = vld [vmem:[#allocation13 + $0x1e8] sm:$0xff]
    %v6633 = vld [vmem:[#allocation13 + $0x1f0] sm:$0xff]
    %v6634 = vld [vmem:[#allocation13 + $0x1f8] sm:$0xff]
    %v6635 = vld [vmem:[#allocation13 + $0x200] sm:$0xff]
    %v6636 = vld [vmem:[#allocation13 + $0x208] sm:$0xff]
    %v6637 = vld [vmem:[#allocation13 + $0x210] sm:$0xff]
    %v6638 = vld [vmem:[#allocation13 + $0x218] sm:$0xff]
    %v6639 = vld [vmem:[#allocation13 + $0x220] sm:$0xff]
    %v6640 = vld [vmem:[#allocation13 + $0x228] sm:$0xff]
    %v6641 = vld [vmem:[#allocation13 + $0x230] sm:$0xff]
    %v6642 = vld [vmem:[#allocation13 + $0x238] sm:$0xff]
    %v6643 = vld [vmem:[#allocation13 + $0x240] sm:$0xff]
    %v6644 = vld [vmem:[#allocation13 + $0x248] sm:$0xff]
    %v6645 = vld [vmem:[#allocation13 + $0x250] sm:$0xff]
    %v6646 = vld [vmem:[#allocation13 + $0x258] sm:$0xff]
    %v6647 = vld [vmem:[#allocation13 + $0x260] sm:$0xff]
    %v6648 = vld [vmem:[#allocation13 + $0x268] sm:$0xff]
    %v6649 = vld [vmem:[#allocation13 + $0x270] sm:$0xff]
    %v6650 = vld [vmem:[#allocation13 + $0x278] sm:$0xff]
    %v6651 = vld [vmem:[#allocation13 + $0x280] sm:$0xff]
    %v6652 = vld [vmem:[#allocation13 + $0x288] sm:$0xff]
    %v6653 = vld [vmem:[#allocation13 + $0x290] sm:$0xff]
    %v6654 = vld [vmem:[#allocation13 + $0x298] sm:$0xff]
    %v6655 = vld [vmem:[#allocation13 + $0x2a0] sm:$0xff]
    %v6656 = vld [vmem:[#allocation13 + $0x2a8] sm:$0xff]
    %v6657 = vld [vmem:[#allocation13 + $0x2b0] sm:$0xff]
    %v6658 = vld [vmem:[#allocation13 + $0x2b8] sm:$0xff]
    %v6659 = vld [vmem:[#allocation13 + $0x2c0] sm:$0xff]
    %v6660 = vld [vmem:[#allocation13 + $0x2c8] sm:$0xff]
    %v6661 = vld [vmem:[#allocation13 + $0x2d0] sm:$0xff]
    %v6662 = vld [vmem:[#allocation13 + $0x2d8] sm:$0xff]
    %v6663 = vld [vmem:[#allocation13 + $0x2e0] sm:$0xff]
    %v6664 = vld [vmem:[#allocation13 + $0x2e8] sm:$0xff]
    %v6665 = vld [vmem:[#allocation13 + $0x2f0] sm:$0xff]
    %v6666 = vld [vmem:[#allocation13 + $0x2f8] sm:$0xff]
    %v6667 = vld [vmem:[#allocation13 + $0x300] sm:$0xff]
    %v6668 = vld [vmem:[#allocation13 + $0x308] sm:$0xff]
    %v6669 = vld [vmem:[#allocation13 + $0x310] sm:$0xff]
    %v6670 = vld [vmem:[#allocation13 + $0x318] sm:$0xff]
    %v6671 = vld [vmem:[#allocation13 + $0x320] sm:$0xff]
    %v6672 = vld [vmem:[#allocation13 + $0x328] sm:$0xff]
    %v6673 = vld [vmem:[#allocation13 + $0x330] sm:$0xff]
    %v6674 = vld [vmem:[#allocation13 + $0x338] sm:$0xff]
    %v6675 = vld [vmem:[#allocation13 + $0x340] sm:$0xff]
    %v6676 = vld [vmem:[#allocation13 + $0x348] sm:$0xff]
    %v6677 = vld [vmem:[#allocation13 + $0x350] sm:$0xff]
    %v6678 = vld [vmem:[#allocation13 + $0x358] sm:$0xff]
    %v6679 = vld [vmem:[#allocation13 + $0x360] sm:$0xff]
    %v6680 = vld [vmem:[#allocation13 + $0x368] sm:$0xff]
    %v6681 = vld [vmem:[#allocation13 + $0x370] sm:$0xff]
    %v6682 = vld [vmem:[#allocation13 + $0x378] sm:$0xff]
    %v6683 = vld [vmem:[#allocation13 + $0x380] sm:$0xff]
    %v6684 = vld [vmem:[#allocation13 + $0x388] sm:$0xff]
    %v6685 = vld [vmem:[#allocation13 + $0x390] sm:$0xff]
    %v6686 = vld [vmem:[#allocation13 + $0x398] sm:$0xff]
    %v6687 = vld [vmem:[#allocation13 + $0x3a0] sm:$0xff]
    %v6688 = vld [vmem:[#allocation13 + $0x3a8] sm:$0xff]
    %v6689 = vld [vmem:[#allocation13 + $0x3b0] sm:$0xff]
    %v6690 = vld [vmem:[#allocation13 + $0x3b8] sm:$0xff]
    %v6691 = vld [vmem:[#allocation13 + $0x3c0] sm:$0xff]
    %v6692 = vld [vmem:[#allocation13 + $0x3c8] sm:$0xff]
    %v6693 = vld [vmem:[#allocation13 + $0x3d0] sm:$0xff]
    %v6694 = vld [vmem:[#allocation13 + $0x3d8] sm:$0xff]
    %v6695 = vld [vmem:[#allocation13 + $0x3e0] sm:$0xff]
    %v6696 = vld [vmem:[#allocation13 + $0x3e8] sm:$0xff]
    %v6697 = vld [vmem:[#allocation13 + $0x3f0] sm:$0xff]
    %v6698 = vld [vmem:[#allocation13 + $0x3f8] sm:$0xff]
    %v6699 = vld [vmem:[#allocation4 + $0x10] sm:$0x77]
    %v6700 = vld [vmem:[#allocation4 + $0x18] sm:$0x77]
    %s6701 = scalar_lea.vmem [#allocation13], 1024
    %v6702 = vld [vmem:[%s6701] sm:$0xff]
    %v6703 = vld [vmem:[%s6701 + $0x8] sm:$0xff]
    %v6704 = vld [vmem:[%s6701 + $0x10] sm:$0xff]
    %v6705 = vld [vmem:[%s6701 + $0x18] sm:$0xff]
    %v6706 = vld [vmem:[%s6701 + $0x20] sm:$0xff]
    %v6707 = vld [vmem:[%s6701 + $0x28] sm:$0xff]
    %v6708 = vld [vmem:[%s6701 + $0x30] sm:$0xff]
    %v6709 = vld [vmem:[%s6701 + $0x38] sm:$0xff]
    %v6710 = vld [vmem:[%s6701 + $0x40] sm:$0xff]
    %v6711 = vld [vmem:[%s6701 + $0x48] sm:$0xff]
    %v6712 = vld [vmem:[%s6701 + $0x50] sm:$0xff]
    %v6713 = vld [vmem:[%s6701 + $0x58] sm:$0xff]
    %v6714 = vld [vmem:[%s6701 + $0x60] sm:$0xff]
    %v6715 = vld [vmem:[%s6701 + $0x68] sm:$0xff]
    %v6716 = vld [vmem:[%s6701 + $0x70] sm:$0xff]
    %v6717 = vld [vmem:[%s6701 + $0x78] sm:$0xff]
    %v6718 = vld [vmem:[%s6701 + $0x80] sm:$0xff]
    %v6719 = vld [vmem:[%s6701 + $0x88] sm:$0xff]
    %v6720 = vld [vmem:[%s6701 + $0x90] sm:$0xff]
    %v6721 = vld [vmem:[%s6701 + $0x98] sm:$0xff]
    %v6722 = vld [vmem:[%s6701 + $0xa0] sm:$0xff]
    %v6723 = vld [vmem:[%s6701 + $0xa8] sm:$0xff]
    %v6724 = vld [vmem:[%s6701 + $0xb0] sm:$0xff]
    %v6725 = vld [vmem:[%s6701 + $0xb8] sm:$0xff]
    %v6726 = vld [vmem:[%s6701 + $0xc0] sm:$0xff]
    %v6727 = vld [vmem:[%s6701 + $0xc8] sm:$0xff]
    %v6728 = vld [vmem:[%s6701 + $0xd0] sm:$0xff]
    %v6729 = vld [vmem:[%s6701 + $0xd8] sm:$0xff]
    %v6730 = vld [vmem:[%s6701 + $0xe0] sm:$0xff]
    %v6731 = vld [vmem:[%s6701 + $0xe8] sm:$0xff]
    %v6732 = vld [vmem:[%s6701 + $0xf0] sm:$0xff]
    %v6733 = vld [vmem:[%s6701 + $0xf8] sm:$0xff]
    %v6734 = vld [vmem:[%s6701 + $0x100] sm:$0xff]
    %v6735 = vld [vmem:[%s6701 + $0x108] sm:$0xff]
    %v6736 = vld [vmem:[%s6701 + $0x110] sm:$0xff]
    %v6737 = vld [vmem:[%s6701 + $0x118] sm:$0xff]
    %v6738 = vld [vmem:[%s6701 + $0x120] sm:$0xff]
    %v6739 = vld [vmem:[%s6701 + $0x128] sm:$0xff]
    %v6740 = vld [vmem:[%s6701 + $0x130] sm:$0xff]
    %v6741 = vld [vmem:[%s6701 + $0x138] sm:$0xff]
    %v6742 = vld [vmem:[%s6701 + $0x140] sm:$0xff]
    %v6743 = vld [vmem:[%s6701 + $0x148] sm:$0xff]
    %v6744 = vld [vmem:[%s6701 + $0x150] sm:$0xff]
    %v6745 = vld [vmem:[%s6701 + $0x158] sm:$0xff]
    %v6746 = vld [vmem:[%s6701 + $0x160] sm:$0xff]
    %v6747 = vld [vmem:[%s6701 + $0x168] sm:$0xff]
    %v6748 = vld [vmem:[%s6701 + $0x170] sm:$0xff]
    %v6749 = vld [vmem:[%s6701 + $0x178] sm:$0xff]
    %v6750 = vld [vmem:[%s6701 + $0x180] sm:$0xff]
    %v6751 = vld [vmem:[%s6701 + $0x188] sm:$0xff]
    %v6752 = vld [vmem:[%s6701 + $0x190] sm:$0xff]
    %v6753 = vld [vmem:[%s6701 + $0x198] sm:$0xff]
    %v6754 = vld [vmem:[%s6701 + $0x1a0] sm:$0xff]
    %v6755 = vld [vmem:[%s6701 + $0x1a8] sm:$0xff]
    %v6756 = vld [vmem:[%s6701 + $0x1b0] sm:$0xff]
    %v6757 = vld [vmem:[%s6701 + $0x1b8] sm:$0xff]
    %v6758 = vld [vmem:[%s6701 + $0x1c0] sm:$0xff]
    %v6759 = vld [vmem:[%s6701 + $0x1c8] sm:$0xff]
    %v6760 = vld [vmem:[%s6701 + $0x1d0] sm:$0xff]
    %v6761 = vld [vmem:[%s6701 + $0x1d8] sm:$0xff]
    %v6762 = vld [vmem:[%s6701 + $0x1e0] sm:$0xff]
    %v6763 = vld [vmem:[%s6701 + $0x1e8] sm:$0xff]
    %v6764 = vld [vmem:[%s6701 + $0x1f0] sm:$0xff]
    %v6765 = vld [vmem:[%s6701 + $0x1f8] sm:$0xff]
    %v6766 = vld [vmem:[%s6701 + $0x200] sm:$0xff]
    %v6767 = vld [vmem:[%s6701 + $0x208] sm:$0xff]
    %v6768 = vld [vmem:[%s6701 + $0x210] sm:$0xff]
    %v6769 = vld [vmem:[%s6701 + $0x218] sm:$0xff]
    %v6770 = vld [vmem:[%s6701 + $0x220] sm:$0xff]
    %v6771 = vld [vmem:[%s6701 + $0x228] sm:$0xff]
    %v6772 = vld [vmem:[%s6701 + $0x230] sm:$0xff]
    %v6773 = vld [vmem:[%s6701 + $0x238] sm:$0xff]
    %v6774 = vld [vmem:[%s6701 + $0x240] sm:$0xff]
    %v6775 = vld [vmem:[%s6701 + $0x248] sm:$0xff]
    %v6776 = vld [vmem:[%s6701 + $0x250] sm:$0xff]
    %v6777 = vld [vmem:[%s6701 + $0x258] sm:$0xff]
    %v6778 = vld [vmem:[%s6701 + $0x260] sm:$0xff]
    %v6779 = vld [vmem:[%s6701 + $0x268] sm:$0xff]
    %v6780 = vld [vmem:[%s6701 + $0x270] sm:$0xff]
    %v6781 = vld [vmem:[%s6701 + $0x278] sm:$0xff]
    %v6782 = vld [vmem:[%s6701 + $0x280] sm:$0xff]
    %v6783 = vld [vmem:[%s6701 + $0x288] sm:$0xff]
    %v6784 = vld [vmem:[%s6701 + $0x290] sm:$0xff]
    %v6785 = vld [vmem:[%s6701 + $0x298] sm:$0xff]
    %v6786 = vld [vmem:[%s6701 + $0x2a0] sm:$0xff]
    %v6787 = vld [vmem:[%s6701 + $0x2a8] sm:$0xff]
    %v6788 = vld [vmem:[%s6701 + $0x2b0] sm:$0xff]
    %v6789 = vld [vmem:[%s6701 + $0x2b8] sm:$0xff]
    %v6790 = vld [vmem:[%s6701 + $0x2c0] sm:$0xff]
    %v6791 = vld [vmem:[%s6701 + $0x2c8] sm:$0xff]
    %v6792 = vld [vmem:[%s6701 + $0x2d0] sm:$0xff]
    %v6793 = vld [vmem:[%s6701 + $0x2d8] sm:$0xff]
    %v6794 = vld [vmem:[%s6701 + $0x2e0] sm:$0xff]
    %v6795 = vld [vmem:[%s6701 + $0x2e8] sm:$0xff]
    %v6796 = vld [vmem:[%s6701 + $0x2f0] sm:$0xff]
    %v6797 = vld [vmem:[%s6701 + $0x2f8] sm:$0xff]
    %v6798 = vld [vmem:[%s6701 + $0x300] sm:$0xff]
    %v6799 = vld [vmem:[%s6701 + $0x308] sm:$0xff]
    %v6800 = vld [vmem:[%s6701 + $0x310] sm:$0xff]
    %v6801 = vld [vmem:[%s6701 + $0x318] sm:$0xff]
    %v6802 = vld [vmem:[%s6701 + $0x320] sm:$0xff]
    %v6803 = vld [vmem:[%s6701 + $0x328] sm:$0xff]
    %v6804 = vld [vmem:[%s6701 + $0x330] sm:$0xff]
    %v6805 = vld [vmem:[%s6701 + $0x338] sm:$0xff]
    %v6806 = vld [vmem:[%s6701 + $0x340] sm:$0xff]
    %v6807 = vld [vmem:[%s6701 + $0x348] sm:$0xff]
    %v6808 = vld [vmem:[%s6701 + $0x350] sm:$0xff]
    %v6809 = vld [vmem:[%s6701 + $0x358] sm:$0xff]
    %v6810 = vld [vmem:[%s6701 + $0x360] sm:$0xff]
    %v6811 = vld [vmem:[%s6701 + $0x368] sm:$0xff]
    %v6812 = vld [vmem:[%s6701 + $0x370] sm:$0xff]
    %v6813 = vld [vmem:[%s6701 + $0x378] sm:$0xff]
    %v6814 = vld [vmem:[%s6701 + $0x380] sm:$0xff]
    %v6815 = vld [vmem:[%s6701 + $0x388] sm:$0xff]
    %v6816 = vld [vmem:[%s6701 + $0x390] sm:$0xff]
    %v6817 = vld [vmem:[%s6701 + $0x398] sm:$0xff]
    %v6818 = vld [vmem:[%s6701 + $0x3a0] sm:$0xff]
    %v6819 = vld [vmem:[%s6701 + $0x3a8] sm:$0xff]
    %v6820 = vld [vmem:[%s6701 + $0x3b0] sm:$0xff]
    %v6821 = vld [vmem:[%s6701 + $0x3b8] sm:$0xff]
    %v6822 = vld [vmem:[%s6701 + $0x3c0] sm:$0xff]
    %v6823 = vld [vmem:[%s6701 + $0x3c8] sm:$0xff]
    %v6824 = vld [vmem:[%s6701 + $0x3d0] sm:$0xff]
    %v6825 = vld [vmem:[%s6701 + $0x3d8] sm:$0xff]
    %v6826 = vld [vmem:[%s6701 + $0x3e0] sm:$0xff]
    %v6827 = vld [vmem:[%s6701 + $0x3e8] sm:$0xff]
    %v6828 = vld [vmem:[%s6701 + $0x3f0] sm:$0xff]
    %v6829 = vld [vmem:[%s6701 + $0x3f8] sm:$0xff]
    %v6834 = vunpack.c.l.b16 %v6567
    %v6835 = vunpack.c.h.b16 %v6567
    %v6836 = vunpack.c.l.b16 %v6568
    %v6837 = vunpack.c.h.b16 %v6568
    %v6838 = vunpack.c.l.b16 %v6699
    %v6839 = vunpack.c.h.b16 %v6699
    %v6840 = vunpack.c.l.b16 %v6700
    %v6841 = vunpack.c.h.b16 %v6700
    %v6842 = vpack.c.b16 %v6838, %v6834
    %v6843 = vpack.c.b16 %v6839, %v6835
    %v6844 = vpack.c.b16 %v6840, %v6836
    %v6845 = vpack.c.b16 %v6841, %v6837
    %v6847 = vshrl.u32 %v6842, 16
    %v6849 = vshll.u32 %v6842, 16
    %v6851 = vrot.slane %v6849, 1
    %v6852 = vor.u32 %v6847, %v6851
    %v6854 = vshrl.u32 %v6843, 16
    %v6856 = vshll.u32 %v6843, 16
    %v6858 = vrot.slane %v6856, 1
    %v6859 = vor.u32 %v6854, %v6858
    %v6861 = vshrl.u32 %v6844, 16
    %v6863 = vshll.u32 %v6844, 16
    %v6865 = vrot.slane %v6863, 1
    %v6866 = vor.u32 %v6861, %v6865
    %v6868 = vshrl.u32 %v6845, 16
    %v6870 = vshll.u32 %v6845, 16
    %v6872 = vrot.slane %v6870, 1
    %v6873 = vor.u32 %v6868, %v6872
    %v7006 = vunpack.c.l.b16 %v6702
    %v7007 = vunpack.c.h.b16 %v6702
    %v7008 = vunpack.c.l.b16 %v6703
    %v7009 = vunpack.c.h.b16 %v6703
    %v7010 = vunpack.c.l.b16 %v6704
    %v7011 = vunpack.c.h.b16 %v6704
    %v7012 = vunpack.c.l.b16 %v6705
    %v7013 = vunpack.c.h.b16 %v6705
    %v7014 = vunpack.c.l.b16 %v6706
    %v7015 = vunpack.c.h.b16 %v6706
    %v7016 = vunpack.c.l.b16 %v6707
    %v7017 = vunpack.c.h.b16 %v6707
    %v7018 = vunpack.c.l.b16 %v6708
    %v7019 = vunpack.c.h.b16 %v6708
    %v7020 = vunpack.c.l.b16 %v6709
    %v7021 = vunpack.c.h.b16 %v6709
    %v7022 = vunpack.c.l.b16 %v6710
    %v7023 = vunpack.c.h.b16 %v6710
    %v7024 = vunpack.c.l.b16 %v6711
    %v7025 = vunpack.c.h.b16 %v6711
    %v7026 = vunpack.c.l.b16 %v6712
    %v7027 = vunpack.c.h.b16 %v6712
    %v7028 = vunpack.c.l.b16 %v6713
    %v7029 = vunpack.c.h.b16 %v6713
    %v7030 = vunpack.c.l.b16 %v6714
    %v7031 = vunpack.c.h.b16 %v6714
    %v7032 = vunpack.c.l.b16 %v6715
    %v7033 = vunpack.c.h.b16 %v6715
    %v7034 = vunpack.c.l.b16 %v6716
    %v7035 = vunpack.c.h.b16 %v6716
    %v7036 = vunpack.c.l.b16 %v6717
    %v7037 = vunpack.c.h.b16 %v6717
    %v7038 = vunpack.c.l.b16 %v6718
    %v7039 = vunpack.c.h.b16 %v6718
    %v7040 = vunpack.c.l.b16 %v6719
    %v7041 = vunpack.c.h.b16 %v6719
    %v7042 = vunpack.c.l.b16 %v6720
    %v7043 = vunpack.c.h.b16 %v6720
    %v7044 = vunpack.c.l.b16 %v6721
    %v7045 = vunpack.c.h.b16 %v6721
    %v7046 = vunpack.c.l.b16 %v6722
    %v7047 = vunpack.c.h.b16 %v6722
    %v7048 = vunpack.c.l.b16 %v6723
    %v7049 = vunpack.c.h.b16 %v6723
    %v7050 = vunpack.c.l.b16 %v6724
    %v7051 = vunpack.c.h.b16 %v6724
    %v7052 = vunpack.c.l.b16 %v6725
    %v7053 = vunpack.c.h.b16 %v6725
    %v7054 = vunpack.c.l.b16 %v6726
    %v7055 = vunpack.c.h.b16 %v6726
    %v7056 = vunpack.c.l.b16 %v6727
    %v7057 = vunpack.c.h.b16 %v6727
    %v7058 = vunpack.c.l.b16 %v6728
    %v7059 = vunpack.c.h.b16 %v6728
    %v7060 = vunpack.c.l.b16 %v6729
    %v7061 = vunpack.c.h.b16 %v6729
    %v7062 = vunpack.c.l.b16 %v6730
    %v7063 = vunpack.c.h.b16 %v6730
    %v7064 = vunpack.c.l.b16 %v6731
    %v7065 = vunpack.c.h.b16 %v6731
    %v7066 = vunpack.c.l.b16 %v6732
    %v7067 = vunpack.c.h.b16 %v6732
    %v7068 = vunpack.c.l.b16 %v6733
    %v7069 = vunpack.c.h.b16 %v6733
    %v7070 = vunpack.c.l.b16 %v6734
    %v7071 = vunpack.c.h.b16 %v6734
    %v7072 = vunpack.c.l.b16 %v6735
    %v7073 = vunpack.c.h.b16 %v6735
    %v7074 = vunpack.c.l.b16 %v6736
    %v7075 = vunpack.c.h.b16 %v6736
    %v7076 = vunpack.c.l.b16 %v6737
    %v7077 = vunpack.c.h.b16 %v6737
    %v7078 = vunpack.c.l.b16 %v6738
    %v7079 = vunpack.c.h.b16 %v6738
    %v7080 = vunpack.c.l.b16 %v6739
    %v7081 = vunpack.c.h.b16 %v6739
    %v7082 = vunpack.c.l.b16 %v6740
    %v7083 = vunpack.c.h.b16 %v6740
    %v7084 = vunpack.c.l.b16 %v6741
    %v7085 = vunpack.c.h.b16 %v6741
    %v7086 = vunpack.c.l.b16 %v6742
    %v7087 = vunpack.c.h.b16 %v6742
    %v7088 = vunpack.c.l.b16 %v6743
    %v7089 = vunpack.c.h.b16 %v6743
    %v7090 = vunpack.c.l.b16 %v6744
    %v7091 = vunpack.c.h.b16 %v6744
    %v7092 = vunpack.c.l.b16 %v6745
    %v7093 = vunpack.c.h.b16 %v6745
    %v7094 = vunpack.c.l.b16 %v6746
    %v7095 = vunpack.c.h.b16 %v6746
    %v7096 = vunpack.c.l.b16 %v6747
    %v7097 = vunpack.c.h.b16 %v6747
    %v7098 = vunpack.c.l.b16 %v6748
    %v7099 = vunpack.c.h.b16 %v6748
    %v7100 = vunpack.c.l.b16 %v6749
    %v7101 = vunpack.c.h.b16 %v6749
    %v7102 = vunpack.c.l.b16 %v6750
    %v7103 = vunpack.c.h.b16 %v6750
    %v7104 = vunpack.c.l.b16 %v6751
    %v7105 = vunpack.c.h.b16 %v6751
    %v7106 = vunpack.c.l.b16 %v6752
    %v7107 = vunpack.c.h.b16 %v6752
    %v7108 = vunpack.c.l.b16 %v6753
    %v7109 = vunpack.c.h.b16 %v6753
    %v7110 = vunpack.c.l.b16 %v6754
    %v7111 = vunpack.c.h.b16 %v6754
    %v7112 = vunpack.c.l.b16 %v6755
    %v7113 = vunpack.c.h.b16 %v6755
    %v7114 = vunpack.c.l.b16 %v6756
    %v7115 = vunpack.c.h.b16 %v6756
    %v7116 = vunpack.c.l.b16 %v6757
    %v7117 = vunpack.c.h.b16 %v6757
    %v7118 = vunpack.c.l.b16 %v6758
    %v7119 = vunpack.c.h.b16 %v6758
    %v7120 = vunpack.c.l.b16 %v6759
    %v7121 = vunpack.c.h.b16 %v6759
    %v7122 = vunpack.c.l.b16 %v6760
    %v7123 = vunpack.c.h.b16 %v6760
    %v7124 = vunpack.c.l.b16 %v6761
    %v7125 = vunpack.c.h.b16 %v6761
    %v7126 = vunpack.c.l.b16 %v6762
    %v7127 = vunpack.c.h.b16 %v6762
    %v7128 = vunpack.c.l.b16 %v6763
    %v7129 = vunpack.c.h.b16 %v6763
    %v7130 = vunpack.c.l.b16 %v6764
    %v7131 = vunpack.c.h.b16 %v6764
    %v7132 = vunpack.c.l.b16 %v6765
    %v7133 = vunpack.c.h.b16 %v6765
    %v7134 = vunpack.c.l.b16 %v6766
    %v7135 = vunpack.c.h.b16 %v6766
    %v7136 = vunpack.c.l.b16 %v6767
    %v7137 = vunpack.c.h.b16 %v6767
    %v7138 = vunpack.c.l.b16 %v6768
    %v7139 = vunpack.c.h.b16 %v6768
    %v7140 = vunpack.c.l.b16 %v6769
    %v7141 = vunpack.c.h.b16 %v6769
    %v7142 = vunpack.c.l.b16 %v6770
    %v7143 = vunpack.c.h.b16 %v6770
    %v7144 = vunpack.c.l.b16 %v6771
    %v7145 = vunpack.c.h.b16 %v6771
    %v7146 = vunpack.c.l.b16 %v6772
    %v7147 = vunpack.c.h.b16 %v6772
    %v7148 = vunpack.c.l.b16 %v6773
    %v7149 = vunpack.c.h.b16 %v6773
    %v7150 = vunpack.c.l.b16 %v6774
    %v7151 = vunpack.c.h.b16 %v6774
    %v7152 = vunpack.c.l.b16 %v6775
    %v7153 = vunpack.c.h.b16 %v6775
    %v7154 = vunpack.c.l.b16 %v6776
    %v7155 = vunpack.c.h.b16 %v6776
    %v7156 = vunpack.c.l.b16 %v6777
    %v7157 = vunpack.c.h.b16 %v6777
    %v7158 = vunpack.c.l.b16 %v6778
    %v7159 = vunpack.c.h.b16 %v6778
    %v7160 = vunpack.c.l.b16 %v6779
    %v7161 = vunpack.c.h.b16 %v6779
    %v7162 = vunpack.c.l.b16 %v6780
    %v7163 = vunpack.c.h.b16 %v6780
    %v7164 = vunpack.c.l.b16 %v6781
    %v7165 = vunpack.c.h.b16 %v6781
    %v7166 = vunpack.c.l.b16 %v6782
    %v7167 = vunpack.c.h.b16 %v6782
    %v7168 = vunpack.c.l.b16 %v6783
    %v7169 = vunpack.c.h.b16 %v6783
    %v7170 = vunpack.c.l.b16 %v6784
    %v7171 = vunpack.c.h.b16 %v6784
    %v7172 = vunpack.c.l.b16 %v6785
    %v7173 = vunpack.c.h.b16 %v6785
    %v7174 = vunpack.c.l.b16 %v6786
    %v7175 = vunpack.c.h.b16 %v6786
    %v7176 = vunpack.c.l.b16 %v6787
    %v7177 = vunpack.c.h.b16 %v6787
    %v7178 = vunpack.c.l.b16 %v6788
    %v7179 = vunpack.c.h.b16 %v6788
    %v7180 = vunpack.c.l.b16 %v6789
    %v7181 = vunpack.c.h.b16 %v6789
    %v7182 = vunpack.c.l.b16 %v6790
    %v7183 = vunpack.c.h.b16 %v6790
    %v7184 = vunpack.c.l.b16 %v6791
    %v7185 = vunpack.c.h.b16 %v6791
    %v7186 = vunpack.c.l.b16 %v6792
    %v7187 = vunpack.c.h.b16 %v6792
    %v7188 = vunpack.c.l.b16 %v6793
    %v7189 = vunpack.c.h.b16 %v6793
    %v7190 = vunpack.c.l.b16 %v6794
    %v7191 = vunpack.c.h.b16 %v6794
    %v7192 = vunpack.c.l.b16 %v6795
    %v7193 = vunpack.c.h.b16 %v6795
    %v7194 = vunpack.c.l.b16 %v6796
    %v7195 = vunpack.c.h.b16 %v6796
    %v7196 = vunpack.c.l.b16 %v6797
    %v7197 = vunpack.c.h.b16 %v6797
    %v7198 = vunpack.c.l.b16 %v6798
    %v7199 = vunpack.c.h.b16 %v6798
    %v7200 = vunpack.c.l.b16 %v6799
    %v7201 = vunpack.c.h.b16 %v6799
    %v7202 = vunpack.c.l.b16 %v6800
    %v7203 = vunpack.c.h.b16 %v6800
    %v7204 = vunpack.c.l.b16 %v6801
    %v7205 = vunpack.c.h.b16 %v6801
    %v7206 = vunpack.c.l.b16 %v6802
    %v7207 = vunpack.c.h.b16 %v6802
    %v7208 = vunpack.c.l.b16 %v6803
    %v7209 = vunpack.c.h.b16 %v6803
    %v7210 = vunpack.c.l.b16 %v6804
    %v7211 = vunpack.c.h.b16 %v6804
    %v7212 = vunpack.c.l.b16 %v6805
    %v7213 = vunpack.c.h.b16 %v6805
    %v7214 = vunpack.c.l.b16 %v6806
    %v7215 = vunpack.c.h.b16 %v6806
    %v7216 = vunpack.c.l.b16 %v6807
    %v7217 = vunpack.c.h.b16 %v6807
    %v7218 = vunpack.c.l.b16 %v6808
    %v7219 = vunpack.c.h.b16 %v6808
    %v7220 = vunpack.c.l.b16 %v6809
    %v7221 = vunpack.c.h.b16 %v6809
    %v7222 = vunpack.c.l.b16 %v6810
    %v7223 = vunpack.c.h.b16 %v6810
    %v7224 = vunpack.c.l.b16 %v6811
    %v7225 = vunpack.c.h.b16 %v6811
    %v7226 = vunpack.c.l.b16 %v6812
    %v7227 = vunpack.c.h.b16 %v6812
    %v7228 = vunpack.c.l.b16 %v6813
    %v7229 = vunpack.c.h.b16 %v6813
    %v7230 = vunpack.c.l.b16 %v6814
    %v7231 = vunpack.c.h.b16 %v6814
    %v7232 = vunpack.c.l.b16 %v6815
    %v7233 = vunpack.c.h.b16 %v6815
    %v7234 = vunpack.c.l.b16 %v6816
    %v7235 = vunpack.c.h.b16 %v6816
    %v7236 = vunpack.c.l.b16 %v6817
    %v7237 = vunpack.c.h.b16 %v6817
    %v7238 = vunpack.c.l.b16 %v6818
    %v7239 = vunpack.c.h.b16 %v6818
    %v7240 = vunpack.c.l.b16 %v6819
    %v7241 = vunpack.c.h.b16 %v6819
    %v7242 = vunpack.c.l.b16 %v6820
    %v7243 = vunpack.c.h.b16 %v6820
    %v7244 = vunpack.c.l.b16 %v6821
    %v7245 = vunpack.c.h.b16 %v6821
    %v7246 = vunpack.c.l.b16 %v6822
    %v7247 = vunpack.c.h.b16 %v6822
    %v7248 = vunpack.c.l.b16 %v6823
    %v7249 = vunpack.c.h.b16 %v6823
    %v7250 = vunpack.c.l.b16 %v6824
    %v7251 = vunpack.c.h.b16 %v6824
    %v7252 = vunpack.c.l.b16 %v6825
    %v7253 = vunpack.c.h.b16 %v6825
    %v7254 = vunpack.c.l.b16 %v6826
    %v7255 = vunpack.c.h.b16 %v6826
    %v7256 = vunpack.c.l.b16 %v6827
    %v7257 = vunpack.c.h.b16 %v6827
    %v7258 = vunpack.c.l.b16 %v6828
    %v7259 = vunpack.c.h.b16 %v6828
    %v7260 = vunpack.c.l.b16 %v6829
    %v7261 = vunpack.c.h.b16 %v6829
    %v7262 = vpack.c.b16 %v7010, %v7006
    %v7263 = vpack.c.b16 %v7011, %v7007
    %v7264 = vpack.c.b16 %v7012, %v7008
    %v7265 = vpack.c.b16 %v7013, %v7009
    %v7266 = vpack.c.b16 %v7018, %v7014
    %v7267 = vpack.c.b16 %v7019, %v7015
    %v7268 = vpack.c.b16 %v7020, %v7016
    %v7269 = vpack.c.b16 %v7021, %v7017
    %v7270 = vpack.c.b16 %v7026, %v7022
    %v7271 = vpack.c.b16 %v7027, %v7023
    %v7272 = vpack.c.b16 %v7028, %v7024
    %v7273 = vpack.c.b16 %v7029, %v7025
    %v7274 = vpack.c.b16 %v7034, %v7030
    %v7275 = vpack.c.b16 %v7035, %v7031
    %v7276 = vpack.c.b16 %v7036, %v7032
    %v7277 = vpack.c.b16 %v7037, %v7033
    %v7278 = vpack.c.b16 %v7042, %v7038
    %v7279 = vpack.c.b16 %v7043, %v7039
    %v7280 = vpack.c.b16 %v7044, %v7040
    %v7281 = vpack.c.b16 %v7045, %v7041
    %v7282 = vpack.c.b16 %v7050, %v7046
    %v7283 = vpack.c.b16 %v7051, %v7047
    %v7284 = vpack.c.b16 %v7052, %v7048
    %v7285 = vpack.c.b16 %v7053, %v7049
    %v7286 = vpack.c.b16 %v7058, %v7054
    %v7287 = vpack.c.b16 %v7059, %v7055
    %v7288 = vpack.c.b16 %v7060, %v7056
    %v7289 = vpack.c.b16 %v7061, %v7057
    %v7290 = vpack.c.b16 %v7066, %v7062
    %v7291 = vpack.c.b16 %v7067, %v7063
    %v7292 = vpack.c.b16 %v7068, %v7064
    %v7293 = vpack.c.b16 %v7069, %v7065
    %v7294 = vpack.c.b16 %v7074, %v7070
    %v7295 = vpack.c.b16 %v7075, %v7071
    %v7296 = vpack.c.b16 %v7076, %v7072
    %v7297 = vpack.c.b16 %v7077, %v7073
    %v7298 = vpack.c.b16 %v7082, %v7078
    %v7299 = vpack.c.b16 %v7083, %v7079
    %v7300 = vpack.c.b16 %v7084, %v7080
    %v7301 = vpack.c.b16 %v7085, %v7081
    %v7302 = vpack.c.b16 %v7090, %v7086
    %v7303 = vpack.c.b16 %v7091, %v7087
    %v7304 = vpack.c.b16 %v7092, %v7088
    %v7305 = vpack.c.b16 %v7093, %v7089
    %v7306 = vpack.c.b16 %v7098, %v7094
    %v7307 = vpack.c.b16 %v7099, %v7095
    %v7308 = vpack.c.b16 %v7100, %v7096
    %v7309 = vpack.c.b16 %v7101, %v7097
    %v7310 = vpack.c.b16 %v7106, %v7102
    %v7311 = vpack.c.b16 %v7107, %v7103
    %v7312 = vpack.c.b16 %v7108, %v7104
    %v7313 = vpack.c.b16 %v7109, %v7105
    %v7314 = vpack.c.b16 %v7114, %v7110
    %v7315 = vpack.c.b16 %v7115, %v7111
    %v7316 = vpack.c.b16 %v7116, %v7112
    %v7317 = vpack.c.b16 %v7117, %v7113
    %v7318 = vpack.c.b16 %v7122, %v7118
    %v7319 = vpack.c.b16 %v7123, %v7119
    %v7320 = vpack.c.b16 %v7124, %v7120
    %v7321 = vpack.c.b16 %v7125, %v7121
    %v7322 = vpack.c.b16 %v7130, %v7126
    %v7323 = vpack.c.b16 %v7131, %v7127
    %v7324 = vpack.c.b16 %v7132, %v7128
    %v7325 = vpack.c.b16 %v7133, %v7129
    %v7326 = vpack.c.b16 %v7138, %v7134
    %v7327 = vpack.c.b16 %v7139, %v7135
    %v7328 = vpack.c.b16 %v7140, %v7136
    %v7329 = vpack.c.b16 %v7141, %v7137
    %v7330 = vpack.c.b16 %v7146, %v7142
    %v7331 = vpack.c.b16 %v7147, %v7143
    %v7332 = vpack.c.b16 %v7148, %v7144
    %v7333 = vpack.c.b16 %v7149, %v7145
    %v7334 = vpack.c.b16 %v7154, %v7150
    %v7335 = vpack.c.b16 %v7155, %v7151
    %v7336 = vpack.c.b16 %v7156, %v7152
    %v7337 = vpack.c.b16 %v7157, %v7153
    %v7338 = vpack.c.b16 %v7162, %v7158
    %v7339 = vpack.c.b16 %v7163, %v7159
    %v7340 = vpack.c.b16 %v7164, %v7160
    %v7341 = vpack.c.b16 %v7165, %v7161
    %v7342 = vpack.c.b16 %v7170, %v7166
    %v7343 = vpack.c.b16 %v7171, %v7167
    %v7344 = vpack.c.b16 %v7172, %v7168
    %v7345 = vpack.c.b16 %v7173, %v7169
    %v7346 = vpack.c.b16 %v7178, %v7174
    %v7347 = vpack.c.b16 %v7179, %v7175
    %v7348 = vpack.c.b16 %v7180, %v7176
    %v7349 = vpack.c.b16 %v7181, %v7177
    %v7350 = vpack.c.b16 %v7186, %v7182
    %v7351 = vpack.c.b16 %v7187, %v7183
    %v7352 = vpack.c.b16 %v7188, %v7184
    %v7353 = vpack.c.b16 %v7189, %v7185
    %v7354 = vpack.c.b16 %v7194, %v7190
    %v7355 = vpack.c.b16 %v7195, %v7191
    %v7356 = vpack.c.b16 %v7196, %v7192
    %v7357 = vpack.c.b16 %v7197, %v7193
    %v7358 = vpack.c.b16 %v7202, %v7198
    %v7359 = vpack.c.b16 %v7203, %v7199
    %v7360 = vpack.c.b16 %v7204, %v7200
    %v7361 = vpack.c.b16 %v7205, %v7201
    %v7362 = vpack.c.b16 %v7210, %v7206
    %v7363 = vpack.c.b16 %v7211, %v7207
    %v7364 = vpack.c.b16 %v7212, %v7208
    %v7365 = vpack.c.b16 %v7213, %v7209
    %v7366 = vpack.c.b16 %v7218, %v7214
    %v7367 = vpack.c.b16 %v7219, %v7215
    %v7368 = vpack.c.b16 %v7220, %v7216
    %v7369 = vpack.c.b16 %v7221, %v7217
    %v7370 = vpack.c.b16 %v7226, %v7222
    %v7371 = vpack.c.b16 %v7227, %v7223
    %v7372 = vpack.c.b16 %v7228, %v7224
    %v7373 = vpack.c.b16 %v7229, %v7225
    %v7374 = vpack.c.b16 %v7234, %v7230
    %v7375 = vpack.c.b16 %v7235, %v7231
    %v7376 = vpack.c.b16 %v7236, %v7232
    %v7377 = vpack.c.b16 %v7237, %v7233
    %v7378 = vpack.c.b16 %v7242, %v7238
    %v7379 = vpack.c.b16 %v7243, %v7239
    %v7380 = vpack.c.b16 %v7244, %v7240
    %v7381 = vpack.c.b16 %v7245, %v7241
    %v7382 = vpack.c.b16 %v7250, %v7246
    %v7383 = vpack.c.b16 %v7251, %v7247
    %v7384 = vpack.c.b16 %v7252, %v7248
    %v7385 = vpack.c.b16 %v7253, %v7249
    %v7386 = vpack.c.b16 %v7258, %v7254
    %v7387 = vpack.c.b16 %v7259, %v7255
    %v7388 = vpack.c.b16 %v7260, %v7256
    %v7389 = vpack.c.b16 %v7261, %v7257
    %7518 = vmatprep.subr.bf16.mxu0 %v7263
    %7519 = vmatpush1.bf16.msra.mxu0 %v7262
    %7520 = vmatprep.subr.bf16.mxu0 %v7267
    %7521 = vmatpush1.bf16.msra.mxu0 %v7266
    %7522 = vmatprep.subr.bf16.mxu0 %v7271
    %7523 = vmatpush1.bf16.msra.mxu0 %v7270
    %7524 = vmatprep.subr.bf16.mxu0 %v7275
    %7525 = vmatpush1.bf16.msra.mxu0 %v7274
    %7526 = vmatprep.subr.bf16.mxu0 %v7279
    %7527 = vmatpush1.bf16.msra.mxu0 %v7278
    %7528 = vmatprep.subr.bf16.mxu0 %v7283
    %7529 = vmatpush1.bf16.msra.mxu0 %v7282
    %7530 = vmatprep.subr.bf16.mxu0 %v7287
    %7531 = vmatpush1.bf16.msra.mxu0 %v7286
    %7532 = vmatprep.subr.bf16.mxu0 %v7291
    %7533 = vmatpush1.bf16.msra.mxu0 %v7290
    %7534 = vmatprep.subr.bf16.mxu0 %v7295
    %7535 = vmatpush1.bf16.msra.mxu0 %v7294
    %7536 = vmatprep.subr.bf16.mxu0 %v7299
    %7537 = vmatpush1.bf16.msra.mxu0 %v7298
    %7538 = vmatprep.subr.bf16.mxu0 %v7303
    %7539 = vmatpush1.bf16.msra.mxu0 %v7302
    %7540 = vmatprep.subr.bf16.mxu0 %v7307
    %7541 = vmatpush1.bf16.msra.mxu0 %v7306
    %7542 = vmatprep.subr.bf16.mxu0 %v7311
    %7543 = vmatpush1.bf16.msra.mxu0 %v7310
    %7544 = vmatprep.subr.bf16.mxu0 %v7315
    %7545 = vmatpush1.bf16.msra.mxu0 %v7314
    %7546 = vmatprep.subr.bf16.mxu0 %v7319
    %7547 = vmatpush1.bf16.msra.mxu0 %v7318
    %7548 = vmatprep.subr.bf16.mxu0 %v7323
    %7549 = vmatpush1.bf16.msra.mxu0 %v7322
    %7550 = vmatprep.mubr.bf16.mxu0 %v6859
    %7551 = vmatmul.mubr.bf16.gmra.mrb[0].mxu0 %v6852
    %v7552 = vpop.f32.mrb[0].mxu0
    %v7553 = vadd.f32 0.0, %v7552
    %v7554 = vpop.f32.mrb[0].mxu0
    %v7555 = vadd.f32 0.0, %v7554
    %v7556 = vpop.f32.mrb[0].mxu0
    %v7557 = vadd.f32 0.0, %v7556
    %v7558 = vpop.f32.mrb[0].mxu0
    %v7559 = vadd.f32 0.0, %v7558
    %7560 = vdwg.mxu0
    %7561 = vmatprep.subr.bf16.mxu0 %v7327
    %7562 = vmatpush1.bf16.msra.mxu0 %v7326
    %7563 = vmatprep.subr.bf16.mxu0 %v7331
    %7564 = vmatpush1.bf16.msra.mxu0 %v7330
    %7565 = vmatprep.subr.bf16.mxu0 %v7335
    %7566 = vmatpush1.bf16.msra.mxu0 %v7334
    %7567 = vmatprep.subr.bf16.mxu0 %v7339
    %7568 = vmatpush1.bf16.msra.mxu0 %v7338
    %7569 = vmatprep.subr.bf16.mxu0 %v7343
    %7570 = vmatpush1.bf16.msra.mxu0 %v7342
    %7571 = vmatprep.subr.bf16.mxu0 %v7347
    %7572 = vmatpush1.bf16.msra.mxu0 %v7346
    %7573 = vmatprep.subr.bf16.mxu0 %v7351
    %7574 = vmatpush1.bf16.msra.mxu0 %v7350
    %7575 = vmatprep.subr.bf16.mxu0 %v7355
    %7576 = vmatpush1.bf16.msra.mxu0 %v7354
    %7577 = vmatprep.subr.bf16.mxu0 %v7359
    %7578 = vmatpush1.bf16.msra.mxu0 %v7358
    %7579 = vmatprep.subr.bf16.mxu0 %v7363
    %7580 = vmatpush1.bf16.msra.mxu0 %v7362
    %7581 = vmatprep.subr.bf16.mxu0 %v7367
    %7582 = vmatpush1.bf16.msra.mxu0 %v7366
    %7583 = vmatprep.subr.bf16.mxu0 %v7371
    %7584 = vmatpush1.bf16.msra.mxu0 %v7370
    %7585 = vmatprep.subr.bf16.mxu0 %v7375
    %7586 = vmatpush1.bf16.msra.mxu0 %v7374
    %7587 = vmatprep.subr.bf16.mxu0 %v7379
    %7588 = vmatpush1.bf16.msra.mxu0 %v7378
    %7589 = vmatprep.subr.bf16.mxu0 %v7383
    %7590 = vmatpush1.bf16.msra.mxu0 %v7382
    %7591 = vmatprep.subr.bf16.mxu0 %v7387
    %7592 = vmatpush1.bf16.msra.mxu0 %v7386
    %7593 = vmatprep.mubr.bf16.mxu0 %v6873
    %7594 = vmatmul.mubr.bf16.gmra.mrb[0].mxu0 %v6866
    %v7595 = vpop.f32.mrb[0].mxu0
    %v7596 = vadd.f32 %v7553, %v7595
    %v7597 = vpop.f32.mrb[0].mxu0
    %v7598 = vadd.f32 %v7555, %v7597
    %v7599 = vpop.f32.mrb[0].mxu0
    %v7600 = vadd.f32 %v7557, %v7599
    %v7601 = vpop.f32.mrb[0].mxu0
    %v7602 = vadd.f32 %v7559, %v7601
    %7603 = vdwg.mxu0
    %7604 = vmatprep.subr.bf16.mxu0 %v7265
    %7605 = vmatpush1.bf16.msra.mxu0 %v7264
    %7606 = vmatprep.subr.bf16.mxu0 %v7269
    %7607 = vmatpush1.bf16.msra.mxu0 %v7268
    %7608 = vmatprep.subr.bf16.mxu0 %v7273
    %7609 = vmatpush1.bf16.msra.mxu0 %v7272
    %7610 = vmatprep.subr.bf16.mxu0 %v7277
    %7611 = vmatpush1.bf16.msra.mxu0 %v7276
    %7612 = vmatprep.subr.bf16.mxu0 %v7281
    %7613 = vmatpush1.bf16.msra.mxu0 %v7280
    %7614 = vmatprep.subr.bf16.mxu0 %v7285
    %7615 = vmatpush1.bf16.msra.mxu0 %v7284
    %7616 = vmatprep.subr.bf16.mxu0 %v7289
    %7617 = vmatpush1.bf16.msra.mxu0 %v7288
    %7618 = vmatprep.subr.bf16.mxu0 %v7293
    %7619 = vmatpush1.bf16.msra.mxu0 %v7292
    %7620 = vmatprep.subr.bf16.mxu0 %v7297
    %7621 = vmatpush1.bf16.msra.mxu0 %v7296
    %7622 = vmatprep.subr.bf16.mxu0 %v7301
    %7623 = vmatpush1.bf16.msra.mxu0 %v7300
    %7624 = vmatprep.subr.bf16.mxu0 %v7305
    %7625 = vmatpush1.bf16.msra.mxu0 %v7304
    %7626 = vmatprep.subr.bf16.mxu0 %v7309
    %7627 = vmatpush1.bf16.msra.mxu0 %v7308
    %7628 = vmatprep.subr.bf16.mxu0 %v7313
    %7629 = vmatpush1.bf16.msra.mxu0 %v7312
    %7630 = vmatprep.subr.bf16.mxu0 %v7317
    %7631 = vmatpush1.bf16.msra.mxu0 %v7316
    %7632 = vmatprep.subr.bf16.mxu0 %v7321
    %7633 = vmatpush1.bf16.msra.mxu0 %v7320
    %7634 = vmatprep.subr.bf16.mxu0 %v7325
    %7635 = vmatpush1.bf16.msra.mxu0 %v7324
    %7636 = vmatprep.mubr.bf16.mxu0 %v6859
    %7637 = vmatmul.mubr.bf16.gmra.mrb[0].mxu0 %v6852
    %v7638 = vpop.f32.mrb[0].mxu0
    %v7639 = vadd.f32 0.0, %v7638
    %v7640 = vpop.f32.mrb[0].mxu0
    %v7641 = vadd.f32 0.0, %v7640
    %v7642 = vpop.f32.mrb[0].mxu0
    %v7643 = vadd.f32 0.0, %v7642
    %v7644 = vpop.f32.mrb[0].mxu0
    %v7645 = vadd.f32 0.0, %v7644
    %7646 = vdwg.mxu0
    %7647 = vmatprep.subr.bf16.mxu0 %v7329
    %7648 = vmatpush1.bf16.msra.mxu0 %v7328
    %7649 = vmatprep.subr.bf16.mxu0 %v7333
    %7650 = vmatpush1.bf16.msra.mxu0 %v7332
    %7651 = vmatprep.subr.bf16.mxu0 %v7337
    %7652 = vmatpush1.bf16.msra.mxu0 %v7336
    %7653 = vmatprep.subr.bf16.mxu0 %v7341
    %7654 = vmatpush1.bf16.msra.mxu0 %v7340
    %7655 = vmatprep.subr.bf16.mxu0 %v7345
    %7656 = vmatpush1.bf16.msra.mxu0 %v7344
    %7657 = vmatprep.subr.bf16.mxu0 %v7349
    %7658 = vmatpush1.bf16.msra.mxu0 %v7348
    %7659 = vmatprep.subr.bf16.mxu0 %v7353
    %7660 = vmatpush1.bf16.msra.mxu0 %v7352
    %7661 = vmatprep.subr.bf16.mxu0 %v7357
    %7662 = vmatpush1.bf16.msra.mxu0 %v7356
    %7663 = vmatprep.subr.bf16.mxu0 %v7361
    %7664 = vmatpush1.bf16.msra.mxu0 %v7360
    %7665 = vmatprep.subr.bf16.mxu0 %v7365
    %7666 = vmatpush1.bf16.msra.mxu0 %v7364
    %7667 = vmatprep.subr.bf16.mxu0 %v7369
    %7668 = vmatpush1.bf16.msra.mxu0 %v7368
    %7669 = vmatprep.subr.bf16.mxu0 %v7373
    %7670 = vmatpush1.bf16.msra.mxu0 %v7372
    %7671 = vmatprep.subr.bf16.mxu0 %v7377
    %7672 = vmatpush1.bf16.msra.mxu0 %v7376
    %7673 = vmatprep.subr.bf16.mxu0 %v7381
    %7674 = vmatpush1.bf16.msra.mxu0 %v7380
    %7675 = vmatprep.subr.bf16.mxu0 %v7385
    %7676 = vmatpush1.bf16.msra.mxu0 %v7384
    %7677 = vmatprep.subr.bf16.mxu0 %v7389
    %7678 = vmatpush1.bf16.msra.mxu0 %v7388
    %7679 = vmatprep.mubr.bf16.mxu0 %v6873
    %7680 = vmatmul.mubr.bf16.gmra.mrb[0].mxu0 %v6866
    %v7681 = vpop.f32.mrb[0].mxu0
    %v7682 = vadd.f32 %v7639, %v7681
    %v7683 = vpop.f32.mrb[0].mxu0
    %v7684 = vadd.f32 %v7641, %v7683
    %v7685 = vpop.f32.mrb[0].mxu0
    %v7686 = vadd.f32 %v7643, %v7685
    %v7687 = vpop.f32.mrb[0].mxu0
    %v7688 = vadd.f32 %v7645, %v7687
    %7689 = vdwg.mxu0
    %v7692 = vunpack.c.l.b16 %v6569
    %v7693 = vunpack.c.h.b16 %v6569
    %v7694 = vunpack.c.l.b16 %v6570
    %v7695 = vunpack.c.h.b16 %v6570
    %v7696 = vpack.c.b16 %v7692, %v6834
    %v7697 = vpack.c.b16 %v7693, %v6835
    %v7698 = vpack.c.b16 %v7694, %v6836
    %v7699 = vpack.c.b16 %v7695, %v6837
    %v7832 = vunpack.c.l.b16 %v6571
    %v7833 = vunpack.c.h.b16 %v6571
    %v7834 = vunpack.c.l.b16 %v6572
    %v7835 = vunpack.c.h.b16 %v6572
    %v7836 = vunpack.c.l.b16 %v6573
    %v7837 = vunpack.c.h.b16 %v6573
    %v7838 = vunpack.c.l.b16 %v6574
    %v7839 = vunpack.c.h.b16 %v6574
    %v7840 = vunpack.c.l.b16 %v6575
    %v7841 = vunpack.c.h.b16 %v6575
    %v7842 = vunpack.c.l.b16 %v6576
    %v7843 = vunpack.c.h.b16 %v6576
    %v7844 = vunpack.c.l.b16 %v6577
    %v7845 = vunpack.c.h.b16 %v6577
    %v7846 = vunpack.c.l.b16 %v6578
    %v7847 = vunpack.c.h.b16 %v6578
    %v7848 = vunpack.c.l.b16 %v6579
    %v7849 = vunpack.c.h.b16 %v6579
    %v7850 = vunpack.c.l.b16 %v6580
    %v7851 = vunpack.c.h.b16 %v6580
    %v7852 = vunpack.c.l.b16 %v6581
    %v7853 = vunpack.c.h.b16 %v6581
    %v7854 = vunpack.c.l.b16 %v6582
    %v7855 = vunpack.c.h.b16 %v6582
    %v7856 = vunpack.c.l.b16 %v6583
    %v7857 = vunpack.c.h.b16 %v6583
    %v7858 = vunpack.c.l.b16 %v6584
    %v7859 = vunpack.c.h.b16 %v6584
    %v7860 = vunpack.c.l.b16 %v6585
    %v7861 = vunpack.c.h.b16 %v6585
    %v7862 = vunpack.c.l.b16 %v6586
    %v7863 = vunpack.c.h.b16 %v6586
    %v7864 = vunpack.c.l.b16 %v6587
    %v7865 = vunpack.c.h.b16 %v6587
    %v7866 = vunpack.c.l.b16 %v6588
    %v7867 = vunpack.c.h.b16 %v6588
    %v7868 = vunpack.c.l.b16 %v6589
    %v7869 = vunpack.c.h.b16 %v6589
    %v7870 = vunpack.c.l.b16 %v6590
    %v7871 = vunpack.c.h.b16 %v6590
    %v7872 = vunpack.c.l.b16 %v6591
    %v7873 = vunpack.c.h.b16 %v6591
    %v7874 = vunpack.c.l.b16 %v6592
    %v7875 = vunpack.c.h.b16 %v6592
    %v7876 = vunpack.c.l.b16 %v6593
    %v7877 = vunpack.c.h.b16 %v6593
    %v7878 = vunpack.c.l.b16 %v6594
    %v7879 = vunpack.c.h.b16 %v6594
    %v7880 = vunpack.c.l.b16 %v6595
    %v7881 = vunpack.c.h.b16 %v6595
    %v7882 = vunpack.c.l.b16 %v6596
    %v7883 = vunpack.c.h.b16 %v6596
    %v7884 = vunpack.c.l.b16 %v6597
    %v7885 = vunpack.c.h.b16 %v6597
    %v7886 = vunpack.c.l.b16 %v6598
    %v7887 = vunpack.c.h.b16 %v6598
    %v7888 = vunpack.c.l.b16 %v6599
    %v7889 = vunpack.c.h.b16 %v6599
    %v7890 = vunpack.c.l.b16 %v6600
    %v7891 = vunpack.c.h.b16 %v6600
    %v7892 = vunpack.c.l.b16 %v6601
    %v7893 = vunpack.c.h.b16 %v6601
    %v7894 = vunpack.c.l.b16 %v6602
    %v7895 = vunpack.c.h.b16 %v6602
    %v7896 = vunpack.c.l.b16 %v6603
    %v7897 = vunpack.c.h.b16 %v6603
    %v7898 = vunpack.c.l.b16 %v6604
    %v7899 = vunpack.c.h.b16 %v6604
    %v7900 = vunpack.c.l.b16 %v6605
    %v7901 = vunpack.c.h.b16 %v6605
    %v7902 = vunpack.c.l.b16 %v6606
    %v7903 = vunpack.c.h.b16 %v6606
    %v7904 = vunpack.c.l.b16 %v6607
    %v7905 = vunpack.c.h.b16 %v6607
    %v7906 = vunpack.c.l.b16 %v6608
    %v7907 = vunpack.c.h.b16 %v6608
    %v7908 = vunpack.c.l.b16 %v6609
    %v7909 = vunpack.c.h.b16 %v6609
    %v7910 = vunpack.c.l.b16 %v6610
    %v7911 = vunpack.c.h.b16 %v6610
    %v7912 = vunpack.c.l.b16 %v6611
    %v7913 = vunpack.c.h.b16 %v6611
    %v7914 = vunpack.c.l.b16 %v6612
    %v7915 = vunpack.c.h.b16 %v6612
    %v7916 = vunpack.c.l.b16 %v6613
    %v7917 = vunpack.c.h.b16 %v6613
    %v7918 = vunpack.c.l.b16 %v6614
    %v7919 = vunpack.c.h.b16 %v6614
    %v7920 = vunpack.c.l.b16 %v6615
    %v7921 = vunpack.c.h.b16 %v6615
    %v7922 = vunpack.c.l.b16 %v6616
    %v7923 = vunpack.c.h.b16 %v6616
    %v7924 = vunpack.c.l.b16 %v6617
    %v7925 = vunpack.c.h.b16 %v6617
    %v7926 = vunpack.c.l.b16 %v6618
    %v7927 = vunpack.c.h.b16 %v6618
    %v7928 = vunpack.c.l.b16 %v6619
    %v7929 = vunpack.c.h.b16 %v6619
    %v7930 = vunpack.c.l.b16 %v6620
    %v7931 = vunpack.c.h.b16 %v6620
    %v7932 = vunpack.c.l.b16 %v6621
    %v7933 = vunpack.c.h.b16 %v6621
    %v7934 = vunpack.c.l.b16 %v6622
    %v7935 = vunpack.c.h.b16 %v6622
    %v7936 = vunpack.c.l.b16 %v6623
    %v7937 = vunpack.c.h.b16 %v6623
    %v7938 = vunpack.c.l.b16 %v6624
    %v7939 = vunpack.c.h.b16 %v6624
    %v7940 = vunpack.c.l.b16 %v6625
    %v7941 = vunpack.c.h.b16 %v6625
    %v7942 = vunpack.c.l.b16 %v6626
    %v7943 = vunpack.c.h.b16 %v6626
    %v7944 = vunpack.c.l.b16 %v6627
    %v7945 = vunpack.c.h.b16 %v6627
    %v7946 = vunpack.c.l.b16 %v6628
    %v7947 = vunpack.c.h.b16 %v6628
    %v7948 = vunpack.c.l.b16 %v6629
    %v7949 = vunpack.c.h.b16 %v6629
    %v7950 = vunpack.c.l.b16 %v6630
    %v7951 = vunpack.c.h.b16 %v6630
    %v7952 = vunpack.c.l.b16 %v6631
    %v7953 = vunpack.c.h.b16 %v6631
    %v7954 = vunpack.c.l.b16 %v6632
    %v7955 = vunpack.c.h.b16 %v6632
    %v7956 = vunpack.c.l.b16 %v6633
    %v7957 = vunpack.c.h.b16 %v6633
    %v7958 = vunpack.c.l.b16 %v6634
    %v7959 = vunpack.c.h.b16 %v6634
    %v7960 = vunpack.c.l.b16 %v6635
    %v7961 = vunpack.c.h.b16 %v6635
    %v7962 = vunpack.c.l.b16 %v6636
    %v7963 = vunpack.c.h.b16 %v6636
    %v7964 = vunpack.c.l.b16 %v6637
    %v7965 = vunpack.c.h.b16 %v6637
    %v7966 = vunpack.c.l.b16 %v6638
    %v7967 = vunpack.c.h.b16 %v6638
    %v7968 = vunpack.c.l.b16 %v6639
    %v7969 = vunpack.c.h.b16 %v6639
    %v7970 = vunpack.c.l.b16 %v6640
    %v7971 = vunpack.c.h.b16 %v6640
    %v7972 = vunpack.c.l.b16 %v6641
    %v7973 = vunpack.c.h.b16 %v6641
    %v7974 = vunpack.c.l.b16 %v6642
    %v7975 = vunpack.c.h.b16 %v6642
    %v7976 = vunpack.c.l.b16 %v6643
    %v7977 = vunpack.c.h.b16 %v6643
    %v7978 = vunpack.c.l.b16 %v6644
    %v7979 = vunpack.c.h.b16 %v6644
    %v7980 = vunpack.c.l.b16 %v6645
    %v7981 = vunpack.c.h.b16 %v6645
    %v7982 = vunpack.c.l.b16 %v6646
    %v7983 = vunpack.c.h.b16 %v6646
    %v7984 = vunpack.c.l.b16 %v6647
    %v7985 = vunpack.c.h.b16 %v6647
    %v7986 = vunpack.c.l.b16 %v6648
    %v7987 = vunpack.c.h.b16 %v6648
    %v7988 = vunpack.c.l.b16 %v6649
    %v7989 = vunpack.c.h.b16 %v6649
    %v7990 = vunpack.c.l.b16 %v6650
    %v7991 = vunpack.c.h.b16 %v6650
    %v7992 = vunpack.c.l.b16 %v6651
    %v7993 = vunpack.c.h.b16 %v6651
    %v7994 = vunpack.c.l.b16 %v6652
    %v7995 = vunpack.c.h.b16 %v6652
    %v7996 = vunpack.c.l.b16 %v6653
    %v7997 = vunpack.c.h.b16 %v6653
    %v7998 = vunpack.c.l.b16 %v6654
    %v7999 = vunpack.c.h.b16 %v6654
    %v8000 = vunpack.c.l.b16 %v6655
    %v8001 = vunpack.c.h.b16 %v6655
    %v8002 = vunpack.c.l.b16 %v6656
    %v8003 = vunpack.c.h.b16 %v6656
    %v8004 = vunpack.c.l.b16 %v6657
    %v8005 = vunpack.c.h.b16 %v6657
    %v8006 = vunpack.c.l.b16 %v6658
    %v8007 = vunpack.c.h.b16 %v6658
    %v8008 = vunpack.c.l.b16 %v6659
    %v8009 = vunpack.c.h.b16 %v6659
    %v8010 = vunpack.c.l.b16 %v6660
    %v8011 = vunpack.c.h.b16 %v6660
    %v8012 = vunpack.c.l.b16 %v6661
    %v8013 = vunpack.c.h.b16 %v6661
    %v8014 = vunpack.c.l.b16 %v6662
    %v8015 = vunpack.c.h.b16 %v6662
    %v8016 = vunpack.c.l.b16 %v6663
    %v8017 = vunpack.c.h.b16 %v6663
    %v8018 = vunpack.c.l.b16 %v6664
    %v8019 = vunpack.c.h.b16 %v6664
    %v8020 = vunpack.c.l.b16 %v6665
    %v8021 = vunpack.c.h.b16 %v6665
    %v8022 = vunpack.c.l.b16 %v6666
    %v8023 = vunpack.c.h.b16 %v6666
    %v8024 = vunpack.c.l.b16 %v6667
    %v8025 = vunpack.c.h.b16 %v6667
    %v8026 = vunpack.c.l.b16 %v6668
    %v8027 = vunpack.c.h.b16 %v6668
    %v8028 = vunpack.c.l.b16 %v6669
    %v8029 = vunpack.c.h.b16 %v6669
    %v8030 = vunpack.c.l.b16 %v6670
    %v8031 = vunpack.c.h.b16 %v6670
    %v8032 = vunpack.c.l.b16 %v6671
    %v8033 = vunpack.c.h.b16 %v6671
    %v8034 = vunpack.c.l.b16 %v6672
    %v8035 = vunpack.c.h.b16 %v6672
    %v8036 = vunpack.c.l.b16 %v6673
    %v8037 = vunpack.c.h.b16 %v6673
    %v8038 = vunpack.c.l.b16 %v6674
    %v8039 = vunpack.c.h.b16 %v6674
    %v8040 = vunpack.c.l.b16 %v6675
    %v8041 = vunpack.c.h.b16 %v6675
    %v8042 = vunpack.c.l.b16 %v6676
    %v8043 = vunpack.c.h.b16 %v6676
    %v8044 = vunpack.c.l.b16 %v6677
    %v8045 = vunpack.c.h.b16 %v6677
    %v8046 = vunpack.c.l.b16 %v6678
    %v8047 = vunpack.c.h.b16 %v6678
    %v8048 = vunpack.c.l.b16 %v6679
    %v8049 = vunpack.c.h.b16 %v6679
    %v8050 = vunpack.c.l.b16 %v6680
    %v8051 = vunpack.c.h.b16 %v6680
    %v8052 = vunpack.c.l.b16 %v6681
    %v8053 = vunpack.c.h.b16 %v6681
    %v8054 = vunpack.c.l.b16 %v6682
    %v8055 = vunpack.c.h.b16 %v6682
    %v8056 = vunpack.c.l.b16 %v6683
    %v8057 = vunpack.c.h.b16 %v6683
    %v8058 = vunpack.c.l.b16 %v6684
    %v8059 = vunpack.c.h.b16 %v6684
    %v8060 = vunpack.c.l.b16 %v6685
    %v8061 = vunpack.c.h.b16 %v6685
    %v8062 = vunpack.c.l.b16 %v6686
    %v8063 = vunpack.c.h.b16 %v6686
    %v8064 = vunpack.c.l.b16 %v6687
    %v8065 = vunpack.c.h.b16 %v6687
    %v8066 = vunpack.c.l.b16 %v6688
    %v8067 = vunpack.c.h.b16 %v6688
    %v8068 = vunpack.c.l.b16 %v6689
    %v8069 = vunpack.c.h.b16 %v6689
    %v8070 = vunpack.c.l.b16 %v6690
    %v8071 = vunpack.c.h.b16 %v6690
    %v8072 = vunpack.c.l.b16 %v6691
    %v8073 = vunpack.c.h.b16 %v6691
    %v8074 = vunpack.c.l.b16 %v6692
    %v8075 = vunpack.c.h.b16 %v6692
    %v8076 = vunpack.c.l.b16 %v6693
    %v8077 = vunpack.c.h.b16 %v6693
    %v8078 = vunpack.c.l.b16 %v6694
    %v8079 = vunpack.c.h.b16 %v6694
    %v8080 = vunpack.c.l.b16 %v6695
    %v8081 = vunpack.c.h.b16 %v6695
    %v8082 = vunpack.c.l.b16 %v6696
    %v8083 = vunpack.c.h.b16 %v6696
    %v8084 = vunpack.c.l.b16 %v6697
    %v8085 = vunpack.c.h.b16 %v6697
    %v8086 = vunpack.c.l.b16 %v6698
    %v8087 = vunpack.c.h.b16 %v6698
    %v8088 = vpack.c.b16 %v7836, %v7832
    %v8089 = vpack.c.b16 %v7837, %v7833
    %v8090 = vpack.c.b16 %v7838, %v7834
    %v8091 = vpack.c.b16 %v7839, %v7835
    %v8092 = vpack.c.b16 %v7844, %v7840
    %v8093 = vpack.c.b16 %v7845, %v7841
    %v8094 = vpack.c.b16 %v7846, %v7842
    %v8095 = vpack.c.b16 %v7847, %v7843
    %v8096 = vpack.c.b16 %v7852, %v7848
    %v8097 = vpack.c.b16 %v7853, %v7849
    %v8098 = vpack.c.b16 %v7854, %v7850
    %v8099 = vpack.c.b16 %v7855, %v7851
    %v8100 = vpack.c.b16 %v7860, %v7856
    %v8101 = vpack.c.b16 %v7861, %v7857
    %v8102 = vpack.c.b16 %v7862, %v7858
    %v8103 = vpack.c.b16 %v7863, %v7859
    %v8104 = vpack.c.b16 %v7868, %v7864
    %v8105 = vpack.c.b16 %v7869, %v7865
    %v8106 = vpack.c.b16 %v7870, %v7866
    %v8107 = vpack.c.b16 %v7871, %v7867
    %v8108 = vpack.c.b16 %v7876, %v7872
    %v8109 = vpack.c.b16 %v7877, %v7873
    %v8110 = vpack.c.b16 %v7878, %v7874
    %v8111 = vpack.c.b16 %v7879, %v7875
    %v8112 = vpack.c.b16 %v7884, %v7880
    %v8113 = vpack.c.b16 %v7885, %v7881
    %v8114 = vpack.c.b16 %v7886, %v7882
    %v8115 = vpack.c.b16 %v7887, %v7883
    %v8116 = vpack.c.b16 %v7892, %v7888
    %v8117 = vpack.c.b16 %v7893, %v7889
    %v8118 = vpack.c.b16 %v7894, %v7890
    %v8119 = vpack.c.b16 %v7895, %v7891
    %v8120 = vpack.c.b16 %v7900, %v7896
    %v8121 = vpack.c.b16 %v7901, %v7897
    %v8122 = vpack.c.b16 %v7902, %v7898
    %v8123 = vpack.c.b16 %v7903, %v7899
    %v8124 = vpack.c.b16 %v7908, %v7904
    %v8125 = vpack.c.b16 %v7909, %v7905
    %v8126 = vpack.c.b16 %v7910, %v7906
    %v8127 = vpack.c.b16 %v7911, %v7907
    %v8128 = vpack.c.b16 %v7916, %v7912
    %v8129 = vpack.c.b16 %v7917, %v7913
    %v8130 = vpack.c.b16 %v7918, %v7914
    %v8131 = vpack.c.b16 %v7919, %v7915
    %v8132 = vpack.c.b16 %v7924, %v7920
    %v8133 = vpack.c.b16 %v7925, %v7921
    %v8134 = vpack.c.b16 %v7926, %v7922
    %v8135 = vpack.c.b16 %v7927, %v7923
    %v8136 = vpack.c.b16 %v7932, %v7928
    %v8137 = vpack.c.b16 %v7933, %v7929
    %v8138 = vpack.c.b16 %v7934, %v7930
    %v8139 = vpack.c.b16 %v7935, %v7931
    %v8140 = vpack.c.b16 %v7940, %v7936
    %v8141 = vpack.c.b16 %v7941, %v7937
    %v8142 = vpack.c.b16 %v7942, %v7938
    %v8143 = vpack.c.b16 %v7943, %v7939
    %v8144 = vpack.c.b16 %v7948, %v7944
    %v8145 = vpack.c.b16 %v7949, %v7945
    %v8146 = vpack.c.b16 %v7950, %v7946
    %v8147 = vpack.c.b16 %v7951, %v7947
    %v8148 = vpack.c.b16 %v7956, %v7952
    %v8149 = vpack.c.b16 %v7957, %v7953
    %v8150 = vpack.c.b16 %v7958, %v7954
    %v8151 = vpack.c.b16 %v7959, %v7955
    %v8152 = vpack.c.b16 %v7964, %v7960
    %v8153 = vpack.c.b16 %v7965, %v7961
    %v8154 = vpack.c.b16 %v7966, %v7962
    %v8155 = vpack.c.b16 %v7967, %v7963
    %v8156 = vpack.c.b16 %v7972, %v7968
    %v8157 = vpack.c.b16 %v7973, %v7969
    %v8158 = vpack.c.b16 %v7974, %v7970
    %v8159 = vpack.c.b16 %v7975, %v7971
    %v8160 = vpack.c.b16 %v7980, %v7976
    %v8161 = vpack.c.b16 %v7981, %v7977
    %v8162 = vpack.c.b16 %v7982, %v7978
    %v8163 = vpack.c.b16 %v7983, %v7979
    %v8164 = vpack.c.b16 %v7988, %v7984
    %v8165 = vpack.c.b16 %v7989, %v7985
    %v8166 = vpack.c.b16 %v7990, %v7986
    %v8167 = vpack.c.b16 %v7991, %v7987
    %v8168 = vpack.c.b16 %v7996, %v7992
    %v8169 = vpack.c.b16 %v7997, %v7993
    %v8170 = vpack.c.b16 %v7998, %v7994
    %v8171 = vpack.c.b16 %v7999, %v7995
    %v8172 = vpack.c.b16 %v8004, %v8000
    %v8173 = vpack.c.b16 %v8005, %v8001
    %v8174 = vpack.c.b16 %v8006, %v8002
    %v8175 = vpack.c.b16 %v8007, %v8003
    %v8176 = vpack.c.b16 %v8012, %v8008
    %v8177 = vpack.c.b16 %v8013, %v8009
    %v8178 = vpack.c.b16 %v8014, %v8010
    %v8179 = vpack.c.b16 %v8015, %v8011
    %v8180 = vpack.c.b16 %v8020, %v8016
    %v8181 = vpack.c.b16 %v8021, %v8017
    %v8182 = vpack.c.b16 %v8022, %v8018
    %v8183 = vpack.c.b16 %v8023, %v8019
    %v8184 = vpack.c.b16 %v8028, %v8024
    %v8185 = vpack.c.b16 %v8029, %v8025
    %v8186 = vpack.c.b16 %v8030, %v8026
    %v8187 = vpack.c.b16 %v8031, %v8027
    %v8188 = vpack.c.b16 %v8036, %v8032
    %v8189 = vpack.c.b16 %v8037, %v8033
    %v8190 = vpack.c.b16 %v8038, %v8034
    %v8191 = vpack.c.b16 %v8039, %v8035
    %v8192 = vpack.c.b16 %v8044, %v8040
    %v8193 = vpack.c.b16 %v8045, %v8041
    %v8194 = vpack.c.b16 %v8046, %v8042
    %v8195 = vpack.c.b16 %v8047, %v8043
    %v8196 = vpack.c.b16 %v8052, %v8048
    %v8197 = vpack.c.b16 %v8053, %v8049
    %v8198 = vpack.c.b16 %v8054, %v8050
    %v8199 = vpack.c.b16 %v8055, %v8051
    %v8200 = vpack.c.b16 %v8060, %v8056
    %v8201 = vpack.c.b16 %v8061, %v8057
    %v8202 = vpack.c.b16 %v8062, %v8058
    %v8203 = vpack.c.b16 %v8063, %v8059
    %v8204 = vpack.c.b16 %v8068, %v8064
    %v8205 = vpack.c.b16 %v8069, %v8065
    %v8206 = vpack.c.b16 %v8070, %v8066
    %v8207 = vpack.c.b16 %v8071, %v8067
    %v8208 = vpack.c.b16 %v8076, %v8072
    %v8209 = vpack.c.b16 %v8077, %v8073
    %v8210 = vpack.c.b16 %v8078, %v8074
    %v8211 = vpack.c.b16 %v8079, %v8075
    %v8212 = vpack.c.b16 %v8084, %v8080
    %v8213 = vpack.c.b16 %v8085, %v8081
    %v8214 = vpack.c.b16 %v8086, %v8082
    %v8215 = vpack.c.b16 %v8087, %v8083
    %8344 = vmatprep.subr.bf16.mxu0 %v8089
    %8345 = vmatpush1.bf16.msra.mxu0 %v8088
    %8346 = vmatprep.subr.bf16.mxu0 %v8093
    %8347 = vmatpush1.bf16.msra.mxu0 %v8092
    %8348 = vmatprep.subr.bf16.mxu0 %v8097
    %8349 = vmatpush1.bf16.msra.mxu0 %v8096
    %8350 = vmatprep.subr.bf16.mxu0 %v8101
    %8351 = vmatpush1.bf16.msra.mxu0 %v8100
    %8352 = vmatprep.subr.bf16.mxu0 %v8105
    %8353 = vmatpush1.bf16.msra.mxu0 %v8104
    %8354 = vmatprep.subr.bf16.mxu0 %v8109
    %8355 = vmatpush1.bf16.msra.mxu0 %v8108
    %8356 = vmatprep.subr.bf16.mxu0 %v8113
    %8357 = vmatpush1.bf16.msra.mxu0 %v8112
    %8358 = vmatprep.subr.bf16.mxu0 %v8117
    %8359 = vmatpush1.bf16.msra.mxu0 %v8116
    %8360 = vmatprep.subr.bf16.mxu0 %v8121
    %8361 = vmatpush1.bf16.msra.mxu0 %v8120
    %8362 = vmatprep.subr.bf16.mxu0 %v8125
    %8363 = vmatpush1.bf16.msra.mxu0 %v8124
    %8364 = vmatprep.subr.bf16.mxu0 %v8129
    %8365 = vmatpush1.bf16.msra.mxu0 %v8128
    %8366 = vmatprep.subr.bf16.mxu0 %v8133
    %8367 = vmatpush1.bf16.msra.mxu0 %v8132
    %8368 = vmatprep.subr.bf16.mxu0 %v8137
    %8369 = vmatpush1.bf16.msra.mxu0 %v8136
    %8370 = vmatprep.subr.bf16.mxu0 %v8141
    %8371 = vmatpush1.bf16.msra.mxu0 %v8140
    %8372 = vmatprep.subr.bf16.mxu0 %v8145
    %8373 = vmatpush1.bf16.msra.mxu0 %v8144
    %8374 = vmatprep.subr.bf16.mxu0 %v8149
    %8375 = vmatpush1.bf16.msra.mxu0 %v8148
    %8376 = vmatprep.mubr.bf16.mxu0 %v7697
    %8377 = vmatmul.mubr.bf16.gmra.mrb[0].mxu0 %v7696
    %v8378 = vpop.f32.mrb[0].mxu0
    %v8379 = vadd.f32 %v7596, %v8378
    %v8380 = vpop.f32.mrb[0].mxu0
    %v8381 = vadd.f32 %v7598, %v8380
    %v8382 = vpop.f32.mrb[0].mxu0
    %v8383 = vadd.f32 %v7600, %v8382
    %v8384 = vpop.f32.mrb[0].mxu0
    %v8385 = vadd.f32 %v7602, %v8384
    %8386 = vdwg.mxu0
    %8387 = vmatprep.subr.bf16.mxu0 %v8153
    %8388 = vmatpush1.bf16.msra.mxu0 %v8152
    %8389 = vmatprep.subr.bf16.mxu0 %v8157
    %8390 = vmatpush1.bf16.msra.mxu0 %v8156
    %8391 = vmatprep.subr.bf16.mxu0 %v8161
    %8392 = vmatpush1.bf16.msra.mxu0 %v8160
    %8393 = vmatprep.subr.bf16.mxu0 %v8165
    %8394 = vmatpush1.bf16.msra.mxu0 %v8164
    %8395 = vmatprep.subr.bf16.mxu0 %v8169
    %8396 = vmatpush1.bf16.msra.mxu0 %v8168
    %8397 = vmatprep.subr.bf16.mxu0 %v8173
    %8398 = vmatpush1.bf16.msra.mxu0 %v8172
    %8399 = vmatprep.subr.bf16.mxu0 %v8177
    %8400 = vmatpush1.bf16.msra.mxu0 %v8176
    %8401 = vmatprep.subr.bf16.mxu0 %v8181
    %8402 = vmatpush1.bf16.msra.mxu0 %v8180
    %8403 = vmatprep.subr.bf16.mxu0 %v8185
    %8404 = vmatpush1.bf16.msra.mxu0 %v8184
    %8405 = vmatprep.subr.bf16.mxu0 %v8189
    %8406 = vmatpush1.bf16.msra.mxu0 %v8188
    %8407 = vmatprep.subr.bf16.mxu0 %v8193
    %8408 = vmatpush1.bf16.msra.mxu0 %v8192
    %8409 = vmatprep.subr.bf16.mxu0 %v8197
    %8410 = vmatpush1.bf16.msra.mxu0 %v8196
    %8411 = vmatprep.subr.bf16.mxu0 %v8201
    %8412 = vmatpush1.bf16.msra.mxu0 %v8200
    %8413 = vmatprep.subr.bf16.mxu0 %v8205
    %8414 = vmatpush1.bf16.msra.mxu0 %v8204
    %8415 = vmatprep.subr.bf16.mxu0 %v8209
    %8416 = vmatpush1.bf16.msra.mxu0 %v8208
    %8417 = vmatprep.subr.bf16.mxu0 %v8213
    %8418 = vmatpush1.bf16.msra.mxu0 %v8212
    %8419 = vmatprep.mubr.bf16.mxu0 %v7699
    %8420 = vmatmul.mubr.bf16.gmra.mrb[0].mxu0 %v7698
    %v8421 = vpop.f32.mrb[0].mxu0
    %v8422 = vadd.f32 %v8379, %v8421
    %v8423 = vpop.f32.mrb[0].mxu0
    %v8424 = vadd.f32 %v8381, %v8423
    %v8425 = vpop.f32.mrb[0].mxu0
    %v8426 = vadd.f32 %v8383, %v8425
    %v8427 = vpop.f32.mrb[0].mxu0
    %v8428 = vadd.f32 %v8385, %v8427
    %8429 = vdwg.mxu0
    %8430 = vmatprep.subr.bf16.mxu0 %v8091
    %8431 = vmatpush1.bf16.msra.mxu0 %v8090
    %8432 = vmatprep.subr.bf16.mxu0 %v8095
    %8433 = vmatpush1.bf16.msra.mxu0 %v8094
    %8434 = vmatprep.subr.bf16.mxu0 %v8099
    %8435 = vmatpush1.bf16.msra.mxu0 %v8098
    %8436 = vmatprep.subr.bf16.mxu0 %v8103
    %8437 = vmatpush1.bf16.msra.mxu0 %v8102
    %8438 = vmatprep.subr.bf16.mxu0 %v8107
    %8439 = vmatpush1.bf16.msra.mxu0 %v8106
    %8440 = vmatprep.subr.bf16.mxu0 %v8111
    %8441 = vmatpush1.bf16.msra.mxu0 %v8110
    %8442 = vmatprep.subr.bf16.mxu0 %v8115
    %8443 = vmatpush1.bf16.msra.mxu0 %v8114
    %8444 = vmatprep.subr.bf16.mxu0 %v8119
    %8445 = vmatpush1.bf16.msra.mxu0 %v8118
    %8446 = vmatprep.subr.bf16.mxu0 %v8123
    %8447 = vmatpush1.bf16.msra.mxu0 %v8122
    %8448 = vmatprep.subr.bf16.mxu0 %v8127
    %8449 = vmatpush1.bf16.msra.mxu0 %v8126
    %8450 = vmatprep.subr.bf16.mxu0 %v8131
    %8451 = vmatpush1.bf16.msra.mxu0 %v8130
    %8452 = vmatprep.subr.bf16.mxu0 %v8135
    %8453 = vmatpush1.bf16.msra.mxu0 %v8134
    %8454 = vmatprep.subr.bf16.mxu0 %v8139
    %8455 = vmatpush1.bf16.msra.mxu0 %v8138
    %8456 = vmatprep.subr.bf16.mxu0 %v8143
    %8457 = vmatpush1.bf16.msra.mxu0 %v8142
    %8458 = vmatprep.subr.bf16.mxu0 %v8147
    %8459 = vmatpush1.bf16.msra.mxu0 %v8146
    %8460 = vmatprep.subr.bf16.mxu0 %v8151
    %8461 = vmatpush1.bf16.msra.mxu0 %v8150
    %8462 = vmatprep.mubr.bf16.mxu0 %v7697
    %8463 = vmatmul.mubr.bf16.gmra.mrb[0].mxu0 %v7696
    %v8464 = vpop.f32.mrb[0].mxu0
    %v8465 = vadd.f32 %v7682, %v8464
    %v8466 = vpop.f32.mrb[0].mxu0
    %v8467 = vadd.f32 %v7684, %v8466
    %v8468 = vpop.f32.mrb[0].mxu0
    %v8469 = vadd.f32 %v7686, %v8468
    %v8470 = vpop.f32.mrb[0].mxu0
    %v8471 = vadd.f32 %v7688, %v8470
    %8472 = vdwg.mxu0
    %8473 = vmatprep.subr.bf16.mxu0 %v8155
    %8474 = vmatpush1.bf16.msra.mxu0 %v8154
    %8475 = vmatprep.subr.bf16.mxu0 %v8159
    %8476 = vmatpush1.bf16.msra.mxu0 %v8158
    %8477 = vmatprep.subr.bf16.mxu0 %v8163
    %8478 = vmatpush1.bf16.msra.mxu0 %v8162
    %8479 = vmatprep.subr.bf16.mxu0 %v8167
    %8480 = vmatpush1.bf16.msra.mxu0 %v8166
    %8481 = vmatprep.subr.bf16.mxu0 %v8171
    %8482 = vmatpush1.bf16.msra.mxu0 %v8170
    %8483 = vmatprep.subr.bf16.mxu0 %v8175
    %8484 = vmatpush1.bf16.msra.mxu0 %v8174
    %8485 = vmatprep.subr.bf16.mxu0 %v8179
    %8486 = vmatpush1.bf16.msra.mxu0 %v8178
    %8487 = vmatprep.subr.bf16.mxu0 %v8183
    %8488 = vmatpush1.bf16.msra.mxu0 %v8182
    %8489 = vmatprep.subr.bf16.mxu0 %v8187
    %8490 = vmatpush1.bf16.msra.mxu0 %v8186
    %8491 = vmatprep.subr.bf16.mxu0 %v8191
    %8492 = vmatpush1.bf16.msra.mxu0 %v8190
    %8493 = vmatprep.subr.bf16.mxu0 %v8195
    %8494 = vmatpush1.bf16.msra.mxu0 %v8194
    %8495 = vmatprep.subr.bf16.mxu0 %v8199
    %8496 = vmatpush1.bf16.msra.mxu0 %v8198
    %8497 = vmatprep.subr.bf16.mxu0 %v8203
    %8498 = vmatpush1.bf16.msra.mxu0 %v8202
    %8499 = vmatprep.subr.bf16.mxu0 %v8207
    %8500 = vmatpush1.bf16.msra.mxu0 %v8206
    %8501 = vmatprep.subr.bf16.mxu0 %v8211
    %8502 = vmatpush1.bf16.msra.mxu0 %v8210
    %8503 = vmatprep.subr.bf16.mxu0 %v8215
    %8504 = vmatpush1.bf16.msra.mxu0 %v8214
    %8505 = vmatprep.mubr.bf16.mxu0 %v7699
    %8506 = vmatmul.mubr.bf16.gmra.mrb[0].mxu0 %v7698
    %v8507 = vpop.f32.mrb[0].mxu0
    %v8508 = vadd.f32 %v8465, %v8507
    %v8509 = vpop.f32.mrb[0].mxu0
    %v8510 = vadd.f32 %v8467, %v8509
    %v8511 = vpop.f32.mrb[0].mxu0
    %v8512 = vadd.f32 %v8469, %v8511
    %v8513 = vpop.f32.mrb[0].mxu0
    %v8514 = vadd.f32 %v8471, %v8513
    %8515 = vdwg.mxu0
    %v8516 = vld [vmem:[#allocation4] sm:$0xee]
    %v8517 = vld [vmem:[#allocation4 + $0x8] sm:$0xee]
    %s8518 = scalar_lea.vmem [#allocation13], 2048
    %v8519 = vld [vmem:[%s8518] sm:$0xff]
    %v8520 = vld [vmem:[%s8518 + $0x8] sm:$0xff]
    %v8521 = vld [vmem:[%s8518 + $0x10] sm:$0xff]
    %v8522 = vld [vmem:[%s8518 + $0x18] sm:$0xff]
    %v8523 = vld [vmem:[%s8518 + $0x20] sm:$0xff]
    %v8524 = vld [vmem:[%s8518 + $0x28] sm:$0xff]
    %v8525 = vld [vmem:[%s8518 + $0x30] sm:$0xff]
    %v8526 = vld [vmem:[%s8518 + $0x38] sm:$0xff]
    %v8527 = vld [vmem:[%s8518 + $0x40] sm:$0xff]
    %v8528 = vld [vmem:[%s8518 + $0x48] sm:$0xff]
    %v8529 = vld [vmem:[%s8518 + $0x50] sm:$0xff]
    %v8530 = vld [vmem:[%s8518 + $0x58] sm:$0xff]
    %v8531 = vld [vmem:[%s8518 + $0x60] sm:$0xff]
    %v8532 = vld [vmem:[%s8518 + $0x68] sm:$0xff]
    %v8533 = vld [vmem:[%s8518 + $0x70] sm:$0xff]
    %v8534 = vld [vmem:[%s8518 + $0x78] sm:$0xff]
    %v8535 = vld [vmem:[%s8518 + $0x80] sm:$0xff]
    %v8536 = vld [vmem:[%s8518 + $0x88] sm:$0xff]
    %v8537 = vld [vmem:[%s8518 + $0x90] sm:$0xff]
    %v8538 = vld [vmem:[%s8518 + $0x98] sm:$0xff]
    %v8539 = vld [vmem:[%s8518 + $0xa0] sm:$0xff]
    %v8540 = vld [vmem:[%s8518 + $0xa8] sm:$0xff]
    %v8541 = vld [vmem:[%s8518 + $0xb0] sm:$0xff]
    %v8542 = vld [vmem:[%s8518 + $0xb8] sm:$0xff]
    %v8543 = vld [vmem:[%s8518 + $0xc0] sm:$0xff]
    %v8544 = vld [vmem:[%s8518 + $0xc8] sm:$0xff]
    %v8545 = vld [vmem:[%s8518 + $0xd0] sm:$0xff]
    %v8546 = vld [vmem:[%s8518 + $0xd8] sm:$0xff]
    %v8547 = vld [vmem:[%s8518 + $0xe0] sm:$0xff]
    %v8548 = vld [vmem:[%s8518 + $0xe8] sm:$0xff]
    %v8549 = vld [vmem:[%s8518 + $0xf0] sm:$0xff]
    %v8550 = vld [vmem:[%s8518 + $0xf8] sm:$0xff]
    %v8551 = vld [vmem:[%s8518 + $0x100] sm:$0xff]
    %v8552 = vld [vmem:[%s8518 + $0x108] sm:$0xff]
    %v8553 = vld [vmem:[%s8518 + $0x110] sm:$0xff]
    %v8554 = vld [vmem:[%s8518 + $0x118] sm:$0xff]
    %v8555 = vld [vmem:[%s8518 + $0x120] sm:$0xff]
    %v8556 = vld [vmem:[%s8518 + $0x128] sm:$0xff]
    %v8557 = vld [vmem:[%s8518 + $0x130] sm:$0xff]
    %v8558 = vld [vmem:[%s8518 + $0x138] sm:$0xff]
    %v8559 = vld [vmem:[%s8518 + $0x140] sm:$0xff]
    %v8560 = vld [vmem:[%s8518 + $0x148] sm:$0xff]
    %v8561 = vld [vmem:[%s8518 + $0x150] sm:$0xff]
    %v8562 = vld [vmem:[%s8518 + $0x158] sm:$0xff]
    %v8563 = vld [vmem:[%s8518 + $0x160] sm:$0xff]
    %v8564 = vld [vmem:[%s8518 + $0x168] sm:$0xff]
    %v8565 = vld [vmem:[%s8518 + $0x170] sm:$0xff]
    %v8566 = vld [vmem:[%s8518 + $0x178] sm:$0xff]
    %v8567 = vld [vmem:[%s8518 + $0x180] sm:$0xff]
    %v8568 = vld [vmem:[%s8518 + $0x188] sm:$0xff]
    %v8569 = vld [vmem:[%s8518 + $0x190] sm:$0xff]
    %v8570 = vld [vmem:[%s8518 + $0x198] sm:$0xff]
    %v8571 = vld [vmem:[%s8518 + $0x1a0] sm:$0xff]
    %v8572 = vld [vmem:[%s8518 + $0x1a8] sm:$0xff]
    %v8573 = vld [vmem:[%s8518 + $0x1b0] sm:$0xff]
    %v8574 = vld [vmem:[%s8518 + $0x1b8] sm:$0xff]
    %v8575 = vld [vmem:[%s8518 + $0x1c0] sm:$0xff]
    %v8576 = vld [vmem:[%s8518 + $0x1c8] sm:$0xff]
    %v8577 = vld [vmem:[%s8518 + $0x1d0] sm:$0xff]
    %v8578 = vld [vmem:[%s8518 + $0x1d8] sm:$0xff]
    %v8579 = vld [vmem:[%s8518 + $0x1e0] sm:$0xff]
    %v8580 = vld [vmem:[%s8518 + $0x1e8] sm:$0xff]
    %v8581 = vld [vmem:[%s8518 + $0x1f0] sm:$0xff]
    %v8582 = vld [vmem:[%s8518 + $0x1f8] sm:$0xff]
    %v8583 = vld [vmem:[%s8518 + $0x200] sm:$0xff]
    %v8584 = vld [vmem:[%s8518 + $0x208] sm:$0xff]
    %v8585 = vld [vmem:[%s8518 + $0x210] sm:$0xff]
    %v8586 = vld [vmem:[%s8518 + $0x218] sm:$0xff]
    %v8587 = vld [vmem:[%s8518 + $0x220] sm:$0xff]
    %v8588 = vld [vmem:[%s8518 + $0x228] sm:$0xff]
    %v8589 = vld [vmem:[%s8518 + $0x230] sm:$0xff]
    %v8590 = vld [vmem:[%s8518 + $0x238] sm:$0xff]
    %v8591 = vld [vmem:[%s8518 + $0x240] sm:$0xff]
    %v8592 = vld [vmem:[%s8518 + $0x248] sm:$0xff]
    %v8593 = vld [vmem:[%s8518 + $0x250] sm:$0xff]
    %v8594 = vld [vmem:[%s8518 + $0x258] sm:$0xff]
    %v8595 = vld [vmem:[%s8518 + $0x260] sm:$0xff]
    %v8596 = vld [vmem:[%s8518 + $0x268] sm:$0xff]
    %v8597 = vld [vmem:[%s8518 + $0x270] sm:$0xff]
    %v8598 = vld [vmem:[%s8518 + $0x278] sm:$0xff]
    %v8599 = vld [vmem:[%s8518 + $0x280] sm:$0xff]
    %v8600 = vld [vmem:[%s8518 + $0x288] sm:$0xff]
    %v8601 = vld [vmem:[%s8518 + $0x290] sm:$0xff]
    %v8602 = vld [vmem:[%s8518 + $0x298] sm:$0xff]
    %v8603 = vld [vmem:[%s8518 + $0x2a0] sm:$0xff]
    %v8604 = vld [vmem:[%s8518 + $0x2a8] sm:$0xff]
    %v8605 = vld [vmem:[%s8518 + $0x2b0] sm:$0xff]
    %v8606 = vld [vmem:[%s8518 + $0x2b8] sm:$0xff]
    %v8607 = vld [vmem:[%s8518 + $0x2c0] sm:$0xff]
    %v8608 = vld [vmem:[%s8518 + $0x2c8] sm:$0xff]
    %v8609 = vld [vmem:[%s8518 + $0x2d0] sm:$0xff]
    %v8610 = vld [vmem:[%s8518 + $0x2d8] sm:$0xff]
    %v8611 = vld [vmem:[%s8518 + $0x2e0] sm:$0xff]
    %v8612 = vld [vmem:[%s8518 + $0x2e8] sm:$0xff]
    %v8613 = vld [vmem:[%s8518 + $0x2f0] sm:$0xff]
    %v8614 = vld [vmem:[%s8518 + $0x2f8] sm:$0xff]
    %v8615 = vld [vmem:[%s8518 + $0x300] sm:$0xff]
    %v8616 = vld [vmem:[%s8518 + $0x308] sm:$0xff]
    %v8617 = vld [vmem:[%s8518 + $0x310] sm:$0xff]
    %v8618 = vld [vmem:[%s8518 + $0x318] sm:$0xff]
    %v8619 = vld [vmem:[%s8518 + $0x320] sm:$0xff]
    %v8620 = vld [vmem:[%s8518 + $0x328] sm:$0xff]
    %v8621 = vld [vmem:[%s8518 + $0x330] sm:$0xff]
    %v8622 = vld [vmem:[%s8518 + $0x338] sm:$0xff]
    %v8623 = vld [vmem:[%s8518 + $0x340] sm:$0xff]
    %v8624 = vld [vmem:[%s8518 + $0x348] sm:$0xff]
    %v8625 = vld [vmem:[%s8518 + $0x350] sm:$0xff]
    %v8626 = vld [vmem:[%s8518 + $0x358] sm:$0xff]
    %v8627 = vld [vmem:[%s8518 + $0x360] sm:$0xff]
    %v8628 = vld [vmem:[%s8518 + $0x368] sm:$0xff]
    %v8629 = vld [vmem:[%s8518 + $0x370] sm:$0xff]
    %v8630 = vld [vmem:[%s8518 + $0x378] sm:$0xff]
    %v8631 = vld [vmem:[%s8518 + $0x380] sm:$0xff]
    %v8632 = vld [vmem:[%s8518 + $0x388] sm:$0xff]
    %v8633 = vld [vmem:[%s8518 + $0x390] sm:$0xff]
    %v8634 = vld [vmem:[%s8518 + $0x398] sm:$0xff]
    %v8635 = vld [vmem:[%s8518 + $0x3a0] sm:$0xff]
    %v8636 = vld [vmem:[%s8518 + $0x3a8] sm:$0xff]
    %v8637 = vld [vmem:[%s8518 + $0x3b0] sm:$0xff]
    %v8638 = vld [vmem:[%s8518 + $0x3b8] sm:$0xff]
    %v8639 = vld [vmem:[%s8518 + $0x3c0] sm:$0xff]
    %v8640 = vld [vmem:[%s8518 + $0x3c8] sm:$0xff]
    %v8641 = vld [vmem:[%s8518 + $0x3d0] sm:$0xff]
    %v8642 = vld [vmem:[%s8518 + $0x3d8] sm:$0xff]
    %v8643 = vld [vmem:[%s8518 + $0x3e0] sm:$0xff]
    %v8644 = vld [vmem:[%s8518 + $0x3e8] sm:$0xff]
    %v8645 = vld [vmem:[%s8518 + $0x3f0] sm:$0xff]
    %v8646 = vld [vmem:[%s8518 + $0x3f8] sm:$0xff]
    %v8649 = vunpack.c.l.b16 %v8516
    %v8650 = vunpack.c.h.b16 %v8516
    %v8651 = vunpack.c.l.b16 %v8517
    %v8652 = vunpack.c.h.b16 %v8517
    %v8653 = vpack.c.b16 %v6838, %v8649
    %v8654 = vpack.c.b16 %v6839, %v8650
    %v8655 = vpack.c.b16 %v6840, %v8651
    %v8656 = vpack.c.b16 %v6841, %v8652
    %v8657 = vrot.slane %v8653, 1
    %v8658 = vrot.slane %v8654, 1
    %v8659 = vrot.slane %v8655, 1
    %v8660 = vrot.slane %v8656, 1
    %v8793 = vunpack.c.l.b16 %v8519
    %v8794 = vunpack.c.h.b16 %v8519
    %v8795 = vunpack.c.l.b16 %v8520
    %v8796 = vunpack.c.h.b16 %v8520
    %v8797 = vunpack.c.l.b16 %v8521
    %v8798 = vunpack.c.h.b16 %v8521
    %v8799 = vunpack.c.l.b16 %v8522
    %v8800 = vunpack.c.h.b16 %v8522
    %v8801 = vunpack.c.l.b16 %v8523
    %v8802 = vunpack.c.h.b16 %v8523
    %v8803 = vunpack.c.l.b16 %v8524
    %v8804 = vunpack.c.h.b16 %v8524
    %v8805 = vunpack.c.l.b16 %v8525
    %v8806 = vunpack.c.h.b16 %v8525
    %v8807 = vunpack.c.l.b16 %v8526
    %v8808 = vunpack.c.h.b16 %v8526
    %v8809 = vunpack.c.l.b16 %v8527
    %v8810 = vunpack.c.h.b16 %v8527
    %v8811 = vunpack.c.l.b16 %v8528
    %v8812 = vunpack.c.h.b16 %v8528
    %v8813 = vunpack.c.l.b16 %v8529
    %v8814 = vunpack.c.h.b16 %v8529
    %v8815 = vunpack.c.l.b16 %v8530
    %v8816 = vunpack.c.h.b16 %v8530
    %v8817 = vunpack.c.l.b16 %v8531
    %v8818 = vunpack.c.h.b16 %v8531
    %v8819 = vunpack.c.l.b16 %v8532
    %v8820 = vunpack.c.h.b16 %v8532
    %v8821 = vunpack.c.l.b16 %v8533
    %v8822 = vunpack.c.h.b16 %v8533
    %v8823 = vunpack.c.l.b16 %v8534
    %v8824 = vunpack.c.h.b16 %v8534
    %v8825 = vunpack.c.l.b16 %v8535
    %v8826 = vunpack.c.h.b16 %v8535
    %v8827 = vunpack.c.l.b16 %v8536
    %v8828 = vunpack.c.h.b16 %v8536
    %v8829 = vunpack.c.l.b16 %v8537
    %v8830 = vunpack.c.h.b16 %v8537
    %v8831 = vunpack.c.l.b16 %v8538
    %v8832 = vunpack.c.h.b16 %v8538
    %v8833 = vunpack.c.l.b16 %v8539
    %v8834 = vunpack.c.h.b16 %v8539
    %v8835 = vunpack.c.l.b16 %v8540
    %v8836 = vunpack.c.h.b16 %v8540
    %v8837 = vunpack.c.l.b16 %v8541
    %v8838 = vunpack.c.h.b16 %v8541
    %v8839 = vunpack.c.l.b16 %v8542
    %v8840 = vunpack.c.h.b16 %v8542
    %v8841 = vunpack.c.l.b16 %v8543
    %v8842 = vunpack.c.h.b16 %v8543
    %v8843 = vunpack.c.l.b16 %v8544
    %v8844 = vunpack.c.h.b16 %v8544
    %v8845 = vunpack.c.l.b16 %v8545
    %v8846 = vunpack.c.h.b16 %v8545
    %v8847 = vunpack.c.l.b16 %v8546
    %v8848 = vunpack.c.h.b16 %v8546
    %v8849 = vunpack.c.l.b16 %v8547
    %v8850 = vunpack.c.h.b16 %v8547
    %v8851 = vunpack.c.l.b16 %v8548
    %v8852 = vunpack.c.h.b16 %v8548
    %v8853 = vunpack.c.l.b16 %v8549
    %v8854 = vunpack.c.h.b16 %v8549
    %v8855 = vunpack.c.l.b16 %v8550
    %v8856 = vunpack.c.h.b16 %v8550
    %v8857 = vunpack.c.l.b16 %v8551
    %v8858 = vunpack.c.h.b16 %v8551
    %v8859 = vunpack.c.l.b16 %v8552
    %v8860 = vunpack.c.h.b16 %v8552
    %v8861 = vunpack.c.l.b16 %v8553
    %v8862 = vunpack.c.h.b16 %v8553
    %v8863 = vunpack.c.l.b16 %v8554
    %v8864 = vunpack.c.h.b16 %v8554
    %v8865 = vunpack.c.l.b16 %v8555
    %v8866 = vunpack.c.h.b16 %v8555
    %v8867 = vunpack.c.l.b16 %v8556
    %v8868 = vunpack.c.h.b16 %v8556
    %v8869 = vunpack.c.l.b16 %v8557
    %v8870 = vunpack.c.h.b16 %v8557
    %v8871 = vunpack.c.l.b16 %v8558
    %v8872 = vunpack.c.h.b16 %v8558
    %v8873 = vunpack.c.l.b16 %v8559
    %v8874 = vunpack.c.h.b16 %v8559
    %v8875 = vunpack.c.l.b16 %v8560
    %v8876 = vunpack.c.h.b16 %v8560
    %v8877 = vunpack.c.l.b16 %v8561
    %v8878 = vunpack.c.h.b16 %v8561
    %v8879 = vunpack.c.l.b16 %v8562
    %v8880 = vunpack.c.h.b16 %v8562
    %v8881 = vunpack.c.l.b16 %v8563
    %v8882 = vunpack.c.h.b16 %v8563
    %v8883 = vunpack.c.l.b16 %v8564
    %v8884 = vunpack.c.h.b16 %v8564
    %v8885 = vunpack.c.l.b16 %v8565
    %v8886 = vunpack.c.h.b16 %v8565
    %v8887 = vunpack.c.l.b16 %v8566
    %v8888 = vunpack.c.h.b16 %v8566
    %v8889 = vunpack.c.l.b16 %v8567
    %v8890 = vunpack.c.h.b16 %v8567
    %v8891 = vunpack.c.l.b16 %v8568
    %v8892 = vunpack.c.h.b16 %v8568
    %v8893 = vunpack.c.l.b16 %v8569
    %v8894 = vunpack.c.h.b16 %v8569
    %v8895 = vunpack.c.l.b16 %v8570
    %v8896 = vunpack.c.h.b16 %v8570
    %v8897 = vunpack.c.l.b16 %v8571
    %v8898 = vunpack.c.h.b16 %v8571
    %v8899 = vunpack.c.l.b16 %v8572
    %v8900 = vunpack.c.h.b16 %v8572
    %v8901 = vunpack.c.l.b16 %v8573
    %v8902 = vunpack.c.h.b16 %v8573
    %v8903 = vunpack.c.l.b16 %v8574
    %v8904 = vunpack.c.h.b16 %v8574
    %v8905 = vunpack.c.l.b16 %v8575
    %v8906 = vunpack.c.h.b16 %v8575
    %v8907 = vunpack.c.l.b16 %v8576
    %v8908 = vunpack.c.h.b16 %v8576
    %v8909 = vunpack.c.l.b16 %v8577
    %v8910 = vunpack.c.h.b16 %v8577
    %v8911 = vunpack.c.l.b16 %v8578
    %v8912 = vunpack.c.h.b16 %v8578
    %v8913 = vunpack.c.l.b16 %v8579
    %v8914 = vunpack.c.h.b16 %v8579
    %v8915 = vunpack.c.l.b16 %v8580
    %v8916 = vunpack.c.h.b16 %v8580
    %v8917 = vunpack.c.l.b16 %v8581
    %v8918 = vunpack.c.h.b16 %v8581
    %v8919 = vunpack.c.l.b16 %v8582
    %v8920 = vunpack.c.h.b16 %v8582
    %v8921 = vunpack.c.l.b16 %v8583
    %v8922 = vunpack.c.h.b16 %v8583
    %v8923 = vunpack.c.l.b16 %v8584
    %v8924 = vunpack.c.h.b16 %v8584
    %v8925 = vunpack.c.l.b16 %v8585
    %v8926 = vunpack.c.h.b16 %v8585
    %v8927 = vunpack.c.l.b16 %v8586
    %v8928 = vunpack.c.h.b16 %v8586
    %v8929 = vunpack.c.l.b16 %v8587
    %v8930 = vunpack.c.h.b16 %v8587
    %v8931 = vunpack.c.l.b16 %v8588
    %v8932 = vunpack.c.h.b16 %v8588
    %v8933 = vunpack.c.l.b16 %v8589
    %v8934 = vunpack.c.h.b16 %v8589
    %v8935 = vunpack.c.l.b16 %v8590
    %v8936 = vunpack.c.h.b16 %v8590
    %v8937 = vunpack.c.l.b16 %v8591
    %v8938 = vunpack.c.h.b16 %v8591
    %v8939 = vunpack.c.l.b16 %v8592
    %v8940 = vunpack.c.h.b16 %v8592
    %v8941 = vunpack.c.l.b16 %v8593
    %v8942 = vunpack.c.h.b16 %v8593
    %v8943 = vunpack.c.l.b16 %v8594
    %v8944 = vunpack.c.h.b16 %v8594
    %v8945 = vunpack.c.l.b16 %v8595
    %v8946 = vunpack.c.h.b16 %v8595
    %v8947 = vunpack.c.l.b16 %v8596
    %v8948 = vunpack.c.h.b16 %v8596
    %v8949 = vunpack.c.l.b16 %v8597
    %v8950 = vunpack.c.h.b16 %v8597
    %v8951 = vunpack.c.l.b16 %v8598
    %v8952 = vunpack.c.h.b16 %v8598
    %v8953 = vunpack.c.l.b16 %v8599
    %v8954 = vunpack.c.h.b16 %v8599
    %v8955 = vunpack.c.l.b16 %v8600
    %v8956 = vunpack.c.h.b16 %v8600
    %v8957 = vunpack.c.l.b16 %v8601
    %v8958 = vunpack.c.h.b16 %v8601
    %v8959 = vunpack.c.l.b16 %v8602
    %v8960 = vunpack.c.h.b16 %v8602
    %v8961 = vunpack.c.l.b16 %v8603
    %v8962 = vunpack.c.h.b16 %v8603
    %v8963 = vunpack.c.l.b16 %v8604
    %v8964 = vunpack.c.h.b16 %v8604
    %v8965 = vunpack.c.l.b16 %v8605
    %v8966 = vunpack.c.h.b16 %v8605
    %v8967 = vunpack.c.l.b16 %v8606
    %v8968 = vunpack.c.h.b16 %v8606
    %v8969 = vunpack.c.l.b16 %v8607
    %v8970 = vunpack.c.h.b16 %v8607
    %v8971 = vunpack.c.l.b16 %v8608
    %v8972 = vunpack.c.h.b16 %v8608
    %v8973 = vunpack.c.l.b16 %v8609
    %v8974 = vunpack.c.h.b16 %v8609
    %v8975 = vunpack.c.l.b16 %v8610
    %v8976 = vunpack.c.h.b16 %v8610
    %v8977 = vunpack.c.l.b16 %v8611
    %v8978 = vunpack.c.h.b16 %v8611
    %v8979 = vunpack.c.l.b16 %v8612
    %v8980 = vunpack.c.h.b16 %v8612
    %v8981 = vunpack.c.l.b16 %v8613
    %v8982 = vunpack.c.h.b16 %v8613
    %v8983 = vunpack.c.l.b16 %v8614
    %v8984 = vunpack.c.h.b16 %v8614
    %v8985 = vunpack.c.l.b16 %v8615
    %v8986 = vunpack.c.h.b16 %v8615
    %v8987 = vunpack.c.l.b16 %v8616
    %v8988 = vunpack.c.h.b16 %v8616
    %v8989 = vunpack.c.l.b16 %v8617
    %v8990 = vunpack.c.h.b16 %v8617
    %v8991 = vunpack.c.l.b16 %v8618
    %v8992 = vunpack.c.h.b16 %v8618
    %v8993 = vunpack.c.l.b16 %v8619
    %v8994 = vunpack.c.h.b16 %v8619
    %v8995 = vunpack.c.l.b16 %v8620
    %v8996 = vunpack.c.h.b16 %v8620
    %v8997 = vunpack.c.l.b16 %v8621
    %v8998 = vunpack.c.h.b16 %v8621
    %v8999 = vunpack.c.l.b16 %v8622
    %v9000 = vunpack.c.h.b16 %v8622
    %v9001 = vunpack.c.l.b16 %v8623
    %v9002 = vunpack.c.h.b16 %v8623
    %v9003 = vunpack.c.l.b16 %v8624
    %v9004 = vunpack.c.h.b16 %v8624
    %v9005 = vunpack.c.l.b16 %v8625
    %v9006 = vunpack.c.h.b16 %v8625
    %v9007 = vunpack.c.l.b16 %v8626
    %v9008 = vunpack.c.h.b16 %v8626
    %v9009 = vunpack.c.l.b16 %v8627
    %v9010 = vunpack.c.h.b16 %v8627
    %v9011 = vunpack.c.l.b16 %v8628
    %v9012 = vunpack.c.h.b16 %v8628
    %v9013 = vunpack.c.l.b16 %v8629
    %v9014 = vunpack.c.h.b16 %v8629
    %v9015 = vunpack.c.l.b16 %v8630
    %v9016 = vunpack.c.h.b16 %v8630
    %v9017 = vunpack.c.l.b16 %v8631
    %v9018 = vunpack.c.h.b16 %v8631
    %v9019 = vunpack.c.l.b16 %v8632
    %v9020 = vunpack.c.h.b16 %v8632
    %v9021 = vunpack.c.l.b16 %v8633
    %v9022 = vunpack.c.h.b16 %v8633
    %v9023 = vunpack.c.l.b16 %v8634
    %v9024 = vunpack.c.h.b16 %v8634
    %v9025 = vunpack.c.l.b16 %v8635
    %v9026 = vunpack.c.h.b16 %v8635
    %v9027 = vunpack.c.l.b16 %v8636
    %v9028 = vunpack.c.h.b16 %v8636
    %v9029 = vunpack.c.l.b16 %v8637
    %v9030 = vunpack.c.h.b16 %v8637
    %v9031 = vunpack.c.l.b16 %v8638
    %v9032 = vunpack.c.h.b16 %v8638
    %v9033 = vunpack.c.l.b16 %v8639
    %v9034 = vunpack.c.h.b16 %v8639
    %v9035 = vunpack.c.l.b16 %v8640
    %v9036 = vunpack.c.h.b16 %v8640
    %v9037 = vunpack.c.l.b16 %v8641
    %v9038 = vunpack.c.h.b16 %v8641
    %v9039 = vunpack.c.l.b16 %v8642
    %v9040 = vunpack.c.h.b16 %v8642
    %v9041 = vunpack.c.l.b16 %v8643
    %v9042 = vunpack.c.h.b16 %v8643
    %v9043 = vunpack.c.l.b16 %v8644
    %v9044 = vunpack.c.h.b16 %v8644
    %v9045 = vunpack.c.l.b16 %v8645
    %v9046 = vunpack.c.h.b16 %v8645
    %v9047 = vunpack.c.l.b16 %v8646
    %v9048 = vunpack.c.h.b16 %v8646
    %v9049 = vpack.c.b16 %v8797, %v8793
    %v9050 = vpack.c.b16 %v8798, %v8794
    %v9051 = vpack.c.b16 %v8799, %v8795
    %v9052 = vpack.c.b16 %v8800, %v8796
    %v9053 = vpack.c.b16 %v8805, %v8801
    %v9054 = vpack.c.b16 %v8806, %v8802
    %v9055 = vpack.c.b16 %v8807, %v8803
    %v9056 = vpack.c.b16 %v8808, %v8804
    %v9057 = vpack.c.b16 %v8813, %v8809
    %v9058 = vpack.c.b16 %v8814, %v8810
    %v9059 = vpack.c.b16 %v8815, %v8811
    %v9060 = vpack.c.b16 %v8816, %v8812
    %v9061 = vpack.c.b16 %v8821, %v8817
    %v9062 = vpack.c.b16 %v8822, %v8818
    %v9063 = vpack.c.b16 %v8823, %v8819
    %v9064 = vpack.c.b16 %v8824, %v8820
    %v9065 = vpack.c.b16 %v8829, %v8825
    %v9066 = vpack.c.b16 %v8830, %v8826
    %v9067 = vpack.c.b16 %v8831, %v8827
    %v9068 = vpack.c.b16 %v8832, %v8828
    %v9069 = vpack.c.b16 %v8837, %v8833
    %v9070 = vpack.c.b16 %v8838, %v8834
    %v9071 = vpack.c.b16 %v8839, %v8835
    %v9072 = vpack.c.b16 %v8840, %v8836
    %v9073 = vpack.c.b16 %v8845, %v8841
    %v9074 = vpack.c.b16 %v8846, %v8842
    %v9075 = vpack.c.b16 %v8847, %v8843
    %v9076 = vpack.c.b16 %v8848, %v8844
    %v9077 = vpack.c.b16 %v8853, %v8849
    %v9078 = vpack.c.b16 %v8854, %v8850
    %v9079 = vpack.c.b16 %v8855, %v8851
    %v9080 = vpack.c.b16 %v8856, %v8852
    %v9081 = vpack.c.b16 %v8861, %v8857
    %v9082 = vpack.c.b16 %v8862, %v8858
    %v9083 = vpack.c.b16 %v8863, %v8859
    %v9084 = vpack.c.b16 %v8864, %v8860
    %v9085 = vpack.c.b16 %v8869, %v8865
    %v9086 = vpack.c.b16 %v8870, %v8866
    %v9087 = vpack.c.b16 %v8871, %v8867
    %v9088 = vpack.c.b16 %v8872, %v8868
    %v9089 = vpack.c.b16 %v8877, %v8873
    %v9090 = vpack.c.b16 %v8878, %v8874
    %v9091 = vpack.c.b16 %v8879, %v8875
    %v9092 = vpack.c.b16 %v8880, %v8876
    %v9093 = vpack.c.b16 %v8885, %v8881
    %v9094 = vpack.c.b16 %v8886, %v8882
    %v9095 = vpack.c.b16 %v8887, %v8883
    %v9096 = vpack.c.b16 %v8888, %v8884
    %v9097 = vpack.c.b16 %v8893, %v8889
    %v9098 = vpack.c.b16 %v8894, %v8890
    %v9099 = vpack.c.b16 %v8895, %v8891
    %v9100 = vpack.c.b16 %v8896, %v8892
    %v9101 = vpack.c.b16 %v8901, %v8897
    %v9102 = vpack.c.b16 %v8902, %v8898
    %v9103 = vpack.c.b16 %v8903, %v8899
    %v9104 = vpack.c.b16 %v8904, %v8900
    %v9105 = vpack.c.b16 %v8909, %v8905
    %v9106 = vpack.c.b16 %v8910, %v8906
    %v9107 = vpack.c.b16 %v8911, %v8907
    %v9108 = vpack.c.b16 %v8912, %v8908
    %v9109 = vpack.c.b16 %v8917, %v8913
    %v9110 = vpack.c.b16 %v8918, %v8914
    %v9111 = vpack.c.b16 %v8919, %v8915
    %v9112 = vpack.c.b16 %v8920, %v8916
    %v9113 = vpack.c.b16 %v8925, %v8921
    %v9114 = vpack.c.b16 %v8926, %v8922
    %v9115 = vpack.c.b16 %v8927, %v8923
    %v9116 = vpack.c.b16 %v8928, %v8924
    %v9117 = vpack.c.b16 %v8933, %v8929
    %v9118 = vpack.c.b16 %v8934, %v8930
    %v9119 = vpack.c.b16 %v8935, %v8931
    %v9120 = vpack.c.b16 %v8936, %v8932
    %v9121 = vpack.c.b16 %v8941, %v8937
    %v9122 = vpack.c.b16 %v8942, %v8938
    %v9123 = vpack.c.b16 %v8943, %v8939
    %v9124 = vpack.c.b16 %v8944, %v8940
    %v9125 = vpack.c.b16 %v8949, %v8945
    %v9126 = vpack.c.b16 %v8950, %v8946
    %v9127 = vpack.c.b16 %v8951, %v8947
    %v9128 = vpack.c.b16 %v8952, %v8948
    %v9129 = vpack.c.b16 %v8957, %v8953
    %v9130 = vpack.c.b16 %v8958, %v8954
    %v9131 = vpack.c.b16 %v8959, %v8955
    %v9132 = vpack.c.b16 %v8960, %v8956
    %v9133 = vpack.c.b16 %v8965, %v8961
    %v9134 = vpack.c.b16 %v8966, %v8962
    %v9135 = vpack.c.b16 %v8967, %v8963
    %v9136 = vpack.c.b16 %v8968, %v8964
    %v9137 = vpack.c.b16 %v8973, %v8969
    %v9138 = vpack.c.b16 %v8974, %v8970
    %v9139 = vpack.c.b16 %v8975, %v8971
    %v9140 = vpack.c.b16 %v8976, %v8972
    %v9141 = vpack.c.b16 %v8981, %v8977
    %v9142 = vpack.c.b16 %v8982, %v8978
    %v9143 = vpack.c.b16 %v8983, %v8979
    %v9144 = vpack.c.b16 %v8984, %v8980
    %v9145 = vpack.c.b16 %v8989, %v8985
    %v9146 = vpack.c.b16 %v8990, %v8986
    %v9147 = vpack.c.b16 %v8991, %v8987
    %v9148 = vpack.c.b16 %v8992, %v8988
    %v9149 = vpack.c.b16 %v8997, %v8993
    %v9150 = vpack.c.b16 %v8998, %v8994
    %v9151 = vpack.c.b16 %v8999, %v8995
    %v9152 = vpack.c.b16 %v9000, %v8996
    %v9153 = vpack.c.b16 %v9005, %v9001
    %v9154 = vpack.c.b16 %v9006, %v9002
    %v9155 = vpack.c.b16 %v9007, %v9003
    %v9156 = vpack.c.b16 %v9008, %v9004
    %v9157 = vpack.c.b16 %v9013, %v9009
    %v9158 = vpack.c.b16 %v9014, %v9010
    %v9159 = vpack.c.b16 %v9015, %v9011
    %v9160 = vpack.c.b16 %v9016, %v9012
    %v9161 = vpack.c.b16 %v9021, %v9017
    %v9162 = vpack.c.b16 %v9022, %v9018
    %v9163 = vpack.c.b16 %v9023, %v9019
    %v9164 = vpack.c.b16 %v9024, %v9020
    %v9165 = vpack.c.b16 %v9029, %v9025
    %v9166 = vpack.c.b16 %v9030, %v9026
    %v9167 = vpack.c.b16 %v9031, %v9027
    %v9168 = vpack.c.b16 %v9032, %v9028
    %v9169 = vpack.c.b16 %v9037, %v9033
    %v9170 = vpack.c.b16 %v9038, %v9034
    %v9171 = vpack.c.b16 %v9039, %v9035
    %v9172 = vpack.c.b16 %v9040, %v9036
    %v9173 = vpack.c.b16 %v9045, %v9041
    %v9174 = vpack.c.b16 %v9046, %v9042
    %v9175 = vpack.c.b16 %v9047, %v9043
    %v9176 = vpack.c.b16 %v9048, %v9044
    %9305 = vmatprep.subr.bf16.mxu0 %v9050
    %9306 = vmatpush1.bf16.msra.mxu0 %v9049
    %9307 = vmatprep.subr.bf16.mxu0 %v9054
    %9308 = vmatpush1.bf16.msra.mxu0 %v9053
    %9309 = vmatprep.subr.bf16.mxu0 %v9058
    %9310 = vmatpush1.bf16.msra.mxu0 %v9057
    %9311 = vmatprep.subr.bf16.mxu0 %v9062
    %9312 = vmatpush1.bf16.msra.mxu0 %v9061
    %9313 = vmatprep.subr.bf16.mxu0 %v9066
    %9314 = vmatpush1.bf16.msra.mxu0 %v9065
    %9315 = vmatprep.subr.bf16.mxu0 %v9070
    %9316 = vmatpush1.bf16.msra.mxu0 %v9069
    %9317 = vmatprep.subr.bf16.mxu0 %v9074
    %9318 = vmatpush1.bf16.msra.mxu0 %v9073
    %9319 = vmatprep.subr.bf16.mxu0 %v9078
    %9320 = vmatpush1.bf16.msra.mxu0 %v9077
    %9321 = vmatprep.subr.bf16.mxu0 %v9082
    %9322 = vmatpush1.bf16.msra.mxu0 %v9081
    %9323 = vmatprep.subr.bf16.mxu0 %v9086
    %9324 = vmatpush1.bf16.msra.mxu0 %v9085
    %9325 = vmatprep.subr.bf16.mxu0 %v9090
    %9326 = vmatpush1.bf16.msra.mxu0 %v9089
    %9327 = vmatprep.subr.bf16.mxu0 %v9094
    %9328 = vmatpush1.bf16.msra.mxu0 %v9093
    %9329 = vmatprep.subr.bf16.mxu0 %v9098
    %9330 = vmatpush1.bf16.msra.mxu0 %v9097
    %9331 = vmatprep.subr.bf16.mxu0 %v9102
    %9332 = vmatpush1.bf16.msra.mxu0 %v9101
    %9333 = vmatprep.subr.bf16.mxu0 %v9106
    %9334 = vmatpush1.bf16.msra.mxu0 %v9105
    %9335 = vmatprep.subr.bf16.mxu0 %v9110
    %9336 = vmatpush1.bf16.msra.mxu0 %v9109
    %9337 = vmatprep.mubr.bf16.mxu0 %v8658
    %9338 = vmatmul.mubr.bf16.gmra.mrb[0].mxu0 %v8657
    %v9339 = vpop.f32.mrb[0].mxu0
    %v9340 = vadd.f32 0.0, %v9339
    %v9341 = vpop.f32.mrb[0].mxu0
    %v9342 = vadd.f32 0.0, %v9341
    %v9343 = vpop.f32.mrb[0].mxu0
    %v9344 = vadd.f32 0.0, %v9343
    %v9345 = vpop.f32.mrb[0].mxu0
    %v9346 = vadd.f32 0.0, %v9345
    %9347 = vdwg.mxu0
    %9348 = vmatprep.subr.bf16.mxu0 %v9114
    %9349 = vmatpush1.bf16.msra.mxu0 %v9113
    %9350 = vmatprep.subr.bf16.mxu0 %v9118
    %9351 = vmatpush1.bf16.msra.mxu0 %v9117
    %9352 = vmatprep.subr.bf16.mxu0 %v9122
    %9353 = vmatpush1.bf16.msra.mxu0 %v9121
    %9354 = vmatprep.subr.bf16.mxu0 %v9126
    %9355 = vmatpush1.bf16.msra.mxu0 %v9125
    %9356 = vmatprep.subr.bf16.mxu0 %v9130
    %9357 = vmatpush1.bf16.msra.mxu0 %v9129
    %9358 = vmatprep.subr.bf16.mxu0 %v9134
    %9359 = vmatpush1.bf16.msra.mxu0 %v9133
    %9360 = vmatprep.subr.bf16.mxu0 %v9138
    %9361 = vmatpush1.bf16.msra.mxu0 %v9137
    %9362 = vmatprep.subr.bf16.mxu0 %v9142
    %9363 = vmatpush1.bf16.msra.mxu0 %v9141
    %9364 = vmatprep.subr.bf16.mxu0 %v9146
    %9365 = vmatpush1.bf16.msra.mxu0 %v9145
    %9366 = vmatprep.subr.bf16.mxu0 %v9150
    %9367 = vmatpush1.bf16.msra.mxu0 %v9149
    %9368 = vmatprep.subr.bf16.mxu0 %v9154
    %9369 = vmatpush1.bf16.msra.mxu0 %v9153
    %9370 = vmatprep.subr.bf16.mxu0 %v9158
    %9371 = vmatpush1.bf16.msra.mxu0 %v9157
    %9372 = vmatprep.subr.bf16.mxu0 %v9162
    %9373 = vmatpush1.bf16.msra.mxu0 %v9161
    %9374 = vmatprep.subr.bf16.mxu0 %v9166
    %9375 = vmatpush1.bf16.msra.mxu0 %v9165
    %9376 = vmatprep.subr.bf16.mxu0 %v9170
    %9377 = vmatpush1.bf16.msra.mxu0 %v9169
    %9378 = vmatprep.subr.bf16.mxu0 %v9174
    %9379 = vmatpush1.bf16.msra.mxu0 %v9173
    %9380 = vmatprep.mubr.bf16.mxu0 %v8660
    %9381 = vmatmul.mubr.bf16.gmra.mrb[0].mxu0 %v8659
    %v9382 = vpop.f32.mrb[0].mxu0
    %v9383 = vadd.f32 %v9340, %v9382
    %v9384 = vpop.f32.mrb[0].mxu0
    %v9385 = vadd.f32 %v9342, %v9384
    %v9386 = vpop.f32.mrb[0].mxu0
    %v9387 = vadd.f32 %v9344, %v9386
    %v9388 = vpop.f32.mrb[0].mxu0
    %v9389 = vadd.f32 %v9346, %v9388
    %9390 = vdwg.mxu0
    %9391 = vmatprep.subr.bf16.mxu0 %v9052
    %9392 = vmatpush1.bf16.msra.mxu0 %v9051
    %9393 = vmatprep.subr.bf16.mxu0 %v9056
    %9394 = vmatpush1.bf16.msra.mxu0 %v9055
    %9395 = vmatprep.subr.bf16.mxu0 %v9060
    %9396 = vmatpush1.bf16.msra.mxu0 %v9059
    %9397 = vmatprep.subr.bf16.mxu0 %v9064
    %9398 = vmatpush1.bf16.msra.mxu0 %v9063
    %9399 = vmatprep.subr.bf16.mxu0 %v9068
    %9400 = vmatpush1.bf16.msra.mxu0 %v9067
    %9401 = vmatprep.subr.bf16.mxu0 %v9072
    %9402 = vmatpush1.bf16.msra.mxu0 %v9071
    %9403 = vmatprep.subr.bf16.mxu0 %v9076
    %9404 = vmatpush1.bf16.msra.mxu0 %v9075
    %9405 = vmatprep.subr.bf16.mxu0 %v9080
    %9406 = vmatpush1.bf16.msra.mxu0 %v9079
    %9407 = vmatprep.subr.bf16.mxu0 %v9084
    %9408 = vmatpush1.bf16.msra.mxu0 %v9083
    %9409 = vmatprep.subr.bf16.mxu0 %v9088
    %9410 = vmatpush1.bf16.msra.mxu0 %v9087
    %9411 = vmatprep.subr.bf16.mxu0 %v9092
    %9412 = vmatpush1.bf16.msra.mxu0 %v9091
    %9413 = vmatprep.subr.bf16.mxu0 %v9096
    %9414 = vmatpush1.bf16.msra.mxu0 %v9095
    %9415 = vmatprep.subr.bf16.mxu0 %v9100
    %9416 = vmatpush1.bf16.msra.mxu0 %v9099
    %9417 = vmatprep.subr.bf16.mxu0 %v9104
    %9418 = vmatpush1.bf16.msra.mxu0 %v9103
    %9419 = vmatprep.subr.bf16.mxu0 %v9108
    %9420 = vmatpush1.bf16.msra.mxu0 %v9107
    %9421 = vmatprep.subr.bf16.mxu0 %v9112
    %9422 = vmatpush1.bf16.msra.mxu0 %v9111
    %9423 = vmatprep.mubr.bf16.mxu0 %v8658
    %9424 = vmatmul.mubr.bf16.gmra.mrb[0].mxu0 %v8657
    %v9425 = vpop.f32.mrb[0].mxu0
    %v9426 = vadd.f32 0.0, %v9425
    %v9427 = vpop.f32.mrb[0].mxu0
    %v9428 = vadd.f32 0.0, %v9427
    %v9429 = vpop.f32.mrb[0].mxu0
    %v9430 = vadd.f32 0.0, %v9429
    %v9431 = vpop.f32.mrb[0].mxu0
    %v9432 = vadd.f32 0.0, %v9431
    %9433 = vdwg.mxu0
    %9434 = vmatprep.subr.bf16.mxu0 %v9116
    %9435 = vmatpush1.bf16.msra.mxu0 %v9115
    %9436 = vmatprep.subr.bf16.mxu0 %v9120
    %9437 = vmatpush1.bf16.msra.mxu0 %v9119
    %9438 = vmatprep.subr.bf16.mxu0 %v9124
    %9439 = vmatpush1.bf16.msra.mxu0 %v9123
    %9440 = vmatprep.subr.bf16.mxu0 %v9128
    %9441 = vmatpush1.bf16.msra.mxu0 %v9127
    %9442 = vmatprep.subr.bf16.mxu0 %v9132
    %9443 = vmatpush1.bf16.msra.mxu0 %v9131
    %9444 = vmatprep.subr.bf16.mxu0 %v9136
    %9445 = vmatpush1.bf16.msra.mxu0 %v9135
    %9446 = vmatprep.subr.bf16.mxu0 %v9140
    %9447 = vmatpush1.bf16.msra.mxu0 %v9139
    %9448 = vmatprep.subr.bf16.mxu0 %v9144
    %9449 = vmatpush1.bf16.msra.mxu0 %v9143
    %9450 = vmatprep.subr.bf16.mxu0 %v9148
    %9451 = vmatpush1.bf16.msra.mxu0 %v9147
    %9452 = vmatprep.subr.bf16.mxu0 %v9152
    %9453 = vmatpush1.bf16.msra.mxu0 %v9151
    %9454 = vmatprep.subr.bf16.mxu0 %v9156
    %9455 = vmatpush1.bf16.msra.mxu0 %v9155
    %9456 = vmatprep.subr.bf16.mxu0 %v9160
    %9457 = vmatpush1.bf16.msra.mxu0 %v9159
    %9458 = vmatprep.subr.bf16.mxu0 %v9164
    %9459 = vmatpush1.bf16.msra.mxu0 %v9163
    %9460 = vmatprep.subr.bf16.mxu0 %v9168
    %9461 = vmatpush1.bf16.msra.mxu0 %v9167
    %9462 = vmatprep.subr.bf16.mxu0 %v9172
    %9463 = vmatpush1.bf16.msra.mxu0 %v9171
    %9464 = vmatprep.subr.bf16.mxu0 %v9176
    %9465 = vmatpush1.bf16.msra.mxu0 %v9175
    %9466 = vmatprep.mubr.bf16.mxu0 %v8660
    %9467 = vmatmul.mubr.bf16.gmra.mrb[0].mxu0 %v8659
    %v9468 = vpop.f32.mrb[0].mxu0
    %v9469 = vadd.f32 %v9426, %v9468
    %v9470 = vpop.f32.mrb[0].mxu0
    %v9471 = vadd.f32 %v9428, %v9470
    %v9472 = vpop.f32.mrb[0].mxu0
    %v9473 = vadd.f32 %v9430, %v9472
    %v9474 = vpop.f32.mrb[0].mxu0
    %v9475 = vadd.f32 %v9432, %v9474
    %9476 = vdwg.mxu0
    %v9477 = vadd.f32 %v8422, %v9383
    %v9478 = vadd.f32 %v8424, %v9385
    %v9479 = vadd.f32 %v8508, %v9469
    %v9480 = vadd.f32 %v8510, %v9471
    %v9481 = vadd.f32 %v8426, %v9387
    %v9482 = vadd.f32 %v8428, %v9389
    %v9483 = vadd.f32 %v8512, %v9473
    %v9484 = vadd.f32 %v8514, %v9475
    %v9485 = vld [vmem:[#allocation14] sm:$0xf]
    %v9487 = vlaneseq
    %v9488 = vshrl.u32 %v9487, 7
    %v9489 = vsub.s32 0, %v9488
    %v9490 = vrot.slane %v9485, %v9489
    %v9491 = vlaneseq
    %v9492 = vshrl.u32 %v9491, 7
    %v9493 = vsub.s32 1, %v9492
    %v9494 = vrot.slane %v9485, %v9493
    %v9495 = vlaneseq
    %v9496 = vshrl.u32 %v9495, 7
    %v9497 = vsub.s32 2, %v9496
    %v9498 = vrot.slane %v9485, %v9497
    %v9499 = vlaneseq
    %v9500 = vshrl.u32 %v9499, 7
    %v9501 = vsub.s32 3, %v9500
    %v9502 = vrot.slane %v9485, %v9501
    %v9507 = vadd.f32 %v9477, %v9490
    %v9508 = vadd.f32 %v9478, %v9494
    %v9509 = vadd.f32 %v9479, %v9498
    %v9510 = vadd.f32 %v9480, %v9502
    %v9511 = vadd.f32 %v9481, %v9490
    %v9512 = vadd.f32 %v9482, %v9494
    %v9513 = vadd.f32 %v9483, %v9498
    %v9514 = vadd.f32 %v9484, %v9502
    %v9515 = vmax.f32 %v9507, 0.0
    %v9516 = vmax.f32 %v9508, 0.0
    %v9517 = vmax.f32 %v9509, 0.0
    %v9518 = vmax.f32 %v9510, 0.0
    %v9519 = vmax.f32 %v9511, 0.0
    %v9520 = vmax.f32 %v9512, 0.0
    %v9521 = vmax.f32 %v9513, 0.0
    %v9522 = vmax.f32 %v9514, 0.0
    %v9531 = vcombine.low %v9515, %v9516
    %v9532 = vcombine.high %v9515, %v9516
    %v9533 = vcombine.low %v9517, %v9518
    %v9534 = vcombine.high %v9517, %v9518
    %v9536 = vunpack.c.l.s4 1983009808
    %v9537 = vunpack.c.0.s8 %v9536
    %v9538 = vlaneseq
    %v9539 = vshrl.u32 %v9538, 7
    %v9540 = vsub.s32 %v9537, %v9539
    %v9541 = vrot.slane %v9531, %v9540
    %v9543 = vunpack.c.l.s4 1983009808
    %v9544 = vunpack.c.0.s8 %v9543
    %v9545 = vlaneseq
    %v9546 = vshrl.u32 %v9545, 7
    %v9547 = vsub.s32 %v9544, %v9546
    %v9548 = vrot.slane %v9532, %v9547
    %v9550 = vunpack.c.l.s4 1983009808
    %v9551 = vunpack.c.0.s8 %v9550
    %v9552 = vlaneseq
    %v9553 = vshrl.u32 %v9552, 7
    %v9554 = vsub.s32 %v9551, %v9553
    %v9555 = vrot.slane %v9533, %v9554
    %v9557 = vunpack.c.l.s4 1983009808
    %v9558 = vunpack.c.0.s8 %v9557
    %v9559 = vlaneseq
    %v9560 = vshrl.u32 %v9559, 7
    %v9561 = vsub.s32 %v9558, %v9560
    %v9562 = vrot.slane %v9534, %v9561
    %v9563 = vcombine.low %v9541, %v9555
    %v9564 = vcombine.high %v9541, %v9555
    %v9565 = vcombine.high %v9548, %v9562
    %v9566 = vcombine.low %v9519, %v9520
    %v9567 = vcombine.low %v9521, %v9522
    %v9569 = vunpack.c.l.s4 1983009808
    %v9570 = vunpack.c.0.s8 %v9569
    %v9571 = vlaneseq
    %v9572 = vshrl.u32 %v9571, 7
    %v9573 = vsub.s32 %v9570, %v9572
    %v9574 = vrot.slane %v9566, %v9573
    %v9576 = vunpack.c.l.s4 1983009808
    %v9577 = vunpack.c.0.s8 %v9576
    %v9578 = vlaneseq
    %v9579 = vshrl.u32 %v9578, 7
    %v9580 = vsub.s32 %v9577, %v9579
    %v9581 = vrot.slane %v9567, %v9580
    %v9582 = vcombine.low %v9574, %v9581
    %v9583 = vlaneseq
    %v9584 = vshrl.u32 %v9583, 7
    %v9585 = vsub.s32 0, %v9584
    %v9586 = vrot.slane %v9563, %v9585
    %v9587 = vlaneseq
    %v9588 = vshrl.u32 %v9587, 7
    %v9589 = vsub.s32 2, %v9588
    %v9590 = vrot.slane %v9563, %v9589
    %v9591 = vlaneseq
    %v9592 = vshrl.u32 %v9591, 7
    %v9593 = vsub.s32 4, %v9592
    %v9594 = vrot.slane %v9563, %v9593
    %v9595 = vlaneseq
    %v9596 = vshrl.u32 %v9595, 7
    %v9597 = vsub.s32 6, %v9596
    %v9598 = vrot.slane %v9563, %v9597
    %v9599 = vlaneseq
    %v9600 = vshrl.u32 %v9599, 7
    %v9601 = vsub.s32 0, %v9600
    %v9602 = vrot.slane %v9565, %v9601
    %v9603 = vlaneseq
    %v9604 = vshrl.u32 %v9603, 7
    %v9605 = vsub.s32 2, %v9604
    %v9606 = vrot.slane %v9565, %v9605
    %v9607 = vlaneseq
    %v9608 = vshrl.u32 %v9607, 7
    %v9609 = vsub.s32 4, %v9608
    %v9610 = vrot.slane %v9565, %v9609
    %v9611 = vlaneseq
    %v9612 = vshrl.u32 %v9611, 7
    %v9613 = vsub.s32 6, %v9612
    %v9614 = vrot.slane %v9565, %v9613
    %v9623 = vpack.c.bf16 %v9586, %v9586
    %v9624 = vpack.c.bf16 %v9590, %v9590
    %v9625 = vpack.c.bf16 %v9594, %v9594
    %v9626 = vpack.c.bf16 %v9598, %v9598
    %v9627 = vpack.c.bf16 %v9602, %v9602
    %v9628 = vpack.c.bf16 %v9606, %v9606
    %v9629 = vpack.c.bf16 %v9610, %v9610
    %v9630 = vpack.c.bf16 %v9614, %v9614
    %v9631 = vld [vmem:[#allocation16] sm:$0xf]
    %v9632 = vld [vmem:[#allocation16 + $0x4] sm:$0xf]
    %v9633 = vld [vmem:[#allocation16 + $0x8] sm:$0xf]
    %v9634 = vld [vmem:[#allocation16 + $0xc] sm:$0xf]
    %v9635 = vld [vmem:[#allocation16 + $0x10] sm:$0xf]
    %v9636 = vld [vmem:[#allocation16 + $0x14] sm:$0xf]
    %v9637 = vld [vmem:[#allocation16 + $0x18] sm:$0xf]
    %v9638 = vld [vmem:[#allocation16 + $0x1c] sm:$0xf]
    %v9639 = vld [vmem:[#allocation16 + $0x20] sm:$0xf]
    %v9640 = vld [vmem:[#allocation16 + $0x24] sm:$0xf]
    %v9641 = vld [vmem:[#allocation16 + $0x28] sm:$0xf]
    %v9642 = vld [vmem:[#allocation16 + $0x2c] sm:$0xf]
    %v9643 = vld [vmem:[#allocation16 + $0x30] sm:$0xf]
    %v9644 = vld [vmem:[#allocation16 + $0x34] sm:$0xf]
    %v9645 = vld [vmem:[#allocation16 + $0x38] sm:$0xf]
    %v9646 = vld [vmem:[#allocation16 + $0x3c] sm:$0xf]
    %v9647 = vld [vmem:[#allocation16 + $0x40] sm:$0xf]
    %v9648 = vld [vmem:[#allocation16 + $0x44] sm:$0xf]
    %v9649 = vld [vmem:[#allocation16 + $0x48] sm:$0xf]
    %v9650 = vld [vmem:[#allocation16 + $0x4c] sm:$0xf]
    %v9651 = vld [vmem:[#allocation16 + $0x50] sm:$0xf]
    %v9652 = vld [vmem:[#allocation16 + $0x54] sm:$0xf]
    %v9653 = vld [vmem:[#allocation16 + $0x58] sm:$0xf]
    %v9654 = vld [vmem:[#allocation16 + $0x5c] sm:$0xf]
    %v9655 = vld [vmem:[#allocation16 + $0x60] sm:$0xf]
    %v9656 = vld [vmem:[#allocation16 + $0x64] sm:$0xf]
    %v9657 = vld [vmem:[#allocation16 + $0x68] sm:$0xf]
    %v9658 = vld [vmem:[#allocation16 + $0x6c] sm:$0xf]
    %v9659 = vld [vmem:[#allocation16 + $0x70] sm:$0xf]
    %v9660 = vld [vmem:[#allocation16 + $0x74] sm:$0xf]
    %v9661 = vld [vmem:[#allocation16 + $0x78] sm:$0xf]
    %v9662 = vld [vmem:[#allocation16 + $0x7c] sm:$0xf]
    %v9663 = vld [vmem:[#allocation16 + $0x80] sm:$0xf]
    %v9664 = vld [vmem:[#allocation16 + $0x84] sm:$0xf]
    %v9665 = vld [vmem:[#allocation16 + $0x88] sm:$0xf]
    %v9666 = vld [vmem:[#allocation16 + $0x8c] sm:$0xf]
    %v9667 = vld [vmem:[#allocation16 + $0x90] sm:$0xf]
    %v9668 = vld [vmem:[#allocation16 + $0x94] sm:$0xf]
    %v9669 = vld [vmem:[#allocation16 + $0x98] sm:$0xf]
    %v9670 = vld [vmem:[#allocation16 + $0x9c] sm:$0xf]
    %v9671 = vld [vmem:[#allocation16 + $0xa0] sm:$0xf]
    %v9672 = vld [vmem:[#allocation16 + $0xa4] sm:$0xf]
    %v9673 = vld [vmem:[#allocation16 + $0xa8] sm:$0xf]
    %v9674 = vld [vmem:[#allocation16 + $0xac] sm:$0xf]
    %v9675 = vld [vmem:[#allocation16 + $0xb0] sm:$0xf]
    %v9676 = vld [vmem:[#allocation16 + $0xb4] sm:$0xf]
    %v9677 = vld [vmem:[#allocation16 + $0xb8] sm:$0xf]
    %v9678 = vld [vmem:[#allocation16 + $0xbc] sm:$0xf]
    %v9679 = vld [vmem:[#allocation16 + $0xc0] sm:$0xf]
    %v9680 = vld [vmem:[#allocation16 + $0xc4] sm:$0xf]
    %v9681 = vld [vmem:[#allocation16 + $0xc8] sm:$0xf]
    %v9682 = vld [vmem:[#allocation16 + $0xcc] sm:$0xf]
    %v9683 = vld [vmem:[#allocation16 + $0xd0] sm:$0xf]
    %v9684 = vld [vmem:[#allocation16 + $0xd4] sm:$0xf]
    %v9685 = vld [vmem:[#allocation16 + $0xd8] sm:$0xf]
    %v9686 = vld [vmem:[#allocation16 + $0xdc] sm:$0xf]
    %v9687 = vld [vmem:[#allocation16 + $0xe0] sm:$0xf]
    %v9688 = vld [vmem:[#allocation16 + $0xe4] sm:$0xf]
    %v9689 = vld [vmem:[#allocation16 + $0xe8] sm:$0xf]
    %v9690 = vld [vmem:[#allocation16 + $0xec] sm:$0xf]
    %v9691 = vld [vmem:[#allocation16 + $0xf0] sm:$0xf]
    %v9692 = vld [vmem:[#allocation16 + $0xf4] sm:$0xf]
    %v9693 = vld [vmem:[#allocation16 + $0xf8] sm:$0xf]
    %v9694 = vld [vmem:[#allocation16 + $0xfc] sm:$0xf]
    %v9695 = vlaneseq
    %v9696 = vshrl.u32 %v9695, 7
    %v9697 = vsub.s32 1, %v9696
    %v9698 = vrot.slane %v9563, %v9697
    %v9699 = vlaneseq
    %v9700 = vshrl.u32 %v9699, 7
    %v9701 = vsub.s32 3, %v9700
    %v9702 = vrot.slane %v9563, %v9701
    %v9703 = vlaneseq
    %v9704 = vshrl.u32 %v9703, 7
    %v9705 = vsub.s32 5, %v9704
    %v9706 = vrot.slane %v9563, %v9705
    %v9707 = vlaneseq
    %v9708 = vshrl.u32 %v9707, 7
    %v9709 = vsub.s32 7, %v9708
    %v9710 = vrot.slane %v9563, %v9709
    %v9711 = vlaneseq
    %v9712 = vshrl.u32 %v9711, 7
    %v9713 = vsub.s32 1, %v9712
    %v9714 = vrot.slane %v9565, %v9713
    %v9715 = vlaneseq
    %v9716 = vshrl.u32 %v9715, 7
    %v9717 = vsub.s32 3, %v9716
    %v9718 = vrot.slane %v9565, %v9717
    %v9719 = vlaneseq
    %v9720 = vshrl.u32 %v9719, 7
    %v9721 = vsub.s32 5, %v9720
    %v9722 = vrot.slane %v9565, %v9721
    %v9723 = vlaneseq
    %v9724 = vshrl.u32 %v9723, 7
    %v9725 = vsub.s32 7, %v9724
    %v9726 = vrot.slane %v9565, %v9725
    %v9735 = vpack.c.bf16 %v9698, %v9698
    %v9736 = vpack.c.bf16 %v9702, %v9702
    %v9737 = vpack.c.bf16 %v9706, %v9706
    %v9738 = vpack.c.bf16 %v9710, %v9710
    %v9739 = vpack.c.bf16 %v9714, %v9714
    %v9740 = vpack.c.bf16 %v9718, %v9718
    %v9741 = vpack.c.bf16 %v9722, %v9722
    %v9742 = vpack.c.bf16 %v9726, %v9726
    %s9743 = scalar_lea.vmem [#allocation16], 256
    %v9744 = vld [vmem:[%s9743] sm:$0xf]
    %v9745 = vld [vmem:[%s9743 + $0x4] sm:$0xf]
    %v9746 = vld [vmem:[%s9743 + $0x8] sm:$0xf]
    %v9747 = vld [vmem:[%s9743 + $0xc] sm:$0xf]
    %v9748 = vld [vmem:[%s9743 + $0x10] sm:$0xf]
    %v9749 = vld [vmem:[%s9743 + $0x14] sm:$0xf]
    %v9750 = vld [vmem:[%s9743 + $0x18] sm:$0xf]
    %v9751 = vld [vmem:[%s9743 + $0x1c] sm:$0xf]
    %v9752 = vld [vmem:[%s9743 + $0x20] sm:$0xf]
    %v9753 = vld [vmem:[%s9743 + $0x24] sm:$0xf]
    %v9754 = vld [vmem:[%s9743 + $0x28] sm:$0xf]
    %v9755 = vld [vmem:[%s9743 + $0x2c] sm:$0xf]
    %v9756 = vld [vmem:[%s9743 + $0x30] sm:$0xf]
    %v9757 = vld [vmem:[%s9743 + $0x34] sm:$0xf]
    %v9758 = vld [vmem:[%s9743 + $0x38] sm:$0xf]
    %v9759 = vld [vmem:[%s9743 + $0x3c] sm:$0xf]
    %v9760 = vld [vmem:[%s9743 + $0x40] sm:$0xf]
    %v9761 = vld [vmem:[%s9743 + $0x44] sm:$0xf]
    %v9762 = vld [vmem:[%s9743 + $0x48] sm:$0xf]
    %v9763 = vld [vmem:[%s9743 + $0x4c] sm:$0xf]
    %v9764 = vld [vmem:[%s9743 + $0x50] sm:$0xf]
    %v9765 = vld [vmem:[%s9743 + $0x54] sm:$0xf]
    %v9766 = vld [vmem:[%s9743 + $0x58] sm:$0xf]
    %v9767 = vld [vmem:[%s9743 + $0x5c] sm:$0xf]
    %v9768 = vld [vmem:[%s9743 + $0x60] sm:$0xf]
    %v9769 = vld [vmem:[%s9743 + $0x64] sm:$0xf]
    %v9770 = vld [vmem:[%s9743 + $0x68] sm:$0xf]
    %v9771 = vld [vmem:[%s9743 + $0x6c] sm:$0xf]
    %v9772 = vld [vmem:[%s9743 + $0x70] sm:$0xf]
    %v9773 = vld [vmem:[%s9743 + $0x74] sm:$0xf]
    %v9774 = vld [vmem:[%s9743 + $0x78] sm:$0xf]
    %v9775 = vld [vmem:[%s9743 + $0x7c] sm:$0xf]
    %v9776 = vld [vmem:[%s9743 + $0x80] sm:$0xf]
    %v9777 = vld [vmem:[%s9743 + $0x84] sm:$0xf]
    %v9778 = vld [vmem:[%s9743 + $0x88] sm:$0xf]
    %v9779 = vld [vmem:[%s9743 + $0x8c] sm:$0xf]
    %v9780 = vld [vmem:[%s9743 + $0x90] sm:$0xf]
    %v9781 = vld [vmem:[%s9743 + $0x94] sm:$0xf]
    %v9782 = vld [vmem:[%s9743 + $0x98] sm:$0xf]
    %v9783 = vld [vmem:[%s9743 + $0x9c] sm:$0xf]
    %v9784 = vld [vmem:[%s9743 + $0xa0] sm:$0xf]
    %v9785 = vld [vmem:[%s9743 + $0xa4] sm:$0xf]
    %v9786 = vld [vmem:[%s9743 + $0xa8] sm:$0xf]
    %v9787 = vld [vmem:[%s9743 + $0xac] sm:$0xf]
    %v9788 = vld [vmem:[%s9743 + $0xb0] sm:$0xf]
    %v9789 = vld [vmem:[%s9743 + $0xb4] sm:$0xf]
    %v9790 = vld [vmem:[%s9743 + $0xb8] sm:$0xf]
    %v9791 = vld [vmem:[%s9743 + $0xbc] sm:$0xf]
    %v9792 = vld [vmem:[%s9743 + $0xc0] sm:$0xf]
    %v9793 = vld [vmem:[%s9743 + $0xc4] sm:$0xf]
    %v9794 = vld [vmem:[%s9743 + $0xc8] sm:$0xf]
    %v9795 = vld [vmem:[%s9743 + $0xcc] sm:$0xf]
    %v9796 = vld [vmem:[%s9743 + $0xd0] sm:$0xf]
    %v9797 = vld [vmem:[%s9743 + $0xd4] sm:$0xf]
    %v9798 = vld [vmem:[%s9743 + $0xd8] sm:$0xf]
    %v9799 = vld [vmem:[%s9743 + $0xdc] sm:$0xf]
    %v9800 = vld [vmem:[%s9743 + $0xe0] sm:$0xf]
    %v9801 = vld [vmem:[%s9743 + $0xe4] sm:$0xf]
    %v9802 = vld [vmem:[%s9743 + $0xe8] sm:$0xf]
    %v9803 = vld [vmem:[%s9743 + $0xec] sm:$0xf]
    %v9804 = vld [vmem:[%s9743 + $0xf0] sm:$0xf]
    %v9805 = vld [vmem:[%s9743 + $0xf4] sm:$0xf]
    %v9806 = vld [vmem:[%s9743 + $0xf8] sm:$0xf]
    %v9807 = vld [vmem:[%s9743 + $0xfc] sm:$0xf]
    %v9816 = vunpack.c.l.b16 %v9735
    %v9817 = vunpack.c.l.b16 %v9736
    %v9818 = vunpack.c.l.b16 %v9737
    %v9819 = vunpack.c.l.b16 %v9738
    %v9820 = vunpack.c.l.b16 %v9739
    %v9821 = vunpack.c.l.b16 %v9740
    %v9822 = vunpack.c.l.b16 %v9741
    %v9823 = vunpack.c.l.b16 %v9742
    %v9824 = vrot.slane %v9816, 1
    %v9825 = vsel %vm1706, %v9820, %v9824
    %v9826 = vrot.slane %v9817, 1
    %v9827 = vsel %vm1706, %v9821, %v9826
    %v9828 = vrot.slane %v9818, 1
    %v9829 = vsel %vm1706, %v9822, %v9828
    %v9830 = vrot.slane %v9819, 1
    %v9831 = vsel %vm1706, %v9823, %v9830
    %v9832 = vpack.c.b16 %v9825, %v9825
    %v9833 = vpack.c.b16 %v9827, %v9827
    %v9834 = vpack.c.b16 %v9829, %v9829
    %v9835 = vpack.c.b16 %v9831, %v9831
    %v9904 = vunpack.c.l.b16 %v9744
    %v9905 = vunpack.c.l.b16 %v9745
    %v9906 = vunpack.c.l.b16 %v9746
    %v9907 = vunpack.c.l.b16 %v9747
    %v9908 = vunpack.c.l.b16 %v9748
    %v9909 = vunpack.c.l.b16 %v9749
    %v9910 = vunpack.c.l.b16 %v9750
    %v9911 = vunpack.c.l.b16 %v9751
    %v9912 = vunpack.c.l.b16 %v9752
    %v9913 = vunpack.c.l.b16 %v9753
    %v9914 = vunpack.c.l.b16 %v9754
    %v9915 = vunpack.c.l.b16 %v9755
    %v9916 = vunpack.c.l.b16 %v9756
    %v9917 = vunpack.c.l.b16 %v9757
    %v9918 = vunpack.c.l.b16 %v9758
    %v9919 = vunpack.c.l.b16 %v9759
    %v9920 = vunpack.c.l.b16 %v9760
    %v9921 = vunpack.c.l.b16 %v9761
    %v9922 = vunpack.c.l.b16 %v9762
    %v9923 = vunpack.c.l.b16 %v9763
    %v9924 = vunpack.c.l.b16 %v9764
    %v9925 = vunpack.c.l.b16 %v9765
    %v9926 = vunpack.c.l.b16 %v9766
    %v9927 = vunpack.c.l.b16 %v9767
    %v9928 = vunpack.c.l.b16 %v9768
    %v9929 = vunpack.c.l.b16 %v9769
    %v9930 = vunpack.c.l.b16 %v9770
    %v9931 = vunpack.c.l.b16 %v9771
    %v9932 = vunpack.c.l.b16 %v9772
    %v9933 = vunpack.c.l.b16 %v9773
    %v9934 = vunpack.c.l.b16 %v9774
    %v9935 = vunpack.c.l.b16 %v9775
    %v9936 = vunpack.c.l.b16 %v9776
    %v9937 = vunpack.c.l.b16 %v9777
    %v9938 = vunpack.c.l.b16 %v9778
    %v9939 = vunpack.c.l.b16 %v9779
    %v9940 = vunpack.c.l.b16 %v9780
    %v9941 = vunpack.c.l.b16 %v9781
    %v9942 = vunpack.c.l.b16 %v9782
    %v9943 = vunpack.c.l.b16 %v9783
    %v9944 = vunpack.c.l.b16 %v9784
    %v9945 = vunpack.c.l.b16 %v9785
    %v9946 = vunpack.c.l.b16 %v9786
    %v9947 = vunpack.c.l.b16 %v9787
    %v9948 = vunpack.c.l.b16 %v9788
    %v9949 = vunpack.c.l.b16 %v9789
    %v9950 = vunpack.c.l.b16 %v9790
    %v9951 = vunpack.c.l.b16 %v9791
    %v9952 = vunpack.c.l.b16 %v9792
    %v9953 = vunpack.c.l.b16 %v9793
    %v9954 = vunpack.c.l.b16 %v9794
    %v9955 = vunpack.c.l.b16 %v9795
    %v9956 = vunpack.c.l.b16 %v9796
    %v9957 = vunpack.c.l.b16 %v9797
    %v9958 = vunpack.c.l.b16 %v9798
    %v9959 = vunpack.c.l.b16 %v9799
    %v9960 = vunpack.c.l.b16 %v9800
    %v9961 = vunpack.c.l.b16 %v9801
    %v9962 = vunpack.c.l.b16 %v9802
    %v9963 = vunpack.c.l.b16 %v9803
    %v9964 = vunpack.c.l.b16 %v9804
    %v9965 = vunpack.c.l.b16 %v9805
    %v9966 = vunpack.c.l.b16 %v9806
    %v9967 = vunpack.c.l.b16 %v9807
    %v9968 = vpack.c.b16 %v9905, %v9904
    %v9969 = vpack.c.b16 %v9907, %v9906
    %v9970 = vpack.c.b16 %v9909, %v9908
    %v9971 = vpack.c.b16 %v9911, %v9910
    %v9972 = vpack.c.b16 %v9913, %v9912
    %v9973 = vpack.c.b16 %v9915, %v9914
    %v9974 = vpack.c.b16 %v9917, %v9916
    %v9975 = vpack.c.b16 %v9919, %v9918
    %v9976 = vpack.c.b16 %v9921, %v9920
    %v9977 = vpack.c.b16 %v9923, %v9922
    %v9978 = vpack.c.b16 %v9925, %v9924
    %v9979 = vpack.c.b16 %v9927, %v9926
    %v9980 = vpack.c.b16 %v9929, %v9928
    %v9981 = vpack.c.b16 %v9931, %v9930
    %v9982 = vpack.c.b16 %v9933, %v9932
    %v9983 = vpack.c.b16 %v9935, %v9934
    %v9984 = vpack.c.b16 %v9937, %v9936
    %v9985 = vpack.c.b16 %v9939, %v9938
    %v9986 = vpack.c.b16 %v9941, %v9940
    %v9987 = vpack.c.b16 %v9943, %v9942
    %v9988 = vpack.c.b16 %v9945, %v9944
    %v9989 = vpack.c.b16 %v9947, %v9946
    %v9990 = vpack.c.b16 %v9949, %v9948
    %v9991 = vpack.c.b16 %v9951, %v9950
    %v9992 = vpack.c.b16 %v9953, %v9952
    %v9993 = vpack.c.b16 %v9955, %v9954
    %v9994 = vpack.c.b16 %v9957, %v9956
    %v9995 = vpack.c.b16 %v9959, %v9958
    %v9996 = vpack.c.b16 %v9961, %v9960
    %v9997 = vpack.c.b16 %v9963, %v9962
    %v9998 = vpack.c.b16 %v9965, %v9964
    %v9999 = vpack.c.b16 %v9967, %v9966
    %10032 = vmatprep.subr.bf16.mxu0 0
    %10033 = vmatpush1.bf16.msra.mxu0 %v9968
    %10034 = vmatprep.subr.bf16.mxu0 0
    %10035 = vmatpush1.bf16.msra.mxu0 %v9969
    %10036 = vmatprep.subr.bf16.mxu0 0
    %10037 = vmatpush1.bf16.msra.mxu0 %v9970
    %10038 = vmatprep.subr.bf16.mxu0 0
    %10039 = vmatpush1.bf16.msra.mxu0 %v9971
    %10040 = vmatprep.subr.bf16.mxu0 0
    %10041 = vmatpush1.bf16.msra.mxu0 %v9972
    %10042 = vmatprep.subr.bf16.mxu0 0
    %10043 = vmatpush1.bf16.msra.mxu0 %v9973
    %10044 = vmatprep.subr.bf16.mxu0 0
    %10045 = vmatpush1.bf16.msra.mxu0 %v9974
    %10046 = vmatprep.subr.bf16.mxu0 0
    %10047 = vmatpush1.bf16.msra.mxu0 %v9975
    %10048 = vmatprep.subr.bf16.mxu0 0
    %10049 = vmatpush1.bf16.msra.mxu0 %v9976
    %10050 = vmatprep.subr.bf16.mxu0 0
    %10051 = vmatpush1.bf16.msra.mxu0 %v9977
    %10052 = vmatprep.subr.bf16.mxu0 0
    %10053 = vmatpush1.bf16.msra.mxu0 %v9978
    %10054 = vmatprep.subr.bf16.mxu0 0
    %10055 = vmatpush1.bf16.msra.mxu0 %v9979
    %10056 = vmatprep.subr.bf16.mxu0 0
    %10057 = vmatpush1.bf16.msra.mxu0 %v9980
    %10058 = vmatprep.subr.bf16.mxu0 0
    %10059 = vmatpush1.bf16.msra.mxu0 %v9981
    %10060 = vmatprep.subr.bf16.mxu0 0
    %10061 = vmatpush1.bf16.msra.mxu0 %v9982
    %10062 = vmatprep.subr.bf16.mxu0 0
    %10063 = vmatpush1.bf16.msra.mxu0 %v9983
    %10064 = vmatprep.mubr.bf16.mxu0 %v9833
    %10065 = vmatmul.mubr.bf16.gmra.mrb[0].mxu0 %v9832
    %v10066 = vpop.f32.mrb[0].mxu0
    %v10067 = vadd.f32 0.0, %v10066
    %v10068 = vpop.f32.mrb[0].mxu0
    %v10069 = vpop.f32.mrb[0].mxu0
    %v10070 = vpop.f32.mrb[0].mxu0
    %10071 = vdwg.mxu0
    %10072 = vmatprep.subr.bf16.mxu0 0
    %10073 = vmatpush1.bf16.msra.mxu0 %v9984
    %10074 = vmatprep.subr.bf16.mxu0 0
    %10075 = vmatpush1.bf16.msra.mxu0 %v9985
    %10076 = vmatprep.subr.bf16.mxu0 0
    %10077 = vmatpush1.bf16.msra.mxu0 %v9986
    %10078 = vmatprep.subr.bf16.mxu0 0
    %10079 = vmatpush1.bf16.msra.mxu0 %v9987
    %10080 = vmatprep.subr.bf16.mxu0 0
    %10081 = vmatpush1.bf16.msra.mxu0 %v9988
    %10082 = vmatprep.subr.bf16.mxu0 0
    %10083 = vmatpush1.bf16.msra.mxu0 %v9989
    %10084 = vmatprep.subr.bf16.mxu0 0
    %10085 = vmatpush1.bf16.msra.mxu0 %v9990
    %10086 = vmatprep.subr.bf16.mxu0 0
    %10087 = vmatpush1.bf16.msra.mxu0 %v9991
    %10088 = vmatprep.subr.bf16.mxu0 0
    %10089 = vmatpush1.bf16.msra.mxu0 %v9992
    %10090 = vmatprep.subr.bf16.mxu0 0
    %10091 = vmatpush1.bf16.msra.mxu0 %v9993
    %10092 = vmatprep.subr.bf16.mxu0 0
    %10093 = vmatpush1.bf16.msra.mxu0 %v9994
    %10094 = vmatprep.subr.bf16.mxu0 0
    %10095 = vmatpush1.bf16.msra.mxu0 %v9995
    %10096 = vmatprep.subr.bf16.mxu0 0
    %10097 = vmatpush1.bf16.msra.mxu0 %v9996
    %10098 = vmatprep.subr.bf16.mxu0 0
    %10099 = vmatpush1.bf16.msra.mxu0 %v9997
    %10100 = vmatprep.subr.bf16.mxu0 0
    %10101 = vmatpush1.bf16.msra.mxu0 %v9998
    %10102 = vmatprep.subr.bf16.mxu0 0
    %10103 = vmatpush1.bf16.msra.mxu0 %v9999
    %10104 = vmatprep.mubr.bf16.mxu0 %v9835
    %10105 = vmatmul.mubr.bf16.gmra.mrb[0].mxu0 %v9834
    %v10106 = vpop.f32.mrb[0].mxu0
    %v10107 = vadd.f32 %v10067, %v10106
    %v10108 = vpop.f32.mrb[0].mxu0
    %v10109 = vpop.f32.mrb[0].mxu0
    %v10110 = vpop.f32.mrb[0].mxu0
    %10111 = vdwg.mxu0
    %v10120 = vunpack.c.l.b16 %v9623
    %v10121 = vunpack.c.l.b16 %v9624
    %v10122 = vunpack.c.l.b16 %v9625
    %v10123 = vunpack.c.l.b16 %v9626
    %v10124 = vunpack.c.l.b16 %v9627
    %v10125 = vunpack.c.l.b16 %v9628
    %v10126 = vunpack.c.l.b16 %v9629
    %v10127 = vunpack.c.l.b16 %v9630
    %v10128 = vrot.slane %v10124, 7
    %v10129 = vsel %vm1706, %v10128, %v10120
    %v10130 = vrot.slane %v10125, 7
    %v10131 = vsel %vm1706, %v10130, %v10121
    %v10132 = vrot.slane %v10126, 7
    %v10133 = vsel %vm1706, %v10132, %v10122
    %v10134 = vrot.slane %v10127, 7
    %v10135 = vsel %vm1706, %v10134, %v10123
    %v10136 = vpack.c.b16 %v10129, %v10129
    %v10137 = vpack.c.b16 %v10131, %v10131
    %v10138 = vpack.c.b16 %v10133, %v10133
    %v10139 = vpack.c.b16 %v10135, %v10135
    %v10208 = vunpack.c.l.b16 %v9631
    %v10209 = vunpack.c.l.b16 %v9632
    %v10210 = vunpack.c.l.b16 %v9633
    %v10211 = vunpack.c.l.b16 %v9634
    %v10212 = vunpack.c.l.b16 %v9635
    %v10213 = vunpack.c.l.b16 %v9636
    %v10214 = vunpack.c.l.b16 %v9637
    %v10215 = vunpack.c.l.b16 %v9638
    %v10216 = vunpack.c.l.b16 %v9639
    %v10217 = vunpack.c.l.b16 %v9640
    %v10218 = vunpack.c.l.b16 %v9641
    %v10219 = vunpack.c.l.b16 %v9642
    %v10220 = vunpack.c.l.b16 %v9643
    %v10221 = vunpack.c.l.b16 %v9644
    %v10222 = vunpack.c.l.b16 %v9645
    %v10223 = vunpack.c.l.b16 %v9646
    %v10224 = vunpack.c.l.b16 %v9647
    %v10225 = vunpack.c.l.b16 %v9648
    %v10226 = vunpack.c.l.b16 %v9649
    %v10227 = vunpack.c.l.b16 %v9650
    %v10228 = vunpack.c.l.b16 %v9651
    %v10229 = vunpack.c.l.b16 %v9652
    %v10230 = vunpack.c.l.b16 %v9653
    %v10231 = vunpack.c.l.b16 %v9654
    %v10232 = vunpack.c.l.b16 %v9655
    %v10233 = vunpack.c.l.b16 %v9656
    %v10234 = vunpack.c.l.b16 %v9657
    %v10235 = vunpack.c.l.b16 %v9658
    %v10236 = vunpack.c.l.b16 %v9659
    %v10237 = vunpack.c.l.b16 %v9660
    %v10238 = vunpack.c.l.b16 %v9661
    %v10239 = vunpack.c.l.b16 %v9662
    %v10240 = vunpack.c.l.b16 %v9663
    %v10241 = vunpack.c.l.b16 %v9664
    %v10242 = vunpack.c.l.b16 %v9665
    %v10243 = vunpack.c.l.b16 %v9666
    %v10244 = vunpack.c.l.b16 %v9667
    %v10245 = vunpack.c.l.b16 %v9668
    %v10246 = vunpack.c.l.b16 %v9669
    %v10247 = vunpack.c.l.b16 %v9670
    %v10248 = vunpack.c.l.b16 %v9671
    %v10249 = vunpack.c.l.b16 %v9672
    %v10250 = vunpack.c.l.b16 %v9673
    %v10251 = vunpack.c.l.b16 %v9674
    %v10252 = vunpack.c.l.b16 %v9675
    %v10253 = vunpack.c.l.b16 %v9676
    %v10254 = vunpack.c.l.b16 %v9677
    %v10255 = vunpack.c.l.b16 %v9678
    %v10256 = vunpack.c.l.b16 %v9679
    %v10257 = vunpack.c.l.b16 %v9680
    %v10258 = vunpack.c.l.b16 %v9681
    %v10259 = vunpack.c.l.b16 %v9682
    %v10260 = vunpack.c.l.b16 %v9683
    %v10261 = vunpack.c.l.b16 %v9684
    %v10262 = vunpack.c.l.b16 %v9685
    %v10263 = vunpack.c.l.b16 %v9686
    %v10264 = vunpack.c.l.b16 %v9687
    %v10265 = vunpack.c.l.b16 %v9688
    %v10266 = vunpack.c.l.b16 %v9689
    %v10267 = vunpack.c.l.b16 %v9690
    %v10268 = vunpack.c.l.b16 %v9691
    %v10269 = vunpack.c.l.b16 %v9692
    %v10270 = vunpack.c.l.b16 %v9693
    %v10271 = vunpack.c.l.b16 %v9694
    %v10272 = vpack.c.b16 %v10209, %v10208
    %v10273 = vpack.c.b16 %v10211, %v10210
    %v10274 = vpack.c.b16 %v10213, %v10212
    %v10275 = vpack.c.b16 %v10215, %v10214
    %v10276 = vpack.c.b16 %v10217, %v10216
    %v10277 = vpack.c.b16 %v10219, %v10218
    %v10278 = vpack.c.b16 %v10221, %v10220
    %v10279 = vpack.c.b16 %v10223, %v10222
    %v10280 = vpack.c.b16 %v10225, %v10224
    %v10281 = vpack.c.b16 %v10227, %v10226
    %v10282 = vpack.c.b16 %v10229, %v10228
    %v10283 = vpack.c.b16 %v10231, %v10230
    %v10284 = vpack.c.b16 %v10233, %v10232
    %v10285 = vpack.c.b16 %v10235, %v10234
    %v10286 = vpack.c.b16 %v10237, %v10236
    %v10287 = vpack.c.b16 %v10239, %v10238
    %v10288 = vpack.c.b16 %v10241, %v10240
    %v10289 = vpack.c.b16 %v10243, %v10242
    %v10290 = vpack.c.b16 %v10245, %v10244
    %v10291 = vpack.c.b16 %v10247, %v10246
    %v10292 = vpack.c.b16 %v10249, %v10248
    %v10293 = vpack.c.b16 %v10251, %v10250
    %v10294 = vpack.c.b16 %v10253, %v10252
    %v10295 = vpack.c.b16 %v10255, %v10254
    %v10296 = vpack.c.b16 %v10257, %v10256
    %v10297 = vpack.c.b16 %v10259, %v10258
    %v10298 = vpack.c.b16 %v10261, %v10260
    %v10299 = vpack.c.b16 %v10263, %v10262
    %v10300 = vpack.c.b16 %v10265, %v10264
    %v10301 = vpack.c.b16 %v10267, %v10266
    %v10302 = vpack.c.b16 %v10269, %v10268
    %v10303 = vpack.c.b16 %v10271, %v10270
    %10336 = vmatprep.subr.bf16.mxu0 0
    %10337 = vmatpush1.bf16.msra.mxu0 %v10272
    %10338 = vmatprep.subr.bf16.mxu0 0
    %10339 = vmatpush1.bf16.msra.mxu0 %v10273
    %10340 = vmatprep.subr.bf16.mxu0 0
    %10341 = vmatpush1.bf16.msra.mxu0 %v10274
    %10342 = vmatprep.subr.bf16.mxu0 0
    %10343 = vmatpush1.bf16.msra.mxu0 %v10275
    %10344 = vmatprep.subr.bf16.mxu0 0
    %10345 = vmatpush1.bf16.msra.mxu0 %v10276
    %10346 = vmatprep.subr.bf16.mxu0 0
    %10347 = vmatpush1.bf16.msra.mxu0 %v10277
    %10348 = vmatprep.subr.bf16.mxu0 0
    %10349 = vmatpush1.bf16.msra.mxu0 %v10278
    %10350 = vmatprep.subr.bf16.mxu0 0
    %10351 = vmatpush1.bf16.msra.mxu0 %v10279
    %10352 = vmatprep.subr.bf16.mxu0 0
    %10353 = vmatpush1.bf16.msra.mxu0 %v10280
    %10354 = vmatprep.subr.bf16.mxu0 0
    %10355 = vmatpush1.bf16.msra.mxu0 %v10281
    %10356 = vmatprep.subr.bf16.mxu0 0
    %10357 = vmatpush1.bf16.msra.mxu0 %v10282
    %10358 = vmatprep.subr.bf16.mxu0 0
    %10359 = vmatpush1.bf16.msra.mxu0 %v10283
    %10360 = vmatprep.subr.bf16.mxu0 0
    %10361 = vmatpush1.bf16.msra.mxu0 %v10284
    %10362 = vmatprep.subr.bf16.mxu0 0
    %10363 = vmatpush1.bf16.msra.mxu0 %v10285
    %10364 = vmatprep.subr.bf16.mxu0 0
    %10365 = vmatpush1.bf16.msra.mxu0 %v10286
    %10366 = vmatprep.subr.bf16.mxu0 0
    %10367 = vmatpush1.bf16.msra.mxu0 %v10287
    %10368 = vmatprep.mubr.bf16.mxu0 %v10137
    %10369 = vmatmul.mubr.bf16.gmra.mrb[0].mxu0 %v10136
    %v10370 = vpop.f32.mrb[0].mxu0
    %v10371 = vadd.f32 %v10107, %v10370
    %v10372 = vpop.f32.mrb[0].mxu0
    %v10373 = vpop.f32.mrb[0].mxu0
    %v10374 = vpop.f32.mrb[0].mxu0
    %10375 = vdwg.mxu0
    %10376 = vmatprep.subr.bf16.mxu0 0
    %10377 = vmatpush1.bf16.msra.mxu0 %v10288
    %10378 = vmatprep.subr.bf16.mxu0 0
    %10379 = vmatpush1.bf16.msra.mxu0 %v10289
    %10380 = vmatprep.subr.bf16.mxu0 0
    %10381 = vmatpush1.bf16.msra.mxu0 %v10290
    %10382 = vmatprep.subr.bf16.mxu0 0
    %10383 = vmatpush1.bf16.msra.mxu0 %v10291
    %10384 = vmatprep.subr.bf16.mxu0 0
    %10385 = vmatpush1.bf16.msra.mxu0 %v10292
    %10386 = vmatprep.subr.bf16.mxu0 0
    %10387 = vmatpush1.bf16.msra.mxu0 %v10293
    %10388 = vmatprep.subr.bf16.mxu0 0
    %10389 = vmatpush1.bf16.msra.mxu0 %v10294
    %10390 = vmatprep.subr.bf16.mxu0 0
    %10391 = vmatpush1.bf16.msra.mxu0 %v10295
    %10392 = vmatprep.subr.bf16.mxu0 0
    %10393 = vmatpush1.bf16.msra.mxu0 %v10296
    %10394 = vmatprep.subr.bf16.mxu0 0
    %10395 = vmatpush1.bf16.msra.mxu0 %v10297
    %10396 = vmatprep.subr.bf16.mxu0 0
    %10397 = vmatpush1.bf16.msra.mxu0 %v10298
    %10398 = vmatprep.subr.bf16.mxu0 0
    %10399 = vmatpush1.bf16.msra.mxu0 %v10299
    %10400 = vmatprep.subr.bf16.mxu0 0
    %10401 = vmatpush1.bf16.msra.mxu0 %v10300
    %10402 = vmatprep.subr.bf16.mxu0 0
    %10403 = vmatpush1.bf16.msra.mxu0 %v10301
    %10404 = vmatprep.subr.bf16.mxu0 0
    %10405 = vmatpush1.bf16.msra.mxu0 %v10302
    %10406 = vmatprep.subr.bf16.mxu0 0
    %10407 = vmatpush1.bf16.msra.mxu0 %v10303
    %10408 = vmatprep.mubr.bf16.mxu0 %v10139
    %10409 = vmatmul.mubr.bf16.gmra.mrb[0].mxu0 %v10138
    %v10410 = vpop.f32.mrb[0].mxu0
    %v10411 = vadd.f32 %v10371, %v10410
    %v10412 = vpop.f32.mrb[0].mxu0
    %v10413 = vpop.f32.mrb[0].mxu0
    %v10414 = vpop.f32.mrb[0].mxu0
    %10415 = vdwg.mxu0
    %v10416 = vlaneseq
    %v10417 = vshrl.u32 %v10416, 7
    %v10418 = vsub.s32 0, %v10417
    %v10419 = vrot.slane %v9564, %v10418
    %v10420 = vlaneseq
    %v10421 = vshrl.u32 %v10420, 7
    %v10422 = vsub.s32 2, %v10421
    %v10423 = vrot.slane %v9564, %v10422
    %v10424 = vlaneseq
    %v10425 = vshrl.u32 %v10424, 7
    %v10426 = vsub.s32 4, %v10425
    %v10427 = vrot.slane %v9564, %v10426
    %v10428 = vlaneseq
    %v10429 = vshrl.u32 %v10428, 7
    %v10430 = vsub.s32 6, %v10429
    %v10431 = vrot.slane %v9564, %v10430
    %v10432 = vlaneseq
    %v10433 = vshrl.u32 %v10432, 7
    %v10434 = vsub.s32 0, %v10433
    %v10435 = vrot.slane %v9582, %v10434
    %v10436 = vlaneseq
    %v10437 = vshrl.u32 %v10436, 7
    %v10438 = vsub.s32 2, %v10437
    %v10439 = vrot.slane %v9582, %v10438
    %v10440 = vlaneseq
    %v10441 = vshrl.u32 %v10440, 7
    %v10442 = vsub.s32 4, %v10441
    %v10443 = vrot.slane %v9582, %v10442
    %v10444 = vlaneseq
    %v10445 = vshrl.u32 %v10444, 7
    %v10446 = vsub.s32 6, %v10445
    %v10447 = vrot.slane %v9582, %v10446
    %v10456 = vpack.c.bf16 %v10419, %v10419
    %v10457 = vpack.c.bf16 %v10423, %v10423
    %v10458 = vpack.c.bf16 %v10427, %v10427
    %v10459 = vpack.c.bf16 %v10431, %v10431
    %v10460 = vpack.c.bf16 %v10435, %v10435
    %v10461 = vpack.c.bf16 %v10439, %v10439
    %v10462 = vpack.c.bf16 %v10443, %v10443
    %v10463 = vpack.c.bf16 %v10447, %v10447
    %s10464 = scalar_lea.vmem [#allocation16], 512
    %v10465 = vld [vmem:[%s10464] sm:$0xf]
    %v10466 = vld [vmem:[%s10464 + $0x4] sm:$0xf]
    %v10467 = vld [vmem:[%s10464 + $0x8] sm:$0xf]
    %v10468 = vld [vmem:[%s10464 + $0xc] sm:$0xf]
    %v10469 = vld [vmem:[%s10464 + $0x10] sm:$0xf]
    %v10470 = vld [vmem:[%s10464 + $0x14] sm:$0xf]
    %v10471 = vld [vmem:[%s10464 + $0x18] sm:$0xf]
    %v10472 = vld [vmem:[%s10464 + $0x1c] sm:$0xf]
    %v10473 = vld [vmem:[%s10464 + $0x20] sm:$0xf]
    %v10474 = vld [vmem:[%s10464 + $0x24] sm:$0xf]
    %v10475 = vld [vmem:[%s10464 + $0x28] sm:$0xf]
    %v10476 = vld [vmem:[%s10464 + $0x2c] sm:$0xf]
    %v10477 = vld [vmem:[%s10464 + $0x30] sm:$0xf]
    %v10478 = vld [vmem:[%s10464 + $0x34] sm:$0xf]
    %v10479 = vld [vmem:[%s10464 + $0x38] sm:$0xf]
    %v10480 = vld [vmem:[%s10464 + $0x3c] sm:$0xf]
    %v10481 = vld [vmem:[%s10464 + $0x40] sm:$0xf]
    %v10482 = vld [vmem:[%s10464 + $0x44] sm:$0xf]
    %v10483 = vld [vmem:[%s10464 + $0x48] sm:$0xf]
    %v10484 = vld [vmem:[%s10464 + $0x4c] sm:$0xf]
    %v10485 = vld [vmem:[%s10464 + $0x50] sm:$0xf]
    %v10486 = vld [vmem:[%s10464 + $0x54] sm:$0xf]
    %v10487 = vld [vmem:[%s10464 + $0x58] sm:$0xf]
    %v10488 = vld [vmem:[%s10464 + $0x5c] sm:$0xf]
    %v10489 = vld [vmem:[%s10464 + $0x60] sm:$0xf]
    %v10490 = vld [vmem:[%s10464 + $0x64] sm:$0xf]
    %v10491 = vld [vmem:[%s10464 + $0x68] sm:$0xf]
    %v10492 = vld [vmem:[%s10464 + $0x6c] sm:$0xf]
    %v10493 = vld [vmem:[%s10464 + $0x70] sm:$0xf]
    %v10494 = vld [vmem:[%s10464 + $0x74] sm:$0xf]
    %v10495 = vld [vmem:[%s10464 + $0x78] sm:$0xf]
    %v10496 = vld [vmem:[%s10464 + $0x7c] sm:$0xf]
    %v10497 = vld [vmem:[%s10464 + $0x80] sm:$0xf]
    %v10498 = vld [vmem:[%s10464 + $0x84] sm:$0xf]
    %v10499 = vld [vmem:[%s10464 + $0x88] sm:$0xf]
    %v10500 = vld [vmem:[%s10464 + $0x8c] sm:$0xf]
    %v10501 = vld [vmem:[%s10464 + $0x90] sm:$0xf]
    %v10502 = vld [vmem:[%s10464 + $0x94] sm:$0xf]
    %v10503 = vld [vmem:[%s10464 + $0x98] sm:$0xf]
    %v10504 = vld [vmem:[%s10464 + $0x9c] sm:$0xf]
    %v10505 = vld [vmem:[%s10464 + $0xa0] sm:$0xf]
    %v10506 = vld [vmem:[%s10464 + $0xa4] sm:$0xf]
    %v10507 = vld [vmem:[%s10464 + $0xa8] sm:$0xf]
    %v10508 = vld [vmem:[%s10464 + $0xac] sm:$0xf]
    %v10509 = vld [vmem:[%s10464 + $0xb0] sm:$0xf]
    %v10510 = vld [vmem:[%s10464 + $0xb4] sm:$0xf]
    %v10511 = vld [vmem:[%s10464 + $0xb8] sm:$0xf]
    %v10512 = vld [vmem:[%s10464 + $0xbc] sm:$0xf]
    %v10513 = vld [vmem:[%s10464 + $0xc0] sm:$0xf]
    %v10514 = vld [vmem:[%s10464 + $0xc4] sm:$0xf]
    %v10515 = vld [vmem:[%s10464 + $0xc8] sm:$0xf]
    %v10516 = vld [vmem:[%s10464 + $0xcc] sm:$0xf]
    %v10517 = vld [vmem:[%s10464 + $0xd0] sm:$0xf]
    %v10518 = vld [vmem:[%s10464 + $0xd4] sm:$0xf]
    %v10519 = vld [vmem:[%s10464 + $0xd8] sm:$0xf]
    %v10520 = vld [vmem:[%s10464 + $0xdc] sm:$0xf]
    %v10521 = vld [vmem:[%s10464 + $0xe0] sm:$0xf]
    %v10522 = vld [vmem:[%s10464 + $0xe4] sm:$0xf]
    %v10523 = vld [vmem:[%s10464 + $0xe8] sm:$0xf]
    %v10524 = vld [vmem:[%s10464 + $0xec] sm:$0xf]
    %v10525 = vld [vmem:[%s10464 + $0xf0] sm:$0xf]
    %v10526 = vld [vmem:[%s10464 + $0xf4] sm:$0xf]
    %v10527 = vld [vmem:[%s10464 + $0xf8] sm:$0xf]
    %v10528 = vld [vmem:[%s10464 + $0xfc] sm:$0xf]
    %v10537 = vunpack.c.l.b16 %v10456
    %v10538 = vunpack.c.l.b16 %v10457
    %v10539 = vunpack.c.l.b16 %v10458
    %v10540 = vunpack.c.l.b16 %v10459
    %v10541 = vunpack.c.l.b16 %v10460
    %v10542 = vunpack.c.l.b16 %v10461
    %v10543 = vunpack.c.l.b16 %v10462
    %v10544 = vunpack.c.l.b16 %v10463
    %v10545 = vrot.slane %v10541, 7
    %v10546 = vsel %vm1706, %v10545, %v10537
    %v10547 = vrot.slane %v10542, 7
    %v10548 = vsel %vm1706, %v10547, %v10538
    %v10549 = vrot.slane %v10543, 7
    %v10550 = vsel %vm1706, %v10549, %v10539
    %v10551 = vrot.slane %v10544, 7
    %v10552 = vsel %vm1706, %v10551, %v10540
    %v10553 = vpack.c.b16 %v10546, %v10546
    %v10554 = vpack.c.b16 %v10548, %v10548
    %v10555 = vpack.c.b16 %v10550, %v10550
    %v10556 = vpack.c.b16 %v10552, %v10552
    %v10625 = vunpack.c.l.b16 %v10465
    %v10626 = vunpack.c.l.b16 %v10466
    %v10627 = vunpack.c.l.b16 %v10467
    %v10628 = vunpack.c.l.b16 %v10468
    %v10629 = vunpack.c.l.b16 %v10469
    %v10630 = vunpack.c.l.b16 %v10470
    %v10631 = vunpack.c.l.b16 %v10471
    %v10632 = vunpack.c.l.b16 %v10472
    %v10633 = vunpack.c.l.b16 %v10473
    %v10634 = vunpack.c.l.b16 %v10474
    %v10635 = vunpack.c.l.b16 %v10475
    %v10636 = vunpack.c.l.b16 %v10476
    %v10637 = vunpack.c.l.b16 %v10477
    %v10638 = vunpack.c.l.b16 %v10478
    %v10639 = vunpack.c.l.b16 %v10479
    %v10640 = vunpack.c.l.b16 %v10480
    %v10641 = vunpack.c.l.b16 %v10481
    %v10642 = vunpack.c.l.b16 %v10482
    %v10643 = vunpack.c.l.b16 %v10483
    %v10644 = vunpack.c.l.b16 %v10484
    %v10645 = vunpack.c.l.b16 %v10485
    %v10646 = vunpack.c.l.b16 %v10486
    %v10647 = vunpack.c.l.b16 %v10487
    %v10648 = vunpack.c.l.b16 %v10488
    %v10649 = vunpack.c.l.b16 %v10489
    %v10650 = vunpack.c.l.b16 %v10490
    %v10651 = vunpack.c.l.b16 %v10491
    %v10652 = vunpack.c.l.b16 %v10492
    %v10653 = vunpack.c.l.b16 %v10493
    %v10654 = vunpack.c.l.b16 %v10494
    %v10655 = vunpack.c.l.b16 %v10495
    %v10656 = vunpack.c.l.b16 %v10496
    %v10657 = vunpack.c.l.b16 %v10497
    %v10658 = vunpack.c.l.b16 %v10498
    %v10659 = vunpack.c.l.b16 %v10499
    %v10660 = vunpack.c.l.b16 %v10500
    %v10661 = vunpack.c.l.b16 %v10501
    %v10662 = vunpack.c.l.b16 %v10502
    %v10663 = vunpack.c.l.b16 %v10503
    %v10664 = vunpack.c.l.b16 %v10504
    %v10665 = vunpack.c.l.b16 %v10505
    %v10666 = vunpack.c.l.b16 %v10506
    %v10667 = vunpack.c.l.b16 %v10507
    %v10668 = vunpack.c.l.b16 %v10508
    %v10669 = vunpack.c.l.b16 %v10509
    %v10670 = vunpack.c.l.b16 %v10510
    %v10671 = vunpack.c.l.b16 %v10511
    %v10672 = vunpack.c.l.b16 %v10512
    %v10673 = vunpack.c.l.b16 %v10513
    %v10674 = vunpack.c.l.b16 %v10514
    %v10675 = vunpack.c.l.b16 %v10515
    %v10676 = vunpack.c.l.b16 %v10516
    %v10677 = vunpack.c.l.b16 %v10517
    %v10678 = vunpack.c.l.b16 %v10518
    %v10679 = vunpack.c.l.b16 %v10519
    %v10680 = vunpack.c.l.b16 %v10520
    %v10681 = vunpack.c.l.b16 %v10521
    %v10682 = vunpack.c.l.b16 %v10522
    %v10683 = vunpack.c.l.b16 %v10523
    %v10684 = vunpack.c.l.b16 %v10524
    %v10685 = vunpack.c.l.b16 %v10525
    %v10686 = vunpack.c.l.b16 %v10526
    %v10687 = vunpack.c.l.b16 %v10527
    %v10688 = vunpack.c.l.b16 %v10528
    %v10689 = vpack.c.b16 %v10626, %v10625
    %v10690 = vpack.c.b16 %v10628, %v10627
    %v10691 = vpack.c.b16 %v10630, %v10629
    %v10692 = vpack.c.b16 %v10632, %v10631
    %v10693 = vpack.c.b16 %v10634, %v10633
    %v10694 = vpack.c.b16 %v10636, %v10635
    %v10695 = vpack.c.b16 %v10638, %v10637
    %v10696 = vpack.c.b16 %v10640, %v10639
    %v10697 = vpack.c.b16 %v10642, %v10641
    %v10698 = vpack.c.b16 %v10644, %v10643
    %v10699 = vpack.c.b16 %v10646, %v10645
    %v10700 = vpack.c.b16 %v10648, %v10647
    %v10701 = vpack.c.b16 %v10650, %v10649
    %v10702 = vpack.c.b16 %v10652, %v10651
    %v10703 = vpack.c.b16 %v10654, %v10653
    %v10704 = vpack.c.b16 %v10656, %v10655
    %v10705 = vpack.c.b16 %v10658, %v10657
    %v10706 = vpack.c.b16 %v10660, %v10659
    %v10707 = vpack.c.b16 %v10662, %v10661
    %v10708 = vpack.c.b16 %v10664, %v10663
    %v10709 = vpack.c.b16 %v10666, %v10665
    %v10710 = vpack.c.b16 %v10668, %v10667
    %v10711 = vpack.c.b16 %v10670, %v10669
    %v10712 = vpack.c.b16 %v10672, %v10671
    %v10713 = vpack.c.b16 %v10674, %v10673
    %v10714 = vpack.c.b16 %v10676, %v10675
    %v10715 = vpack.c.b16 %v10678, %v10677
    %v10716 = vpack.c.b16 %v10680, %v10679
    %v10717 = vpack.c.b16 %v10682, %v10681
    %v10718 = vpack.c.b16 %v10684, %v10683
    %v10719 = vpack.c.b16 %v10686, %v10685
    %v10720 = vpack.c.b16 %v10688, %v10687
    %10753 = vmatprep.subr.bf16.mxu0 0
    %10754 = vmatpush1.bf16.msra.mxu0 %v10689
    %10755 = vmatprep.subr.bf16.mxu0 0
    %10756 = vmatpush1.bf16.msra.mxu0 %v10690
    %10757 = vmatprep.subr.bf16.mxu0 0
    %10758 = vmatpush1.bf16.msra.mxu0 %v10691
    %10759 = vmatprep.subr.bf16.mxu0 0
    %10760 = vmatpush1.bf16.msra.mxu0 %v10692
    %10761 = vmatprep.subr.bf16.mxu0 0
    %10762 = vmatpush1.bf16.msra.mxu0 %v10693
    %10763 = vmatprep.subr.bf16.mxu0 0
    %10764 = vmatpush1.bf16.msra.mxu0 %v10694
    %10765 = vmatprep.subr.bf16.mxu0 0
    %10766 = vmatpush1.bf16.msra.mxu0 %v10695
    %10767 = vmatprep.subr.bf16.mxu0 0
    %10768 = vmatpush1.bf16.msra.mxu0 %v10696
    %10769 = vmatprep.subr.bf16.mxu0 0
    %10770 = vmatpush1.bf16.msra.mxu0 %v10697
    %10771 = vmatprep.subr.bf16.mxu0 0
    %10772 = vmatpush1.bf16.msra.mxu0 %v10698
    %10773 = vmatprep.subr.bf16.mxu0 0
    %10774 = vmatpush1.bf16.msra.mxu0 %v10699
    %10775 = vmatprep.subr.bf16.mxu0 0
    %10776 = vmatpush1.bf16.msra.mxu0 %v10700
    %10777 = vmatprep.subr.bf16.mxu0 0
    %10778 = vmatpush1.bf16.msra.mxu0 %v10701
    %10779 = vmatprep.subr.bf16.mxu0 0
    %10780 = vmatpush1.bf16.msra.mxu0 %v10702
    %10781 = vmatprep.subr.bf16.mxu0 0
    %10782 = vmatpush1.bf16.msra.mxu0 %v10703
    %10783 = vmatprep.subr.bf16.mxu0 0
    %10784 = vmatpush1.bf16.msra.mxu0 %v10704
    %10785 = vmatprep.mubr.bf16.mxu0 %v10554
    %10786 = vmatmul.mubr.bf16.gmra.mrb[0].mxu0 %v10553
    %v10787 = vpop.f32.mrb[0].mxu0
    %v10788 = vadd.f32 0.0, %v10787
    %v10789 = vpop.f32.mrb[0].mxu0
    %v10790 = vpop.f32.mrb[0].mxu0
    %v10791 = vpop.f32.mrb[0].mxu0
    %10792 = vdwg.mxu0
    %10793 = vmatprep.subr.bf16.mxu0 0
    %10794 = vmatpush1.bf16.msra.mxu0 %v10705
    %10795 = vmatprep.subr.bf16.mxu0 0
    %10796 = vmatpush1.bf16.msra.mxu0 %v10706
    %10797 = vmatprep.subr.bf16.mxu0 0
    %10798 = vmatpush1.bf16.msra.mxu0 %v10707
    %10799 = vmatprep.subr.bf16.mxu0 0
    %10800 = vmatpush1.bf16.msra.mxu0 %v10708
    %10801 = vmatprep.subr.bf16.mxu0 0
    %10802 = vmatpush1.bf16.msra.mxu0 %v10709
    %10803 = vmatprep.subr.bf16.mxu0 0
    %10804 = vmatpush1.bf16.msra.mxu0 %v10710
    %10805 = vmatprep.subr.bf16.mxu0 0
    %10806 = vmatpush1.bf16.msra.mxu0 %v10711
    %10807 = vmatprep.subr.bf16.mxu0 0
    %10808 = vmatpush1.bf16.msra.mxu0 %v10712
    %10809 = vmatprep.subr.bf16.mxu0 0
    %10810 = vmatpush1.bf16.msra.mxu0 %v10713
    %10811 = vmatprep.subr.bf16.mxu0 0
    %10812 = vmatpush1.bf16.msra.mxu0 %v10714
    %10813 = vmatprep.subr.bf16.mxu0 0
    %10814 = vmatpush1.bf16.msra.mxu0 %v10715
    %10815 = vmatprep.subr.bf16.mxu0 0
    %10816 = vmatpush1.bf16.msra.mxu0 %v10716
    %10817 = vmatprep.subr.bf16.mxu0 0
    %10818 = vmatpush1.bf16.msra.mxu0 %v10717
    %10819 = vmatprep.subr.bf16.mxu0 0
    %10820 = vmatpush1.bf16.msra.mxu0 %v10718
    %10821 = vmatprep.subr.bf16.mxu0 0
    %10822 = vmatpush1.bf16.msra.mxu0 %v10719
    %10823 = vmatprep.subr.bf16.mxu0 0
    %10824 = vmatpush1.bf16.msra.mxu0 %v10720
    %10825 = vmatprep.mubr.bf16.mxu0 %v10556
    %10826 = vmatmul.mubr.bf16.gmra.mrb[0].mxu0 %v10555
    %v10827 = vpop.f32.mrb[0].mxu0
    %v10828 = vadd.f32 %v10788, %v10827
    %v10829 = vpop.f32.mrb[0].mxu0
    %v10830 = vpop.f32.mrb[0].mxu0
    %v10831 = vpop.f32.mrb[0].mxu0
    %10832 = vdwg.mxu0
    %v10833 = vadd.f32 %v10411, %v10828
    %v10834 = vlaneseq
    %v10835 = vshrl.u32 %v10834, 7
    %v10836 = vsub.s32 1, %v10835
    %v10837 = vrot.slane %v9564, %v10836
    %v10838 = vlaneseq
    %v10839 = vshrl.u32 %v10838, 7
    %v10840 = vsub.s32 3, %v10839
    %v10841 = vrot.slane %v9564, %v10840
    %v10842 = vlaneseq
    %v10843 = vshrl.u32 %v10842, 7
    %v10844 = vsub.s32 5, %v10843
    %v10845 = vrot.slane %v9564, %v10844
    %v10846 = vlaneseq
    %v10847 = vshrl.u32 %v10846, 7
    %v10848 = vsub.s32 7, %v10847
    %v10849 = vrot.slane %v9564, %v10848
    %v10850 = vlaneseq
    %v10851 = vshrl.u32 %v10850, 7
    %v10852 = vsub.s32 1, %v10851
    %v10853 = vrot.slane %v9582, %v10852
    %v10854 = vlaneseq
    %v10855 = vshrl.u32 %v10854, 7
    %v10856 = vsub.s32 3, %v10855
    %v10857 = vrot.slane %v9582, %v10856
    %v10858 = vlaneseq
    %v10859 = vshrl.u32 %v10858, 7
    %v10860 = vsub.s32 5, %v10859
    %v10861 = vrot.slane %v9582, %v10860
    %v10862 = vlaneseq
    %v10863 = vshrl.u32 %v10862, 7
    %v10864 = vsub.s32 7, %v10863
    %v10865 = vrot.slane %v9582, %v10864
    %v10874 = vpack.c.bf16 %v10837, %v10837
    %v10875 = vpack.c.bf16 %v10841, %v10841
    %v10876 = vpack.c.bf16 %v10845, %v10845
    %v10877 = vpack.c.bf16 %v10849, %v10849
    %v10878 = vpack.c.bf16 %v10853, %v10853
    %v10879 = vpack.c.bf16 %v10857, %v10857
    %v10880 = vpack.c.bf16 %v10861, %v10861
    %v10881 = vpack.c.bf16 %v10865, %v10865
    %s10882 = scalar_lea.vmem [#allocation16], 768
    %v10883 = vld [vmem:[%s10882] sm:$0xf]
    %v10884 = vld [vmem:[%s10882 + $0x4] sm:$0xf]
    %v10885 = vld [vmem:[%s10882 + $0x8] sm:$0xf]
    %v10886 = vld [vmem:[%s10882 + $0xc] sm:$0xf]
    %v10887 = vld [vmem:[%s10882 + $0x10] sm:$0xf]
    %v10888 = vld [vmem:[%s10882 + $0x14] sm:$0xf]
    %v10889 = vld [vmem:[%s10882 + $0x18] sm:$0xf]
    %v10890 = vld [vmem:[%s10882 + $0x1c] sm:$0xf]
    %v10891 = vld [vmem:[%s10882 + $0x20] sm:$0xf]
    %v10892 = vld [vmem:[%s10882 + $0x24] sm:$0xf]
    %v10893 = vld [vmem:[%s10882 + $0x28] sm:$0xf]
    %v10894 = vld [vmem:[%s10882 + $0x2c] sm:$0xf]
    %v10895 = vld [vmem:[%s10882 + $0x30] sm:$0xf]
    %v10896 = vld [vmem:[%s10882 + $0x34] sm:$0xf]
    %v10897 = vld [vmem:[%s10882 + $0x38] sm:$0xf]
    %v10898 = vld [vmem:[%s10882 + $0x3c] sm:$0xf]
    %v10899 = vld [vmem:[%s10882 + $0x40] sm:$0xf]
    %v10900 = vld [vmem:[%s10882 + $0x44] sm:$0xf]
    %v10901 = vld [vmem:[%s10882 + $0x48] sm:$0xf]
    %v10902 = vld [vmem:[%s10882 + $0x4c] sm:$0xf]
    %v10903 = vld [vmem:[%s10882 + $0x50] sm:$0xf]
    %v10904 = vld [vmem:[%s10882 + $0x54] sm:$0xf]
    %v10905 = vld [vmem:[%s10882 + $0x58] sm:$0xf]
    %v10906 = vld [vmem:[%s10882 + $0x5c] sm:$0xf]
    %v10907 = vld [vmem:[%s10882 + $0x60] sm:$0xf]
    %v10908 = vld [vmem:[%s10882 + $0x64] sm:$0xf]
    %v10909 = vld [vmem:[%s10882 + $0x68] sm:$0xf]
    %v10910 = vld [vmem:[%s10882 + $0x6c] sm:$0xf]
    %v10911 = vld [vmem:[%s10882 + $0x70] sm:$0xf]
    %v10912 = vld [vmem:[%s10882 + $0x74] sm:$0xf]
    %v10913 = vld [vmem:[%s10882 + $0x78] sm:$0xf]
    %v10914 = vld [vmem:[%s10882 + $0x7c] sm:$0xf]
    %v10915 = vld [vmem:[%s10882 + $0x80] sm:$0xf]
    %v10916 = vld [vmem:[%s10882 + $0x84] sm:$0xf]
    %v10917 = vld [vmem:[%s10882 + $0x88] sm:$0xf]
    %v10918 = vld [vmem:[%s10882 + $0x8c] sm:$0xf]
    %v10919 = vld [vmem:[%s10882 + $0x90] sm:$0xf]
    %v10920 = vld [vmem:[%s10882 + $0x94] sm:$0xf]
    %v10921 = vld [vmem:[%s10882 + $0x98] sm:$0xf]
    %v10922 = vld [vmem:[%s10882 + $0x9c] sm:$0xf]
    %v10923 = vld [vmem:[%s10882 + $0xa0] sm:$0xf]
    %v10924 = vld [vmem:[%s10882 + $0xa4] sm:$0xf]
    %v10925 = vld [vmem:[%s10882 + $0xa8] sm:$0xf]
    %v10926 = vld [vmem:[%s10882 + $0xac] sm:$0xf]
    %v10927 = vld [vmem:[%s10882 + $0xb0] sm:$0xf]
    %v10928 = vld [vmem:[%s10882 + $0xb4] sm:$0xf]
    %v10929 = vld [vmem:[%s10882 + $0xb8] sm:$0xf]
    %v10930 = vld [vmem:[%s10882 + $0xbc] sm:$0xf]
    %v10931 = vld [vmem:[%s10882 + $0xc0] sm:$0xf]
    %v10932 = vld [vmem:[%s10882 + $0xc4] sm:$0xf]
    %v10933 = vld [vmem:[%s10882 + $0xc8] sm:$0xf]
    %v10934 = vld [vmem:[%s10882 + $0xcc] sm:$0xf]
    %v10935 = vld [vmem:[%s10882 + $0xd0] sm:$0xf]
    %v10936 = vld [vmem:[%s10882 + $0xd4] sm:$0xf]
    %v10937 = vld [vmem:[%s10882 + $0xd8] sm:$0xf]
    %v10938 = vld [vmem:[%s10882 + $0xdc] sm:$0xf]
    %v10939 = vld [vmem:[%s10882 + $0xe0] sm:$0xf]
    %v10940 = vld [vmem:[%s10882 + $0xe4] sm:$0xf]
    %v10941 = vld [vmem:[%s10882 + $0xe8] sm:$0xf]
    %v10942 = vld [vmem:[%s10882 + $0xec] sm:$0xf]
    %v10943 = vld [vmem:[%s10882 + $0xf0] sm:$0xf]
    %v10944 = vld [vmem:[%s10882 + $0xf4] sm:$0xf]
    %v10945 = vld [vmem:[%s10882 + $0xf8] sm:$0xf]
    %v10946 = vld [vmem:[%s10882 + $0xfc] sm:$0xf]
    %v10955 = vunpack.c.l.b16 %v10874
    %v10956 = vunpack.c.l.b16 %v10875
    %v10957 = vunpack.c.l.b16 %v10876
    %v10958 = vunpack.c.l.b16 %v10877
    %v10959 = vunpack.c.l.b16 %v10878
    %v10960 = vunpack.c.l.b16 %v10879
    %v10961 = vunpack.c.l.b16 %v10880
    %v10962 = vunpack.c.l.b16 %v10881
    %v10963 = vrot.slane %v10955, 1
    %v10964 = vsel %vm1706, %v10959, %v10963
    %v10965 = vrot.slane %v10956, 1
    %v10966 = vsel %vm1706, %v10960, %v10965
    %v10967 = vrot.slane %v10957, 1
    %v10968 = vsel %vm1706, %v10961, %v10967
    %v10969 = vrot.slane %v10958, 1
    %v10970 = vsel %vm1706, %v10962, %v10969
    %v10971 = vpack.c.b16 %v10964, %v10964
    %v10972 = vpack.c.b16 %v10966, %v10966
    %v10973 = vpack.c.b16 %v10968, %v10968
    %v10974 = vpack.c.b16 %v10970, %v10970
    %v11043 = vunpack.c.l.b16 %v10883
    %v11044 = vunpack.c.l.b16 %v10884
    %v11045 = vunpack.c.l.b16 %v10885
    %v11046 = vunpack.c.l.b16 %v10886
    %v11047 = vunpack.c.l.b16 %v10887
    %v11048 = vunpack.c.l.b16 %v10888
    %v11049 = vunpack.c.l.b16 %v10889
    %v11050 = vunpack.c.l.b16 %v10890
    %v11051 = vunpack.c.l.b16 %v10891
    %v11052 = vunpack.c.l.b16 %v10892
    %v11053 = vunpack.c.l.b16 %v10893
    %v11054 = vunpack.c.l.b16 %v10894
    %v11055 = vunpack.c.l.b16 %v10895
    %v11056 = vunpack.c.l.b16 %v10896
    %v11057 = vunpack.c.l.b16 %v10897
    %v11058 = vunpack.c.l.b16 %v10898
    %v11059 = vunpack.c.l.b16 %v10899
    %v11060 = vunpack.c.l.b16 %v10900
    %v11061 = vunpack.c.l.b16 %v10901
    %v11062 = vunpack.c.l.b16 %v10902
    %v11063 = vunpack.c.l.b16 %v10903
    %v11064 = vunpack.c.l.b16 %v10904
    %v11065 = vunpack.c.l.b16 %v10905
    %v11066 = vunpack.c.l.b16 %v10906
    %v11067 = vunpack.c.l.b16 %v10907
    %v11068 = vunpack.c.l.b16 %v10908
    %v11069 = vunpack.c.l.b16 %v10909
    %v11070 = vunpack.c.l.b16 %v10910
    %v11071 = vunpack.c.l.b16 %v10911
    %v11072 = vunpack.c.l.b16 %v10912
    %v11073 = vunpack.c.l.b16 %v10913
    %v11074 = vunpack.c.l.b16 %v10914
    %v11075 = vunpack.c.l.b16 %v10915
    %v11076 = vunpack.c.l.b16 %v10916
    %v11077 = vunpack.c.l.b16 %v10917
    %v11078 = vunpack.c.l.b16 %v10918
    %v11079 = vunpack.c.l.b16 %v10919
    %v11080 = vunpack.c.l.b16 %v10920
    %v11081 = vunpack.c.l.b16 %v10921
    %v11082 = vunpack.c.l.b16 %v10922
    %v11083 = vunpack.c.l.b16 %v10923
    %v11084 = vunpack.c.l.b16 %v10924
    %v11085 = vunpack.c.l.b16 %v10925
    %v11086 = vunpack.c.l.b16 %v10926
    %v11087 = vunpack.c.l.b16 %v10927
    %v11088 = vunpack.c.l.b16 %v10928
    %v11089 = vunpack.c.l.b16 %v10929
    %v11090 = vunpack.c.l.b16 %v10930
    %v11091 = vunpack.c.l.b16 %v10931
    %v11092 = vunpack.c.l.b16 %v10932
    %v11093 = vunpack.c.l.b16 %v10933
    %v11094 = vunpack.c.l.b16 %v10934
    %v11095 = vunpack.c.l.b16 %v10935
    %v11096 = vunpack.c.l.b16 %v10936
    %v11097 = vunpack.c.l.b16 %v10937
    %v11098 = vunpack.c.l.b16 %v10938
    %v11099 = vunpack.c.l.b16 %v10939
    %v11100 = vunpack.c.l.b16 %v10940
    %v11101 = vunpack.c.l.b16 %v10941
    %v11102 = vunpack.c.l.b16 %v10942
    %v11103 = vunpack.c.l.b16 %v10943
    %v11104 = vunpack.c.l.b16 %v10944
    %v11105 = vunpack.c.l.b16 %v10945
    %v11106 = vunpack.c.l.b16 %v10946
    %v11107 = vpack.c.b16 %v11044, %v11043
    %v11108 = vpack.c.b16 %v11046, %v11045
    %v11109 = vpack.c.b16 %v11048, %v11047
    %v11110 = vpack.c.b16 %v11050, %v11049
    %v11111 = vpack.c.b16 %v11052, %v11051
    %v11112 = vpack.c.b16 %v11054, %v11053
    %v11113 = vpack.c.b16 %v11056, %v11055
    %v11114 = vpack.c.b16 %v11058, %v11057
    %v11115 = vpack.c.b16 %v11060, %v11059
    %v11116 = vpack.c.b16 %v11062, %v11061
    %v11117 = vpack.c.b16 %v11064, %v11063
    %v11118 = vpack.c.b16 %v11066, %v11065
    %v11119 = vpack.c.b16 %v11068, %v11067
    %v11120 = vpack.c.b16 %v11070, %v11069
    %v11121 = vpack.c.b16 %v11072, %v11071
    %v11122 = vpack.c.b16 %v11074, %v11073
    %v11123 = vpack.c.b16 %v11076, %v11075
    %v11124 = vpack.c.b16 %v11078, %v11077
    %v11125 = vpack.c.b16 %v11080, %v11079
    %v11126 = vpack.c.b16 %v11082, %v11081
    %v11127 = vpack.c.b16 %v11084, %v11083
    %v11128 = vpack.c.b16 %v11086, %v11085
    %v11129 = vpack.c.b16 %v11088, %v11087
    %v11130 = vpack.c.b16 %v11090, %v11089
    %v11131 = vpack.c.b16 %v11092, %v11091
    %v11132 = vpack.c.b16 %v11094, %v11093
    %v11133 = vpack.c.b16 %v11096, %v11095
    %v11134 = vpack.c.b16 %v11098, %v11097
    %v11135 = vpack.c.b16 %v11100, %v11099
    %v11136 = vpack.c.b16 %v11102, %v11101
    %v11137 = vpack.c.b16 %v11104, %v11103
    %v11138 = vpack.c.b16 %v11106, %v11105
    %11171 = vmatprep.subr.bf16.mxu0 0
    %11172 = vmatpush1.bf16.msra.mxu0 %v11107
    %11173 = vmatprep.subr.bf16.mxu0 0
    %11174 = vmatpush1.bf16.msra.mxu0 %v11108
    %11175 = vmatprep.subr.bf16.mxu0 0
    %11176 = vmatpush1.bf16.msra.mxu0 %v11109
    %11177 = vmatprep.subr.bf16.mxu0 0
    %11178 = vmatpush1.bf16.msra.mxu0 %v11110
    %11179 = vmatprep.subr.bf16.mxu0 0
    %11180 = vmatpush1.bf16.msra.mxu0 %v11111
    %11181 = vmatprep.subr.bf16.mxu0 0
    %11182 = vmatpush1.bf16.msra.mxu0 %v11112
    %11183 = vmatprep.subr.bf16.mxu0 0
    %11184 = vmatpush1.bf16.msra.mxu0 %v11113
    %11185 = vmatprep.subr.bf16.mxu0 0
    %11186 = vmatpush1.bf16.msra.mxu0 %v11114
    %11187 = vmatprep.subr.bf16.mxu0 0
    %11188 = vmatpush1.bf16.msra.mxu0 %v11115
    %11189 = vmatprep.subr.bf16.mxu0 0
    %11190 = vmatpush1.bf16.msra.mxu0 %v11116
    %11191 = vmatprep.subr.bf16.mxu0 0
    %11192 = vmatpush1.bf16.msra.mxu0 %v11117
    %11193 = vmatprep.subr.bf16.mxu0 0
    %11194 = vmatpush1.bf16.msra.mxu0 %v11118
    %11195 = vmatprep.subr.bf16.mxu0 0
    %11196 = vmatpush1.bf16.msra.mxu0 %v11119
    %11197 = vmatprep.subr.bf16.mxu0 0
    %11198 = vmatpush1.bf16.msra.mxu0 %v11120
    %11199 = vmatprep.subr.bf16.mxu0 0
    %11200 = vmatpush1.bf16.msra.mxu0 %v11121
    %11201 = vmatprep.subr.bf16.mxu0 0
    %11202 = vmatpush1.bf16.msra.mxu0 %v11122
    %11203 = vmatprep.mubr.bf16.mxu0 %v10972
    %11204 = vmatmul.mubr.bf16.gmra.mrb[0].mxu0 %v10971
    %v11205 = vpop.f32.mrb[0].mxu0
    %v11206 = vadd.f32 0.0, %v11205
    %v11207 = vpop.f32.mrb[0].mxu0
    %v11208 = vpop.f32.mrb[0].mxu0
    %v11209 = vpop.f32.mrb[0].mxu0
    %11210 = vdwg.mxu0
    %11211 = vmatprep.subr.bf16.mxu0 0
    %11212 = vmatpush1.bf16.msra.mxu0 %v11123
    %11213 = vmatprep.subr.bf16.mxu0 0
    %11214 = vmatpush1.bf16.msra.mxu0 %v11124
    %11215 = vmatprep.subr.bf16.mxu0 0
    %11216 = vmatpush1.bf16.msra.mxu0 %v11125
    %11217 = vmatprep.subr.bf16.mxu0 0
    %11218 = vmatpush1.bf16.msra.mxu0 %v11126
    %11219 = vmatprep.subr.bf16.mxu0 0
    %11220 = vmatpush1.bf16.msra.mxu0 %v11127
    %11221 = vmatprep.subr.bf16.mxu0 0
    %11222 = vmatpush1.bf16.msra.mxu0 %v11128
    %11223 = vmatprep.subr.bf16.mxu0 0
    %11224 = vmatpush1.bf16.msra.mxu0 %v11129
    %11225 = vmatprep.subr.bf16.mxu0 0
    %11226 = vmatpush1.bf16.msra.mxu0 %v11130
    %11227 = vmatprep.subr.bf16.mxu0 0
    %11228 = vmatpush1.bf16.msra.mxu0 %v11131
    %11229 = vmatprep.subr.bf16.mxu0 0
    %11230 = vmatpush1.bf16.msra.mxu0 %v11132
    %11231 = vmatprep.subr.bf16.mxu0 0
    %11232 = vmatpush1.bf16.msra.mxu0 %v11133
    %11233 = vmatprep.subr.bf16.mxu0 0
    %11234 = vmatpush1.bf16.msra.mxu0 %v11134
    %11235 = vmatprep.subr.bf16.mxu0 0
    %11236 = vmatpush1.bf16.msra.mxu0 %v11135
    %11237 = vmatprep.subr.bf16.mxu0 0
    %11238 = vmatpush1.bf16.msra.mxu0 %v11136
    %11239 = vmatprep.subr.bf16.mxu0 0
    %11240 = vmatpush1.bf16.msra.mxu0 %v11137
    %11241 = vmatprep.subr.bf16.mxu0 0
    %11242 = vmatpush1.bf16.msra.mxu0 %v11138
    %11243 = vmatprep.mubr.bf16.mxu0 %v10974
    %11244 = vmatmul.mubr.bf16.gmra.mrb[0].mxu0 %v10973
    %v11245 = vpop.f32.mrb[0].mxu0
    %v11246 = vadd.f32 %v11206, %v11245
    %v11247 = vpop.f32.mrb[0].mxu0
    %v11248 = vpop.f32.mrb[0].mxu0
    %v11249 = vpop.f32.mrb[0].mxu0
    %11250 = vdwg.mxu0
    %v11251 = vadd.f32 %v10833, %v11246
    %v11252 = vld [vmem:[#allocation17] sm:$0x1]
    %v11254 = vlaneseq
    %v11255 = vshrl.u32 %v11254, 7
    %v11256 = vsub.s32 0, %v11255
    %v11257 = vrot.slane %v11252, %v11256
    %v11259 = vadd.f32 %v11251, %v11257
    %11260 = vst [vmem:[#allocation19] sm:$0x3] %v11259
    // Predicated region
    $region70: #{encoder_forward.1} parent=1 // pred_check
      _
    $region71: #{encoder_forward.1} parent=1 // pred_check_branch
      %11262 = sbr.rel (0) target = $region73
    $region72: #{encoder_forward.1} parent=1 // pred_region
      %s11264 = ssub.s32 32, 32
      %11265 = vsyncadd [#allocation7], %s11264
      %s11267 = sshll.u32 [#allocation19], 4
      %s11268 = int_to_ptr.vmem [resolvable:$true] %s11267
      %11270 = dma.vmem_to_hbm [thread:$0]  %s11268, 32, %s9, [#allocation7]
    $region73: #{encoder_forward.1} parent=1 // pred_fallthru
      _
    // Predicated region
    $region74: #{encoder_forward.1} parent=1 // pred_check
      _
    $region75: #{encoder_forward.1} parent=1 // pred_check_branch
      %11272 = sbr.rel (0) target = $region77
    $region76: #{encoder_forward.1} parent=1 // pred_region
      %11273 = dma.done [#allocation7], 32
    $region77: #{encoder_forward.1} parent=1 // pred_fallthru
      _
    %11274 = vsyncpa [#allocation6], 1
    %11275 = vsyncpa [#allocation9], 1
    %11276 = vsyncpa [#allocation12], 1
    %11277 = vsyncpa [#allocation15], 1
    %11278 = vsyncpa [#allocation18], 1
    %11279 = vsyncpa [#allocation7], 1

</llo_original>
